<compile_context>
chip_gen: v6e
topology: v6e:2x2x1
jax: 0.10.0
libtpu: 0.0.40
codegen_flags: <defaults>
</compile_context>

<pallas_src>
import functools

import jax
import jax.numpy as jnp
from jax import lax
from jax.experimental import pallas as pl
from jax.experimental.pallas import tpu as pltpu


# --------------------------------------------------------------------------
# Weight preprocessing (tiny, once per stage, plain XLA): expand the
# (3,3,3,Cin,Cout) kernel into 3 banded matrices wb[kd] of shape
# (Hp*Wp*Cin, H*W*Cout) with
#   wb[kd][((h+kh)*Wp+(w+kw))*Cin+ci, (h*W+w)*Cout+co] = w[kd,kh,kw,ci,co]
# so that conv(x)[d] == sum_kd  x_pad_row[d+kd] @ wb[kd].
# --------------------------------------------------------------------------
def build_banded_weight(w_dhwio, H, W):
    Cin, Cout = int(w_dhwio.shape[3]), int(w_dhwio.shape[4])
    Hp, Wp = H + 2, W + 2
    kh, kw, ci, co, hh, ww = jnp.meshgrid(
        jnp.arange(3), jnp.arange(3), jnp.arange(Cin), jnp.arange(Cout),
        jnp.arange(H), jnp.arange(W), indexing="ij")
    rows = ((hh + kh) * Wp + (ww + kw)) * Cin + ci
    cols = (hh * W + ww) * Cout + co
    vals = w_dhwio[:, kh, kw, ci, co]                    # (3, 3,3,Cin,Cout,H,W)
    wb = jnp.zeros((3, Hp * Wp * Cin, H * W * Cout), jnp.float32)
    return wb.at[:, rows, cols].set(vals)


# --------------------------------------------------------------------------
# Kernel 1: 3x3x3 conv (padded, lane-packed input) + per-sample column
# sum / sum-of-squares for BatchNorm.  Grid (N,), fully "parallel".
# --------------------------------------------------------------------------
def conv3d_stats_kernel(x_ref, wb_ref, out_ref, sum_ref, sumsq_ref, *, blk_d):
    # x_ref   : (1, D+2, Hp*Wp*Cin)   zero-padded, lane-packed sample
    # wb_ref  : (3, Hp*Wp*Cin, H*W*Cout)
    # out_ref : (1, D, H*W*Cout)
    # sum_ref / sumsq_ref : (1, 1, H*W*Cout)  per-sample column partials
    d_out = out_ref.shape[1]
    hwco = out_ref.shape[2]

    col_s = jnp.zeros((1, hwco), jnp.float32)
    col_ss = jnp.zeros((1, hwco), jnp.float32)

    for d0 in range(0, d_out, blk_d):                  # small, static trip count
        td = min(blk_d, d_out - d0)
        acc = jnp.dot(x_ref[0, d0:d0 + td, :], wb_ref[0],
                      preferred_element_type=jnp.float32)
        acc = acc + jnp.dot(x_ref[0, d0 + 1:d0 + 1 + td, :], wb_ref[1],
                            preferred_element_type=jnp.float32)
        acc = acc + jnp.dot(x_ref[0, d0 + 2:d0 + 2 + td, :], wb_ref[2],
                            preferred_element_type=jnp.float32)
        out_ref[0, d0:d0 + td, :] = acc                # lane-dense, 128-aligned
        col_s = col_s + jnp.sum(acc, axis=0, keepdims=True)
        col_ss = col_ss + jnp.sum(acc * acc, axis=0, keepdims=True)

    sum_ref[0] = col_s
    sumsq_ref[0] = col_ss


# --------------------------------------------------------------------------
# Kernel 2a: fused BN-affine + ReLU, writing straight into the zero-padded,
# lane-packed (1, D+2, Hp*Wp*C) buffer consumed by the next conv stage
# (removes the jnp.pad HBM round trip between stages).
# --------------------------------------------------------------------------
def affine_relu_pad_kernel(x_ref, scale_ref, shift_ref, o_ref, *, H, W, C):
    # x_ref : (1, D, H*W*C)   scale/shift : (1, H*W*C)   o_ref : (1, D+2, Hp*Wp*C)
    D = x_ref.shape[1]
    Wp = W + 2
    WC = W * C
    y = jnp.maximum(x_ref[0] * scale_ref[...] + shift_ref[...], 0.0)  # (D, H*W*C)
    o_ref[...] = jnp.zeros(o_ref.shape, o_ref.dtype)                  # zero border
    for h in range(H):
        dst = ((h + 1) * Wp + 1) * C
        o_ref[0, 1:1 + D, dst:dst + WC] = y[:, h * WC:(h + 1) * WC]


# --------------------------------------------------------------------------
# Kernel 2b: plain fused BN-affine + ReLU (final stage), lane-dense output.
# --------------------------------------------------------------------------
def affine_relu_kernel(x_ref, scale_ref, shift_ref, o_ref):
    o_ref[0] = jnp.maximum(x_ref[0] * scale_ref[...] + shift_ref[...], 0.0)


_MOSAIC = pltpu.CompilerParams(dimension_semantics=("parallel",),
                               vmem_limit_bytes=32 * 1024 * 1024)


# --------------------------------------------------------------------------
# One Conv3d(k=3,p=1) -> BatchNorm3d(train) -> ReLU stage.
#   x3 : (N, D+2, Hp*Wp*Cin)  padded, lane-packed activations
#   returns padded input for the next stage if pad_next, else (N, D, H*W*Cout)
# --------------------------------------------------------------------------
def conv_bn_relu_stage(x3, wb, gamma, beta, H, W, Cout, *, pad_next, eps=1e-5):
    N, Dp, K = x3.shape
    D = Dp - 2
    HWCo = H * W * Cout

    conv, colsum, colsumsq = pl.pallas_call(
        functools.partial(conv3d_stats_kernel, blk_d=min(D, 8)),
        out_shape=[
            jax.ShapeDtypeStruct((N, D, HWCo), jnp.float32),
            jax.ShapeDtypeStruct((N, 1, HWCo), jnp.float32),
            jax.ShapeDtypeStruct((N, 1, HWCo), jnp.float32),
        ],
        grid=(N,),
        in_specs=[
            pl.BlockSpec((1, Dp, K), lambda n: (n, 0, 0)),
            pl.BlockSpec((3, K, HWCo), lambda n: (0, 0, 0)),
        ],
        out_specs=[
            pl.BlockSpec((1, D, HWCo), lambda n: (n, 0, 0)),
            pl.BlockSpec((1, 1, HWCo), lambda n: (n, 0, 0)),
            pl.BlockSpec((1, 1, HWCo), lambda n: (n, 0, 0)),
        ],
        compiler_params=_MOSAIC,
    )(x3, wb)

    # Tiny per-channel glue: fold training-mode BatchNorm into scale/shift.
    # (E[x^2]-E[x]^2 is fine at these sizes; use shifted moments if scaled up.)
    csum = colsum.reshape(N, H * W, Cout).sum(axis=(0, 1))
    csumsq = colsumsq.reshape(N, H * W, Cout).sum(axis=(0, 1))
    count = float(N * D * H * W)
    mean = csum / count
    var = csumsq / count - mean * mean                 # biased var (PyTorch train)
    scale = gamma * lax.rsqrt(var + eps)
    shift = beta - mean * scale
    scale_t = jnp.tile(scale, H * W)[None, :]          # lane-periodic (1, H*W*Cout)
    shift_t = jnp.tile(shift, H * W)[None, :]

    in_specs = [
        pl.BlockSpec((1, D, HWCo), lambda n: (n, 0, 0)),
        pl.BlockSpec((1, HWCo), lambda n: (0, 0)),
        pl.BlockSpec((1, HWCo), lambda n: (0, 0)),
    ]

    if pad_next:
        Hp, Wp = H + 2, W + 2
        return pl.pallas_call(
            functools.partial(affine_relu_pad_kernel, H=H, W=W, C=Cout),
            out_shape=jax.ShapeDtypeStruct((N, D + 2, Hp * Wp * Cout), jnp.float32),
            grid=(N,),
            in_specs=in_specs,
            out_specs=pl.BlockSpec((1, D + 2, Hp * Wp * Cout), lambda n: (n, 0, 0)),
            compiler_params=_MOSAIC,
        )(conv, scale_t, shift_t)

    return pl.pallas_call(
        affine_relu_kernel,
        out_shape=jax.ShapeDtypeStruct((N, D, HWCo), jnp.float32),
        grid=(N,),
        in_specs=in_specs,
        out_specs=pl.BlockSpec((1, D, HWCo), lambda n: (n, 0, 0)),
        compiler_params=_MOSAIC,
    )(conv, scale_t, shift_t)


# --------------------------------------------------------------------------
# ConvBlock forward.  Input/output follow PyTorch NCDHW.
# (Conv biases cancel exactly under training-mode BN, so they are unused.)
# --------------------------------------------------------------------------
@jax.jit
def conv_block_forward(x_ncdhw, params):
    N, Cin, D, H, W = x_ncdhw.shape
    Cout = params["w1"].shape[-1]

    x = jnp.transpose(x_ncdhw, (0, 2, 3, 4, 1))        # NCDHW -> NDHWC
    x = jnp.pad(x, ((0, 0), (1, 1), (1, 1), (1, 1), (0, 0)))
    x3 = x.reshape(N, D + 2, (H + 2) * (W + 2) * Cin)  # lane-packed, padded

    wb1 = build_banded_weight(params["w1"], H, W)
    wb2 = build_banded_weight(params["w2"], H, W)

    h1 = conv_bn_relu_stage(x3, wb1, params["gamma1"], params["beta1"],
                            H, W, Cout, pad_next=True)   # (N, D+2, Hp*Wp*Cout)
    y = conv_bn_relu_stage(h1, wb2, params["gamma2"], params["beta2"],
                           H, W, Cout, pad_next=False)   # (N, D, H*W*Cout)

    y = y.reshape(N, D, H, W, Cout)
    return jnp.transpose(y, (0, 4, 1, 2, 3))             # NDHWC -> NCDHW


# --------------------------------------------------------------------------
# Pure-JAX reference (keeps the conv bias, which must cancel under BN).
# --------------------------------------------------------------------------
def ref_stage(x, w_dhwio, b, gamma, beta, eps=1e-5):
    y = lax.conv_general_dilated(
        x, w_dhwio, window_strides=(1, 1, 1), padding="SAME",
        dimension_numbers=("NDHWC", "DHWIO", "NDHWC")) + b
    mean = y.mean(axis=(0, 1, 2, 3))
    var = y.var(axis=(0, 1, 2, 3))
    yn = (y - mean) * lax.rsqrt(var + eps) * gamma + beta
    return jnp.maximum(yn, 0.0)


def ref_forward(x_ncdhw, p):
    x = jnp.transpose(x_ncdhw, (0, 2, 3, 4, 1))
    y = ref_stage(x, p["w1"], p["b1"], p["gamma1"], p["beta1"])
    y = ref_stage(y, p["w2"], p["b2"], p["gamma2"], p["beta2"])
    return jnp.transpose(y, (0, 4, 1, 2, 3))


if __name__ == "__main__":
    # ConvBlock(in_channels=4, out_channels=8, kernel_size=3, batch_norm=True)
    N, Cin, Cout = 2, 4, 8
    D = H = W = 8

    key = jax.random.PRNGKey(0)
    ks = jax.random.split(key, 9)

    params = {
        # weights stored DHWIO = (kd, kh, kw, Cin, Cout)
        "w1": 0.1 * jax.random.normal(ks[0], (3, 3, 3, Cin, Cout), jnp.float32),
        "b1": 0.1 * jax.random.normal(ks[1], (Cout,), jnp.float32),
        "gamma1": 1.0 + 0.1 * jax.random.normal(ks[2], (Cout,), jnp.float32),
        "beta1": 0.1 * jax.random.normal(ks[3], (Cout,), jnp.float32),
        "w2": 0.1 * jax.random.normal(ks[4], (3, 3, 3, Cout, Cout), jnp.float32),
        "b2": 0.1 * jax.random.normal(ks[5], (Cout,), jnp.float32),
        "gamma2": 1.0 + 0.1 * jax.random.normal(ks[6], (Cout,), jnp.float32),
        "beta2": 0.1 * jax.random.normal(ks[7], (Cout,), jnp.float32),
    }

    x = jax.random.normal(ks[8], (N, Cin, D, H, W), jnp.float32)

    out = conv_block_forward(x, params)
    out = jax.block_until_ready(out)

    ref = ref_forward(x, params)
    assert out.shape == (N, Cout, D, H, W)
    assert jnp.allclose(out, ref, rtol=1e-3, atol=1e-3), (
        float(jnp.max(jnp.abs(out - ref))))

    print("KERNEL_OK")
</pallas_src>

<mosaic_0001>
module attributes {stable_mosaic.version = 11 : i64} {
  func.func @conv3d_stats_kernel(%arg0: i32, %arg1: memref<1x10x400xf32, #tpu.memory_space<vmem>>, %arg2: memref<3x400x512xf32, #tpu.memory_space<vmem>>, %arg3: memref<1x8x512xf32, #tpu.memory_space<vmem>>, %arg4: memref<1x1x512xf32, #tpu.memory_space<vmem>>, %arg5: memref<1x1x512xf32, #tpu.memory_space<vmem>>) attributes {dimension_semantics = [#tpu.dimension_semantics<parallel>], iteration_bounds = array<i64: 2>, scalar_prefetch = 0 : i64, scratch_operands = 0 : i64, tpu.core_type = #tpu.core_type<tc>, window_params = [{transform_indices = @transform_0, window_bounds = array<i64: 1, 10, 400>}, {pipeline_mode = #tpu.pipeline_mode<synchronous>, transform_indices = @transform_1, window_bounds = array<i64: 3, 400, 512>}, {transform_indices = @transform_2, window_bounds = array<i64: 1, 8, 512>}, {transform_indices = @transform_3, window_bounds = array<i64: 1, 1, 512>}, {transform_indices = @transform_4, window_bounds = array<i64: 1, 1, 512>}]} {
    %cst = arith.constant 0.000000e+00 : f32
    %0 = vector.broadcast %cst : f32 to vector<1x512xf32>
    %cst_0 = arith.constant 0.000000e+00 : f32
    %1 = vector.broadcast %cst_0 : f32 to vector<1x512xf32>
    %c0 = arith.constant 0 : index
    %c0_1 = arith.constant 0 : index
    %c0_2 = arith.constant 0 : index
    %2 = vector.load %arg1[%c0, %c0_1, %c0_2] : memref<1x10x400xf32, #tpu.memory_space<vmem>>, vector<1x8x400xf32>
    %3 = vector.shape_cast %2 : vector<1x8x400xf32> to vector<8x400xf32>
    %c0_3 = arith.constant 0 : index
    %c0_4 = arith.constant 0 : index
    %c0_5 = arith.constant 0 : index
    %4 = vector.load %arg2[%c0_3, %c0_4, %c0_5] : memref<3x400x512xf32, #tpu.memory_space<vmem>>, vector<1x400x512xf32>
    %5 = vector.shape_cast %4 : vector<1x400x512xf32> to vector<400x512xf32>
    %cst_6 = arith.constant dense<0.000000e+00> : vector<8x512xf32>
    %6 = tpu.matmul %3, %5, %cst_6 {dimension_numbers = #tpu.dot_dimension_numbers<[1], [0], [0], [1], [0, 0, 1, 1], [], []>} : vector<8x400xf32>, vector<400x512xf32>, vector<8x512xf32> -> vector<8x512xf32>
    %c0_7 = arith.constant 0 : index
    %c1 = arith.constant 1 : index
    %c0_8 = arith.constant 0 : index
    %7 = vector.load %arg1[%c0_7, %c1, %c0_8] : memref<1x10x400xf32, #tpu.memory_space<vmem>>, vector<1x8x400xf32>
    %8 = vector.shape_cast %7 : vector<1x8x400xf32> to vector<8x400xf32>
    %c1_9 = arith.constant 1 : index
    %c0_10 = arith.constant 0 : index
    %c0_11 = arith.constant 0 : index
    %9 = vector.load %arg2[%c1_9, %c0_10, %c0_11] : memref<3x400x512xf32, #tpu.memory_space<vmem>>, vector<1x400x512xf32>
    %10 = vector.shape_cast %9 : vector<1x400x512xf32> to vector<400x512xf32>
    %cst_12 = arith.constant dense<0.000000e+00> : vector<8x512xf32>
    %11 = tpu.matmul %8, %10, %cst_12 {dimension_numbers = #tpu.dot_dimension_numbers<[1], [0], [0], [1], [0, 0, 1, 1], [], []>} : vector<8x400xf32>, vector<400x512xf32>, vector<8x512xf32> -> vector<8x512xf32>
    %12 = arith.addf %6, %11 : vector<8x512xf32>
    %c0_13 = arith.constant 0 : index
    %c2 = arith.constant 2 : index
    %c0_14 = arith.constant 0 : index
    %13 = vector.load %arg1[%c0_13, %c2, %c0_14] : memref<1x10x400xf32, #tpu.memory_space<vmem>>, vector<1x8x400xf32>
    %14 = vector.shape_cast %13 : vector<1x8x400xf32> to vector<8x400xf32>
    %c2_15 = arith.constant 2 : index
    %c0_16 = arith.constant 0 : index
    %c0_17 = arith.constant 0 : index
    %15 = vector.load %arg2[%c2_15, %c0_16, %c0_17] : memref<3x400x512xf32, #tpu.memory_space<vmem>>, vector<1x400x512xf32>
    %16 = vector.shape_cast %15 : vector<1x400x512xf32> to vector<400x512xf32>
    %cst_18 = arith.constant dense<0.000000e+00> : vector<8x512xf32>
    %17 = tpu.matmul %14, %16, %cst_18 {dimension_numbers = #tpu.dot_dimension_numbers<[1], [0], [0], [1], [0, 0, 1, 1], [], []>} : vector<8x400xf32>, vector<400x512xf32>, vector<8x512xf32> -> vector<8x512xf32>
    %18 = arith.addf %12, %17 : vector<8x512xf32>
    %c0_19 = arith.constant 0 : index
    %c0_20 = arith.constant 0 : index
    %c0_21 = arith.constant 0 : index
    %19 = vector.load %arg3[%c0_19, %c0_20, %c0_21] : memref<1x8x512xf32, #tpu.memory_space<vmem>>, vector<1x8x512xf32>
    %20 = vector.shape_cast %19 : vector<1x8x512xf32> to vector<8x512xf32>
    %21 = vector.shape_cast %18 : vector<8x512xf32> to vector<1x8x512xf32>
    tpu.vector_store %arg3[%c0_19, %c0_20, %c0_21], %21 {strides = array<i32>} : memref<1x8x512xf32, #tpu.memory_space<vmem>>, vector<1x8x512xf32>,
    %cst_22 = arith.constant dense<0.000000e+00> : vector<512xf32>
    %22 = vector.multi_reduction <add>, %18, %cst_22 [0] : vector<8x512xf32> to vector<512xf32>
    %23 = vector.shape_cast %22 : vector<512xf32> to vector<1x512xf32>
    %24 = arith.addf %0, %23 : vector<1x512xf32>
    %25 = arith.mulf %18, %18 : vector<8x512xf32>
    %cst_23 = arith.constant dense<0.000000e+00> : vector<512xf32>
    %26 = vector.multi_reduction <add>, %25, %cst_23 [0] : vector<8x512xf32> to vector<512xf32>
    %27 = vector.shape_cast %26 : vector<512xf32> to vector<1x512xf32>
    %28 = arith.addf %1, %27 : vector<1x512xf32>
    %c0_24 = arith.constant 0 : index
    %c0_25 = arith.constant 0 : index
    %c0_26 = arith.constant 0 : index
    %29 = vector.load %arg4[%c0_24, %c0_25, %c0_26] : memref<1x1x512xf32, #tpu.memory_space<vmem>>, vector<1x1x512xf32>
    %30 = vector.shape_cast %29 : vector<1x1x512xf32> to vector<1x512xf32>
    %31 = vector.shape_cast %24 : vector<1x512xf32> to vector<1x1x512xf32>
    tpu.vector_store %arg4[%c0_24, %c0_25, %c0_26], %31 {strides = array<i32>} : memref<1x1x512xf32, #tpu.memory_space<vmem>>, vector<1x1x512xf32>,
    %c0_27 = arith.constant 0 : index
    %c0_28 = arith.constant 0 : index
    %c0_29 = arith.constant 0 : index
    %32 = vector.load %arg5[%c0_27, %c0_28, %c0_29] : memref<1x1x512xf32, #tpu.memory_space<vmem>>, vector<1x1x512xf32>
    %33 = vector.shape_cast %32 : vector<1x1x512xf32> to vector<1x512xf32>
    %34 = vector.shape_cast %28 : vector<1x512xf32> to vector<1x1x512xf32>
    tpu.vector_store %arg5[%c0_27, %c0_28, %c0_29], %34 {strides = array<i32>} : memref<1x1x512xf32, #tpu.memory_space<vmem>>, vector<1x1x512xf32>,
    return
  }
  func.func @transform_0(%arg0: i32) -> (i32, i32, i32) {
    %c0_i32 = arith.constant 0 : i32
    %c0_i32_0 = arith.constant 0 : i32
    %c0_i32_1 = arith.constant 0 : i32
    return %arg0, %c0_i32, %c0_i32_0 : i32, i32, i32
  }
  func.func @transform_1(%arg0: i32) -> (i32, i32, i32) {
    %c0_i32 = arith.constant 0 : i32
    %c0_i32_0 = arith.constant 0 : i32
    %c0_i32_1 = arith.constant 0 : i32
    %c0_i32_2 = arith.constant 0 : i32
    return %c0_i32, %c0_i32_0, %c0_i32_1 : i32, i32, i32
  }
  func.func @transform_2(%arg0: i32) -> (i32, i32, i32) {
    %c0_i32 = arith.constant 0 : i32
    %c0_i32_0 = arith.constant 0 : i32
    %c0_i32_1 = arith.constant 0 : i32
    return %arg0, %c0_i32, %c0_i32_0 : i32, i32, i32
  }
  func.func @transform_3(%arg0: i32) -> (i32, i32, i32) {
    %c0_i32 = arith.constant 0 : i32
    %c0_i32_0 = arith.constant 0 : i32
    %c0_i32_1 = arith.constant 0 : i32
    return %arg0, %c0_i32, %c0_i32_0 : i32, i32, i32
  }
  func.func @transform_4(%arg0: i32) -> (i32, i32, i32) {
    %c0_i32 = arith.constant 0 : i32
    %c0_i32_0 = arith.constant 0 : i32
    %c0_i32_1 = arith.constant 0 : i32
    return %arg0, %c0_i32, %c0_i32_0 : i32, i32, i32
  }
}

module attributes {stable_mosaic.version = 11 : i64} {
  func.func @affine_relu_pad_kernel(%arg0: i32, %arg1: memref<1x8x512xf32, #tpu.memory_space<vmem>>, %arg2: memref<1x512xf32, #tpu.memory_space<vmem>>, %arg3: memref<1x512xf32, #tpu.memory_space<vmem>>, %arg4: memref<1x10x800xf32, #tpu.memory_space<vmem>>) attributes {dimension_semantics = [#tpu.dimension_semantics<parallel>], iteration_bounds = array<i64: 2>, scalar_prefetch = 0 : i64, scratch_operands = 0 : i64, tpu.core_type = #tpu.core_type<tc>, window_params = [{transform_indices = @transform_0, window_bounds = array<i64: 1, 8, 512>}, {pipeline_mode = #tpu.pipeline_mode<synchronous>, transform_indices = @transform_1, window_bounds = array<i64: 1, 512>}, {pipeline_mode = #tpu.pipeline_mode<synchronous>, transform_indices = @transform_2, window_bounds = array<i64: 1, 512>}, {transform_indices = @transform_3, window_bounds = array<i64: 1, 10, 800>}]} {
    %c0 = arith.constant 0 : index
    %c0_0 = arith.constant 0 : index
    %c0_1 = arith.constant 0 : index
    %0 = vector.load %arg1[%c0, %c0_0, %c0_1] : memref<1x8x512xf32, #tpu.memory_space<vmem>>, vector<1x8x512xf32>
    %1 = vector.shape_cast %0 : vector<1x8x512xf32> to vector<8x512xf32>
    %c0_2 = arith.constant 0 : index
    %c0_3 = arith.constant 0 : index
    %2 = vector.load %arg2[%c0_2, %c0_3] : memref<1x512xf32, #tpu.memory_space<vmem>>, vector<1x512xf32>
    %3 = vector.broadcast %2 : vector<1x512xf32> to vector<8x512xf32>
    %4 = arith.mulf %1, %3 : vector<8x512xf32>
    %c0_4 = arith.constant 0 : index
    %c0_5 = arith.constant 0 : index
    %5 = vector.load %arg3[%c0_4, %c0_5] : memref<1x512xf32, #tpu.memory_space<vmem>>, vector<1x512xf32>
    %6 = vector.broadcast %5 : vector<1x512xf32> to vector<8x512xf32>
    %7 = arith.addf %4, %6 : vector<8x512xf32>
    %cst = arith.constant 0.000000e+00 : f32
    %8 = vector.broadcast %cst : f32 to vector<8x512xf32>
    %9 = arith.maximumf %7, %8 : vector<8x512xf32>
    %cst_6 = arith.constant 0.000000e+00 : f32
    %10 = vector.broadcast %cst_6 : f32 to vector<1x10x800xf32>
    %c0_7 = arith.constant 0 : index
    %c0_8 = arith.constant 0 : index
    %c0_9 = arith.constant 0 : index
    %11 = vector.load %arg4[%c0_7, %c0_8, %c0_9] : memref<1x10x800xf32, #tpu.memory_space<vmem>>, vector<1x10x800xf32>
    tpu.vector_store %arg4[%c0_7, %c0_8, %c0_9], %10 {strides = array<i32>} : memref<1x10x800xf32, #tpu.memory_space<vmem>>, vector<1x10x800xf32>,
    %12 = vector.extract_strided_slice %9 {offsets = [0, 0], sizes = [8, 64], strides = [1, 1]} : vector<8x512xf32> to vector<8x64xf32>
    %c0_10 = arith.constant 0 : index
    %c1 = arith.constant 1 : index
    %c88 = arith.constant 88 : index
    %13 = vector.load %arg4[%c0_10, %c1, %c88] : memref<1x10x800xf32, #tpu.memory_space<vmem>>, vector<1x8x64xf32>
    %14 = vector.shape_cast %13 : vector<1x8x64xf32> to vector<8x64xf32>
    %15 = vector.shape_cast %12 : vector<8x64xf32> to vector<1x8x64xf32>
    tpu.vector_store %arg4[%c0_10, %c1, %c88], %15 {strides = array<i32>} : memref<1x10x800xf32, #tpu.memory_space<vmem>>, vector<1x8x64xf32>,
    %16 = vector.extract_strided_slice %9 {offsets = [0, 64], sizes = [8, 64], strides = [1, 1]} : vector<8x512xf32> to vector<8x64xf32>
    %c0_11 = arith.constant 0 : index
    %c1_12 = arith.constant 1 : index
    %c168 = arith.constant 168 : index
    %17 = vector.load %arg4[%c0_11, %c1_12, %c168] : memref<1x10x800xf32, #tpu.memory_space<vmem>>, vector<1x8x64xf32>
    %18 = vector.shape_cast %17 : vector<1x8x64xf32> to vector<8x64xf32>
    %19 = vector.shape_cast %16 : vector<8x64xf32> to vector<1x8x64xf32>
    tpu.vector_store %arg4[%c0_11, %c1_12, %c168], %19 {strides = array<i32>} : memref<1x10x800xf32, #tpu.memory_space<vmem>>, vector<1x8x64xf32>,
    %20 = vector.extract_strided_slice %9 {offsets = [0, 128], sizes = [8, 64], strides = [1, 1]} : vector<8x512xf32> to vector<8x64xf32>
    %c0_13 = arith.constant 0 : index
    %c1_14 = arith.constant 1 : index
    %c248 = arith.constant 248 : index
    %21 = vector.load %arg4[%c0_13, %c1_14, %c248] : memref<1x10x800xf32, #tpu.memory_space<vmem>>, vector<1x8x64xf32>
    %22 = vector.shape_cast %21 : vector<1x8x64xf32> to vector<8x64xf32>
    %23 = vector.shape_cast %20 : vector<8x64xf32> to vector<1x8x64xf32>
    tpu.vector_store %arg4[%c0_13, %c1_14, %c248], %23 {strides = array<i32>} : memref<1x10x800xf32, #tpu.memory_space<vmem>>, vector<1x8x64xf32>,
    %24 = vector.extract_strided_slice %9 {offsets = [0, 192], sizes = [8, 64], strides = [1, 1]} : vector<8x512xf32> to vector<8x64xf32>
    %c0_15 = arith.constant 0 : index
    %c1_16 = arith.constant 1 : index
    %c328 = arith.constant 328 : index
    %25 = vector.load %arg4[%c0_15, %c1_16, %c328] : memref<1x10x800xf32, #tpu.memory_space<vmem>>, vector<1x8x64xf32>
    %26 = vector.shape_cast %25 : vector<1x8x64xf32> to vector<8x64xf32>
    %27 = vector.shape_cast %24 : vector<8x64xf32> to vector<1x8x64xf32>
    tpu.vector_store %arg4[%c0_15, %c1_16, %c328], %27 {strides = array<i32>} : memref<1x10x800xf32, #tpu.memory_space<vmem>>, vector<1x8x64xf32>,
    %28 = vector.extract_strided_slice %9 {offsets = [0, 256], sizes = [8, 64], strides = [1, 1]} : vector<8x512xf32> to vector<8x64xf32>
    %c0_17 = arith.constant 0 : index
    %c1_18 = arith.constant 1 : index
    %c408 = arith.constant 408 : index
    %29 = vector.load %arg4[%c0_17, %c1_18, %c408] : memref<1x10x800xf32, #tpu.memory_space<vmem>>, vector<1x8x64xf32>
    %30 = vector.shape_cast %29 : vector<1x8x64xf32> to vector<8x64xf32>
    %31 = vector.shape_cast %28 : vector<8x64xf32> to vector<1x8x64xf32>
    tpu.vector_store %arg4[%c0_17, %c1_18, %c408], %31 {strides = array<i32>} : memref<1x10x800xf32, #tpu.memory_space<vmem>>, vector<1x8x64xf32>,
    %32 = vector.extract_strided_slice %9 {offsets = [0, 320], sizes = [8, 64], strides = [1, 1]} : vector<8x512xf32> to vector<8x64xf32>
    %c0_19 = arith.constant 0 : index
    %c1_20 = arith.constant 1 : index
    %c488 = arith.constant 488 : index
    %33 = vector.load %arg4[%c0_19, %c1_20, %c488] : memref<1x10x800xf32, #tpu.memory_space<vmem>>, vector<1x8x64xf32>
    %34 = vector.shape_cast %33 : vector<1x8x64xf32> to vector<8x64xf32>
    %35 = vector.shape_cast %32 : vector<8x64xf32> to vector<1x8x64xf32>
    tpu.vector_store %arg4[%c0_19, %c1_20, %c488], %35 {strides = array<i32>} : memref<1x10x800xf32, #tpu.memory_space<vmem>>, vector<1x8x64xf32>,
    %36 = vector.extract_strided_slice %9 {offsets = [0, 384], sizes = [8, 64], strides = [1, 1]} : vector<8x512xf32> to vector<8x64xf32>
    %c0_21 = arith.constant 0 : index
    %c1_22 = arith.constant 1 : index
    %c568 = arith.constant 568 : index
    %37 = vector.load %arg4[%c0_21, %c1_22, %c568] : memref<1x10x800xf32, #tpu.memory_space<vmem>>, vector<1x8x64xf32>
    %38 = vector.shape_cast %37 : vector<1x8x64xf32> to vector<8x64xf32>
    %39 = vector.shape_cast %36 : vector<8x64xf32> to vector<1x8x64xf32>
    tpu.vector_store %arg4[%c0_21, %c1_22, %c568], %39 {strides = array<i32>} : memref<1x10x800xf32, #tpu.memory_space<vmem>>, vector<1x8x64xf32>,
    %40 = vector.extract_strided_slice %9 {offsets = [0, 448], sizes = [8, 64], strides = [1, 1]} : vector<8x512xf32> to vector<8x64xf32>
    %c0_23 = arith.constant 0 : index
    %c1_24 = arith.constant 1 : index
    %c648 = arith.constant 648 : index
    %41 = vector.load %arg4[%c0_23, %c1_24, %c648] : memref<1x10x800xf32, #tpu.memory_space<vmem>>, vector<1x8x64xf32>
    %42 = vector.shape_cast %41 : vector<1x8x64xf32> to vector<8x64xf32>
    %43 = vector.shape_cast %40 : vector<8x64xf32> to vector<1x8x64xf32>
    tpu.vector_store %arg4[%c0_23, %c1_24, %c648], %43 {strides = array<i32>} : memref<1x10x800xf32, #tpu.memory_space<vmem>>, vector<1x8x64xf32>,
    return
  }
  func.func @transform_0(%arg0: i32) -> (i32, i32, i32) {
    %c0_i32 = arith.constant 0 : i32
    %c0_i32_0 = arith.constant 0 : i32
    %c0_i32_1 = arith.constant 0 : i32
    return %arg0, %c0_i32, %c0_i32_0 : i32, i32, i32
  }
  func.func @transform_1(%arg0: i32) -> (i32, i32) {
    %c0_i32 = arith.constant 0 : i32
    %c0_i32_0 = arith.constant 0 : i32
    %c0_i32_1 = arith.constant 0 : i32
    return %c0_i32, %c0_i32_0 : i32, i32
  }
  func.func @transform_2(%arg0: i32) -> (i32, i32) {
    %c0_i32 = arith.constant 0 : i32
    %c0_i32_0 = arith.constant 0 : i32
    %c0_i32_1 = arith.constant 0 : i32
    return %c0_i32, %c0_i32_0 : i32, i32
  }
  func.func @transform_3(%arg0: i32) -> (i32, i32, i32) {
    %c0_i32 = arith.constant 0 : i32
    %c0_i32_0 = arith.constant 0 : i32
    %c0_i32_1 = arith.constant 0 : i32
    return %arg0, %c0_i32, %c0_i32_0 : i32, i32, i32
  }
}

module attributes {stable_mosaic.version = 11 : i64} {
  func.func @conv3d_stats_kernel(%arg0: i32, %arg1: memref<1x10x800xf32, #tpu.memory_space<vmem>>, %arg2: memref<3x800x512xf32, #tpu.memory_space<vmem>>, %arg3: memref<1x8x512xf32, #tpu.memory_space<vmem>>, %arg4: memref<1x1x512xf32, #tpu.memory_space<vmem>>, %arg5: memref<1x1x512xf32, #tpu.memory_space<vmem>>) attributes {dimension_semantics = [#tpu.dimension_semantics<parallel>], iteration_bounds = array<i64: 2>, scalar_prefetch = 0 : i64, scratch_operands = 0 : i64, tpu.core_type = #tpu.core_type<tc>, window_params = [{transform_indices = @transform_0, window_bounds = array<i64: 1, 10, 800>}, {pipeline_mode = #tpu.pipeline_mode<synchronous>, transform_indices = @transform_1, window_bounds = array<i64: 3, 800, 512>}, {transform_indices = @transform_2, window_bounds = array<i64: 1, 8, 512>}, {transform_indices = @transform_3, window_bounds = array<i64: 1, 1, 512>}, {transform_indices = @transform_4, window_bounds = array<i64: 1, 1, 512>}]} {
    %cst = arith.constant 0.000000e+00 : f32
    %0 = vector.broadcast %cst : f32 to vector<1x512xf32>
    %cst_0 = arith.constant 0.000000e+00 : f32
    %1 = vector.broadcast %cst_0 : f32 to vector<1x512xf32>
    %c0 = arith.constant 0 : index
    %c0_1 = arith.constant 0 : index
    %c0_2 = arith.constant 0 : index
    %2 = vector.load %arg1[%c0, %c0_1, %c0_2] : memref<1x10x800xf32, #tpu.memory_space<vmem>>, vector<1x8x800xf32>
    %3 = vector.shape_cast %2 : vector<1x8x800xf32> to vector<8x800xf32>
    %c0_3 = arith.constant 0 : index
    %c0_4 = arith.constant 0 : index
    %c0_5 = arith.constant 0 : index
    %4 = vector.load %arg2[%c0_3, %c0_4, %c0_5] : memref<3x800x512xf32, #tpu.memory_space<vmem>>, vector<1x800x512xf32>
    %5 = vector.shape_cast %4 : vector<1x800x512xf32> to vector<800x512xf32>
    %cst_6 = arith.constant dense<0.000000e+00> : vector<8x512xf32>
    %6 = tpu.matmul %3, %5, %cst_6 {dimension_numbers = #tpu.dot_dimension_numbers<[1], [0], [0], [1], [0, 0, 1, 1], [], []>} : vector<8x800xf32>, vector<800x512xf32>, vector<8x512xf32> -> vector<8x512xf32>
    %c0_7 = arith.constant 0 : index
    %c1 = arith.constant 1 : index
    %c0_8 = arith.constant 0 : index
    %7 = vector.load %arg1[%c0_7, %c1, %c0_8] : memref<1x10x800xf32, #tpu.memory_space<vmem>>, vector<1x8x800xf32>
    %8 = vector.shape_cast %7 : vector<1x8x800xf32> to vector<8x800xf32>
    %c1_9 = arith.constant 1 : index
    %c0_10 = arith.constant 0 : index
    %c0_11 = arith.constant 0 : index
    %9 = vector.load %arg2[%c1_9, %c0_10, %c0_11] : memref<3x800x512xf32, #tpu.memory_space<vmem>>, vector<1x800x512xf32>
    %10 = vector.shape_cast %9 : vector<1x800x512xf32> to vector<800x512xf32>
    %cst_12 = arith.constant dense<0.000000e+00> : vector<8x512xf32>
    %11 = tpu.matmul %8, %10, %cst_12 {dimension_numbers = #tpu.dot_dimension_numbers<[1], [0], [0], [1], [0, 0, 1, 1], [], []>} : vector<8x800xf32>, vector<800x512xf32>, vector<8x512xf32> -> vector<8x512xf32>
    %12 = arith.addf %6, %11 : vector<8x512xf32>
    %c0_13 = arith.constant 0 : index
    %c2 = arith.constant 2 : index
    %c0_14 = arith.constant 0 : index
    %13 = vector.load %arg1[%c0_13, %c2, %c0_14] : memref<1x10x800xf32, #tpu.memory_space<vmem>>, vector<1x8x800xf32>
    %14 = vector.shape_cast %13 : vector<1x8x800xf32> to vector<8x800xf32>
    %c2_15 = arith.constant 2 : index
    %c0_16 = arith.constant 0 : index
    %c0_17 = arith.constant 0 : index
    %15 = vector.load %arg2[%c2_15, %c0_16, %c0_17] : memref<3x800x512xf32, #tpu.memory_space<vmem>>, vector<1x800x512xf32>
    %16 = vector.shape_cast %15 : vector<1x800x512xf32> to vector<800x512xf32>
    %cst_18 = arith.constant dense<0.000000e+00> : vector<8x512xf32>
    %17 = tpu.matmul %14, %16, %cst_18 {dimension_numbers = #tpu.dot_dimension_numbers<[1], [0], [0], [1], [0, 0, 1, 1], [], []>} : vector<8x800xf32>, vector<800x512xf32>, vector<8x512xf32> -> vector<8x512xf32>
    %18 = arith.addf %12, %17 : vector<8x512xf32>
    %c0_19 = arith.constant 0 : index
    %c0_20 = arith.constant 0 : index
    %c0_21 = arith.constant 0 : index
    %19 = vector.load %arg3[%c0_19, %c0_20, %c0_21] : memref<1x8x512xf32, #tpu.memory_space<vmem>>, vector<1x8x512xf32>
    %20 = vector.shape_cast %19 : vector<1x8x512xf32> to vector<8x512xf32>
    %21 = vector.shape_cast %18 : vector<8x512xf32> to vector<1x8x512xf32>
    tpu.vector_store %arg3[%c0_19, %c0_20, %c0_21], %21 {strides = array<i32>} : memref<1x8x512xf32, #tpu.memory_space<vmem>>, vector<1x8x512xf32>,
    %cst_22 = arith.constant dense<0.000000e+00> : vector<512xf32>
    %22 = vector.multi_reduction <add>, %18, %cst_22 [0] : vector<8x512xf32> to vector<512xf32>
    %23 = vector.shape_cast %22 : vector<512xf32> to vector<1x512xf32>
    %24 = arith.addf %0, %23 : vector<1x512xf32>
    %25 = arith.mulf %18, %18 : vector<8x512xf32>
    %cst_23 = arith.constant dense<0.000000e+00> : vector<512xf32>
    %26 = vector.multi_reduction <add>, %25, %cst_23 [0] : vector<8x512xf32> to vector<512xf32>
    %27 = vector.shape_cast %26 : vector<512xf32> to vector<1x512xf32>
    %28 = arith.addf %1, %27 : vector<1x512xf32>
    %c0_24 = arith.constant 0 : index
    %c0_25 = arith.constant 0 : index
    %c0_26 = arith.constant 0 : index
    %29 = vector.load %arg4[%c0_24, %c0_25, %c0_26] : memref<1x1x512xf32, #tpu.memory_space<vmem>>, vector<1x1x512xf32>
    %30 = vector.shape_cast %29 : vector<1x1x512xf32> to vector<1x512xf32>
    %31 = vector.shape_cast %24 : vector<1x512xf32> to vector<1x1x512xf32>
    tpu.vector_store %arg4[%c0_24, %c0_25, %c0_26], %31 {strides = array<i32>} : memref<1x1x512xf32, #tpu.memory_space<vmem>>, vector<1x1x512xf32>,
    %c0_27 = arith.constant 0 : index
    %c0_28 = arith.constant 0 : index
    %c0_29 = arith.constant 0 : index
    %32 = vector.load %arg5[%c0_27, %c0_28, %c0_29] : memref<1x1x512xf32, #tpu.memory_space<vmem>>, vector<1x1x512xf32>
    %33 = vector.shape_cast %32 : vector<1x1x512xf32> to vector<1x512xf32>
    %34 = vector.shape_cast %28 : vector<1x512xf32> to vector<1x1x512xf32>
    tpu.vector_store %arg5[%c0_27, %c0_28, %c0_29], %34 {strides = array<i32>} : memref<1x1x512xf32, #tpu.memory_space<vmem>>, vector<1x1x512xf32>,
    return
  }
  func.func @transform_0(%arg0: i32) -> (i32, i32, i32) {
    %c0_i32 = arith.constant 0 : i32
    %c0_i32_0 = arith.constant 0 : i32
    %c0_i32_1 = arith.constant 0 : i32
    return %arg0, %c0_i32, %c0_i32_0 : i32, i32, i32
  }
  func.func @transform_1(%arg0: i32) -> (i32, i32, i32) {
    %c0_i32 = arith.constant 0 : i32
    %c0_i32_0 = arith.constant 0 : i32
    %c0_i32_1 = arith.constant 0 : i32
    %c0_i32_2 = arith.constant 0 : i32
    return %c0_i32, %c0_i32_0, %c0_i32_1 : i32, i32, i32
  }
  func.func @transform_2(%arg0: i32) -> (i32, i32, i32) {
    %c0_i32 = arith.constant 0 : i32
    %c0_i32_0 = arith.constant 0 : i32
    %c0_i32_1 = arith.constant 0 : i32
    return %arg0, %c0_i32, %c0_i32_0 : i32, i32, i32
  }
  func.func @transform_3(%arg0: i32) -> (i32, i32, i32) {
    %c0_i32 = arith.constant 0 : i32
    %c0_i32_0 = arith.constant 0 : i32
    %c0_i32_1 = arith.constant 0 : i32
    return %arg0, %c0_i32, %c0_i32_0 : i32, i32, i32
  }
  func.func @transform_4(%arg0: i32) -> (i32, i32, i32) {
    %c0_i32 = arith.constant 0 : i32
    %c0_i32_0 = arith.constant 0 : i32
    %c0_i32_1 = arith.constant 0 : i32
    return %arg0, %c0_i32, %c0_i32_0 : i32, i32, i32
  }
}

module attributes {stable_mosaic.version = 11 : i64} {
  func.func @affine_relu_kernel(%arg0: i32, %arg1: memref<1x8x512xf32, #tpu.memory_space<vmem>>, %arg2: memref<1x512xf32, #tpu.memory_space<vmem>>, %arg3: memref<1x512xf32, #tpu.memory_space<vmem>>, %arg4: memref<1x8x512xf32, #tpu.memory_space<vmem>>) attributes {dimension_semantics = [#tpu.dimension_semantics<parallel>], iteration_bounds = array<i64: 2>, scalar_prefetch = 0 : i64, scratch_operands = 0 : i64, tpu.core_type = #tpu.core_type<tc>, window_params = [{transform_indices = @transform_0, window_bounds = array<i64: 1, 8, 512>}, {pipeline_mode = #tpu.pipeline_mode<synchronous>, transform_indices = @transform_1, window_bounds = array<i64: 1, 512>}, {pipeline_mode = #tpu.pipeline_mode<synchronous>, transform_indices = @transform_2, window_bounds = array<i64: 1, 512>}, {transform_indices = @transform_3, window_bounds = array<i64: 1, 8, 512>}]} {
    %c0 = arith.constant 0 : index
    %c0_0 = arith.constant 0 : index
    %c0_1 = arith.constant 0 : index
    %0 = vector.load %arg1[%c0, %c0_0, %c0_1] : memref<1x8x512xf32, #tpu.memory_space<vmem>>, vector<1x8x512xf32>
    %1 = vector.shape_cast %0 : vector<1x8x512xf32> to vector<8x512xf32>
    %c0_2 = arith.constant 0 : index
    %c0_3 = arith.constant 0 : index
    %2 = vector.load %arg2[%c0_2, %c0_3] : memref<1x512xf32, #tpu.memory_space<vmem>>, vector<1x512xf32>
    %3 = vector.broadcast %2 : vector<1x512xf32> to vector<8x512xf32>
    %4 = arith.mulf %1, %3 : vector<8x512xf32>
    %c0_4 = arith.constant 0 : index
    %c0_5 = arith.constant 0 : index
    %5 = vector.load %arg3[%c0_4, %c0_5] : memref<1x512xf32, #tpu.memory_space<vmem>>, vector<1x512xf32>
    %6 = vector.broadcast %5 : vector<1x512xf32> to vector<8x512xf32>
    %7 = arith.addf %4, %6 : vector<8x512xf32>
    %cst = arith.constant 0.000000e+00 : f32
    %8 = vector.broadcast %cst : f32 to vector<8x512xf32>
    %9 = arith.maximumf %7, %8 : vector<8x512xf32>
    %c0_6 = arith.constant 0 : index
    %c0_7 = arith.constant 0 : index
    %c0_8 = arith.constant 0 : index
    %10 = vector.load %arg4[%c0_6, %c0_7, %c0_8] : memref<1x8x512xf32, #tpu.memory_space<vmem>>, vector<1x8x512xf32>
    %11 = vector.shape_cast %10 : vector<1x8x512xf32> to vector<8x512xf32>
    %12 = vector.shape_cast %9 : vector<8x512xf32> to vector<1x8x512xf32>
    tpu.vector_store %arg4[%c0_6, %c0_7, %c0_8], %12 {strides = array<i32>} : memref<1x8x512xf32, #tpu.memory_space<vmem>>, vector<1x8x512xf32>,
    return
  }
  func.func @transform_0(%arg0: i32) -> (i32, i32, i32) {
    %c0_i32 = arith.constant 0 : i32
    %c0_i32_0 = arith.constant 0 : i32
    %c0_i32_1 = arith.constant 0 : i32
    return %arg0, %c0_i32, %c0_i32_0 : i32, i32, i32
  }
  func.func @transform_1(%arg0: i32) -> (i32, i32) {
    %c0_i32 = arith.constant 0 : i32
    %c0_i32_0 = arith.constant 0 : i32
    %c0_i32_1 = arith.constant 0 : i32
    return %c0_i32, %c0_i32_0 : i32, i32
  }
  func.func @transform_2(%arg0: i32) -> (i32, i32) {
    %c0_i32 = arith.constant 0 : i32
    %c0_i32_0 = arith.constant 0 : i32
    %c0_i32_1 = arith.constant 0 : i32
    return %c0_i32, %c0_i32_0 : i32, i32
  }
  func.func @transform_3(%arg0: i32) -> (i32, i32, i32) {
    %c0_i32 = arith.constant 0 : i32
    %c0_i32_0 = arith.constant 0 : i32
    %c0_i32_1 = arith.constant 0 : i32
    return %arg0, %c0_i32, %c0_i32_0 : i32, i32, i32
  }
}

</mosaic_0001>

<llo_original>
// kernel: tile.23
$region0: #{tile.23}
  #allocation0 [shape = 's32[1]{0}', space=sflag, size = 0x4, scoped, tag = 'scoped memory for tile.23']
  %s0 = inlined_call_operand.vmem [shape: f32[8], index: 0, kind: input, shape index: {}]
  %s1 = inlined_call_operand.vmem [shape: f32[64,8], index: 1, kind: output, shape index: {}]
  // Predicated region
  $region2: #{tile.23} parent=0 // pred_check
    _
  $region3: #{tile.23} parent=0 // pred_check_branch
    %3 = sbr.rel (0) target = $region5
  $region4: #{tile.23} parent=0 // pred_region
    _
  $region5: #{tile.23} parent=0 // pred_fallthru
    _
  %v4 = vld [vmem:[%s0] ss:$0 sm:$0xff]
  %5 = vst [vmem:[%s1] sm:$0xff] %v4
  %s6 = scalar_lea.vmem %s1, 8
  %7 = vst [vmem:[%s6] sm:$0xff] %v4
  %s8 = scalar_lea.vmem %s1, 16
  %9 = vst [vmem:[%s8] sm:$0xff] %v4
  %s10 = scalar_lea.vmem %s1, 24
  %11 = vst [vmem:[%s10] sm:$0xff] %v4
  %s12 = scalar_lea.vmem %s1, 32
  %13 = vst [vmem:[%s12] sm:$0xff] %v4
  %s14 = scalar_lea.vmem %s1, 40
  %15 = vst [vmem:[%s14] sm:$0xff] %v4
  %s16 = scalar_lea.vmem %s1, 48
  %17 = vst [vmem:[%s16] sm:$0xff] %v4
  %s18 = scalar_lea.vmem %s1, 56
  %19 = vst [vmem:[%s18] sm:$0xff] %v4

// kernel: tile.24
$region0: #{tile.24}
  %s0 = inlined_call_operand.vmem [shape: f32[64,8], index: 0, kind: input, shape index: {}]
  %s1 = inlined_call_operand.vmem [shape: f32[1,512], index: 1, kind: output, shape index: {}]
  $region1: #{tile.24} parent=0
    #allocation0 [shape = 'u8[16384]{0}', space=vmem, size = 0x4000, scoped, tag = 'scoped mem for output reshape']
    %s2 = smov 3
    %v3 = vld [vmem:[%s0] ss:$16 sm:%s2]
    %s4 = smov 12
    %v5 = vld [vmem:[%s0] ss:$16 sm:%s4]
    %vm6 = vcmask 1043458
    %v7 = vsel %vm6, %v5, %v3
    %vm8 = vcmask 64512
    %9 = vst.msk [vmem:[#allocation0] ss:$8 sm:$0xf] %vm8, %v7
    %s10 = scalar_lea.vmem %s0, 15
    %s11 = smov 3
    %v12 = vld [vmem:[%s10] ss:$16 sm:%s11]
    %s13 = scalar_lea.vmem %s0, 15
    %s14 = smov 12
    %v15 = vld [vmem:[%s13] ss:$16 sm:%s14]
    %vm16 = vcmask 1043458
    %v17 = vsel %vm16, %v15, %v12
    %18 = vrot.lane.b32.xlu0 %v17, 120
    %v19 = vpop.permute.xlu0 %18
    %vm20 = vcmask 1048512
    %21 = vst.msk [vmem:[#allocation0] ss:$8 sm:$0xf] %vm20, %v19
    %s22 = scalar_lea.vmem %s0, 14
    %s23 = smov 3
    %v24 = vld [vmem:[%s22] ss:$16 sm:%s23]
    %s25 = scalar_lea.vmem %s0, 14
    %s26 = smov 12
    %v27 = vld [vmem:[%s25] ss:$16 sm:%s26]
    %vm28 = vcmask 1043458
    %v29 = vsel %vm28, %v27, %v24
    %30 = vrot.lane.b32.xlu0 %v29, 112
    %v31 = vpop.permute.xlu0 %30
    %vm32 = vcmask 982912
    %33 = vst.msk [vmem:[#allocation0] ss:$8 sm:$0xf] %vm32, %v31
    %s34 = scalar_lea.vmem %s0, 13
    %s35 = smov 3
    %v36 = vld [vmem:[%s34] ss:$16 sm:%s35]
    %s37 = scalar_lea.vmem %s0, 13
    %s38 = smov 12
    %v39 = vld [vmem:[%s37] ss:$16 sm:%s38]
    %vm40 = vcmask 1043458
    %v41 = vsel %vm40, %v39, %v36
    %42 = vrot.lane.b32.xlu0 %v41, 104
    %v43 = vpop.permute.xlu0 %42
    %vm44 = vcmask 917312
    %45 = vst.msk [vmem:[#allocation0] ss:$8 sm:$0xf] %vm44, %v43
    %s46 = scalar_lea.vmem %s0, 12
    %s47 = smov 3
    %v48 = vld [vmem:[%s46] ss:$16 sm:%s47]
    %s49 = scalar_lea.vmem %s0, 12
    %s50 = smov 12
    %v51 = vld [vmem:[%s49] ss:$16 sm:%s50]
    %vm52 = vcmask 1043458
    %v53 = vsel %vm52, %v51, %v48
    %54 = vrot.lane.b32.xlu0 %v53, 96
    %v55 = vpop.permute.xlu0 %54
    %vm56 = vcmask 851712
    %57 = vst.msk [vmem:[#allocation0] ss:$8 sm:$0xf] %vm56, %v55
    %s58 = scalar_lea.vmem %s0, 11
    %s59 = smov 3
    %v60 = vld [vmem:[%s58] ss:$16 sm:%s59]
    %s61 = scalar_lea.vmem %s0, 11
    %s62 = smov 12
    %v63 = vld [vmem:[%s61] ss:$16 sm:%s62]
    %vm64 = vcmask 1043458
    %v65 = vsel %vm64, %v63, %v60
    %66 = vrot.lane.b32.xlu0 %v65, 88
    %v67 = vpop.permute.xlu0 %66
    %vm68 = vcmask 786112
    %69 = vst.msk [vmem:[#allocation0] ss:$8 sm:$0xf] %vm68, %v67
    %s70 = scalar_lea.vmem %s0, 10
    %s71 = smov 3
    %v72 = vld [vmem:[%s70] ss:$16 sm:%s71]
    %s73 = scalar_lea.vmem %s0, 10
    %s74 = smov 12
    %v75 = vld [vmem:[%s73] ss:$16 sm:%s74]
    %vm76 = vcmask 1043458
    %v77 = vsel %vm76, %v75, %v72
    %78 = vrot.lane.b32.xlu0 %v77, 80
    %v79 = vpop.permute.xlu0 %78
    %vm80 = vcmask 720512
    %81 = vst.msk [vmem:[#allocation0] ss:$8 sm:$0xf] %vm80, %v79
    %s82 = scalar_lea.vmem %s0, 9
    %s83 = smov 3
    %v84 = vld [vmem:[%s82] ss:$16 sm:%s83]
    %s85 = scalar_lea.vmem %s0, 9
    %s86 = smov 12
    %v87 = vld [vmem:[%s85] ss:$16 sm:%s86]
    %vm88 = vcmask 1043458
    %v89 = vsel %vm88, %v87, %v84
    %90 = vrot.lane.b32.xlu0 %v89, 72
    %v91 = vpop.permute.xlu0 %90
    %vm92 = vcmask 654912
    %93 = vst.msk [vmem:[#allocation0] ss:$8 sm:$0xf] %vm92, %v91
    %s94 = scalar_lea.vmem %s0, 8
    %s95 = smov 3
    %v96 = vld [vmem:[%s94] ss:$16 sm:%s95]
    %s97 = scalar_lea.vmem %s0, 8
    %s98 = smov 12
    %v99 = vld [vmem:[%s97] ss:$16 sm:%s98]
    %vm100 = vcmask 1043458
    %v101 = vsel %vm100, %v99, %v96
    %102 = vrot.lane.b32.xlu0 %v101, 64
    %v103 = vpop.permute.xlu0 %102
    %vm104 = vcmask 589312
    %105 = vst.msk [vmem:[#allocation0] ss:$8 sm:$0xf] %vm104, %v103
    %s106 = scalar_lea.vmem %s0, 7
    %s107 = smov 3
    %v108 = vld [vmem:[%s106] ss:$16 sm:%s107]
    %s109 = scalar_lea.vmem %s0, 7
    %s110 = smov 12
    %v111 = vld [vmem:[%s109] ss:$16 sm:%s110]
    %vm112 = vcmask 1043458
    %v113 = vsel %vm112, %v111, %v108
    %114 = vrot.lane.b32.xlu0 %v113, 56
    %v115 = vpop.permute.xlu0 %114
    %vm116 = vcmask 523712
    %117 = vst.msk [vmem:[#allocation0] ss:$8 sm:$0xf] %vm116, %v115
    %s118 = scalar_lea.vmem %s0, 6
    %s119 = smov 3
    %v120 = vld [vmem:[%s118] ss:$16 sm:%s119]
    %s121 = scalar_lea.vmem %s0, 6
    %s122 = smov 12
    %v123 = vld [vmem:[%s121] ss:$16 sm:%s122]
    %vm124 = vcmask 1043458
    %v125 = vsel %vm124, %v123, %v120
    %126 = vrot.lane.b32.xlu0 %v125, 48
    %v127 = vpop.permute.xlu0 %126
    %vm128 = vcmask 458112
    %129 = vst.msk [vmem:[#allocation0] ss:$8 sm:$0xf] %vm128, %v127
    %s130 = scalar_lea.vmem %s0, 5
    %s131 = smov 3
    %v132 = vld [vmem:[%s130] ss:$16 sm:%s131]
    %s133 = scalar_lea.vmem %s0, 5
    %s134 = smov 12
    %v135 = vld [vmem:[%s133] ss:$16 sm:%s134]
    %vm136 = vcmask 1043458
    %v137 = vsel %vm136, %v135, %v132
    %138 = vrot.lane.b32.xlu0 %v137, 40
    %v139 = vpop.permute.xlu0 %138
    %vm140 = vcmask 392512
    %141 = vst.msk [vmem:[#allocation0] ss:$8 sm:$0xf] %vm140, %v139
    %s142 = scalar_lea.vmem %s0, 4
    %s143 = smov 3
    %v144 = vld [vmem:[%s142] ss:$16 sm:%s143]
    %s145 = scalar_lea.vmem %s0, 4
    %s146 = smov 12
    %v147 = vld [vmem:[%s145] ss:$16 sm:%s146]
    %vm148 = vcmask 1043458
    %v149 = vsel %vm148, %v147, %v144
    %150 = vrot.lane.b32.xlu0 %v149, 32
    %v151 = vpop.permute.xlu0 %150
    %vm152 = vcmask 326912
    %153 = vst.msk [vmem:[#allocation0] ss:$8 sm:$0xf] %vm152, %v151
    %s154 = scalar_lea.vmem %s0, 3
    %s155 = smov 3
    %v156 = vld [vmem:[%s154] ss:$16 sm:%s155]
    %s157 = scalar_lea.vmem %s0, 3
    %s158 = smov 12
    %v159 = vld [vmem:[%s157] ss:$16 sm:%s158]
    %vm160 = vcmask 1043458
    %v161 = vsel %vm160, %v159, %v156
    %162 = vrot.lane.b32.xlu0 %v161, 24
    %v163 = vpop.permute.xlu0 %162
    %vm164 = vcmask 261312
    %165 = vst.msk [vmem:[#allocation0] ss:$8 sm:$0xf] %vm164, %v163
    %s166 = scalar_lea.vmem %s0, 2
    %s167 = smov 3
    %v168 = vld [vmem:[%s166] ss:$16 sm:%s167]
    %s169 = scalar_lea.vmem %s0, 2
    %s170 = smov 12
    %v171 = vld [vmem:[%s169] ss:$16 sm:%s170]
    %vm172 = vcmask 1043458
    %v173 = vsel %vm172, %v171, %v168
    %174 = vrot.lane.b32.xlu0 %v173, 16
    %v175 = vpop.permute.xlu0 %174
    %vm176 = vcmask 195712
    %177 = vst.msk [vmem:[#allocation0] ss:$8 sm:$0xf] %vm176, %v175
    %s178 = scalar_lea.vmem %s0, 1
    %s179 = smov 3
    %v180 = vld [vmem:[%s178] ss:$16 sm:%s179]
    %s181 = scalar_lea.vmem %s0, 1
    %s182 = smov 12
    %v183 = vld [vmem:[%s181] ss:$16 sm:%s182]
    %vm184 = vcmask 1043458
    %v185 = vsel %vm184, %v183, %v180
    %186 = vrot.lane.b32.xlu0 %v185, 8
    %v187 = vpop.permute.xlu0 %186
    %vm188 = vcmask 130112
    %189 = vst.msk [vmem:[#allocation0] ss:$8 sm:$0xf] %vm188, %v187
    %s191 = sshll.u32 1, 1
    %s192 = ssub.s32 %s191, 1
    %v194 = vld [vmem:[#allocation0] sm:%s192]
    %s195 = sshll.u32 1, 1
    %s196 = ssub.s32 %s195, 1
    %197 = vst [vmem:[%s1] sm:%s196] %v194
    %s198 = scalar_lea.vmem [#allocation0], 8
    %v199 = vld [vmem:[%s198] sm:%s192]
    %s200 = sshll.u32 1, 1
    %s201 = ssub.s32 %s200, 1
    %s202 = scalar_lea.vmem %s1, 1
    %203 = vst [vmem:[%s202] sm:%s201] %v199
    %s204 = scalar_lea.vmem [#allocation0], 16
    %v205 = vld [vmem:[%s204] sm:%s192]
    %s206 = sshll.u32 1, 1
    %s207 = ssub.s32 %s206, 1
    %s208 = smul.addr 1, 2
    %s209 = scalar_lea.vmem %s1, %s208
    %210 = vst [vmem:[%s209] sm:%s207] %v205
    %s211 = scalar_lea.vmem [#allocation0], 24
    %v212 = vld [vmem:[%s211] sm:%s192]
    %s213 = sshll.u32 1, 1
    %s214 = ssub.s32 %s213, 1
    %s215 = smul.addr 1, 3
    %s216 = scalar_lea.vmem %s1, %s215
    %217 = vst [vmem:[%s216] sm:%s214] %v212

// kernel: conv_block_forward.5
$region0: #{conv_block_forward.5}
  #allocation0 [shape = 'u32[]', space=smem, size = 0x4, offset = 0x4, fixed_abs, tag = 'smem constant byte address 0x4 - core index']
  #allocation1 [shape = 'u32[144,128]{1,0:T(1,128)}', space=vmem, size = 0x12000, scoped, tag = 'internal scratch']
  %s0 = inlined_call_operand.vmem [shape: f32[2,8,512], index: 0, kind: input, shape index: {}]
  %s1 = inlined_call_operand.vmem [shape: f32[1,512], index: 1, kind: input, shape index: {}]
  %s2 = inlined_call_operand.vmem [shape: f32[1,512], index: 2, kind: input, shape index: {}]
  %s3 = inlined_call_operand.hbm [shape: f32[2,10,800], index: 3, kind: output, shape index: {}]
  %s4 = sld [smem:[#allocation0]]
  $region45: #{conv_block_forward.5} parent=0
    _
  %s6 = ssub.s32 1, %s4
  %s7 = scalar_select 0, %s6, %s4
  $region1: #{conv_block_forward.5} parent=0
    #allocation2 [shape = 'u8[114688]{0}', space=vmem, size = 0x1c000, scoped, tag = 'output window, operand 0']
    #allocation3 [shape = 's32[2]{0}', space=sflag, size = 0x8, scoped, tag = 'scoped memory for conv_block_forward.5']
    %8 = vsyncpa [#allocation3], 0
    %s9 = scalar_lea.sflag [#allocation3], 1
    %10 = vsyncpa %s9, 0
    loop: start=0, step=1, limit=4
    $region2: #{conv_block_forward.5} parent=1 // loop_pre_header
      _
    $region3: #{conv_block_forward.5} parent=1 // loop_header
      %s12 = sphi 0, %s16
      %p13 = scmp.ge.s32.totalorder %s12, 4
      %s22 = sphi 0, %s24
      %s25 = sphi 0, %s22
      %s26 = sphi 0, %s25
      %s42 = sphi 0, %s26
      %s46 = sphi 0, %s46
      %s48 = sphi 0, %s46
      %s49 = sphi 0, %s48
      %s63 = sphi 0, %s49
      %s67 = sphi 0, %s67
      %s69 = sphi 0, %s67
      %s70 = sphi 0, %s69
      %s84 = sphi 0, %s70
      %s90 = sphi 0, %s92
      %s93 = sphi 0, %s90
      %s94 = sphi 0, %s93
      %s110 = sphi 0, %s94
    $region4: #{conv_block_forward.5} parent=1 // loop_header_branch
      %15 = sbr.rel (%p13) target = $region8
    $region5: #{conv_block_forward.5} parent=1 // loop_body
      %s17 = ssub.s32 %s12, 1
      %s18 = ssub.s32 %s12, 2
      %s19 = sadd.s32 %s12, 1
      %s20 = ssub.s32 %s12, %s19
      %p21 = scmp.eq.s32.totalorder %s20, 0
      %s23 = sadd.s32 %s22, 1
      %s24 = scalar_select %p21, %s22, %s23
      %p27 = pneg %p21
      %p28 = scmp.eq.s32.totalorder %s12, 1
      %p29 = por %p27, %p28
      %p30 = scmp.ne.s32.totalorder %s22, %s25
      %p31 = scmp.eq.s32.totalorder %s12, 0
      %p32 = por %p30, %p31
      %p33 = scmp.ne.s32.totalorder %s22, %s25
      %p34 = scmp.eq.s32.totalorder %s17, 1
      %p35 = por %p33, %p34
      %p36 = scmp.ne.s32.totalorder %s25, %s26
      %p37 = scmp.eq.s32.totalorder %s17, 0
      %p38 = por %p36, %p37
      %p39 = scmp.ne.s32.totalorder %s25, %s26
      %p40 = scmp.eq.s32.totalorder %s18, 1
      %p41 = por %p39, %p40
      %p43 = scmp.ne.s32.totalorder %s26, %s42
      %p44 = scmp.eq.s32.totalorder %s18, 0
      %p45 = por %p43, %p44
      %s47 = sadd.s32 %s46, 1
      %p50 = scmp.eq.s32.totalorder %s12, 1
      %p51 = scmp.ne.s32.totalorder %s46, %s48
      %p52 = scmp.eq.s32.totalorder %s12, 0
      %p53 = por %p51, %p52
      %p54 = scmp.ne.s32.totalorder %s46, %s48
      %p55 = scmp.eq.s32.totalorder %s17, 1
      %p56 = por %p54, %p55
      %p57 = scmp.ne.s32.totalorder %s48, %s49
      %p58 = scmp.eq.s32.totalorder %s17, 0
      %p59 = por %p57, %p58
      %p60 = scmp.ne.s32.totalorder %s48, %s49
      %p61 = scmp.eq.s32.totalorder %s18, 1
      %p62 = por %p60, %p61
      %p64 = scmp.ne.s32.totalorder %s49, %s63
      %p65 = scmp.eq.s32.totalorder %s18, 0
      %p66 = por %p64, %p65
      %s68 = sadd.s32 %s67, 1
      %p71 = scmp.eq.s32.totalorder %s12, 1
      %p72 = scmp.ne.s32.totalorder %s67, %s69
      %p73 = scmp.eq.s32.totalorder %s12, 0
      %p74 = por %p72, %p73
      %p75 = scmp.ne.s32.totalorder %s67, %s69
      %p76 = scmp.eq.s32.totalorder %s17, 1
      %p77 = por %p75, %p76
      %p78 = scmp.ne.s32.totalorder %s69, %s70
      %p79 = scmp.eq.s32.totalorder %s17, 0
      %p80 = por %p78, %p79
      %p81 = scmp.ne.s32.totalorder %s69, %s70
      %p82 = scmp.eq.s32.totalorder %s18, 1
      %p83 = por %p81, %p82
      %p85 = scmp.ne.s32.totalorder %s70, %s84
      %p86 = scmp.eq.s32.totalorder %s18, 0
      %p87 = por %p85, %p86
      %s88 = ssub.s32 %s12, %s19
      %p89 = scmp.eq.s32.totalorder %s88, 0
      %s91 = sadd.s32 %s90, 1
      %s92 = scalar_select %p89, %s90, %s91
      %p95 = pneg %p89
      %p96 = scmp.eq.s32.totalorder %s12, 1
      %p97 = por %p95, %p96
      %p98 = scmp.ne.s32.totalorder %s90, %s93
      %p99 = scmp.eq.s32.totalorder %s12, 0
      %p100 = por %p98, %p99
      %p101 = scmp.ne.s32.totalorder %s90, %s93
      %p102 = scmp.eq.s32.totalorder %s17, 1
      %p103 = por %p101, %p102
      %p104 = scmp.ne.s32.totalorder %s93, %s94
      %p105 = scmp.eq.s32.totalorder %s17, 0
      %p106 = por %p104, %p105
      %p107 = scmp.ne.s32.totalorder %s93, %s94
      %p108 = scmp.eq.s32.totalorder %s18, 1
      %p109 = por %p107, %p108
      %p111 = scmp.ne.s32.totalorder %s94, %s110
      %p112 = scmp.eq.s32.totalorder %s18, 0
      %p113 = por %p111, %p112
      %p114 = scmp.le.s32.totalorder 1, %s12
      %p115 = scmp.lt.s32.totalorder %s12, 3
      %p116 = pnand %p114, %p115
      %p117 = pneg %p116
      // Predicated region
      $region9: #{conv_block_forward.5} parent=5 // pred_check
        _
      $region10: #{conv_block_forward.5} parent=5 // pred_check_branch
        %119 = sbr.rel (%p116) target = $region12
      $region11: #{conv_block_forward.5} parent=5 // pred_region
        %s120 = ssub.s32 %s12, 1
        // Predicated region
        $region13: #{conv_block_forward.5} parent=11 // pred_check
          %p121 = pneg %p59
        $region14: #{conv_block_forward.5} parent=11 // pred_check_branch
          %123 = sbr.rel (%p121) target = $region16
        $region15: #{conv_block_forward.5} parent=11 // pred_region
          _
        $region16: #{conv_block_forward.5} parent=11 // pred_fallthru
          _
        // Predicated region
        $region17: #{conv_block_forward.5} parent=11 // pred_check
          %p124 = pneg %p80
        $region18: #{conv_block_forward.5} parent=11 // pred_check_branch
          %126 = sbr.rel (%p124) target = $region20
        $region19: #{conv_block_forward.5} parent=11 // pred_region
          _
        $region20: #{conv_block_forward.5} parent=11 // pred_fallthru
          _
      $region12: #{conv_block_forward.5} parent=5 // pred_fallthru
        _
      %p127 = scmp.lt.s32.totalorder %s12, 2
      // Predicated region
      $region21: #{conv_block_forward.5} parent=5 // pred_check
        %p128 = pneg %p127
      $region22: #{conv_block_forward.5} parent=5 // pred_check_branch
        %130 = sbr.rel (%p128) target = $region24
      $region23: #{conv_block_forward.5} parent=5 // pred_region
        // Predicated region
        $region25: #{conv_block_forward.5} parent=23 // pred_check
          %p131 = pneg %p32
        $region26: #{conv_block_forward.5} parent=23 // pred_check_branch
          %133 = sbr.rel (%p131) target = $region28
        $region27: #{conv_block_forward.5} parent=23 // pred_region
          %p134 = scmp.lt.s32.totalorder %s12, 1
          %s135 = scalar_select %p134, %s12, 1
          %s136 = smul.addr %s135, 4
          %s137 = smul.addr %s136, 8
          %s138 = scalar_lea.vmem %s0, %s137
        $region28: #{conv_block_forward.5} parent=23 // pred_fallthru
          _
      $region24: #{conv_block_forward.5} parent=5 // pred_fallthru
        _
      %p139 = scmp.le.s32.totalorder 1, %s12
      %p140 = scmp.lt.s32.totalorder %s12, 3
      %p141 = pnand %p139, %p140
      %p142 = pneg %p141
      // Predicated region
      $region29: #{conv_block_forward.5} parent=5 // pred_check
        _
      $region30: #{conv_block_forward.5} parent=5 // pred_check_branch
        %144 = sbr.rel (%p141) target = $region32
      $region31: #{conv_block_forward.5} parent=5 // pred_region
        %s145 = ssub.s32 %s12, 1
        %p146 = scmp.lt.s32.totalorder %s17, 1
        %s147 = scalar_select %p146, %s17, 1
        %s148 = smul.addr %s147, 4
        %s149 = smul.addr %s148, 8
        %s150 = scalar_lea.vmem %s0, %s149
        %p151 = pneg %p38
        %p152 = pneg %p35
        %p153 = pneg %p59
        %p154 = pneg %p56
        %p155 = pneg %p80
        %p156 = pneg %p77
        %p157 = pneg %p106
        %p158 = pneg %p103
        %s159 = sand.u32 %s93, 1
        %s160 = scalar_lea.sflag [#allocation3], %s159
        %s161 = sand.u32 %s93, 1
        %s162 = smul.addr %s161, 112
        %s163 = scalar_lea.vmem [#allocation2], %s162
        %p164 = scmp.lt.s32.totalorder %s17, 1
        %s165 = scalar_select %p164, %s17, 1
        %s166 = smul.addr %s165, 4
        %s167 = smul.addr %s166, 8
        %s168 = scalar_lea.vmem %s0, %s167
        %v169 = vld [vmem:[%s168] sm:$0xff]
        %v170 = vld [vmem:[%s168 + $0x8] sm:$0xff]
        %v171 = vld [vmem:[%s168 + $0x10] sm:$0xff]
        %v172 = vld [vmem:[%s168 + $0x18] sm:$0xff]
        %v173 = vld [vmem:[%s1] sm:$0xf]
        %v175 = vlaneseq
        %v176 = vshrl.u32 %v175, 7
        %v177 = vsub.s32 0, %v176
        %v178 = vrot.slane %v173, %v177
        %v179 = vlaneseq
        %v180 = vshrl.u32 %v179, 7
        %v181 = vsub.s32 1, %v180
        %v182 = vrot.slane %v173, %v181
        %v183 = vlaneseq
        %v184 = vshrl.u32 %v183, 7
        %v185 = vsub.s32 2, %v184
        %v186 = vrot.slane %v173, %v185
        %v187 = vlaneseq
        %v188 = vshrl.u32 %v187, 7
        %v189 = vsub.s32 3, %v188
        %v190 = vrot.slane %v173, %v189
        %v195 = vmul.f32 %v169, %v178
        %v196 = vmul.f32 %v170, %v182
        %v197 = vmul.f32 %v171, %v186
        %v198 = vmul.f32 %v172, %v190
        %v199 = vld [vmem:[%s2] sm:$0xf]
        %v201 = vlaneseq
        %v202 = vshrl.u32 %v201, 7
        %v203 = vsub.s32 0, %v202
        %v204 = vrot.slane %v199, %v203
        %v205 = vlaneseq
        %v206 = vshrl.u32 %v205, 7
        %v207 = vsub.s32 1, %v206
        %v208 = vrot.slane %v199, %v207
        %v209 = vlaneseq
        %v210 = vshrl.u32 %v209, 7
        %v211 = vsub.s32 2, %v210
        %v212 = vrot.slane %v199, %v211
        %v213 = vlaneseq
        %v214 = vshrl.u32 %v213, 7
        %v215 = vsub.s32 3, %v214
        %v216 = vrot.slane %v199, %v215
        %v221 = vadd.f32 %v195, %v204
        %v222 = vadd.f32 %v196, %v208
        %v223 = vadd.f32 %v197, %v212
        %v224 = vadd.f32 %v198, %v216
        %v225 = vmax.f32 %v221, 0.0
        %v226 = vmax.f32 %v222, 0.0
        %v227 = vmax.f32 %v223, 0.0
        %v228 = vmax.f32 %v224, 0.0
        %229 = vst [vmem:[%s163] sm:$0xff] 0.0
        %230 = vst [vmem:[%s163 + $0x8] sm:$0xff] 0.0
        %231 = vst [vmem:[%s163 + $0x10] sm:$0xff] 0.0
        %232 = vst [vmem:[%s163 + $0x18] sm:$0xff] 0.0
        %233 = vst [vmem:[%s163 + $0x20] sm:$0xff] 0.0
        %234 = vst [vmem:[%s163 + $0x28] sm:$0xff] 0.0
        %vm235 = vcmask 261120
        %236 = vst.msk [vmem:[%s163 + $0x30] sm:$0xff] %vm235, 0.0
        %237 = vst [vmem:[%s163 + $0x38] sm:$0x3] 0.0
        %238 = vst [vmem:[%s163 + $0x40] sm:$0x3] 0.0
        %239 = vst [vmem:[%s163 + $0x48] sm:$0x3] 0.0
        %240 = vst [vmem:[%s163 + $0x50] sm:$0x3] 0.0
        %241 = vst [vmem:[%s163 + $0x58] sm:$0x3] 0.0
        %242 = vst [vmem:[%s163 + $0x60] sm:$0x3] 0.0
        %vm243 = vcmask 254976
        %244 = vst.msk [vmem:[%s163 + $0x68] sm:$0x3] %vm243, 0.0
        %v246 = vrot.slane %v225, 7
        %247 = vrot.lane.b32.xlu0 %v246, 88
        %v248 = vpop.permute.xlu0 %247
        %vm250 = vcmask 1048257
        %251 = vst.msk [vmem:[%s163] sm:$0xfe] %vm250, %v248
        %vm252 = vcmask 195585
        %253 = vst.msk [vmem:[%s163 + $0x8] sm:$0xfe] %vm252, %v248
        %vm254 = vcmask 1041088
        %255 = vst.msk [vmem:[%s163 + $0x38] sm:$0x1] %vm254, %v248
        %vm256 = vcmask 188416
        %257 = vst.msk [vmem:[%s163 + $0x40] sm:$0x1] %vm256, %v248
        %258 = vrot.lane.b32.xlu0 %v246, 104
        %v259 = vpop.permute.xlu0 %258
        %vm261 = vcmask 851265
        %262 = vst.msk [vmem:[%s163 + $0x8] sm:$0xfe] %vm261, %v259
        %vm263 = vcmask 844096
        %264 = vst.msk [vmem:[%s163 + $0x40] sm:$0x1] %vm263, %v259
        %v266 = vrot.slane %v226, 7
        %267 = vrot.lane.b32.xlu0 %v266, 120
        %v268 = vpop.permute.xlu0 %267
        %vm270 = vcmask 1048513
        %271 = vst.msk [vmem:[%s163 + $0x8] sm:$0xfe] %vm270, %v268
        %vm272 = vcmask 457729
        %273 = vst.msk [vmem:[%s163 + $0x10] sm:$0xfe] %vm272, %v268
        %vm274 = vcmask 1041344
        %275 = vst.msk [vmem:[%s163 + $0x40] sm:$0x1] %vm274, %v268
        %vm276 = vcmask 450560
        %277 = vst.msk [vmem:[%s163 + $0x48] sm:$0x1] %vm276, %v268
        %278 = vrot.lane.b32.xlu0 %v266, 8
        %v279 = vpop.permute.xlu0 %278
        %vm281 = vcmask 1048129
        %282 = vst.msk [vmem:[%s163 + $0x10] sm:$0xfe] %vm281, %v279
        %vm283 = vcmask 64513
        %284 = vst.msk [vmem:[%s163 + $0x18] sm:$0xfe] %vm283, %v279
        %vm285 = vcmask 1040960
        %286 = vst.msk [vmem:[%s163 + $0x48] sm:$0x1] %vm285, %v279
        %vm287 = vcmask 57344
        %288 = vst.msk [vmem:[%s163 + $0x50] sm:$0x1] %vm287, %v279
        %v290 = vrot.slane %v227, 7
        %291 = vrot.lane.b32.xlu0 %v290, 24
        %v292 = vpop.permute.xlu0 %291
        %vm294 = vcmask 720065
        %295 = vst.msk [vmem:[%s163 + $0x18] sm:$0xfe] %vm294, %v292
        %vm296 = vcmask 712896
        %297 = vst.msk [vmem:[%s163 + $0x50] sm:$0x1] %vm296, %v292
        %298 = vrot.lane.b32.xlu0 %v290, 40
        %v299 = vpop.permute.xlu0 %298
        %vm301 = vcmask 1048385
        %302 = vst.msk [vmem:[%s163 + $0x18] sm:$0xfe] %vm301, %v299
        %vm303 = vcmask 326657
        %304 = vst.msk [vmem:[%s163 + $0x20] sm:$0xfe] %vm303, %v299
        %vm305 = vcmask 1041216
        %306 = vst.msk [vmem:[%s163 + $0x50] sm:$0x1] %vm305, %v299
        %vm307 = vcmask 319488
        %308 = vst.msk [vmem:[%s163 + $0x58] sm:$0x1] %vm307, %v299
        %v310 = vrot.slane %v228, 7
        %311 = vrot.lane.b32.xlu0 %v310, 56
        %v312 = vpop.permute.xlu0 %311
        %vm314 = vcmask 982465
        %315 = vst.msk [vmem:[%s163 + $0x20] sm:$0xfe] %vm314, %v312
        %vm316 = vcmask 975296
        %317 = vst.msk [vmem:[%s163 + $0x58] sm:$0x1] %vm316, %v312
        %318 = vrot.lane.b32.xlu0 %v310, 72
        %v319 = vpop.permute.xlu0 %318
        %vm321 = vcmask 588865
        %322 = vst.msk [vmem:[%s163 + $0x28] sm:$0xfe] %vm321, %v319
        %vm323 = vcmask 581696
        %324 = vst.msk [vmem:[%s163 + $0x60] sm:$0x1] %vm323, %v319
        %s325 = sand.u32 %s93, 1
        %s326 = scalar_lea.sflag [#allocation3], %s325
        %s327 = sand.u32 %s93, 1
        %s328 = smul.addr %s327, 112
        %s329 = scalar_lea.vmem [#allocation2], %s328
        // Predicated region
        $region33: #{conv_block_forward.5} parent=31 // pred_check
          %p330 = pneg %p103
        $region34: #{conv_block_forward.5} parent=31 // pred_check_branch
          %332 = sbr.rel (%p330) target = $region36
        $region35: #{conv_block_forward.5} parent=31 // pred_region
          %s334 = ssub.s32 1792, 1792
          %335 = vsyncadd %s326, %s334
          %s336 = smul.addr %s17, 14
          %s337 = smul.addr %s336, 128
          %s338 = scalar_lea.hbm %s3, %s337
          %s339 = sshll.u32 %s329, 4
          %s340 = int_to_ptr.vmem [resolvable:$true] %s339
          %345 = dma.vmem_to_hbm [thread:$0]  %s340, 1792, %s338, %s326, 896, 896, 56
        $region36: #{conv_block_forward.5} parent=31 // pred_fallthru
          _
      $region32: #{conv_block_forward.5} parent=5 // pred_fallthru
        _
      %p346 = scmp.le.s32.totalorder 2, %s12
      // Predicated region
      $region37: #{conv_block_forward.5} parent=5 // pred_check
        %p347 = pneg %p346
      $region38: #{conv_block_forward.5} parent=5 // pred_check_branch
        %349 = sbr.rel (%p347) target = $region40
      $region39: #{conv_block_forward.5} parent=5 // pred_region
        %s350 = ssub.s32 %s12, 2
        // Predicated region
        $region41: #{conv_block_forward.5} parent=39 // pred_check
          %p351 = pneg %p109
        $region42: #{conv_block_forward.5} parent=39 // pred_check_branch
          %353 = sbr.rel (%p351) target = $region44
        $region43: #{conv_block_forward.5} parent=39 // pred_region
          %s354 = sand.u32 %s94, 1
          %s355 = scalar_lea.sflag [#allocation3], %s354
          %s356 = sand.u32 %s94, 1
          %s357 = smul.addr %s356, 112
          %s358 = scalar_lea.vmem [#allocation2], %s357
          %359 = dma.done %s355, 1792
        $region44: #{conv_block_forward.5} parent=39 // pred_fallthru
          _
      $region40: #{conv_block_forward.5} parent=5 // pred_fallthru
        _
    $region6: #{conv_block_forward.5} parent=1 // loop_footer
      %s16 = sadd.s32 1, %s12
    $region7: #{conv_block_forward.5} parent=1 // loop_footer_branch
      %11 = sbr.rel target = $region3
    $region8: #{conv_block_forward.5} parent=1 // loop_exit
      _
    %360 = vsyncpa [#allocation3], 1
    %s361 = scalar_lea.sflag [#allocation3], 1
    %362 = vsyncpa %s361, 1

// kernel: conv_block_forward.4
$region0: #{conv_block_forward.4}
  #allocation0 [shape = 'u32[]', space=smem, size = 0x4, offset = 0x4, fixed_abs, tag = 'smem constant byte address 0x4 - core index']
  #allocation1 [shape = 'u32[144,128]{1,0:T(1,128)}', space=vmem, size = 0x12000, scoped, tag = 'internal scratch']
  %s0 = inlined_call_operand.vmem [shape: f32[2,10,400], index: 0, kind: input, shape index: {}]
  %s1 = inlined_call_operand.vmem [shape: f32[3,400,512], index: 1, kind: input, shape index: {}]
  %s2 = inlined_call_operand.vmem [shape: f32[2,8,512], index: 2, kind: output, shape index: {0}]
  %s3 = inlined_call_operand.vmem [shape: f32[2,1,512], index: 3, kind: output, shape index: {1}]
  %s4 = inlined_call_operand.vmem [shape: f32[2,1,512], index: 4, kind: output, shape index: {2}]
  %5 = xla_tuple %s2, %s3, %s4
  %s6 = sld [smem:[#allocation0]]
  $region57: #{conv_block_forward.4} parent=0
    _
  %s8 = ssub.s32 1, %s6
  %s9 = scalar_select 0, %s8, %s6
  loop: start=0, step=1, limit=4
  $region2: #{conv_block_forward.4} parent=0 // loop_pre_header
    _
  $region3: #{conv_block_forward.4} parent=0 // loop_header
    %s11 = sphi 0, %s15
    %p12 = scmp.ge.s32.totalorder %s11, 4
    %s21 = sphi 0, %s23
    %s24 = sphi 0, %s21
    %s25 = sphi 0, %s24
    %s41 = sphi 0, %s25
    %s45 = sphi 0, %s45
    %s47 = sphi 0, %s45
    %s48 = sphi 0, %s47
    %s62 = sphi 0, %s48
    %s68 = sphi 0, %s70
    %s71 = sphi 0, %s68
    %s72 = sphi 0, %s71
    %s88 = sphi 0, %s72
    %s94 = sphi 0, %s96
    %s97 = sphi 0, %s94
    %s98 = sphi 0, %s97
    %s114 = sphi 0, %s98
    %s120 = sphi 0, %s122
    %s123 = sphi 0, %s120
    %s124 = sphi 0, %s123
    %s140 = sphi 0, %s124
  $region4: #{conv_block_forward.4} parent=0 // loop_header_branch
    %14 = sbr.rel (%p12) target = $region8
  $region5: #{conv_block_forward.4} parent=0 // loop_body
    %s16 = ssub.s32 %s11, 1
    %s17 = ssub.s32 %s11, 2
    %s18 = sadd.s32 %s11, 1
    %s19 = ssub.s32 %s11, %s18
    %p20 = scmp.eq.s32.totalorder %s19, 0
    %s22 = sadd.s32 %s21, 1
    %s23 = scalar_select %p20, %s21, %s22
    %p26 = pneg %p20
    %p27 = scmp.eq.s32.totalorder %s11, 1
    %p28 = por %p26, %p27
    %p29 = scmp.ne.s32.totalorder %s21, %s24
    %p30 = scmp.eq.s32.totalorder %s11, 0
    %p31 = por %p29, %p30
    %p32 = scmp.ne.s32.totalorder %s21, %s24
    %p33 = scmp.eq.s32.totalorder %s16, 1
    %p34 = por %p32, %p33
    %p35 = scmp.ne.s32.totalorder %s24, %s25
    %p36 = scmp.eq.s32.totalorder %s16, 0
    %p37 = por %p35, %p36
    %p38 = scmp.ne.s32.totalorder %s24, %s25
    %p39 = scmp.eq.s32.totalorder %s17, 1
    %p40 = por %p38, %p39
    %p42 = scmp.ne.s32.totalorder %s25, %s41
    %p43 = scmp.eq.s32.totalorder %s17, 0
    %p44 = por %p42, %p43
    %s46 = sadd.s32 %s45, 1
    %p49 = scmp.eq.s32.totalorder %s11, 1
    %p50 = scmp.ne.s32.totalorder %s45, %s47
    %p51 = scmp.eq.s32.totalorder %s11, 0
    %p52 = por %p50, %p51
    %p53 = scmp.ne.s32.totalorder %s45, %s47
    %p54 = scmp.eq.s32.totalorder %s16, 1
    %p55 = por %p53, %p54
    %p56 = scmp.ne.s32.totalorder %s47, %s48
    %p57 = scmp.eq.s32.totalorder %s16, 0
    %p58 = por %p56, %p57
    %p59 = scmp.ne.s32.totalorder %s47, %s48
    %p60 = scmp.eq.s32.totalorder %s17, 1
    %p61 = por %p59, %p60
    %p63 = scmp.ne.s32.totalorder %s48, %s62
    %p64 = scmp.eq.s32.totalorder %s17, 0
    %p65 = por %p63, %p64
    %s66 = ssub.s32 %s11, %s18
    %p67 = scmp.eq.s32.totalorder %s66, 0
    %s69 = sadd.s32 %s68, 1
    %s70 = scalar_select %p67, %s68, %s69
    %p73 = pneg %p67
    %p74 = scmp.eq.s32.totalorder %s11, 1
    %p75 = por %p73, %p74
    %p76 = scmp.ne.s32.totalorder %s68, %s71
    %p77 = scmp.eq.s32.totalorder %s11, 0
    %p78 = por %p76, %p77
    %p79 = scmp.ne.s32.totalorder %s68, %s71
    %p80 = scmp.eq.s32.totalorder %s16, 1
    %p81 = por %p79, %p80
    %p82 = scmp.ne.s32.totalorder %s71, %s72
    %p83 = scmp.eq.s32.totalorder %s16, 0
    %p84 = por %p82, %p83
    %p85 = scmp.ne.s32.totalorder %s71, %s72
    %p86 = scmp.eq.s32.totalorder %s17, 1
    %p87 = por %p85, %p86
    %p89 = scmp.ne.s32.totalorder %s72, %s88
    %p90 = scmp.eq.s32.totalorder %s17, 0
    %p91 = por %p89, %p90
    %s92 = ssub.s32 %s11, %s18
    %p93 = scmp.eq.s32.totalorder %s92, 0
    %s95 = sadd.s32 %s94, 1
    %s96 = scalar_select %p93, %s94, %s95
    %p99 = pneg %p93
    %p100 = scmp.eq.s32.totalorder %s11, 1
    %p101 = por %p99, %p100
    %p102 = scmp.ne.s32.totalorder %s94, %s97
    %p103 = scmp.eq.s32.totalorder %s11, 0
    %p104 = por %p102, %p103
    %p105 = scmp.ne.s32.totalorder %s94, %s97
    %p106 = scmp.eq.s32.totalorder %s16, 1
    %p107 = por %p105, %p106
    %p108 = scmp.ne.s32.totalorder %s97, %s98
    %p109 = scmp.eq.s32.totalorder %s16, 0
    %p110 = por %p108, %p109
    %p111 = scmp.ne.s32.totalorder %s97, %s98
    %p112 = scmp.eq.s32.totalorder %s17, 1
    %p113 = por %p111, %p112
    %p115 = scmp.ne.s32.totalorder %s98, %s114
    %p116 = scmp.eq.s32.totalorder %s17, 0
    %p117 = por %p115, %p116
    %s118 = ssub.s32 %s11, %s18
    %p119 = scmp.eq.s32.totalorder %s118, 0
    %s121 = sadd.s32 %s120, 1
    %s122 = scalar_select %p119, %s120, %s121
    %p125 = pneg %p119
    %p126 = scmp.eq.s32.totalorder %s11, 1
    %p127 = por %p125, %p126
    %p128 = scmp.ne.s32.totalorder %s120, %s123
    %p129 = scmp.eq.s32.totalorder %s11, 0
    %p130 = por %p128, %p129
    %p131 = scmp.ne.s32.totalorder %s120, %s123
    %p132 = scmp.eq.s32.totalorder %s16, 1
    %p133 = por %p131, %p132
    %p134 = scmp.ne.s32.totalorder %s123, %s124
    %p135 = scmp.eq.s32.totalorder %s16, 0
    %p136 = por %p134, %p135
    %p137 = scmp.ne.s32.totalorder %s123, %s124
    %p138 = scmp.eq.s32.totalorder %s17, 1
    %p139 = por %p137, %p138
    %p141 = scmp.ne.s32.totalorder %s124, %s140
    %p142 = scmp.eq.s32.totalorder %s17, 0
    %p143 = por %p141, %p142
    %p144 = scmp.le.s32.totalorder 1, %s11
    %p145 = scmp.lt.s32.totalorder %s11, 3
    %p146 = pnand %p144, %p145
    %p147 = pneg %p146
    // Predicated region
    $region9: #{conv_block_forward.4} parent=5 // pred_check
      _
    $region10: #{conv_block_forward.4} parent=5 // pred_check_branch
      %149 = sbr.rel (%p146) target = $region12
    $region11: #{conv_block_forward.4} parent=5 // pred_region
      %s150 = ssub.s32 %s11, 1
      // Predicated region
      $region13: #{conv_block_forward.4} parent=11 // pred_check
        %p151 = pneg %p58
      $region14: #{conv_block_forward.4} parent=11 // pred_check_branch
        %153 = sbr.rel (%p151) target = $region16
      $region15: #{conv_block_forward.4} parent=11 // pred_region
        _
      $region16: #{conv_block_forward.4} parent=11 // pred_fallthru
        _
    $region12: #{conv_block_forward.4} parent=5 // pred_fallthru
      _
    %p154 = scmp.lt.s32.totalorder %s11, 2
    // Predicated region
    $region17: #{conv_block_forward.4} parent=5 // pred_check
      %p155 = pneg %p154
    $region18: #{conv_block_forward.4} parent=5 // pred_check_branch
      %157 = sbr.rel (%p155) target = $region20
    $region19: #{conv_block_forward.4} parent=5 // pred_region
      // Predicated region
      $region21: #{conv_block_forward.4} parent=19 // pred_check
        %p158 = pneg %p31
      $region22: #{conv_block_forward.4} parent=19 // pred_check_branch
        %160 = sbr.rel (%p158) target = $region24
      $region23: #{conv_block_forward.4} parent=19 // pred_region
        %p161 = scmp.lt.s32.totalorder %s11, 1
        %s162 = scalar_select %p161, %s11, 1
        %s163 = smul.addr %s162, 8
        %s164 = smul.addr %s163, 8
        %s165 = scalar_lea.vmem %s0, %s164
      $region24: #{conv_block_forward.4} parent=19 // pred_fallthru
        _
    $region20: #{conv_block_forward.4} parent=5 // pred_fallthru
      _
    %p166 = scmp.le.s32.totalorder 1, %s11
    %p167 = scmp.lt.s32.totalorder %s11, 3
    %p168 = pnand %p166, %p167
    %p169 = pneg %p168
    // Predicated region
    $region25: #{conv_block_forward.4} parent=5 // pred_check
      _
    $region26: #{conv_block_forward.4} parent=5 // pred_check_branch
      %171 = sbr.rel (%p168) target = $region28
    $region27: #{conv_block_forward.4} parent=5 // pred_region
      %s172 = ssub.s32 %s11, 1
      %p173 = scmp.lt.s32.totalorder %s16, 1
      %s174 = scalar_select %p173, %s16, 1
      %s175 = smul.addr %s174, 8
      %s176 = smul.addr %s175, 8
      %s177 = scalar_lea.vmem %s0, %s176
      %p178 = pneg %p37
      %p179 = pneg %p34
      %p180 = pneg %p58
      %p181 = pneg %p55
      %p182 = pneg %p84
      %p183 = pneg %p81
      %p184 = scmp.lt.s32.totalorder %s16, 1
      %s185 = scalar_select %p184, %s16, 1
      %s186 = smul.addr %s185, 4
      %s187 = smul.addr %s186, 8
      %s188 = scalar_lea.vmem %s2, %s187
      %p189 = pneg %p110
      %p190 = pneg %p107
      %p191 = scmp.lt.s32.totalorder %s16, 1
      %s192 = scalar_select %p191, %s16, 1
      %s193 = smul.addr %s192, 4
      %s194 = scalar_lea.vmem %s3, %s193
      %p195 = pneg %p136
      %p196 = pneg %p133
      %p197 = scmp.lt.s32.totalorder %s16, 1
      %s198 = scalar_select %p197, %s16, 1
      %s199 = smul.addr %s198, 4
      %s200 = scalar_lea.vmem %s4, %s199
      %p201 = scmp.lt.s32.totalorder %s16, 1
      %s202 = scalar_select %p201, %s16, 1
      %s203 = smul.addr %s202, 8
      %s204 = smul.addr %s203, 8
      %s205 = scalar_lea.vmem %s0, %s204
      %p206 = scmp.lt.s32.totalorder %s16, 1
      %s207 = scalar_select %p206, %s16, 1
      %s208 = smul.addr %s207, 4
      %s209 = smul.addr %s208, 8
      %s210 = scalar_lea.vmem %s2, %s209
      %p211 = scmp.lt.s32.totalorder %s16, 1
      %s212 = scalar_select %p211, %s16, 1
      %s213 = smul.addr %s212, 4
      %s214 = scalar_lea.vmem %s3, %s213
      %p215 = scmp.lt.s32.totalorder %s16, 1
      %s216 = scalar_select %p215, %s16, 1
      %s217 = smul.addr %s216, 4
      %s218 = scalar_lea.vmem %s4, %s217
      %v219 = vld [vmem:[%s205] sm:$0xff]
      %v220 = vld [vmem:[%s205 + $0x8] sm:$0xff]
      %v221 = vld [vmem:[%s205 + $0x10] sm:$0xff]
      %v222 = vld [vmem:[%s205 + $0x18] sm:$0xff]
      %v223 = vld [vmem:[%s1] sm:$0xff]
      %v224 = vld [vmem:[%s1 + $0x8] sm:$0xff]
      %v225 = vld [vmem:[%s1 + $0x10] sm:$0xff]
      %v226 = vld [vmem:[%s1 + $0x18] sm:$0xff]
      %v227 = vld [vmem:[%s1 + $0x20] sm:$0xff]
      %v228 = vld [vmem:[%s1 + $0x28] sm:$0xff]
      %v229 = vld [vmem:[%s1 + $0x30] sm:$0xff]
      %v230 = vld [vmem:[%s1 + $0x38] sm:$0xff]
      %v231 = vld [vmem:[%s1 + $0x40] sm:$0xff]
      %v232 = vld [vmem:[%s1 + $0x48] sm:$0xff]
      %v233 = vld [vmem:[%s1 + $0x50] sm:$0xff]
      %v234 = vld [vmem:[%s1 + $0x58] sm:$0xff]
      %v235 = vld [vmem:[%s1 + $0x60] sm:$0xff]
      %v236 = vld [vmem:[%s1 + $0x68] sm:$0xff]
      %v237 = vld [vmem:[%s1 + $0x70] sm:$0xff]
      %v238 = vld [vmem:[%s1 + $0x78] sm:$0xff]
      %v239 = vld [vmem:[%s1 + $0x80] sm:$0xff]
      %v240 = vld [vmem:[%s1 + $0x88] sm:$0xff]
      %v241 = vld [vmem:[%s1 + $0x90] sm:$0xff]
      %v242 = vld [vmem:[%s1 + $0x98] sm:$0xff]
      %v243 = vld [vmem:[%s1 + $0xa0] sm:$0xff]
      %v244 = vld [vmem:[%s1 + $0xa8] sm:$0xff]
      %v245 = vld [vmem:[%s1 + $0xb0] sm:$0xff]
      %v246 = vld [vmem:[%s1 + $0xb8] sm:$0xff]
      %v247 = vld [vmem:[%s1 + $0xc0] sm:$0xff]
      %v248 = vld [vmem:[%s1 + $0xc8] sm:$0xff]
      %v249 = vld [vmem:[%s1 + $0xd0] sm:$0xff]
      %v250 = vld [vmem:[%s1 + $0xd8] sm:$0xff]
      %v251 = vld [vmem:[%s1 + $0xe0] sm:$0xff]
      %v252 = vld [vmem:[%s1 + $0xe8] sm:$0xff]
      %v253 = vld [vmem:[%s1 + $0xf0] sm:$0xff]
      %v254 = vld [vmem:[%s1 + $0xf8] sm:$0xff]
      %v255 = vld [vmem:[%s1 + $0x100] sm:$0xff]
      %v256 = vld [vmem:[%s1 + $0x108] sm:$0xff]
      %v257 = vld [vmem:[%s1 + $0x110] sm:$0xff]
      %v258 = vld [vmem:[%s1 + $0x118] sm:$0xff]
      %v259 = vld [vmem:[%s1 + $0x120] sm:$0xff]
      %v260 = vld [vmem:[%s1 + $0x128] sm:$0xff]
      %v261 = vld [vmem:[%s1 + $0x130] sm:$0xff]
      %v262 = vld [vmem:[%s1 + $0x138] sm:$0xff]
      %v263 = vld [vmem:[%s1 + $0x140] sm:$0xff]
      %v264 = vld [vmem:[%s1 + $0x148] sm:$0xff]
      %v265 = vld [vmem:[%s1 + $0x150] sm:$0xff]
      %v266 = vld [vmem:[%s1 + $0x158] sm:$0xff]
      %v267 = vld [vmem:[%s1 + $0x160] sm:$0xff]
      %v268 = vld [vmem:[%s1 + $0x168] sm:$0xff]
      %v269 = vld [vmem:[%s1 + $0x170] sm:$0xff]
      %v270 = vld [vmem:[%s1 + $0x178] sm:$0xff]
      %v271 = vld [vmem:[%s1 + $0x180] sm:$0xff]
      %v272 = vld [vmem:[%s1 + $0x188] sm:$0xff]
      %v273 = vld [vmem:[%s1 + $0x190] sm:$0xff]
      %v274 = vld [vmem:[%s1 + $0x198] sm:$0xff]
      %v275 = vld [vmem:[%s1 + $0x1a0] sm:$0xff]
      %v276 = vld [vmem:[%s1 + $0x1a8] sm:$0xff]
      %v277 = vld [vmem:[%s1 + $0x1b0] sm:$0xff]
      %v278 = vld [vmem:[%s1 + $0x1b8] sm:$0xff]
      %v279 = vld [vmem:[%s1 + $0x1c0] sm:$0xff]
      %v280 = vld [vmem:[%s1 + $0x1c8] sm:$0xff]
      %v281 = vld [vmem:[%s1 + $0x1d0] sm:$0xff]
      %v282 = vld [vmem:[%s1 + $0x1d8] sm:$0xff]
      %v283 = vld [vmem:[%s1 + $0x1e0] sm:$0xff]
      %v284 = vld [vmem:[%s1 + $0x1e8] sm:$0xff]
      %v285 = vld [vmem:[%s1 + $0x1f0] sm:$0xff]
      %v286 = vld [vmem:[%s1 + $0x1f8] sm:$0xff]
      %v287 = vld [vmem:[%s1 + $0x200] sm:$0xff]
      %v288 = vld [vmem:[%s1 + $0x208] sm:$0xff]
      %v289 = vld [vmem:[%s1 + $0x210] sm:$0xff]
      %v290 = vld [vmem:[%s1 + $0x218] sm:$0xff]
      %v291 = vld [vmem:[%s1 + $0x220] sm:$0xff]
      %v292 = vld [vmem:[%s1 + $0x228] sm:$0xff]
      %v293 = vld [vmem:[%s1 + $0x230] sm:$0xff]
      %v294 = vld [vmem:[%s1 + $0x238] sm:$0xff]
      %v295 = vld [vmem:[%s1 + $0x240] sm:$0xff]
      %v296 = vld [vmem:[%s1 + $0x248] sm:$0xff]
      %v297 = vld [vmem:[%s1 + $0x250] sm:$0xff]
      %v298 = vld [vmem:[%s1 + $0x258] sm:$0xff]
      %v299 = vld [vmem:[%s1 + $0x260] sm:$0xff]
      %v300 = vld [vmem:[%s1 + $0x268] sm:$0xff]
      %v301 = vld [vmem:[%s1 + $0x270] sm:$0xff]
      %v302 = vld [vmem:[%s1 + $0x278] sm:$0xff]
      %v303 = vld [vmem:[%s1 + $0x280] sm:$0xff]
      %v304 = vld [vmem:[%s1 + $0x288] sm:$0xff]
      %v305 = vld [vmem:[%s1 + $0x290] sm:$0xff]
      %v306 = vld [vmem:[%s1 + $0x298] sm:$0xff]
      %v307 = vld [vmem:[%s1 + $0x2a0] sm:$0xff]
      %v308 = vld [vmem:[%s1 + $0x2a8] sm:$0xff]
      %v309 = vld [vmem:[%s1 + $0x2b0] sm:$0xff]
      %v310 = vld [vmem:[%s1 + $0x2b8] sm:$0xff]
      %v311 = vld [vmem:[%s1 + $0x2c0] sm:$0xff]
      %v312 = vld [vmem:[%s1 + $0x2c8] sm:$0xff]
      %v313 = vld [vmem:[%s1 + $0x2d0] sm:$0xff]
      %v314 = vld [vmem:[%s1 + $0x2d8] sm:$0xff]
      %v315 = vld [vmem:[%s1 + $0x2e0] sm:$0xff]
      %v316 = vld [vmem:[%s1 + $0x2e8] sm:$0xff]
      %v317 = vld [vmem:[%s1 + $0x2f0] sm:$0xff]
      %v318 = vld [vmem:[%s1 + $0x2f8] sm:$0xff]
      %v319 = vld [vmem:[%s1 + $0x300] sm:$0xff]
      %v320 = vld [vmem:[%s1 + $0x308] sm:$0xff]
      %v321 = vld [vmem:[%s1 + $0x310] sm:$0xff]
      %v322 = vld [vmem:[%s1 + $0x318] sm:$0xff]
      %v323 = vld [vmem:[%s1 + $0x320] sm:$0xff]
      %v324 = vld [vmem:[%s1 + $0x328] sm:$0xff]
      %v325 = vld [vmem:[%s1 + $0x330] sm:$0xff]
      %v326 = vld [vmem:[%s1 + $0x338] sm:$0xff]
      %v327 = vld [vmem:[%s1 + $0x340] sm:$0xff]
      %v328 = vld [vmem:[%s1 + $0x348] sm:$0xff]
      %v329 = vld [vmem:[%s1 + $0x350] sm:$0xff]
      %v330 = vld [vmem:[%s1 + $0x358] sm:$0xff]
      %v331 = vld [vmem:[%s1 + $0x360] sm:$0xff]
      %v332 = vld [vmem:[%s1 + $0x368] sm:$0xff]
      %v333 = vld [vmem:[%s1 + $0x370] sm:$0xff]
      %v334 = vld [vmem:[%s1 + $0x378] sm:$0xff]
      %v335 = vld [vmem:[%s1 + $0x380] sm:$0xff]
      %v336 = vld [vmem:[%s1 + $0x388] sm:$0xff]
      %v337 = vld [vmem:[%s1 + $0x390] sm:$0xff]
      %v338 = vld [vmem:[%s1 + $0x398] sm:$0xff]
      %v339 = vld [vmem:[%s1 + $0x3a0] sm:$0xff]
      %v340 = vld [vmem:[%s1 + $0x3a8] sm:$0xff]
      %v341 = vld [vmem:[%s1 + $0x3b0] sm:$0xff]
      %v342 = vld [vmem:[%s1 + $0x3b8] sm:$0xff]
      %v343 = vld [vmem:[%s1 + $0x3c0] sm:$0xff]
      %v344 = vld [vmem:[%s1 + $0x3c8] sm:$0xff]
      %v345 = vld [vmem:[%s1 + $0x3d0] sm:$0xff]
      %v346 = vld [vmem:[%s1 + $0x3d8] sm:$0xff]
      %v347 = vld [vmem:[%s1 + $0x3e0] sm:$0xff]
      %v348 = vld [vmem:[%s1 + $0x3e8] sm:$0xff]
      %v349 = vld [vmem:[%s1 + $0x3f0] sm:$0xff]
      %v350 = vld [vmem:[%s1 + $0x3f8] sm:$0xff]
      %v351 = vld [vmem:[%s1 + $0x400] sm:$0xff]
      %v352 = vld [vmem:[%s1 + $0x408] sm:$0xff]
      %v353 = vld [vmem:[%s1 + $0x410] sm:$0xff]
      %v354 = vld [vmem:[%s1 + $0x418] sm:$0xff]
      %v355 = vld [vmem:[%s1 + $0x420] sm:$0xff]
      %v356 = vld [vmem:[%s1 + $0x428] sm:$0xff]
      %v357 = vld [vmem:[%s1 + $0x430] sm:$0xff]
      %v358 = vld [vmem:[%s1 + $0x438] sm:$0xff]
      %v359 = vld [vmem:[%s1 + $0x440] sm:$0xff]
      %v360 = vld [vmem:[%s1 + $0x448] sm:$0xff]
      %v361 = vld [vmem:[%s1 + $0x450] sm:$0xff]
      %v362 = vld [vmem:[%s1 + $0x458] sm:$0xff]
      %v363 = vld [vmem:[%s1 + $0x460] sm:$0xff]
      %v364 = vld [vmem:[%s1 + $0x468] sm:$0xff]
      %v365 = vld [vmem:[%s1 + $0x470] sm:$0xff]
      %v366 = vld [vmem:[%s1 + $0x478] sm:$0xff]
      %v367 = vld [vmem:[%s1 + $0x480] sm:$0xff]
      %v368 = vld [vmem:[%s1 + $0x488] sm:$0xff]
      %v369 = vld [vmem:[%s1 + $0x490] sm:$0xff]
      %v370 = vld [vmem:[%s1 + $0x498] sm:$0xff]
      %v371 = vld [vmem:[%s1 + $0x4a0] sm:$0xff]
      %v372 = vld [vmem:[%s1 + $0x4a8] sm:$0xff]
      %v373 = vld [vmem:[%s1 + $0x4b0] sm:$0xff]
      %v374 = vld [vmem:[%s1 + $0x4b8] sm:$0xff]
      %v375 = vld [vmem:[%s1 + $0x4c0] sm:$0xff]
      %v376 = vld [vmem:[%s1 + $0x4c8] sm:$0xff]
      %v377 = vld [vmem:[%s1 + $0x4d0] sm:$0xff]
      %v378 = vld [vmem:[%s1 + $0x4d8] sm:$0xff]
      %v379 = vld [vmem:[%s1 + $0x4e0] sm:$0xff]
      %v380 = vld [vmem:[%s1 + $0x4e8] sm:$0xff]
      %v381 = vld [vmem:[%s1 + $0x4f0] sm:$0xff]
      %v382 = vld [vmem:[%s1 + $0x4f8] sm:$0xff]
      %v383 = vld [vmem:[%s1 + $0x500] sm:$0xff]
      %v384 = vld [vmem:[%s1 + $0x508] sm:$0xff]
      %v385 = vld [vmem:[%s1 + $0x510] sm:$0xff]
      %v386 = vld [vmem:[%s1 + $0x518] sm:$0xff]
      %v387 = vld [vmem:[%s1 + $0x520] sm:$0xff]
      %v388 = vld [vmem:[%s1 + $0x528] sm:$0xff]
      %v389 = vld [vmem:[%s1 + $0x530] sm:$0xff]
      %v390 = vld [vmem:[%s1 + $0x538] sm:$0xff]
      %v391 = vld [vmem:[%s1 + $0x540] sm:$0xff]
      %v392 = vld [vmem:[%s1 + $0x548] sm:$0xff]
      %v393 = vld [vmem:[%s1 + $0x550] sm:$0xff]
      %v394 = vld [vmem:[%s1 + $0x558] sm:$0xff]
      %v395 = vld [vmem:[%s1 + $0x560] sm:$0xff]
      %v396 = vld [vmem:[%s1 + $0x568] sm:$0xff]
      %v397 = vld [vmem:[%s1 + $0x570] sm:$0xff]
      %v398 = vld [vmem:[%s1 + $0x578] sm:$0xff]
      %v399 = vld [vmem:[%s1 + $0x580] sm:$0xff]
      %v400 = vld [vmem:[%s1 + $0x588] sm:$0xff]
      %v401 = vld [vmem:[%s1 + $0x590] sm:$0xff]
      %v402 = vld [vmem:[%s1 + $0x598] sm:$0xff]
      %v403 = vld [vmem:[%s1 + $0x5a0] sm:$0xff]
      %v404 = vld [vmem:[%s1 + $0x5a8] sm:$0xff]
      %v405 = vld [vmem:[%s1 + $0x5b0] sm:$0xff]
      %v406 = vld [vmem:[%s1 + $0x5b8] sm:$0xff]
      %v407 = vld [vmem:[%s1 + $0x5c0] sm:$0xff]
      %v408 = vld [vmem:[%s1 + $0x5c8] sm:$0xff]
      %v409 = vld [vmem:[%s1 + $0x5d0] sm:$0xff]
      %v410 = vld [vmem:[%s1 + $0x5d8] sm:$0xff]
      %v411 = vld [vmem:[%s1 + $0x5e0] sm:$0xff]
      %v412 = vld [vmem:[%s1 + $0x5e8] sm:$0xff]
      %v413 = vld [vmem:[%s1 + $0x5f0] sm:$0xff]
      %v414 = vld [vmem:[%s1 + $0x5f8] sm:$0xff]
      %v415 = vld [vmem:[%s1 + $0x600] sm:$0xff]
      %v416 = vld [vmem:[%s1 + $0x608] sm:$0xff]
      %v417 = vld [vmem:[%s1 + $0x610] sm:$0xff]
      %v418 = vld [vmem:[%s1 + $0x618] sm:$0xff]
      %v419 = vld [vmem:[%s1 + $0x620] sm:$0xff]
      %v420 = vld [vmem:[%s1 + $0x628] sm:$0xff]
      %v421 = vld [vmem:[%s1 + $0x630] sm:$0xff]
      %v422 = vld [vmem:[%s1 + $0x638] sm:$0xff]
      %v423 = vld [vmem:[%s205] sm:$0xfe]
      %v424 = vld [vmem:[%s205 + $0x8] sm:$0xfe]
      %v425 = vld [vmem:[%s205 + $0x10] sm:$0xfe]
      %v426 = vld [vmem:[%s205 + $0x18] sm:$0xfe]
      %v427 = vld [vmem:[%s205 + $0x20] sm:$0x1]
      %v428 = vld [vmem:[%s205 + $0x28] sm:$0x1]
      %v429 = vld [vmem:[%s205 + $0x30] sm:$0x1]
      %v430 = vld [vmem:[%s205 + $0x38] sm:$0x1]
      %s431 = scalar_lea.vmem %s1, 1600
      %v432 = vld [vmem:[%s431] sm:$0xff]
      %v433 = vld [vmem:[%s431 + $0x8] sm:$0xff]
      %v434 = vld [vmem:[%s431 + $0x10] sm:$0xff]
      %v435 = vld [vmem:[%s431 + $0x18] sm:$0xff]
      %v436 = vld [vmem:[%s431 + $0x20] sm:$0xff]
      %v437 = vld [vmem:[%s431 + $0x28] sm:$0xff]
      %v438 = vld [vmem:[%s431 + $0x30] sm:$0xff]
      %v439 = vld [vmem:[%s431 + $0x38] sm:$0xff]
      %v440 = vld [vmem:[%s431 + $0x40] sm:$0xff]
      %v441 = vld [vmem:[%s431 + $0x48] sm:$0xff]
      %v442 = vld [vmem:[%s431 + $0x50] sm:$0xff]
      %v443 = vld [vmem:[%s431 + $0x58] sm:$0xff]
      %v444 = vld [vmem:[%s431 + $0x60] sm:$0xff]
      %v445 = vld [vmem:[%s431 + $0x68] sm:$0xff]
      %v446 = vld [vmem:[%s431 + $0x70] sm:$0xff]
      %v447 = vld [vmem:[%s431 + $0x78] sm:$0xff]
      %v448 = vld [vmem:[%s431 + $0x80] sm:$0xff]
      %v449 = vld [vmem:[%s431 + $0x88] sm:$0xff]
      %v450 = vld [vmem:[%s431 + $0x90] sm:$0xff]
      %v451 = vld [vmem:[%s431 + $0x98] sm:$0xff]
      %v452 = vld [vmem:[%s431 + $0xa0] sm:$0xff]
      %v453 = vld [vmem:[%s431 + $0xa8] sm:$0xff]
      %v454 = vld [vmem:[%s431 + $0xb0] sm:$0xff]
      %v455 = vld [vmem:[%s431 + $0xb8] sm:$0xff]
      %v456 = vld [vmem:[%s431 + $0xc0] sm:$0xff]
      %v457 = vld [vmem:[%s431 + $0xc8] sm:$0xff]
      %v458 = vld [vmem:[%s431 + $0xd0] sm:$0xff]
      %v459 = vld [vmem:[%s431 + $0xd8] sm:$0xff]
      %v460 = vld [vmem:[%s431 + $0xe0] sm:$0xff]
      %v461 = vld [vmem:[%s431 + $0xe8] sm:$0xff]
      %v462 = vld [vmem:[%s431 + $0xf0] sm:$0xff]
      %v463 = vld [vmem:[%s431 + $0xf8] sm:$0xff]
      %v464 = vld [vmem:[%s431 + $0x100] sm:$0xff]
      %v465 = vld [vmem:[%s431 + $0x108] sm:$0xff]
      %v466 = vld [vmem:[%s431 + $0x110] sm:$0xff]
      %v467 = vld [vmem:[%s431 + $0x118] sm:$0xff]
      %v468 = vld [vmem:[%s431 + $0x120] sm:$0xff]
      %v469 = vld [vmem:[%s431 + $0x128] sm:$0xff]
      %v470 = vld [vmem:[%s431 + $0x130] sm:$0xff]
      %v471 = vld [vmem:[%s431 + $0x138] sm:$0xff]
      %v472 = vld [vmem:[%s431 + $0x140] sm:$0xff]
      %v473 = vld [vmem:[%s431 + $0x148] sm:$0xff]
      %v474 = vld [vmem:[%s431 + $0x150] sm:$0xff]
      %v475 = vld [vmem:[%s431 + $0x158] sm:$0xff]
      %v476 = vld [vmem:[%s431 + $0x160] sm:$0xff]
      %v477 = vld [vmem:[%s431 + $0x168] sm:$0xff]
      %v478 = vld [vmem:[%s431 + $0x170] sm:$0xff]
      %v479 = vld [vmem:[%s431 + $0x178] sm:$0xff]
      %v480 = vld [vmem:[%s431 + $0x180] sm:$0xff]
      %v481 = vld [vmem:[%s431 + $0x188] sm:$0xff]
      %v482 = vld [vmem:[%s431 + $0x190] sm:$0xff]
      %v483 = vld [vmem:[%s431 + $0x198] sm:$0xff]
      %v484 = vld [vmem:[%s431 + $0x1a0] sm:$0xff]
      %v485 = vld [vmem:[%s431 + $0x1a8] sm:$0xff]
      %v486 = vld [vmem:[%s431 + $0x1b0] sm:$0xff]
      %v487 = vld [vmem:[%s431 + $0x1b8] sm:$0xff]
      %v488 = vld [vmem:[%s431 + $0x1c0] sm:$0xff]
      %v489 = vld [vmem:[%s431 + $0x1c8] sm:$0xff]
      %v490 = vld [vmem:[%s431 + $0x1d0] sm:$0xff]
      %v491 = vld [vmem:[%s431 + $0x1d8] sm:$0xff]
      %v492 = vld [vmem:[%s431 + $0x1e0] sm:$0xff]
      %v493 = vld [vmem:[%s431 + $0x1e8] sm:$0xff]
      %v494 = vld [vmem:[%s431 + $0x1f0] sm:$0xff]
      %v495 = vld [vmem:[%s431 + $0x1f8] sm:$0xff]
      %v496 = vld [vmem:[%s431 + $0x200] sm:$0xff]
      %v497 = vld [vmem:[%s431 + $0x208] sm:$0xff]
      %v498 = vld [vmem:[%s431 + $0x210] sm:$0xff]
      %v499 = vld [vmem:[%s431 + $0x218] sm:$0xff]
      %v500 = vld [vmem:[%s431 + $0x220] sm:$0xff]
      %v501 = vld [vmem:[%s431 + $0x228] sm:$0xff]
      %v502 = vld [vmem:[%s431 + $0x230] sm:$0xff]
      %v503 = vld [vmem:[%s431 + $0x238] sm:$0xff]
      %v504 = vld [vmem:[%s431 + $0x240] sm:$0xff]
      %v505 = vld [vmem:[%s431 + $0x248] sm:$0xff]
      %v506 = vld [vmem:[%s431 + $0x250] sm:$0xff]
      %v507 = vld [vmem:[%s431 + $0x258] sm:$0xff]
      %v508 = vld [vmem:[%s431 + $0x260] sm:$0xff]
      %v509 = vld [vmem:[%s431 + $0x268] sm:$0xff]
      %v510 = vld [vmem:[%s431 + $0x270] sm:$0xff]
      %v511 = vld [vmem:[%s431 + $0x278] sm:$0xff]
      %v512 = vld [vmem:[%s431 + $0x280] sm:$0xff]
      %v513 = vld [vmem:[%s431 + $0x288] sm:$0xff]
      %v514 = vld [vmem:[%s431 + $0x290] sm:$0xff]
      %v515 = vld [vmem:[%s431 + $0x298] sm:$0xff]
      %v516 = vld [vmem:[%s431 + $0x2a0] sm:$0xff]
      %v517 = vld [vmem:[%s431 + $0x2a8] sm:$0xff]
      %v518 = vld [vmem:[%s431 + $0x2b0] sm:$0xff]
      %v519 = vld [vmem:[%s431 + $0x2b8] sm:$0xff]
      %v520 = vld [vmem:[%s431 + $0x2c0] sm:$0xff]
      %v521 = vld [vmem:[%s431 + $0x2c8] sm:$0xff]
      %v522 = vld [vmem:[%s431 + $0x2d0] sm:$0xff]
      %v523 = vld [vmem:[%s431 + $0x2d8] sm:$0xff]
      %v524 = vld [vmem:[%s431 + $0x2e0] sm:$0xff]
      %v525 = vld [vmem:[%s431 + $0x2e8] sm:$0xff]
      %v526 = vld [vmem:[%s431 + $0x2f0] sm:$0xff]
      %v527 = vld [vmem:[%s431 + $0x2f8] sm:$0xff]
      %v528 = vld [vmem:[%s431 + $0x300] sm:$0xff]
      %v529 = vld [vmem:[%s431 + $0x308] sm:$0xff]
      %v530 = vld [vmem:[%s431 + $0x310] sm:$0xff]
      %v531 = vld [vmem:[%s431 + $0x318] sm:$0xff]
      %v532 = vld [vmem:[%s431 + $0x320] sm:$0xff]
      %v533 = vld [vmem:[%s431 + $0x328] sm:$0xff]
      %v534 = vld [vmem:[%s431 + $0x330] sm:$0xff]
      %v535 = vld [vmem:[%s431 + $0x338] sm:$0xff]
      %v536 = vld [vmem:[%s431 + $0x340] sm:$0xff]
      %v537 = vld [vmem:[%s431 + $0x348] sm:$0xff]
      %v538 = vld [vmem:[%s431 + $0x350] sm:$0xff]
      %v539 = vld [vmem:[%s431 + $0x358] sm:$0xff]
      %v540 = vld [vmem:[%s431 + $0x360] sm:$0xff]
      %v541 = vld [vmem:[%s431 + $0x368] sm:$0xff]
      %v542 = vld [vmem:[%s431 + $0x370] sm:$0xff]
      %v543 = vld [vmem:[%s431 + $0x378] sm:$0xff]
      %v544 = vld [vmem:[%s431 + $0x380] sm:$0xff]
      %v545 = vld [vmem:[%s431 + $0x388] sm:$0xff]
      %v546 = vld [vmem:[%s431 + $0x390] sm:$0xff]
      %v547 = vld [vmem:[%s431 + $0x398] sm:$0xff]
      %v548 = vld [vmem:[%s431 + $0x3a0] sm:$0xff]
      %v549 = vld [vmem:[%s431 + $0x3a8] sm:$0xff]
      %v550 = vld [vmem:[%s431 + $0x3b0] sm:$0xff]
      %v551 = vld [vmem:[%s431 + $0x3b8] sm:$0xff]
      %v552 = vld [vmem:[%s431 + $0x3c0] sm:$0xff]
      %v553 = vld [vmem:[%s431 + $0x3c8] sm:$0xff]
      %v554 = vld [vmem:[%s431 + $0x3d0] sm:$0xff]
      %v555 = vld [vmem:[%s431 + $0x3d8] sm:$0xff]
      %v556 = vld [vmem:[%s431 + $0x3e0] sm:$0xff]
      %v557 = vld [vmem:[%s431 + $0x3e8] sm:$0xff]
      %v558 = vld [vmem:[%s431 + $0x3f0] sm:$0xff]
      %v559 = vld [vmem:[%s431 + $0x3f8] sm:$0xff]
      %v560 = vld [vmem:[%s431 + $0x400] sm:$0xff]
      %v561 = vld [vmem:[%s431 + $0x408] sm:$0xff]
      %v562 = vld [vmem:[%s431 + $0x410] sm:$0xff]
      %v563 = vld [vmem:[%s431 + $0x418] sm:$0xff]
      %v564 = vld [vmem:[%s431 + $0x420] sm:$0xff]
      %v565 = vld [vmem:[%s431 + $0x428] sm:$0xff]
      %v566 = vld [vmem:[%s431 + $0x430] sm:$0xff]
      %v567 = vld [vmem:[%s431 + $0x438] sm:$0xff]
      %v568 = vld [vmem:[%s431 + $0x440] sm:$0xff]
      %v569 = vld [vmem:[%s431 + $0x448] sm:$0xff]
      %v570 = vld [vmem:[%s431 + $0x450] sm:$0xff]
      %v571 = vld [vmem:[%s431 + $0x458] sm:$0xff]
      %v572 = vld [vmem:[%s431 + $0x460] sm:$0xff]
      %v573 = vld [vmem:[%s431 + $0x468] sm:$0xff]
      %v574 = vld [vmem:[%s431 + $0x470] sm:$0xff]
      %v575 = vld [vmem:[%s431 + $0x478] sm:$0xff]
      %v576 = vld [vmem:[%s431 + $0x480] sm:$0xff]
      %v577 = vld [vmem:[%s431 + $0x488] sm:$0xff]
      %v578 = vld [vmem:[%s431 + $0x490] sm:$0xff]
      %v579 = vld [vmem:[%s431 + $0x498] sm:$0xff]
      %v580 = vld [vmem:[%s431 + $0x4a0] sm:$0xff]
      %v581 = vld [vmem:[%s431 + $0x4a8] sm:$0xff]
      %v582 = vld [vmem:[%s431 + $0x4b0] sm:$0xff]
      %v583 = vld [vmem:[%s431 + $0x4b8] sm:$0xff]
      %v584 = vld [vmem:[%s431 + $0x4c0] sm:$0xff]
      %v585 = vld [vmem:[%s431 + $0x4c8] sm:$0xff]
      %v586 = vld [vmem:[%s431 + $0x4d0] sm:$0xff]
      %v587 = vld [vmem:[%s431 + $0x4d8] sm:$0xff]
      %v588 = vld [vmem:[%s431 + $0x4e0] sm:$0xff]
      %v589 = vld [vmem:[%s431 + $0x4e8] sm:$0xff]
      %v590 = vld [vmem:[%s431 + $0x4f0] sm:$0xff]
      %v591 = vld [vmem:[%s431 + $0x4f8] sm:$0xff]
      %v592 = vld [vmem:[%s431 + $0x500] sm:$0xff]
      %v593 = vld [vmem:[%s431 + $0x508] sm:$0xff]
      %v594 = vld [vmem:[%s431 + $0x510] sm:$0xff]
      %v595 = vld [vmem:[%s431 + $0x518] sm:$0xff]
      %v596 = vld [vmem:[%s431 + $0x520] sm:$0xff]
      %v597 = vld [vmem:[%s431 + $0x528] sm:$0xff]
      %v598 = vld [vmem:[%s431 + $0x530] sm:$0xff]
      %v599 = vld [vmem:[%s431 + $0x538] sm:$0xff]
      %v600 = vld [vmem:[%s431 + $0x540] sm:$0xff]
      %v601 = vld [vmem:[%s431 + $0x548] sm:$0xff]
      %v602 = vld [vmem:[%s431 + $0x550] sm:$0xff]
      %v603 = vld [vmem:[%s431 + $0x558] sm:$0xff]
      %v604 = vld [vmem:[%s431 + $0x560] sm:$0xff]
      %v605 = vld [vmem:[%s431 + $0x568] sm:$0xff]
      %v606 = vld [vmem:[%s431 + $0x570] sm:$0xff]
      %v607 = vld [vmem:[%s431 + $0x578] sm:$0xff]
      %v608 = vld [vmem:[%s431 + $0x580] sm:$0xff]
      %v609 = vld [vmem:[%s431 + $0x588] sm:$0xff]
      %v610 = vld [vmem:[%s431 + $0x590] sm:$0xff]
      %v611 = vld [vmem:[%s431 + $0x598] sm:$0xff]
      %v612 = vld [vmem:[%s431 + $0x5a0] sm:$0xff]
      %v613 = vld [vmem:[%s431 + $0x5a8] sm:$0xff]
      %v614 = vld [vmem:[%s431 + $0x5b0] sm:$0xff]
      %v615 = vld [vmem:[%s431 + $0x5b8] sm:$0xff]
      %v616 = vld [vmem:[%s431 + $0x5c0] sm:$0xff]
      %v617 = vld [vmem:[%s431 + $0x5c8] sm:$0xff]
      %v618 = vld [vmem:[%s431 + $0x5d0] sm:$0xff]
      %v619 = vld [vmem:[%s431 + $0x5d8] sm:$0xff]
      %v620 = vld [vmem:[%s431 + $0x5e0] sm:$0xff]
      %v621 = vld [vmem:[%s431 + $0x5e8] sm:$0xff]
      %v622 = vld [vmem:[%s431 + $0x5f0] sm:$0xff]
      %v623 = vld [vmem:[%s431 + $0x5f8] sm:$0xff]
      %v624 = vld [vmem:[%s431 + $0x600] sm:$0xff]
      %v625 = vld [vmem:[%s431 + $0x608] sm:$0xff]
      %v626 = vld [vmem:[%s431 + $0x610] sm:$0xff]
      %v627 = vld [vmem:[%s431 + $0x618] sm:$0xff]
      %v628 = vld [vmem:[%s431 + $0x620] sm:$0xff]
      %v629 = vld [vmem:[%s431 + $0x628] sm:$0xff]
      %v630 = vld [vmem:[%s431 + $0x630] sm:$0xff]
      %v631 = vld [vmem:[%s431 + $0x638] sm:$0xff]
      %vm640 = vcmask 1046528
      %v641 = vrot.slane %v423, 1
      %v642 = vrot.slane %v427, 1
      %v643 = vsel %vm640, %v641, %v642
      %v644 = vrot.slane %v424, 1
      %v645 = vrot.slane %v428, 1
      %v646 = vsel %vm640, %v644, %v645
      %v647 = vrot.slane %v425, 1
      %v648 = vrot.slane %v429, 1
      %v649 = vsel %vm640, %v647, %v648
      %v650 = vrot.slane %v426, 1
      %v651 = vrot.slane %v430, 1
      %v652 = vsel %vm640, %v650, %v651
      %vm656 = vcmask 130048
      %v657 = vsel %vm656, %v652, 0
      %659 = vmatprep.subr.mxu0 %v493
      %660 = vmatpush1.msra.mxu0 %v492
      %661 = vmatprep.subr.mxu0 %v489
      %662 = vmatpush1.msra.mxu0 %v488
      %663 = vmatprep.subr.mxu0 %v485
      %664 = vmatpush1.msra.mxu0 %v484
      %665 = vmatprep.subr.mxu0 %v481
      %666 = vmatpush1.msra.mxu0 %v480
      %667 = vmatprep.subr.mxu0 %v477
      %668 = vmatpush1.msra.mxu0 %v476
      %669 = vmatprep.subr.mxu0 %v473
      %670 = vmatpush1.msra.mxu0 %v472
      %671 = vmatprep.subr.mxu0 %v469
      %672 = vmatpush1.msra.mxu0 %v468
      %673 = vmatprep.subr.mxu0 %v465
      %674 = vmatpush1.msra.mxu0 %v464
      %675 = vmatprep.subr.mxu0 %v461
      %676 = vmatpush1.msra.mxu0 %v460
      %677 = vmatprep.subr.mxu0 %v457
      %678 = vmatpush1.msra.mxu0 %v456
      %679 = vmatprep.subr.mxu0 %v453
      %680 = vmatpush1.msra.mxu0 %v452
      %681 = vmatprep.subr.mxu0 %v449
      %682 = vmatpush1.msra.mxu0 %v448
      %683 = vmatprep.subr.mxu0 %v445
      %684 = vmatpush1.msra.mxu0 %v444
      %685 = vmatprep.subr.mxu0 %v441
      %686 = vmatpush1.msra.mxu0 %v440
      %687 = vmatprep.subr.mxu0 %v437
      %688 = vmatpush1.msra.mxu0 %v436
      %689 = vmatprep.subr.mxu0 %v433
      %690 = vmatpush1.msra.mxu0 %v432
      %691 = vmatprep.subr.mxu0 %v557
      %692 = vmatpush2.msra.mxu0 %v556
      %693 = vmatprep.subr.mxu0 %v553
      %694 = vmatpush2.msra.mxu0 %v552
      %695 = vmatprep.subr.mxu0 %v549
      %696 = vmatpush2.msra.mxu0 %v548
      %697 = vmatprep.subr.mxu0 %v545
      %698 = vmatpush2.msra.mxu0 %v544
      %699 = vmatprep.subr.mxu0 %v541
      %700 = vmatpush2.msra.mxu0 %v540
      %701 = vmatprep.subr.mxu0 %v537
      %702 = vmatpush2.msra.mxu0 %v536
      %703 = vmatprep.subr.mxu0 %v533
      %704 = vmatpush2.msra.mxu0 %v532
      %705 = vmatprep.subr.mxu0 %v529
      %706 = vmatpush2.msra.mxu0 %v528
      %707 = vmatprep.subr.mxu0 %v525
      %708 = vmatpush2.msra.mxu0 %v524
      %709 = vmatprep.subr.mxu0 %v521
      %710 = vmatpush2.msra.mxu0 %v520
      %711 = vmatprep.subr.mxu0 %v517
      %712 = vmatpush2.msra.mxu0 %v516
      %713 = vmatprep.subr.mxu0 %v513
      %714 = vmatpush2.msra.mxu0 %v512
      %715 = vmatprep.subr.mxu0 %v509
      %716 = vmatpush2.msra.mxu0 %v508
      %717 = vmatprep.subr.mxu0 %v505
      %718 = vmatpush2.msra.mxu0 %v504
      %719 = vmatprep.subr.mxu0 %v501
      %720 = vmatpush2.msra.mxu0 %v500
      %721 = vmatprep.subr.mxu0 %v497
      %722 = vmatpush2.msra.mxu0 %v496
      %723 = vmatprep.mubr.f32.mxu0 %v646
      %724 = vmatmul.mubr.f32.gmra.mxu0 %v643
      %v725 = vpop.f32.mrf.mxu0
      %v726 = vadd.f32 0.0, %v725
      %v727 = vpop.f32.mrf.mxu0
      %v728 = vadd.f32 0.0, %v727
      %729 = vdwg.mxu0
      %730 = vmatprep.subr.mxu0 %v621
      %731 = vmatpush1.msra.mxu0 %v620
      %732 = vmatprep.subr.mxu0 %v617
      %733 = vmatpush1.msra.mxu0 %v616
      %734 = vmatprep.subr.mxu0 %v613
      %735 = vmatpush1.msra.mxu0 %v612
      %736 = vmatprep.subr.mxu0 %v609
      %737 = vmatpush1.msra.mxu0 %v608
      %738 = vmatprep.subr.mxu0 %v605
      %739 = vmatpush1.msra.mxu0 %v604
      %740 = vmatprep.subr.mxu0 %v601
      %741 = vmatpush1.msra.mxu0 %v600
      %742 = vmatprep.subr.mxu0 %v597
      %743 = vmatpush1.msra.mxu0 %v596
      %744 = vmatprep.subr.mxu0 %v593
      %745 = vmatpush1.msra.mxu0 %v592
      %746 = vmatprep.subr.mxu0 %v589
      %747 = vmatpush1.msra.mxu0 %v588
      %748 = vmatprep.subr.mxu0 %v585
      %749 = vmatpush1.msra.mxu0 %v584
      %750 = vmatprep.subr.mxu0 %v581
      %751 = vmatpush1.msra.mxu0 %v580
      %752 = vmatprep.subr.mxu0 %v577
      %753 = vmatpush1.msra.mxu0 %v576
      %754 = vmatprep.subr.mxu0 %v573
      %755 = vmatpush1.msra.mxu0 %v572
      %756 = vmatprep.subr.mxu0 %v569
      %757 = vmatpush1.msra.mxu0 %v568
      %758 = vmatprep.subr.mxu0 %v565
      %759 = vmatpush1.msra.mxu0 %v564
      %760 = vmatprep.subr.mxu0 %v561
      %761 = vmatpush1.msra.mxu0 %v560
      %762 = vmatprep.subr.mxu0 0.0
      %763 = vmatpush2.msra.mxu0 0.0
      %764 = vmatprep.subr.mxu0 0.0
      %765 = vmatpush2.msra.mxu0 0.0
      %766 = vmatprep.subr.mxu0 0.0
      %767 = vmatpush2.msra.mxu0 0.0
      %768 = vmatprep.subr.mxu0 0.0
      %769 = vmatpush2.msra.mxu0 0.0
      %770 = vmatprep.subr.mxu0 0.0
      %771 = vmatpush2.msra.mxu0 0.0
      %772 = vmatprep.subr.mxu0 0.0
      %773 = vmatpush2.msra.mxu0 0.0
      %774 = vmatprep.subr.mxu0 0.0
      %775 = vmatpush2.msra.mxu0 0.0
      %776 = vmatprep.subr.mxu0 0.0
      %777 = vmatpush2.msra.mxu0 0.0
      %778 = vmatprep.subr.mxu0 0.0
      %779 = vmatpush2.msra.mxu0 0.0
      %780 = vmatprep.subr.mxu0 0.0
      %781 = vmatpush2.msra.mxu0 0.0
      %782 = vmatprep.subr.mxu0 0.0
      %783 = vmatpush2.msra.mxu0 0.0
      %784 = vmatprep.subr.mxu0 0.0
      %785 = vmatpush2.msra.mxu0 0.0
      %786 = vmatprep.subr.mxu0 0.0
      %787 = vmatpush2.msra.mxu0 0.0
      %788 = vmatprep.subr.mxu0 0.0
      %789 = vmatpush2.msra.mxu0 0.0
      %790 = vmatprep.subr.mxu0 %v629
      %791 = vmatpush2.msra.mxu0 %v628
      %792 = vmatprep.subr.mxu0 %v625
      %793 = vmatpush2.msra.mxu0 %v624
      %794 = vmatprep.mubr.f32.mxu0 %v657
      %795 = vmatmul.mubr.f32.gmra.mxu0 %v649
      %v796 = vpop.f32.mrf.mxu0
      %v797 = vadd.f32 %v726, %v796
      %v798 = vpop.f32.mrf.mxu0
      %v799 = vadd.f32 %v728, %v798
      %800 = vdwg.mxu0
      %801 = vmatprep.subr.mxu0 %v495
      %802 = vmatpush1.msra.mxu0 %v494
      %803 = vmatprep.subr.mxu0 %v491
      %804 = vmatpush1.msra.mxu0 %v490
      %805 = vmatprep.subr.mxu0 %v487
      %806 = vmatpush1.msra.mxu0 %v486
      %807 = vmatprep.subr.mxu0 %v483
      %808 = vmatpush1.msra.mxu0 %v482
      %809 = vmatprep.subr.mxu0 %v479
      %810 = vmatpush1.msra.mxu0 %v478
      %811 = vmatprep.subr.mxu0 %v475
      %812 = vmatpush1.msra.mxu0 %v474
      %813 = vmatprep.subr.mxu0 %v471
      %814 = vmatpush1.msra.mxu0 %v470
      %815 = vmatprep.subr.mxu0 %v467
      %816 = vmatpush1.msra.mxu0 %v466
      %817 = vmatprep.subr.mxu0 %v463
      %818 = vmatpush1.msra.mxu0 %v462
      %819 = vmatprep.subr.mxu0 %v459
      %820 = vmatpush1.msra.mxu0 %v458
      %821 = vmatprep.subr.mxu0 %v455
      %822 = vmatpush1.msra.mxu0 %v454
      %823 = vmatprep.subr.mxu0 %v451
      %824 = vmatpush1.msra.mxu0 %v450
      %825 = vmatprep.subr.mxu0 %v447
      %826 = vmatpush1.msra.mxu0 %v446
      %827 = vmatprep.subr.mxu0 %v443
      %828 = vmatpush1.msra.mxu0 %v442
      %829 = vmatprep.subr.mxu0 %v439
      %830 = vmatpush1.msra.mxu0 %v438
      %831 = vmatprep.subr.mxu0 %v435
      %832 = vmatpush1.msra.mxu0 %v434
      %833 = vmatprep.subr.mxu0 %v559
      %834 = vmatpush2.msra.mxu0 %v558
      %835 = vmatprep.subr.mxu0 %v555
      %836 = vmatpush2.msra.mxu0 %v554
      %837 = vmatprep.subr.mxu0 %v551
      %838 = vmatpush2.msra.mxu0 %v550
      %839 = vmatprep.subr.mxu0 %v547
      %840 = vmatpush2.msra.mxu0 %v546
      %841 = vmatprep.subr.mxu0 %v543
      %842 = vmatpush2.msra.mxu0 %v542
      %843 = vmatprep.subr.mxu0 %v539
      %844 = vmatpush2.msra.mxu0 %v538
      %845 = vmatprep.subr.mxu0 %v535
      %846 = vmatpush2.msra.mxu0 %v534
      %847 = vmatprep.subr.mxu0 %v531
      %848 = vmatpush2.msra.mxu0 %v530
      %849 = vmatprep.subr.mxu0 %v527
      %850 = vmatpush2.msra.mxu0 %v526
      %851 = vmatprep.subr.mxu0 %v523
      %852 = vmatpush2.msra.mxu0 %v522
      %853 = vmatprep.subr.mxu0 %v519
      %854 = vmatpush2.msra.mxu0 %v518
      %855 = vmatprep.subr.mxu0 %v515
      %856 = vmatpush2.msra.mxu0 %v514
      %857 = vmatprep.subr.mxu0 %v511
      %858 = vmatpush2.msra.mxu0 %v510
      %859 = vmatprep.subr.mxu0 %v507
      %860 = vmatpush2.msra.mxu0 %v506
      %861 = vmatprep.subr.mxu0 %v503
      %862 = vmatpush2.msra.mxu0 %v502
      %863 = vmatprep.subr.mxu0 %v499
      %864 = vmatpush2.msra.mxu0 %v498
      %865 = vmatprep.mubr.f32.mxu0 %v646
      %866 = vmatmul.mubr.f32.gmra.mxu0 %v643
      %v867 = vpop.f32.mrf.mxu0
      %v868 = vadd.f32 0.0, %v867
      %v869 = vpop.f32.mrf.mxu0
      %v870 = vadd.f32 0.0, %v869
      %871 = vdwg.mxu0
      %872 = vmatprep.subr.mxu0 %v623
      %873 = vmatpush1.msra.mxu0 %v622
      %874 = vmatprep.subr.mxu0 %v619
      %875 = vmatpush1.msra.mxu0 %v618
      %876 = vmatprep.subr.mxu0 %v615
      %877 = vmatpush1.msra.mxu0 %v614
      %878 = vmatprep.subr.mxu0 %v611
      %879 = vmatpush1.msra.mxu0 %v610
      %880 = vmatprep.subr.mxu0 %v607
      %881 = vmatpush1.msra.mxu0 %v606
      %882 = vmatprep.subr.mxu0 %v603
      %883 = vmatpush1.msra.mxu0 %v602
      %884 = vmatprep.subr.mxu0 %v599
      %885 = vmatpush1.msra.mxu0 %v598
      %886 = vmatprep.subr.mxu0 %v595
      %887 = vmatpush1.msra.mxu0 %v594
      %888 = vmatprep.subr.mxu0 %v591
      %889 = vmatpush1.msra.mxu0 %v590
      %890 = vmatprep.subr.mxu0 %v587
      %891 = vmatpush1.msra.mxu0 %v586
      %892 = vmatprep.subr.mxu0 %v583
      %893 = vmatpush1.msra.mxu0 %v582
      %894 = vmatprep.subr.mxu0 %v579
      %895 = vmatpush1.msra.mxu0 %v578
      %896 = vmatprep.subr.mxu0 %v575
      %897 = vmatpush1.msra.mxu0 %v574
      %898 = vmatprep.subr.mxu0 %v571
      %899 = vmatpush1.msra.mxu0 %v570
      %900 = vmatprep.subr.mxu0 %v567
      %901 = vmatpush1.msra.mxu0 %v566
      %902 = vmatprep.subr.mxu0 %v563
      %903 = vmatpush1.msra.mxu0 %v562
      %904 = vmatprep.subr.mxu0 0.0
      %905 = vmatpush2.msra.mxu0 0.0
      %906 = vmatprep.subr.mxu0 0.0
      %907 = vmatpush2.msra.mxu0 0.0
      %908 = vmatprep.subr.mxu0 0.0
      %909 = vmatpush2.msra.mxu0 0.0
      %910 = vmatprep.subr.mxu0 0.0
      %911 = vmatpush2.msra.mxu0 0.0
      %912 = vmatprep.subr.mxu0 0.0
      %913 = vmatpush2.msra.mxu0 0.0
      %914 = vmatprep.subr.mxu0 0.0
      %915 = vmatpush2.msra.mxu0 0.0
      %916 = vmatprep.subr.mxu0 0.0
      %917 = vmatpush2.msra.mxu0 0.0
      %918 = vmatprep.subr.mxu0 0.0
      %919 = vmatpush2.msra.mxu0 0.0
      %920 = vmatprep.subr.mxu0 0.0
      %921 = vmatpush2.msra.mxu0 0.0
      %922 = vmatprep.subr.mxu0 0.0
      %923 = vmatpush2.msra.mxu0 0.0
      %924 = vmatprep.subr.mxu0 0.0
      %925 = vmatpush2.msra.mxu0 0.0
      %926 = vmatprep.subr.mxu0 0.0
      %927 = vmatpush2.msra.mxu0 0.0
      %928 = vmatprep.subr.mxu0 0.0
      %929 = vmatpush2.msra.mxu0 0.0
      %930 = vmatprep.subr.mxu0 0.0
      %931 = vmatpush2.msra.mxu0 0.0
      %932 = vmatprep.subr.mxu0 %v631
      %933 = vmatpush2.msra.mxu0 %v630
      %934 = vmatprep.subr.mxu0 %v627
      %935 = vmatpush2.msra.mxu0 %v626
      %936 = vmatprep.mubr.f32.mxu0 %v657
      %937 = vmatmul.mubr.f32.gmra.mxu0 %v649
      %v938 = vpop.f32.mrf.mxu0
      %v939 = vadd.f32 %v868, %v938
      %v940 = vpop.f32.mrf.mxu0
      %v941 = vadd.f32 %v870, %v940
      %942 = vdwg.mxu0
      %v944 = vsel %vm656, %v222, 0
      %946 = vmatprep.subr.mxu0 %v284
      %947 = vmatpush1.msra.mxu0 %v283
      %948 = vmatprep.subr.mxu0 %v280
      %949 = vmatpush1.msra.mxu0 %v279
      %950 = vmatprep.subr.mxu0 %v276
      %951 = vmatpush1.msra.mxu0 %v275
      %952 = vmatprep.subr.mxu0 %v272
      %953 = vmatpush1.msra.mxu0 %v271
      %954 = vmatprep.subr.mxu0 %v268
      %955 = vmatpush1.msra.mxu0 %v267
      %956 = vmatprep.subr.mxu0 %v264
      %957 = vmatpush1.msra.mxu0 %v263
      %958 = vmatprep.subr.mxu0 %v260
      %959 = vmatpush1.msra.mxu0 %v259
      %960 = vmatprep.subr.mxu0 %v256
      %961 = vmatpush1.msra.mxu0 %v255
      %962 = vmatprep.subr.mxu0 %v252
      %963 = vmatpush1.msra.mxu0 %v251
      %964 = vmatprep.subr.mxu0 %v248
      %965 = vmatpush1.msra.mxu0 %v247
      %966 = vmatprep.subr.mxu0 %v244
      %967 = vmatpush1.msra.mxu0 %v243
      %968 = vmatprep.subr.mxu0 %v240
      %969 = vmatpush1.msra.mxu0 %v239
      %970 = vmatprep.subr.mxu0 %v236
      %971 = vmatpush1.msra.mxu0 %v235
      %972 = vmatprep.subr.mxu0 %v232
      %973 = vmatpush1.msra.mxu0 %v231
      %974 = vmatprep.subr.mxu0 %v228
      %975 = vmatpush1.msra.mxu0 %v227
      %976 = vmatprep.subr.mxu0 %v224
      %977 = vmatpush1.msra.mxu0 %v223
      %978 = vmatprep.subr.mxu0 %v348
      %979 = vmatpush2.msra.mxu0 %v347
      %980 = vmatprep.subr.mxu0 %v344
      %981 = vmatpush2.msra.mxu0 %v343
      %982 = vmatprep.subr.mxu0 %v340
      %983 = vmatpush2.msra.mxu0 %v339
      %984 = vmatprep.subr.mxu0 %v336
      %985 = vmatpush2.msra.mxu0 %v335
      %986 = vmatprep.subr.mxu0 %v332
      %987 = vmatpush2.msra.mxu0 %v331
      %988 = vmatprep.subr.mxu0 %v328
      %989 = vmatpush2.msra.mxu0 %v327
      %990 = vmatprep.subr.mxu0 %v324
      %991 = vmatpush2.msra.mxu0 %v323
      %992 = vmatprep.subr.mxu0 %v320
      %993 = vmatpush2.msra.mxu0 %v319
      %994 = vmatprep.subr.mxu0 %v316
      %995 = vmatpush2.msra.mxu0 %v315
      %996 = vmatprep.subr.mxu0 %v312
      %997 = vmatpush2.msra.mxu0 %v311
      %998 = vmatprep.subr.mxu0 %v308
      %999 = vmatpush2.msra.mxu0 %v307
      %1000 = vmatprep.subr.mxu0 %v304
      %1001 = vmatpush2.msra.mxu0 %v303
      %1002 = vmatprep.subr.mxu0 %v300
      %1003 = vmatpush2.msra.mxu0 %v299
      %1004 = vmatprep.subr.mxu0 %v296
      %1005 = vmatpush2.msra.mxu0 %v295
      %1006 = vmatprep.subr.mxu0 %v292
      %1007 = vmatpush2.msra.mxu0 %v291
      %1008 = vmatprep.subr.mxu0 %v288
      %1009 = vmatpush2.msra.mxu0 %v287
      %1010 = vmatprep.mubr.f32.mxu0 %v220
      %1011 = vmatmul.mubr.f32.gmra.mxu0 %v219
      %v1012 = vpop.f32.mrf.mxu0
      %v1013 = vadd.f32 %v797, %v1012
      %v1014 = vpop.f32.mrf.mxu0
      %v1015 = vadd.f32 %v799, %v1014
      %1016 = vdwg.mxu0
      %1017 = vmatprep.subr.mxu0 %v412
      %1018 = vmatpush1.msra.mxu0 %v411
      %1019 = vmatprep.subr.mxu0 %v408
      %1020 = vmatpush1.msra.mxu0 %v407
      %1021 = vmatprep.subr.mxu0 %v404
      %1022 = vmatpush1.msra.mxu0 %v403
      %1023 = vmatprep.subr.mxu0 %v400
      %1024 = vmatpush1.msra.mxu0 %v399
      %1025 = vmatprep.subr.mxu0 %v396
      %1026 = vmatpush1.msra.mxu0 %v395
      %1027 = vmatprep.subr.mxu0 %v392
      %1028 = vmatpush1.msra.mxu0 %v391
      %1029 = vmatprep.subr.mxu0 %v388
      %1030 = vmatpush1.msra.mxu0 %v387
      %1031 = vmatprep.subr.mxu0 %v384
      %1032 = vmatpush1.msra.mxu0 %v383
      %1033 = vmatprep.subr.mxu0 %v380
      %1034 = vmatpush1.msra.mxu0 %v379
      %1035 = vmatprep.subr.mxu0 %v376
      %1036 = vmatpush1.msra.mxu0 %v375
      %1037 = vmatprep.subr.mxu0 %v372
      %1038 = vmatpush1.msra.mxu0 %v371
      %1039 = vmatprep.subr.mxu0 %v368
      %1040 = vmatpush1.msra.mxu0 %v367
      %1041 = vmatprep.subr.mxu0 %v364
      %1042 = vmatpush1.msra.mxu0 %v363
      %1043 = vmatprep.subr.mxu0 %v360
      %1044 = vmatpush1.msra.mxu0 %v359
      %1045 = vmatprep.subr.mxu0 %v356
      %1046 = vmatpush1.msra.mxu0 %v355
      %1047 = vmatprep.subr.mxu0 %v352
      %1048 = vmatpush1.msra.mxu0 %v351
      %1049 = vmatprep.subr.mxu0 0.0
      %1050 = vmatpush2.msra.mxu0 0.0
      %1051 = vmatprep.subr.mxu0 0.0
      %1052 = vmatpush2.msra.mxu0 0.0
      %1053 = vmatprep.subr.mxu0 0.0
      %1054 = vmatpush2.msra.mxu0 0.0
      %1055 = vmatprep.subr.mxu0 0.0
      %1056 = vmatpush2.msra.mxu0 0.0
      %1057 = vmatprep.subr.mxu0 0.0
      %1058 = vmatpush2.msra.mxu0 0.0
      %1059 = vmatprep.subr.mxu0 0.0
      %1060 = vmatpush2.msra.mxu0 0.0
      %1061 = vmatprep.subr.mxu0 0.0
      %1062 = vmatpush2.msra.mxu0 0.0
      %1063 = vmatprep.subr.mxu0 0.0
      %1064 = vmatpush2.msra.mxu0 0.0
      %1065 = vmatprep.subr.mxu0 0.0
      %1066 = vmatpush2.msra.mxu0 0.0
      %1067 = vmatprep.subr.mxu0 0.0
      %1068 = vmatpush2.msra.mxu0 0.0
      %1069 = vmatprep.subr.mxu0 0.0
      %1070 = vmatpush2.msra.mxu0 0.0
      %1071 = vmatprep.subr.mxu0 0.0
      %1072 = vmatpush2.msra.mxu0 0.0
      %1073 = vmatprep.subr.mxu0 0.0
      %1074 = vmatpush2.msra.mxu0 0.0
      %1075 = vmatprep.subr.mxu0 0.0
      %1076 = vmatpush2.msra.mxu0 0.0
      %1077 = vmatprep.subr.mxu0 %v420
      %1078 = vmatpush2.msra.mxu0 %v419
      %1079 = vmatprep.subr.mxu0 %v416
      %1080 = vmatpush2.msra.mxu0 %v415
      %1081 = vmatprep.mubr.f32.mxu0 %v944
      %1082 = vmatmul.mubr.f32.gmra.mxu0 %v221
      %v1083 = vpop.f32.mrf.mxu0
      %v1084 = vadd.f32 %v1013, %v1083
      %v1085 = vpop.f32.mrf.mxu0
      %v1086 = vadd.f32 %v1015, %v1085
      %1087 = vdwg.mxu0
      %1088 = vmatprep.subr.mxu0 %v286
      %1089 = vmatpush1.msra.mxu0 %v285
      %1090 = vmatprep.subr.mxu0 %v282
      %1091 = vmatpush1.msra.mxu0 %v281
      %1092 = vmatprep.subr.mxu0 %v278
      %1093 = vmatpush1.msra.mxu0 %v277
      %1094 = vmatprep.subr.mxu0 %v274
      %1095 = vmatpush1.msra.mxu0 %v273
      %1096 = vmatprep.subr.mxu0 %v270
      %1097 = vmatpush1.msra.mxu0 %v269
      %1098 = vmatprep.subr.mxu0 %v266
      %1099 = vmatpush1.msra.mxu0 %v265
      %1100 = vmatprep.subr.mxu0 %v262
      %1101 = vmatpush1.msra.mxu0 %v261
      %1102 = vmatprep.subr.mxu0 %v258
      %1103 = vmatpush1.msra.mxu0 %v257
      %1104 = vmatprep.subr.mxu0 %v254
      %1105 = vmatpush1.msra.mxu0 %v253
      %1106 = vmatprep.subr.mxu0 %v250
      %1107 = vmatpush1.msra.mxu0 %v249
      %1108 = vmatprep.subr.mxu0 %v246
      %1109 = vmatpush1.msra.mxu0 %v245
      %1110 = vmatprep.subr.mxu0 %v242
      %1111 = vmatpush1.msra.mxu0 %v241
      %1112 = vmatprep.subr.mxu0 %v238
      %1113 = vmatpush1.msra.mxu0 %v237
      %1114 = vmatprep.subr.mxu0 %v234
      %1115 = vmatpush1.msra.mxu0 %v233
      %1116 = vmatprep.subr.mxu0 %v230
      %1117 = vmatpush1.msra.mxu0 %v229
      %1118 = vmatprep.subr.mxu0 %v226
      %1119 = vmatpush1.msra.mxu0 %v225
      %1120 = vmatprep.subr.mxu0 %v350
      %1121 = vmatpush2.msra.mxu0 %v349
      %1122 = vmatprep.subr.mxu0 %v346
      %1123 = vmatpush2.msra.mxu0 %v345
      %1124 = vmatprep.subr.mxu0 %v342
      %1125 = vmatpush2.msra.mxu0 %v341
      %1126 = vmatprep.subr.mxu0 %v338
      %1127 = vmatpush2.msra.mxu0 %v337
      %1128 = vmatprep.subr.mxu0 %v334
      %1129 = vmatpush2.msra.mxu0 %v333
      %1130 = vmatprep.subr.mxu0 %v330
      %1131 = vmatpush2.msra.mxu0 %v329
      %1132 = vmatprep.subr.mxu0 %v326
      %1133 = vmatpush2.msra.mxu0 %v325
      %1134 = vmatprep.subr.mxu0 %v322
      %1135 = vmatpush2.msra.mxu0 %v321
      %1136 = vmatprep.subr.mxu0 %v318
      %1137 = vmatpush2.msra.mxu0 %v317
      %1138 = vmatprep.subr.mxu0 %v314
      %1139 = vmatpush2.msra.mxu0 %v313
      %1140 = vmatprep.subr.mxu0 %v310
      %1141 = vmatpush2.msra.mxu0 %v309
      %1142 = vmatprep.subr.mxu0 %v306
      %1143 = vmatpush2.msra.mxu0 %v305
      %1144 = vmatprep.subr.mxu0 %v302
      %1145 = vmatpush2.msra.mxu0 %v301
      %1146 = vmatprep.subr.mxu0 %v298
      %1147 = vmatpush2.msra.mxu0 %v297
      %1148 = vmatprep.subr.mxu0 %v294
      %1149 = vmatpush2.msra.mxu0 %v293
      %1150 = vmatprep.subr.mxu0 %v290
      %1151 = vmatpush2.msra.mxu0 %v289
      %1152 = vmatprep.mubr.f32.mxu0 %v220
      %1153 = vmatmul.mubr.f32.gmra.mxu0 %v219
      %v1154 = vpop.f32.mrf.mxu0
      %v1155 = vadd.f32 %v939, %v1154
      %v1156 = vpop.f32.mrf.mxu0
      %v1157 = vadd.f32 %v941, %v1156
      %1158 = vdwg.mxu0
      %1159 = vmatprep.subr.mxu0 %v414
      %1160 = vmatpush1.msra.mxu0 %v413
      %1161 = vmatprep.subr.mxu0 %v410
      %1162 = vmatpush1.msra.mxu0 %v409
      %1163 = vmatprep.subr.mxu0 %v406
      %1164 = vmatpush1.msra.mxu0 %v405
      %1165 = vmatprep.subr.mxu0 %v402
      %1166 = vmatpush1.msra.mxu0 %v401
      %1167 = vmatprep.subr.mxu0 %v398
      %1168 = vmatpush1.msra.mxu0 %v397
      %1169 = vmatprep.subr.mxu0 %v394
      %1170 = vmatpush1.msra.mxu0 %v393
      %1171 = vmatprep.subr.mxu0 %v390
      %1172 = vmatpush1.msra.mxu0 %v389
      %1173 = vmatprep.subr.mxu0 %v386
      %1174 = vmatpush1.msra.mxu0 %v385
      %1175 = vmatprep.subr.mxu0 %v382
      %1176 = vmatpush1.msra.mxu0 %v381
      %1177 = vmatprep.subr.mxu0 %v378
      %1178 = vmatpush1.msra.mxu0 %v377
      %1179 = vmatprep.subr.mxu0 %v374
      %1180 = vmatpush1.msra.mxu0 %v373
      %1181 = vmatprep.subr.mxu0 %v370
      %1182 = vmatpush1.msra.mxu0 %v369
      %1183 = vmatprep.subr.mxu0 %v366
      %1184 = vmatpush1.msra.mxu0 %v365
      %1185 = vmatprep.subr.mxu0 %v362
      %1186 = vmatpush1.msra.mxu0 %v361
      %1187 = vmatprep.subr.mxu0 %v358
      %1188 = vmatpush1.msra.mxu0 %v357
      %1189 = vmatprep.subr.mxu0 %v354
      %1190 = vmatpush1.msra.mxu0 %v353
      %1191 = vmatprep.subr.mxu0 0.0
      %1192 = vmatpush2.msra.mxu0 0.0
      %1193 = vmatprep.subr.mxu0 0.0
      %1194 = vmatpush2.msra.mxu0 0.0
      %1195 = vmatprep.subr.mxu0 0.0
      %1196 = vmatpush2.msra.mxu0 0.0
      %1197 = vmatprep.subr.mxu0 0.0
      %1198 = vmatpush2.msra.mxu0 0.0
      %1199 = vmatprep.subr.mxu0 0.0
      %1200 = vmatpush2.msra.mxu0 0.0
      %1201 = vmatprep.subr.mxu0 0.0
      %1202 = vmatpush2.msra.mxu0 0.0
      %1203 = vmatprep.subr.mxu0 0.0
      %1204 = vmatpush2.msra.mxu0 0.0
      %1205 = vmatprep.subr.mxu0 0.0
      %1206 = vmatpush2.msra.mxu0 0.0
      %1207 = vmatprep.subr.mxu0 0.0
      %1208 = vmatpush2.msra.mxu0 0.0
      %1209 = vmatprep.subr.mxu0 0.0
      %1210 = vmatpush2.msra.mxu0 0.0
      %1211 = vmatprep.subr.mxu0 0.0
      %1212 = vmatpush2.msra.mxu0 0.0
      %1213 = vmatprep.subr.mxu0 0.0
      %1214 = vmatpush2.msra.mxu0 0.0
      %1215 = vmatprep.subr.mxu0 0.0
      %1216 = vmatpush2.msra.mxu0 0.0
      %1217 = vmatprep.subr.mxu0 0.0
      %1218 = vmatpush2.msra.mxu0 0.0
      %1219 = vmatprep.subr.mxu0 %v422
      %1220 = vmatpush2.msra.mxu0 %v421
      %1221 = vmatprep.subr.mxu0 %v418
      %1222 = vmatpush2.msra.mxu0 %v417
      %1223 = vmatprep.mubr.f32.mxu0 %v944
      %1224 = vmatmul.mubr.f32.gmra.mxu0 %v221
      %v1225 = vpop.f32.mrf.mxu0
      %v1226 = vadd.f32 %v1155, %v1225
      %v1227 = vpop.f32.mrf.mxu0
      %v1228 = vadd.f32 %v1157, %v1227
      %1229 = vdwg.mxu0
      %v1230 = vld [vmem:[%s205] sm:$0xfc]
      %v1231 = vld [vmem:[%s205 + $0x8] sm:$0xfc]
      %v1232 = vld [vmem:[%s205 + $0x10] sm:$0xfc]
      %v1233 = vld [vmem:[%s205 + $0x18] sm:$0xfc]
      %v1234 = vld [vmem:[%s205 + $0x20] sm:$0x3]
      %v1235 = vld [vmem:[%s205 + $0x28] sm:$0x3]
      %v1236 = vld [vmem:[%s205 + $0x30] sm:$0x3]
      %v1237 = vld [vmem:[%s205 + $0x38] sm:$0x3]
      %s1238 = scalar_lea.vmem %s1, 3200
      %v1239 = vld [vmem:[%s1238] sm:$0xff]
      %v1240 = vld [vmem:[%s1238 + $0x8] sm:$0xff]
      %v1241 = vld [vmem:[%s1238 + $0x10] sm:$0xff]
      %v1242 = vld [vmem:[%s1238 + $0x18] sm:$0xff]
      %v1243 = vld [vmem:[%s1238 + $0x20] sm:$0xff]
      %v1244 = vld [vmem:[%s1238 + $0x28] sm:$0xff]
      %v1245 = vld [vmem:[%s1238 + $0x30] sm:$0xff]
      %v1246 = vld [vmem:[%s1238 + $0x38] sm:$0xff]
      %v1247 = vld [vmem:[%s1238 + $0x40] sm:$0xff]
      %v1248 = vld [vmem:[%s1238 + $0x48] sm:$0xff]
      %v1249 = vld [vmem:[%s1238 + $0x50] sm:$0xff]
      %v1250 = vld [vmem:[%s1238 + $0x58] sm:$0xff]
      %v1251 = vld [vmem:[%s1238 + $0x60] sm:$0xff]
      %v1252 = vld [vmem:[%s1238 + $0x68] sm:$0xff]
      %v1253 = vld [vmem:[%s1238 + $0x70] sm:$0xff]
      %v1254 = vld [vmem:[%s1238 + $0x78] sm:$0xff]
      %v1255 = vld [vmem:[%s1238 + $0x80] sm:$0xff]
      %v1256 = vld [vmem:[%s1238 + $0x88] sm:$0xff]
      %v1257 = vld [vmem:[%s1238 + $0x90] sm:$0xff]
      %v1258 = vld [vmem:[%s1238 + $0x98] sm:$0xff]
      %v1259 = vld [vmem:[%s1238 + $0xa0] sm:$0xff]
      %v1260 = vld [vmem:[%s1238 + $0xa8] sm:$0xff]
      %v1261 = vld [vmem:[%s1238 + $0xb0] sm:$0xff]
      %v1262 = vld [vmem:[%s1238 + $0xb8] sm:$0xff]
      %v1263 = vld [vmem:[%s1238 + $0xc0] sm:$0xff]
      %v1264 = vld [vmem:[%s1238 + $0xc8] sm:$0xff]
      %v1265 = vld [vmem:[%s1238 + $0xd0] sm:$0xff]
      %v1266 = vld [vmem:[%s1238 + $0xd8] sm:$0xff]
      %v1267 = vld [vmem:[%s1238 + $0xe0] sm:$0xff]
      %v1268 = vld [vmem:[%s1238 + $0xe8] sm:$0xff]
      %v1269 = vld [vmem:[%s1238 + $0xf0] sm:$0xff]
      %v1270 = vld [vmem:[%s1238 + $0xf8] sm:$0xff]
      %v1271 = vld [vmem:[%s1238 + $0x100] sm:$0xff]
      %v1272 = vld [vmem:[%s1238 + $0x108] sm:$0xff]
      %v1273 = vld [vmem:[%s1238 + $0x110] sm:$0xff]
      %v1274 = vld [vmem:[%s1238 + $0x118] sm:$0xff]
      %v1275 = vld [vmem:[%s1238 + $0x120] sm:$0xff]
      %v1276 = vld [vmem:[%s1238 + $0x128] sm:$0xff]
      %v1277 = vld [vmem:[%s1238 + $0x130] sm:$0xff]
      %v1278 = vld [vmem:[%s1238 + $0x138] sm:$0xff]
      %v1279 = vld [vmem:[%s1238 + $0x140] sm:$0xff]
      %v1280 = vld [vmem:[%s1238 + $0x148] sm:$0xff]
      %v1281 = vld [vmem:[%s1238 + $0x150] sm:$0xff]
      %v1282 = vld [vmem:[%s1238 + $0x158] sm:$0xff]
      %v1283 = vld [vmem:[%s1238 + $0x160] sm:$0xff]
      %v1284 = vld [vmem:[%s1238 + $0x168] sm:$0xff]
      %v1285 = vld [vmem:[%s1238 + $0x170] sm:$0xff]
      %v1286 = vld [vmem:[%s1238 + $0x178] sm:$0xff]
      %v1287 = vld [vmem:[%s1238 + $0x180] sm:$0xff]
      %v1288 = vld [vmem:[%s1238 + $0x188] sm:$0xff]
      %v1289 = vld [vmem:[%s1238 + $0x190] sm:$0xff]
      %v1290 = vld [vmem:[%s1238 + $0x198] sm:$0xff]
      %v1291 = vld [vmem:[%s1238 + $0x1a0] sm:$0xff]
      %v1292 = vld [vmem:[%s1238 + $0x1a8] sm:$0xff]
      %v1293 = vld [vmem:[%s1238 + $0x1b0] sm:$0xff]
      %v1294 = vld [vmem:[%s1238 + $0x1b8] sm:$0xff]
      %v1295 = vld [vmem:[%s1238 + $0x1c0] sm:$0xff]
      %v1296 = vld [vmem:[%s1238 + $0x1c8] sm:$0xff]
      %v1297 = vld [vmem:[%s1238 + $0x1d0] sm:$0xff]
      %v1298 = vld [vmem:[%s1238 + $0x1d8] sm:$0xff]
      %v1299 = vld [vmem:[%s1238 + $0x1e0] sm:$0xff]
      %v1300 = vld [vmem:[%s1238 + $0x1e8] sm:$0xff]
      %v1301 = vld [vmem:[%s1238 + $0x1f0] sm:$0xff]
      %v1302 = vld [vmem:[%s1238 + $0x1f8] sm:$0xff]
      %v1303 = vld [vmem:[%s1238 + $0x200] sm:$0xff]
      %v1304 = vld [vmem:[%s1238 + $0x208] sm:$0xff]
      %v1305 = vld [vmem:[%s1238 + $0x210] sm:$0xff]
      %v1306 = vld [vmem:[%s1238 + $0x218] sm:$0xff]
      %v1307 = vld [vmem:[%s1238 + $0x220] sm:$0xff]
      %v1308 = vld [vmem:[%s1238 + $0x228] sm:$0xff]
      %v1309 = vld [vmem:[%s1238 + $0x230] sm:$0xff]
      %v1310 = vld [vmem:[%s1238 + $0x238] sm:$0xff]
      %v1311 = vld [vmem:[%s1238 + $0x240] sm:$0xff]
      %v1312 = vld [vmem:[%s1238 + $0x248] sm:$0xff]
      %v1313 = vld [vmem:[%s1238 + $0x250] sm:$0xff]
      %v1314 = vld [vmem:[%s1238 + $0x258] sm:$0xff]
      %v1315 = vld [vmem:[%s1238 + $0x260] sm:$0xff]
      %v1316 = vld [vmem:[%s1238 + $0x268] sm:$0xff]
      %v1317 = vld [vmem:[%s1238 + $0x270] sm:$0xff]
      %v1318 = vld [vmem:[%s1238 + $0x278] sm:$0xff]
      %v1319 = vld [vmem:[%s1238 + $0x280] sm:$0xff]
      %v1320 = vld [vmem:[%s1238 + $0x288] sm:$0xff]
      %v1321 = vld [vmem:[%s1238 + $0x290] sm:$0xff]
      %v1322 = vld [vmem:[%s1238 + $0x298] sm:$0xff]
      %v1323 = vld [vmem:[%s1238 + $0x2a0] sm:$0xff]
      %v1324 = vld [vmem:[%s1238 + $0x2a8] sm:$0xff]
      %v1325 = vld [vmem:[%s1238 + $0x2b0] sm:$0xff]
      %v1326 = vld [vmem:[%s1238 + $0x2b8] sm:$0xff]
      %v1327 = vld [vmem:[%s1238 + $0x2c0] sm:$0xff]
      %v1328 = vld [vmem:[%s1238 + $0x2c8] sm:$0xff]
      %v1329 = vld [vmem:[%s1238 + $0x2d0] sm:$0xff]
      %v1330 = vld [vmem:[%s1238 + $0x2d8] sm:$0xff]
      %v1331 = vld [vmem:[%s1238 + $0x2e0] sm:$0xff]
      %v1332 = vld [vmem:[%s1238 + $0x2e8] sm:$0xff]
      %v1333 = vld [vmem:[%s1238 + $0x2f0] sm:$0xff]
      %v1334 = vld [vmem:[%s1238 + $0x2f8] sm:$0xff]
      %v1335 = vld [vmem:[%s1238 + $0x300] sm:$0xff]
      %v1336 = vld [vmem:[%s1238 + $0x308] sm:$0xff]
      %v1337 = vld [vmem:[%s1238 + $0x310] sm:$0xff]
      %v1338 = vld [vmem:[%s1238 + $0x318] sm:$0xff]
      %v1339 = vld [vmem:[%s1238 + $0x320] sm:$0xff]
      %v1340 = vld [vmem:[%s1238 + $0x328] sm:$0xff]
      %v1341 = vld [vmem:[%s1238 + $0x330] sm:$0xff]
      %v1342 = vld [vmem:[%s1238 + $0x338] sm:$0xff]
      %v1343 = vld [vmem:[%s1238 + $0x340] sm:$0xff]
      %v1344 = vld [vmem:[%s1238 + $0x348] sm:$0xff]
      %v1345 = vld [vmem:[%s1238 + $0x350] sm:$0xff]
      %v1346 = vld [vmem:[%s1238 + $0x358] sm:$0xff]
      %v1347 = vld [vmem:[%s1238 + $0x360] sm:$0xff]
      %v1348 = vld [vmem:[%s1238 + $0x368] sm:$0xff]
      %v1349 = vld [vmem:[%s1238 + $0x370] sm:$0xff]
      %v1350 = vld [vmem:[%s1238 + $0x378] sm:$0xff]
      %v1351 = vld [vmem:[%s1238 + $0x380] sm:$0xff]
      %v1352 = vld [vmem:[%s1238 + $0x388] sm:$0xff]
      %v1353 = vld [vmem:[%s1238 + $0x390] sm:$0xff]
      %v1354 = vld [vmem:[%s1238 + $0x398] sm:$0xff]
      %v1355 = vld [vmem:[%s1238 + $0x3a0] sm:$0xff]
      %v1356 = vld [vmem:[%s1238 + $0x3a8] sm:$0xff]
      %v1357 = vld [vmem:[%s1238 + $0x3b0] sm:$0xff]
      %v1358 = vld [vmem:[%s1238 + $0x3b8] sm:$0xff]
      %v1359 = vld [vmem:[%s1238 + $0x3c0] sm:$0xff]
      %v1360 = vld [vmem:[%s1238 + $0x3c8] sm:$0xff]
      %v1361 = vld [vmem:[%s1238 + $0x3d0] sm:$0xff]
      %v1362 = vld [vmem:[%s1238 + $0x3d8] sm:$0xff]
      %v1363 = vld [vmem:[%s1238 + $0x3e0] sm:$0xff]
      %v1364 = vld [vmem:[%s1238 + $0x3e8] sm:$0xff]
      %v1365 = vld [vmem:[%s1238 + $0x3f0] sm:$0xff]
      %v1366 = vld [vmem:[%s1238 + $0x3f8] sm:$0xff]
      %v1367 = vld [vmem:[%s1238 + $0x400] sm:$0xff]
      %v1368 = vld [vmem:[%s1238 + $0x408] sm:$0xff]
      %v1369 = vld [vmem:[%s1238 + $0x410] sm:$0xff]
      %v1370 = vld [vmem:[%s1238 + $0x418] sm:$0xff]
      %v1371 = vld [vmem:[%s1238 + $0x420] sm:$0xff]
      %v1372 = vld [vmem:[%s1238 + $0x428] sm:$0xff]
      %v1373 = vld [vmem:[%s1238 + $0x430] sm:$0xff]
      %v1374 = vld [vmem:[%s1238 + $0x438] sm:$0xff]
      %v1375 = vld [vmem:[%s1238 + $0x440] sm:$0xff]
      %v1376 = vld [vmem:[%s1238 + $0x448] sm:$0xff]
      %v1377 = vld [vmem:[%s1238 + $0x450] sm:$0xff]
      %v1378 = vld [vmem:[%s1238 + $0x458] sm:$0xff]
      %v1379 = vld [vmem:[%s1238 + $0x460] sm:$0xff]
      %v1380 = vld [vmem:[%s1238 + $0x468] sm:$0xff]
      %v1381 = vld [vmem:[%s1238 + $0x470] sm:$0xff]
      %v1382 = vld [vmem:[%s1238 + $0x478] sm:$0xff]
      %v1383 = vld [vmem:[%s1238 + $0x480] sm:$0xff]
      %v1384 = vld [vmem:[%s1238 + $0x488] sm:$0xff]
      %v1385 = vld [vmem:[%s1238 + $0x490] sm:$0xff]
      %v1386 = vld [vmem:[%s1238 + $0x498] sm:$0xff]
      %v1387 = vld [vmem:[%s1238 + $0x4a0] sm:$0xff]
      %v1388 = vld [vmem:[%s1238 + $0x4a8] sm:$0xff]
      %v1389 = vld [vmem:[%s1238 + $0x4b0] sm:$0xff]
      %v1390 = vld [vmem:[%s1238 + $0x4b8] sm:$0xff]
      %v1391 = vld [vmem:[%s1238 + $0x4c0] sm:$0xff]
      %v1392 = vld [vmem:[%s1238 + $0x4c8] sm:$0xff]
      %v1393 = vld [vmem:[%s1238 + $0x4d0] sm:$0xff]
      %v1394 = vld [vmem:[%s1238 + $0x4d8] sm:$0xff]
      %v1395 = vld [vmem:[%s1238 + $0x4e0] sm:$0xff]
      %v1396 = vld [vmem:[%s1238 + $0x4e8] sm:$0xff]
      %v1397 = vld [vmem:[%s1238 + $0x4f0] sm:$0xff]
      %v1398 = vld [vmem:[%s1238 + $0x4f8] sm:$0xff]
      %v1399 = vld [vmem:[%s1238 + $0x500] sm:$0xff]
      %v1400 = vld [vmem:[%s1238 + $0x508] sm:$0xff]
      %v1401 = vld [vmem:[%s1238 + $0x510] sm:$0xff]
      %v1402 = vld [vmem:[%s1238 + $0x518] sm:$0xff]
      %v1403 = vld [vmem:[%s1238 + $0x520] sm:$0xff]
      %v1404 = vld [vmem:[%s1238 + $0x528] sm:$0xff]
      %v1405 = vld [vmem:[%s1238 + $0x530] sm:$0xff]
      %v1406 = vld [vmem:[%s1238 + $0x538] sm:$0xff]
      %v1407 = vld [vmem:[%s1238 + $0x540] sm:$0xff]
      %v1408 = vld [vmem:[%s1238 + $0x548] sm:$0xff]
      %v1409 = vld [vmem:[%s1238 + $0x550] sm:$0xff]
      %v1410 = vld [vmem:[%s1238 + $0x558] sm:$0xff]
      %v1411 = vld [vmem:[%s1238 + $0x560] sm:$0xff]
      %v1412 = vld [vmem:[%s1238 + $0x568] sm:$0xff]
      %v1413 = vld [vmem:[%s1238 + $0x570] sm:$0xff]
      %v1414 = vld [vmem:[%s1238 + $0x578] sm:$0xff]
      %v1415 = vld [vmem:[%s1238 + $0x580] sm:$0xff]
      %v1416 = vld [vmem:[%s1238 + $0x588] sm:$0xff]
      %v1417 = vld [vmem:[%s1238 + $0x590] sm:$0xff]
      %v1418 = vld [vmem:[%s1238 + $0x598] sm:$0xff]
      %v1419 = vld [vmem:[%s1238 + $0x5a0] sm:$0xff]
      %v1420 = vld [vmem:[%s1238 + $0x5a8] sm:$0xff]
      %v1421 = vld [vmem:[%s1238 + $0x5b0] sm:$0xff]
      %v1422 = vld [vmem:[%s1238 + $0x5b8] sm:$0xff]
      %v1423 = vld [vmem:[%s1238 + $0x5c0] sm:$0xff]
      %v1424 = vld [vmem:[%s1238 + $0x5c8] sm:$0xff]
      %v1425 = vld [vmem:[%s1238 + $0x5d0] sm:$0xff]
      %v1426 = vld [vmem:[%s1238 + $0x5d8] sm:$0xff]
      %v1427 = vld [vmem:[%s1238 + $0x5e0] sm:$0xff]
      %v1428 = vld [vmem:[%s1238 + $0x5e8] sm:$0xff]
      %v1429 = vld [vmem:[%s1238 + $0x5f0] sm:$0xff]
      %v1430 = vld [vmem:[%s1238 + $0x5f8] sm:$0xff]
      %v1431 = vld [vmem:[%s1238 + $0x600] sm:$0xff]
      %v1432 = vld [vmem:[%s1238 + $0x608] sm:$0xff]
      %v1433 = vld [vmem:[%s1238 + $0x610] sm:$0xff]
      %v1434 = vld [vmem:[%s1238 + $0x618] sm:$0xff]
      %v1435 = vld [vmem:[%s1238 + $0x620] sm:$0xff]
      %v1436 = vld [vmem:[%s1238 + $0x628] sm:$0xff]
      %v1437 = vld [vmem:[%s1238 + $0x630] sm:$0xff]
      %v1438 = vld [vmem:[%s1238 + $0x638] sm:$0xff]
      %vm1447 = vcmask 1045504
      %v1448 = vrot.slane %v1230, 2
      %v1449 = vrot.slane %v1234, 2
      %v1450 = vsel %vm1447, %v1448, %v1449
      %v1451 = vrot.slane %v1231, 2
      %v1452 = vrot.slane %v1235, 2
      %v1453 = vsel %vm1447, %v1451, %v1452
      %v1454 = vrot.slane %v1232, 2
      %v1455 = vrot.slane %v1236, 2
      %v1456 = vsel %vm1447, %v1454, %v1455
      %v1457 = vrot.slane %v1233, 2
      %v1458 = vrot.slane %v1237, 2
      %v1459 = vsel %vm1447, %v1457, %v1458
      %v1463 = vsel %vm656, %v1459, 0
      %1465 = vmatprep.subr.mxu0 %v1300
      %1466 = vmatpush1.msra.mxu0 %v1299
      %1467 = vmatprep.subr.mxu0 %v1296
      %1468 = vmatpush1.msra.mxu0 %v1295
      %1469 = vmatprep.subr.mxu0 %v1292
      %1470 = vmatpush1.msra.mxu0 %v1291
      %1471 = vmatprep.subr.mxu0 %v1288
      %1472 = vmatpush1.msra.mxu0 %v1287
      %1473 = vmatprep.subr.mxu0 %v1284
      %1474 = vmatpush1.msra.mxu0 %v1283
      %1475 = vmatprep.subr.mxu0 %v1280
      %1476 = vmatpush1.msra.mxu0 %v1279
      %1477 = vmatprep.subr.mxu0 %v1276
      %1478 = vmatpush1.msra.mxu0 %v1275
      %1479 = vmatprep.subr.mxu0 %v1272
      %1480 = vmatpush1.msra.mxu0 %v1271
      %1481 = vmatprep.subr.mxu0 %v1268
      %1482 = vmatpush1.msra.mxu0 %v1267
      %1483 = vmatprep.subr.mxu0 %v1264
      %1484 = vmatpush1.msra.mxu0 %v1263
      %1485 = vmatprep.subr.mxu0 %v1260
      %1486 = vmatpush1.msra.mxu0 %v1259
      %1487 = vmatprep.subr.mxu0 %v1256
      %1488 = vmatpush1.msra.mxu0 %v1255
      %1489 = vmatprep.subr.mxu0 %v1252
      %1490 = vmatpush1.msra.mxu0 %v1251
      %1491 = vmatprep.subr.mxu0 %v1248
      %1492 = vmatpush1.msra.mxu0 %v1247
      %1493 = vmatprep.subr.mxu0 %v1244
      %1494 = vmatpush1.msra.mxu0 %v1243
      %1495 = vmatprep.subr.mxu0 %v1240
      %1496 = vmatpush1.msra.mxu0 %v1239
      %1497 = vmatprep.subr.mxu0 %v1364
      %1498 = vmatpush2.msra.mxu0 %v1363
      %1499 = vmatprep.subr.mxu0 %v1360
      %1500 = vmatpush2.msra.mxu0 %v1359
      %1501 = vmatprep.subr.mxu0 %v1356
      %1502 = vmatpush2.msra.mxu0 %v1355
      %1503 = vmatprep.subr.mxu0 %v1352
      %1504 = vmatpush2.msra.mxu0 %v1351
      %1505 = vmatprep.subr.mxu0 %v1348
      %1506 = vmatpush2.msra.mxu0 %v1347
      %1507 = vmatprep.subr.mxu0 %v1344
      %1508 = vmatpush2.msra.mxu0 %v1343
      %1509 = vmatprep.subr.mxu0 %v1340
      %1510 = vmatpush2.msra.mxu0 %v1339
      %1511 = vmatprep.subr.mxu0 %v1336
      %1512 = vmatpush2.msra.mxu0 %v1335
      %1513 = vmatprep.subr.mxu0 %v1332
      %1514 = vmatpush2.msra.mxu0 %v1331
      %1515 = vmatprep.subr.mxu0 %v1328
      %1516 = vmatpush2.msra.mxu0 %v1327
      %1517 = vmatprep.subr.mxu0 %v1324
      %1518 = vmatpush2.msra.mxu0 %v1323
      %1519 = vmatprep.subr.mxu0 %v1320
      %1520 = vmatpush2.msra.mxu0 %v1319
      %1521 = vmatprep.subr.mxu0 %v1316
      %1522 = vmatpush2.msra.mxu0 %v1315
      %1523 = vmatprep.subr.mxu0 %v1312
      %1524 = vmatpush2.msra.mxu0 %v1311
      %1525 = vmatprep.subr.mxu0 %v1308
      %1526 = vmatpush2.msra.mxu0 %v1307
      %1527 = vmatprep.subr.mxu0 %v1304
      %1528 = vmatpush2.msra.mxu0 %v1303
      %1529 = vmatprep.mubr.f32.mxu0 %v1453
      %1530 = vmatmul.mubr.f32.gmra.mxu0 %v1450
      %v1531 = vpop.f32.mrf.mxu0
      %v1532 = vadd.f32 0.0, %v1531
      %v1533 = vpop.f32.mrf.mxu0
      %v1534 = vadd.f32 0.0, %v1533
      %1535 = vdwg.mxu0
      %1536 = vmatprep.subr.mxu0 %v1428
      %1537 = vmatpush1.msra.mxu0 %v1427
      %1538 = vmatprep.subr.mxu0 %v1424
      %1539 = vmatpush1.msra.mxu0 %v1423
      %1540 = vmatprep.subr.mxu0 %v1420
      %1541 = vmatpush1.msra.mxu0 %v1419
      %1542 = vmatprep.subr.mxu0 %v1416
      %1543 = vmatpush1.msra.mxu0 %v1415
      %1544 = vmatprep.subr.mxu0 %v1412
      %1545 = vmatpush1.msra.mxu0 %v1411
      %1546 = vmatprep.subr.mxu0 %v1408
      %1547 = vmatpush1.msra.mxu0 %v1407
      %1548 = vmatprep.subr.mxu0 %v1404
      %1549 = vmatpush1.msra.mxu0 %v1403
      %1550 = vmatprep.subr.mxu0 %v1400
      %1551 = vmatpush1.msra.mxu0 %v1399
      %1552 = vmatprep.subr.mxu0 %v1396
      %1553 = vmatpush1.msra.mxu0 %v1395
      %1554 = vmatprep.subr.mxu0 %v1392
      %1555 = vmatpush1.msra.mxu0 %v1391
      %1556 = vmatprep.subr.mxu0 %v1388
      %1557 = vmatpush1.msra.mxu0 %v1387
      %1558 = vmatprep.subr.mxu0 %v1384
      %1559 = vmatpush1.msra.mxu0 %v1383
      %1560 = vmatprep.subr.mxu0 %v1380
      %1561 = vmatpush1.msra.mxu0 %v1379
      %1562 = vmatprep.subr.mxu0 %v1376
      %1563 = vmatpush1.msra.mxu0 %v1375
      %1564 = vmatprep.subr.mxu0 %v1372
      %1565 = vmatpush1.msra.mxu0 %v1371
      %1566 = vmatprep.subr.mxu0 %v1368
      %1567 = vmatpush1.msra.mxu0 %v1367
      %1568 = vmatprep.subr.mxu0 0.0
      %1569 = vmatpush2.msra.mxu0 0.0
      %1570 = vmatprep.subr.mxu0 0.0
      %1571 = vmatpush2.msra.mxu0 0.0
      %1572 = vmatprep.subr.mxu0 0.0
      %1573 = vmatpush2.msra.mxu0 0.0
      %1574 = vmatprep.subr.mxu0 0.0
      %1575 = vmatpush2.msra.mxu0 0.0
      %1576 = vmatprep.subr.mxu0 0.0
      %1577 = vmatpush2.msra.mxu0 0.0
      %1578 = vmatprep.subr.mxu0 0.0
      %1579 = vmatpush2.msra.mxu0 0.0
      %1580 = vmatprep.subr.mxu0 0.0
      %1581 = vmatpush2.msra.mxu0 0.0
      %1582 = vmatprep.subr.mxu0 0.0
      %1583 = vmatpush2.msra.mxu0 0.0
      %1584 = vmatprep.subr.mxu0 0.0
      %1585 = vmatpush2.msra.mxu0 0.0
      %1586 = vmatprep.subr.mxu0 0.0
      %1587 = vmatpush2.msra.mxu0 0.0
      %1588 = vmatprep.subr.mxu0 0.0
      %1589 = vmatpush2.msra.mxu0 0.0
      %1590 = vmatprep.subr.mxu0 0.0
      %1591 = vmatpush2.msra.mxu0 0.0
      %1592 = vmatprep.subr.mxu0 0.0
      %1593 = vmatpush2.msra.mxu0 0.0
      %1594 = vmatprep.subr.mxu0 0.0
      %1595 = vmatpush2.msra.mxu0 0.0
      %1596 = vmatprep.subr.mxu0 %v1436
      %1597 = vmatpush2.msra.mxu0 %v1435
      %1598 = vmatprep.subr.mxu0 %v1432
      %1599 = vmatpush2.msra.mxu0 %v1431
      %1600 = vmatprep.mubr.f32.mxu0 %v1463
      %1601 = vmatmul.mubr.f32.gmra.mxu0 %v1456
      %v1602 = vpop.f32.mrf.mxu0
      %v1603 = vadd.f32 %v1532, %v1602
      %v1604 = vpop.f32.mrf.mxu0
      %v1605 = vadd.f32 %v1534, %v1604
      %1606 = vdwg.mxu0
      %1607 = vmatprep.subr.mxu0 %v1302
      %1608 = vmatpush1.msra.mxu0 %v1301
      %1609 = vmatprep.subr.mxu0 %v1298
      %1610 = vmatpush1.msra.mxu0 %v1297
      %1611 = vmatprep.subr.mxu0 %v1294
      %1612 = vmatpush1.msra.mxu0 %v1293
      %1613 = vmatprep.subr.mxu0 %v1290
      %1614 = vmatpush1.msra.mxu0 %v1289
      %1615 = vmatprep.subr.mxu0 %v1286
      %1616 = vmatpush1.msra.mxu0 %v1285
      %1617 = vmatprep.subr.mxu0 %v1282
      %1618 = vmatpush1.msra.mxu0 %v1281
      %1619 = vmatprep.subr.mxu0 %v1278
      %1620 = vmatpush1.msra.mxu0 %v1277
      %1621 = vmatprep.subr.mxu0 %v1274
      %1622 = vmatpush1.msra.mxu0 %v1273
      %1623 = vmatprep.subr.mxu0 %v1270
      %1624 = vmatpush1.msra.mxu0 %v1269
      %1625 = vmatprep.subr.mxu0 %v1266
      %1626 = vmatpush1.msra.mxu0 %v1265
      %1627 = vmatprep.subr.mxu0 %v1262
      %1628 = vmatpush1.msra.mxu0 %v1261
      %1629 = vmatprep.subr.mxu0 %v1258
      %1630 = vmatpush1.msra.mxu0 %v1257
      %1631 = vmatprep.subr.mxu0 %v1254
      %1632 = vmatpush1.msra.mxu0 %v1253
      %1633 = vmatprep.subr.mxu0 %v1250
      %1634 = vmatpush1.msra.mxu0 %v1249
      %1635 = vmatprep.subr.mxu0 %v1246
      %1636 = vmatpush1.msra.mxu0 %v1245
      %1637 = vmatprep.subr.mxu0 %v1242
      %1638 = vmatpush1.msra.mxu0 %v1241
      %1639 = vmatprep.subr.mxu0 %v1366
      %1640 = vmatpush2.msra.mxu0 %v1365
      %1641 = vmatprep.subr.mxu0 %v1362
      %1642 = vmatpush2.msra.mxu0 %v1361
      %1643 = vmatprep.subr.mxu0 %v1358
      %1644 = vmatpush2.msra.mxu0 %v1357
      %1645 = vmatprep.subr.mxu0 %v1354
      %1646 = vmatpush2.msra.mxu0 %v1353
      %1647 = vmatprep.subr.mxu0 %v1350
      %1648 = vmatpush2.msra.mxu0 %v1349
      %1649 = vmatprep.subr.mxu0 %v1346
      %1650 = vmatpush2.msra.mxu0 %v1345
      %1651 = vmatprep.subr.mxu0 %v1342
      %1652 = vmatpush2.msra.mxu0 %v1341
      %1653 = vmatprep.subr.mxu0 %v1338
      %1654 = vmatpush2.msra.mxu0 %v1337
      %1655 = vmatprep.subr.mxu0 %v1334
      %1656 = vmatpush2.msra.mxu0 %v1333
      %1657 = vmatprep.subr.mxu0 %v1330
      %1658 = vmatpush2.msra.mxu0 %v1329
      %1659 = vmatprep.subr.mxu0 %v1326
      %1660 = vmatpush2.msra.mxu0 %v1325
      %1661 = vmatprep.subr.mxu0 %v1322
      %1662 = vmatpush2.msra.mxu0 %v1321
      %1663 = vmatprep.subr.mxu0 %v1318
      %1664 = vmatpush2.msra.mxu0 %v1317
      %1665 = vmatprep.subr.mxu0 %v1314
      %1666 = vmatpush2.msra.mxu0 %v1313
      %1667 = vmatprep.subr.mxu0 %v1310
      %1668 = vmatpush2.msra.mxu0 %v1309
      %1669 = vmatprep.subr.mxu0 %v1306
      %1670 = vmatpush2.msra.mxu0 %v1305
      %1671 = vmatprep.mubr.f32.mxu0 %v1453
      %1672 = vmatmul.mubr.f32.gmra.mxu0 %v1450
      %v1673 = vpop.f32.mrf.mxu0
      %v1674 = vadd.f32 0.0, %v1673
      %v1675 = vpop.f32.mrf.mxu0
      %v1676 = vadd.f32 0.0, %v1675
      %1677 = vdwg.mxu0
      %1678 = vmatprep.subr.mxu0 %v1430
      %1679 = vmatpush1.msra.mxu0 %v1429
      %1680 = vmatprep.subr.mxu0 %v1426
      %1681 = vmatpush1.msra.mxu0 %v1425
      %1682 = vmatprep.subr.mxu0 %v1422
      %1683 = vmatpush1.msra.mxu0 %v1421
      %1684 = vmatprep.subr.mxu0 %v1418
      %1685 = vmatpush1.msra.mxu0 %v1417
      %1686 = vmatprep.subr.mxu0 %v1414
      %1687 = vmatpush1.msra.mxu0 %v1413
      %1688 = vmatprep.subr.mxu0 %v1410
      %1689 = vmatpush1.msra.mxu0 %v1409
      %1690 = vmatprep.subr.mxu0 %v1406
      %1691 = vmatpush1.msra.mxu0 %v1405
      %1692 = vmatprep.subr.mxu0 %v1402
      %1693 = vmatpush1.msra.mxu0 %v1401
      %1694 = vmatprep.subr.mxu0 %v1398
      %1695 = vmatpush1.msra.mxu0 %v1397
      %1696 = vmatprep.subr.mxu0 %v1394
      %1697 = vmatpush1.msra.mxu0 %v1393
      %1698 = vmatprep.subr.mxu0 %v1390
      %1699 = vmatpush1.msra.mxu0 %v1389
      %1700 = vmatprep.subr.mxu0 %v1386
      %1701 = vmatpush1.msra.mxu0 %v1385
      %1702 = vmatprep.subr.mxu0 %v1382
      %1703 = vmatpush1.msra.mxu0 %v1381
      %1704 = vmatprep.subr.mxu0 %v1378
      %1705 = vmatpush1.msra.mxu0 %v1377
      %1706 = vmatprep.subr.mxu0 %v1374
      %1707 = vmatpush1.msra.mxu0 %v1373
      %1708 = vmatprep.subr.mxu0 %v1370
      %1709 = vmatpush1.msra.mxu0 %v1369
      %1710 = vmatprep.subr.mxu0 0.0
      %1711 = vmatpush2.msra.mxu0 0.0
      %1712 = vmatprep.subr.mxu0 0.0
      %1713 = vmatpush2.msra.mxu0 0.0
      %1714 = vmatprep.subr.mxu0 0.0
      %1715 = vmatpush2.msra.mxu0 0.0
      %1716 = vmatprep.subr.mxu0 0.0
      %1717 = vmatpush2.msra.mxu0 0.0
      %1718 = vmatprep.subr.mxu0 0.0
      %1719 = vmatpush2.msra.mxu0 0.0
      %1720 = vmatprep.subr.mxu0 0.0
      %1721 = vmatpush2.msra.mxu0 0.0
      %1722 = vmatprep.subr.mxu0 0.0
      %1723 = vmatpush2.msra.mxu0 0.0
      %1724 = vmatprep.subr.mxu0 0.0
      %1725 = vmatpush2.msra.mxu0 0.0
      %1726 = vmatprep.subr.mxu0 0.0
      %1727 = vmatpush2.msra.mxu0 0.0
      %1728 = vmatprep.subr.mxu0 0.0
      %1729 = vmatpush2.msra.mxu0 0.0
      %1730 = vmatprep.subr.mxu0 0.0
      %1731 = vmatpush2.msra.mxu0 0.0
      %1732 = vmatprep.subr.mxu0 0.0
      %1733 = vmatpush2.msra.mxu0 0.0
      %1734 = vmatprep.subr.mxu0 0.0
      %1735 = vmatpush2.msra.mxu0 0.0
      %1736 = vmatprep.subr.mxu0 0.0
      %1737 = vmatpush2.msra.mxu0 0.0
      %1738 = vmatprep.subr.mxu0 %v1438
      %1739 = vmatpush2.msra.mxu0 %v1437
      %1740 = vmatprep.subr.mxu0 %v1434
      %1741 = vmatpush2.msra.mxu0 %v1433
      %1742 = vmatprep.mubr.f32.mxu0 %v1463
      %1743 = vmatmul.mubr.f32.gmra.mxu0 %v1456
      %v1744 = vpop.f32.mrf.mxu0
      %v1745 = vadd.f32 %v1674, %v1744
      %v1746 = vpop.f32.mrf.mxu0
      %v1747 = vadd.f32 %v1676, %v1746
      %1748 = vdwg.mxu0
      %v1749 = vadd.f32 %v1084, %v1603
      %v1750 = vadd.f32 %v1086, %v1605
      %v1751 = vadd.f32 %v1226, %v1745
      %v1752 = vadd.f32 %v1228, %v1747
      %1753 = vst [vmem:[%s210] sm:$0xff] %v1749
      %1754 = vst [vmem:[%s210 + $0x8] sm:$0xff] %v1750
      %1755 = vst [vmem:[%s210 + $0x10] sm:$0xff] %v1751
      %1756 = vst [vmem:[%s210 + $0x18] sm:$0xff] %v1752
      %v1757 = vrot.slane %v1749, 4
      %v1758 = vadd.f32 %v1749, %v1757
      %v1759 = vrot.slane %v1758, 2
      %v1760 = vadd.f32 %v1758, %v1759
      %v1761 = vrot.slane %v1760, 1
      %v1762 = vadd.f32 %v1760, %v1761
      %v1763 = vrot.slane %v1750, 4
      %v1764 = vadd.f32 %v1750, %v1763
      %v1765 = vrot.slane %v1764, 2
      %v1766 = vadd.f32 %v1764, %v1765
      %v1767 = vrot.slane %v1766, 1
      %v1768 = vadd.f32 %v1766, %v1767
      %v1769 = vrot.slane %v1751, 4
      %v1770 = vadd.f32 %v1751, %v1769
      %v1771 = vrot.slane %v1770, 2
      %v1772 = vadd.f32 %v1770, %v1771
      %v1773 = vrot.slane %v1772, 1
      %v1774 = vadd.f32 %v1772, %v1773
      %v1775 = vrot.slane %v1752, 4
      %v1776 = vadd.f32 %v1752, %v1775
      %v1777 = vrot.slane %v1776, 2
      %v1778 = vadd.f32 %v1776, %v1777
      %v1779 = vrot.slane %v1778, 1
      %v1780 = vadd.f32 %v1778, %v1779
      %v1781 = vadd.f32 %v1762, 0.0
      %v1782 = vadd.f32 %v1768, 0.0
      %v1783 = vadd.f32 %v1774, 0.0
      %v1784 = vadd.f32 %v1780, 0.0
      %v1785 = vmul.f32 %v1749, %v1749
      %v1786 = vmul.f32 %v1750, %v1750
      %v1787 = vmul.f32 %v1751, %v1751
      %v1788 = vmul.f32 %v1752, %v1752
      %v1789 = vrot.slane %v1785, 4
      %v1790 = vadd.f32 %v1785, %v1789
      %v1791 = vrot.slane %v1790, 2
      %v1792 = vadd.f32 %v1790, %v1791
      %v1793 = vrot.slane %v1792, 1
      %v1794 = vadd.f32 %v1792, %v1793
      %v1795 = vrot.slane %v1786, 4
      %v1796 = vadd.f32 %v1786, %v1795
      %v1797 = vrot.slane %v1796, 2
      %v1798 = vadd.f32 %v1796, %v1797
      %v1799 = vrot.slane %v1798, 1
      %v1800 = vadd.f32 %v1798, %v1799
      %v1801 = vrot.slane %v1787, 4
      %v1802 = vadd.f32 %v1787, %v1801
      %v1803 = vrot.slane %v1802, 2
      %v1804 = vadd.f32 %v1802, %v1803
      %v1805 = vrot.slane %v1804, 1
      %v1806 = vadd.f32 %v1804, %v1805
      %v1807 = vrot.slane %v1788, 4
      %v1808 = vadd.f32 %v1788, %v1807
      %v1809 = vrot.slane %v1808, 2
      %v1810 = vadd.f32 %v1808, %v1809
      %v1811 = vrot.slane %v1810, 1
      %v1812 = vadd.f32 %v1810, %v1811
      %v1813 = vadd.f32 %v1794, 0.0
      %v1814 = vadd.f32 %v1800, 0.0
      %v1815 = vadd.f32 %v1806, 0.0
      %v1816 = vadd.f32 %v1812, 0.0
      %v1821 = vcombine.low %v1781, %v1782
      %v1822 = vcombine.low %v1783, %v1784
      %v1824 = vunpack.c.l.s4 1966171168
      %v1825 = vunpack.c.0.s8 %v1824
      %v1826 = vlaneseq
      %v1827 = vshrl.u32 %v1826, 7
      %v1828 = vsub.s32 %v1825, %v1827
      %v1829 = vrot.slane %v1821, %v1828
      %v1831 = vunpack.c.l.s4 1966171168
      %v1832 = vunpack.c.0.s8 %v1831
      %v1833 = vlaneseq
      %v1834 = vshrl.u32 %v1833, 7
      %v1835 = vsub.s32 %v1832, %v1834
      %v1836 = vrot.slane %v1822, %v1835
      %v1837 = vcombine.low %v1829, %v1836
      %v1839 = vunpack.c.l.s4 1966171168
      %v1840 = vunpack.c.0.s8 %v1839
      %v1841 = vlaneseq
      %v1842 = vshrl.u32 %v1841, 7
      %v1843 = vsub.s32 %v1840, %v1842
      %v1844 = vrot.slane %v1837, %v1843
      %v1846 = vlaneseq
      %vm1847 = vcmp.ge.s32.totalorder %v1846, 0
      %vm1848 = vcmp.lt.s32.totalorder %v1846, 512
      %vm1849 = vmand %vm1847, %vm1848
      %1850 = vst.msk [vmem:[%s214] sm:$0xf] %vm1849, %v1844
      %v1855 = vcombine.low %v1813, %v1814
      %v1856 = vcombine.low %v1815, %v1816
      %v1858 = vunpack.c.l.s4 1966171168
      %v1859 = vunpack.c.0.s8 %v1858
      %v1860 = vlaneseq
      %v1861 = vshrl.u32 %v1860, 7
      %v1862 = vsub.s32 %v1859, %v1861
      %v1863 = vrot.slane %v1855, %v1862
      %v1865 = vunpack.c.l.s4 1966171168
      %v1866 = vunpack.c.0.s8 %v1865
      %v1867 = vlaneseq
      %v1868 = vshrl.u32 %v1867, 7
      %v1869 = vsub.s32 %v1866, %v1868
      %v1870 = vrot.slane %v1856, %v1869
      %v1871 = vcombine.low %v1863, %v1870
      %v1873 = vunpack.c.l.s4 1966171168
      %v1874 = vunpack.c.0.s8 %v1873
      %v1875 = vlaneseq
      %v1876 = vshrl.u32 %v1875, 7
      %v1877 = vsub.s32 %v1874, %v1876
      %v1878 = vrot.slane %v1871, %v1877
      %1880 = vst.msk [vmem:[%s218] sm:$0xf] %vm1849, %v1878
      %p1881 = scmp.lt.s32.totalorder %s16, 1
      %s1882 = scalar_select %p1881, %s16, 1
      %s1883 = smul.addr %s1882, 4
      %s1884 = smul.addr %s1883, 8
      %s1885 = scalar_lea.vmem %s2, %s1884
      %p1886 = scmp.lt.s32.totalorder %s16, 1
      %s1887 = scalar_select %p1886, %s16, 1
      %s1888 = smul.addr %s1887, 4
      %s1889 = scalar_lea.vmem %s3, %s1888
      %p1890 = scmp.lt.s32.totalorder %s16, 1
      %s1891 = scalar_select %p1890, %s16, 1
      %s1892 = smul.addr %s1891, 4
      %s1893 = scalar_lea.vmem %s4, %s1892
      // Predicated region
      $region29: #{conv_block_forward.4} parent=27 // pred_check
        %p1894 = pneg %p81
      $region30: #{conv_block_forward.4} parent=27 // pred_check_branch
        %1896 = sbr.rel (%p1894) target = $region32
      $region31: #{conv_block_forward.4} parent=27 // pred_region
        _
      $region32: #{conv_block_forward.4} parent=27 // pred_fallthru
        _
      // Predicated region
      $region33: #{conv_block_forward.4} parent=27 // pred_check
        %p1897 = pneg %p107
      $region34: #{conv_block_forward.4} parent=27 // pred_check_branch
        %1899 = sbr.rel (%p1897) target = $region36
      $region35: #{conv_block_forward.4} parent=27 // pred_region
        _
      $region36: #{conv_block_forward.4} parent=27 // pred_fallthru
        _
      // Predicated region
      $region37: #{conv_block_forward.4} parent=27 // pred_check
        %p1900 = pneg %p133
      $region38: #{conv_block_forward.4} parent=27 // pred_check_branch
        %1902 = sbr.rel (%p1900) target = $region40
      $region39: #{conv_block_forward.4} parent=27 // pred_region
        _
      $region40: #{conv_block_forward.4} parent=27 // pred_fallthru
        _
    $region28: #{conv_block_forward.4} parent=5 // pred_fallthru
      _
    %p1903 = scmp.le.s32.totalorder 2, %s11
    // Predicated region
    $region41: #{conv_block_forward.4} parent=5 // pred_check
      %p1904 = pneg %p1903
    $region42: #{conv_block_forward.4} parent=5 // pred_check_branch
      %1906 = sbr.rel (%p1904) target = $region44
    $region43: #{conv_block_forward.4} parent=5 // pred_region
      %s1907 = ssub.s32 %s11, 2
      // Predicated region
      $region45: #{conv_block_forward.4} parent=43 // pred_check
        %p1908 = pneg %p87
      $region46: #{conv_block_forward.4} parent=43 // pred_check_branch
        %1910 = sbr.rel (%p1908) target = $region48
      $region47: #{conv_block_forward.4} parent=43 // pred_region
        %p1911 = scmp.lt.s32.totalorder %s17, 1
        %s1912 = scalar_select %p1911, %s17, 1
        %s1913 = smul.addr %s1912, 4
        %s1914 = smul.addr %s1913, 8
        %s1915 = scalar_lea.vmem %s2, %s1914
      $region48: #{conv_block_forward.4} parent=43 // pred_fallthru
        _
      // Predicated region
      $region49: #{conv_block_forward.4} parent=43 // pred_check
        %p1916 = pneg %p113
      $region50: #{conv_block_forward.4} parent=43 // pred_check_branch
        %1918 = sbr.rel (%p1916) target = $region52
      $region51: #{conv_block_forward.4} parent=43 // pred_region
        %p1919 = scmp.lt.s32.totalorder %s17, 1
        %s1920 = scalar_select %p1919, %s17, 1
        %s1921 = smul.addr %s1920, 4
        %s1922 = scalar_lea.vmem %s3, %s1921
      $region52: #{conv_block_forward.4} parent=43 // pred_fallthru
        _
      // Predicated region
      $region53: #{conv_block_forward.4} parent=43 // pred_check
        %p1923 = pneg %p139
      $region54: #{conv_block_forward.4} parent=43 // pred_check_branch
        %1925 = sbr.rel (%p1923) target = $region56
      $region55: #{conv_block_forward.4} parent=43 // pred_region
        %p1926 = scmp.lt.s32.totalorder %s17, 1
        %s1927 = scalar_select %p1926, %s17, 1
        %s1928 = smul.addr %s1927, 4
        %s1929 = scalar_lea.vmem %s4, %s1928
      $region56: #{conv_block_forward.4} parent=43 // pred_fallthru
        _
    $region44: #{conv_block_forward.4} parent=5 // pred_fallthru
      _
  $region6: #{conv_block_forward.4} parent=0 // loop_footer
    %s15 = sadd.s32 1, %s11
  $region7: #{conv_block_forward.4} parent=0 // loop_footer_branch
    %10 = sbr.rel target = $region3
  $region8: #{conv_block_forward.4} parent=0 // loop_exit
    _

// kernel: conv_block_forward.7
$region0: #{conv_block_forward.7}
  #allocation0 [shape = 'u32[]', space=smem, size = 0x4, offset = 0x4, fixed_abs, tag = 'smem constant byte address 0x4 - core index']
  #allocation1 [shape = 'u32[144,128]{1,0:T(1,128)}', space=vmem, size = 0x12000, scoped, tag = 'internal scratch']
  %s0 = inlined_call_operand.vmem [shape: f32[2,8,512], index: 0, kind: input, shape index: {}]
  %s1 = inlined_call_operand.vmem [shape: f32[1,512], index: 1, kind: input, shape index: {}]
  %s2 = inlined_call_operand.vmem [shape: f32[1,512], index: 2, kind: input, shape index: {}]
  %s3 = inlined_call_operand.vmem [shape: f32[2,8,512], index: 3, kind: output, shape index: {}]
  %s4 = sld [smem:[#allocation0]]
  $region45: #{conv_block_forward.7} parent=0
    _
  %s6 = ssub.s32 1, %s4
  %s7 = scalar_select 0, %s6, %s4
  loop: start=0, step=1, limit=4
  $region2: #{conv_block_forward.7} parent=0 // loop_pre_header
    _
  $region3: #{conv_block_forward.7} parent=0 // loop_header
    %s9 = sphi 0, %s13
    %p10 = scmp.ge.s32.totalorder %s9, 4
    %s19 = sphi 0, %s21
    %s22 = sphi 0, %s19
    %s23 = sphi 0, %s22
    %s39 = sphi 0, %s23
    %s43 = sphi 0, %s43
    %s45 = sphi 0, %s43
    %s46 = sphi 0, %s45
    %s60 = sphi 0, %s46
    %s64 = sphi 0, %s64
    %s66 = sphi 0, %s64
    %s67 = sphi 0, %s66
    %s81 = sphi 0, %s67
    %s87 = sphi 0, %s89
    %s90 = sphi 0, %s87
    %s91 = sphi 0, %s90
    %s107 = sphi 0, %s91
  $region4: #{conv_block_forward.7} parent=0 // loop_header_branch
    %12 = sbr.rel (%p10) target = $region8
  $region5: #{conv_block_forward.7} parent=0 // loop_body
    %s14 = ssub.s32 %s9, 1
    %s15 = ssub.s32 %s9, 2
    %s16 = sadd.s32 %s9, 1
    %s17 = ssub.s32 %s9, %s16
    %p18 = scmp.eq.s32.totalorder %s17, 0
    %s20 = sadd.s32 %s19, 1
    %s21 = scalar_select %p18, %s19, %s20
    %p24 = pneg %p18
    %p25 = scmp.eq.s32.totalorder %s9, 1
    %p26 = por %p24, %p25
    %p27 = scmp.ne.s32.totalorder %s19, %s22
    %p28 = scmp.eq.s32.totalorder %s9, 0
    %p29 = por %p27, %p28
    %p30 = scmp.ne.s32.totalorder %s19, %s22
    %p31 = scmp.eq.s32.totalorder %s14, 1
    %p32 = por %p30, %p31
    %p33 = scmp.ne.s32.totalorder %s22, %s23
    %p34 = scmp.eq.s32.totalorder %s14, 0
    %p35 = por %p33, %p34
    %p36 = scmp.ne.s32.totalorder %s22, %s23
    %p37 = scmp.eq.s32.totalorder %s15, 1
    %p38 = por %p36, %p37
    %p40 = scmp.ne.s32.totalorder %s23, %s39
    %p41 = scmp.eq.s32.totalorder %s15, 0
    %p42 = por %p40, %p41
    %s44 = sadd.s32 %s43, 1
    %p47 = scmp.eq.s32.totalorder %s9, 1
    %p48 = scmp.ne.s32.totalorder %s43, %s45
    %p49 = scmp.eq.s32.totalorder %s9, 0
    %p50 = por %p48, %p49
    %p51 = scmp.ne.s32.totalorder %s43, %s45
    %p52 = scmp.eq.s32.totalorder %s14, 1
    %p53 = por %p51, %p52
    %p54 = scmp.ne.s32.totalorder %s45, %s46
    %p55 = scmp.eq.s32.totalorder %s14, 0
    %p56 = por %p54, %p55
    %p57 = scmp.ne.s32.totalorder %s45, %s46
    %p58 = scmp.eq.s32.totalorder %s15, 1
    %p59 = por %p57, %p58
    %p61 = scmp.ne.s32.totalorder %s46, %s60
    %p62 = scmp.eq.s32.totalorder %s15, 0
    %p63 = por %p61, %p62
    %s65 = sadd.s32 %s64, 1
    %p68 = scmp.eq.s32.totalorder %s9, 1
    %p69 = scmp.ne.s32.totalorder %s64, %s66
    %p70 = scmp.eq.s32.totalorder %s9, 0
    %p71 = por %p69, %p70
    %p72 = scmp.ne.s32.totalorder %s64, %s66
    %p73 = scmp.eq.s32.totalorder %s14, 1
    %p74 = por %p72, %p73
    %p75 = scmp.ne.s32.totalorder %s66, %s67
    %p76 = scmp.eq.s32.totalorder %s14, 0
    %p77 = por %p75, %p76
    %p78 = scmp.ne.s32.totalorder %s66, %s67
    %p79 = scmp.eq.s32.totalorder %s15, 1
    %p80 = por %p78, %p79
    %p82 = scmp.ne.s32.totalorder %s67, %s81
    %p83 = scmp.eq.s32.totalorder %s15, 0
    %p84 = por %p82, %p83
    %s85 = ssub.s32 %s9, %s16
    %p86 = scmp.eq.s32.totalorder %s85, 0
    %s88 = sadd.s32 %s87, 1
    %s89 = scalar_select %p86, %s87, %s88
    %p92 = pneg %p86
    %p93 = scmp.eq.s32.totalorder %s9, 1
    %p94 = por %p92, %p93
    %p95 = scmp.ne.s32.totalorder %s87, %s90
    %p96 = scmp.eq.s32.totalorder %s9, 0
    %p97 = por %p95, %p96
    %p98 = scmp.ne.s32.totalorder %s87, %s90
    %p99 = scmp.eq.s32.totalorder %s14, 1
    %p100 = por %p98, %p99
    %p101 = scmp.ne.s32.totalorder %s90, %s91
    %p102 = scmp.eq.s32.totalorder %s14, 0
    %p103 = por %p101, %p102
    %p104 = scmp.ne.s32.totalorder %s90, %s91
    %p105 = scmp.eq.s32.totalorder %s15, 1
    %p106 = por %p104, %p105
    %p108 = scmp.ne.s32.totalorder %s91, %s107
    %p109 = scmp.eq.s32.totalorder %s15, 0
    %p110 = por %p108, %p109
    %p111 = scmp.le.s32.totalorder 1, %s9
    %p112 = scmp.lt.s32.totalorder %s9, 3
    %p113 = pnand %p111, %p112
    %p114 = pneg %p113
    // Predicated region
    $region9: #{conv_block_forward.7} parent=5 // pred_check
      _
    $region10: #{conv_block_forward.7} parent=5 // pred_check_branch
      %116 = sbr.rel (%p113) target = $region12
    $region11: #{conv_block_forward.7} parent=5 // pred_region
      %s117 = ssub.s32 %s9, 1
      // Predicated region
      $region13: #{conv_block_forward.7} parent=11 // pred_check
        %p118 = pneg %p56
      $region14: #{conv_block_forward.7} parent=11 // pred_check_branch
        %120 = sbr.rel (%p118) target = $region16
      $region15: #{conv_block_forward.7} parent=11 // pred_region
        _
      $region16: #{conv_block_forward.7} parent=11 // pred_fallthru
        _
      // Predicated region
      $region17: #{conv_block_forward.7} parent=11 // pred_check
        %p121 = pneg %p77
      $region18: #{conv_block_forward.7} parent=11 // pred_check_branch
        %123 = sbr.rel (%p121) target = $region20
      $region19: #{conv_block_forward.7} parent=11 // pred_region
        _
      $region20: #{conv_block_forward.7} parent=11 // pred_fallthru
        _
    $region12: #{conv_block_forward.7} parent=5 // pred_fallthru
      _
    %p124 = scmp.lt.s32.totalorder %s9, 2
    // Predicated region
    $region21: #{conv_block_forward.7} parent=5 // pred_check
      %p125 = pneg %p124
    $region22: #{conv_block_forward.7} parent=5 // pred_check_branch
      %127 = sbr.rel (%p125) target = $region24
    $region23: #{conv_block_forward.7} parent=5 // pred_region
      // Predicated region
      $region25: #{conv_block_forward.7} parent=23 // pred_check
        %p128 = pneg %p29
      $region26: #{conv_block_forward.7} parent=23 // pred_check_branch
        %130 = sbr.rel (%p128) target = $region28
      $region27: #{conv_block_forward.7} parent=23 // pred_region
        %p131 = scmp.lt.s32.totalorder %s9, 1
        %s132 = scalar_select %p131, %s9, 1
        %s133 = smul.addr %s132, 4
        %s134 = smul.addr %s133, 8
        %s135 = scalar_lea.vmem %s0, %s134
      $region28: #{conv_block_forward.7} parent=23 // pred_fallthru
        _
    $region24: #{conv_block_forward.7} parent=5 // pred_fallthru
      _
    %p136 = scmp.le.s32.totalorder 1, %s9
    %p137 = scmp.lt.s32.totalorder %s9, 3
    %p138 = pnand %p136, %p137
    %p139 = pneg %p138
    // Predicated region
    $region29: #{conv_block_forward.7} parent=5 // pred_check
      _
    $region30: #{conv_block_forward.7} parent=5 // pred_check_branch
      %141 = sbr.rel (%p138) target = $region32
    $region31: #{conv_block_forward.7} parent=5 // pred_region
      %s142 = ssub.s32 %s9, 1
      %p143 = scmp.lt.s32.totalorder %s14, 1
      %s144 = scalar_select %p143, %s14, 1
      %s145 = smul.addr %s144, 4
      %s146 = smul.addr %s145, 8
      %s147 = scalar_lea.vmem %s0, %s146
      %p148 = pneg %p35
      %p149 = pneg %p32
      %p150 = pneg %p56
      %p151 = pneg %p53
      %p152 = pneg %p77
      %p153 = pneg %p74
      %p154 = pneg %p103
      %p155 = pneg %p100
      %p156 = scmp.lt.s32.totalorder %s14, 1
      %s157 = scalar_select %p156, %s14, 1
      %s158 = smul.addr %s157, 4
      %s159 = smul.addr %s158, 8
      %s160 = scalar_lea.vmem %s3, %s159
      %p161 = scmp.lt.s32.totalorder %s14, 1
      %s162 = scalar_select %p161, %s14, 1
      %s163 = smul.addr %s162, 4
      %s164 = smul.addr %s163, 8
      %s165 = scalar_lea.vmem %s0, %s164
      %p166 = scmp.lt.s32.totalorder %s14, 1
      %s167 = scalar_select %p166, %s14, 1
      %s168 = smul.addr %s167, 4
      %s169 = smul.addr %s168, 8
      %s170 = scalar_lea.vmem %s3, %s169
      %v171 = vld [vmem:[%s165] sm:$0xff]
      %v172 = vld [vmem:[%s165 + $0x8] sm:$0xff]
      %v173 = vld [vmem:[%s165 + $0x10] sm:$0xff]
      %v174 = vld [vmem:[%s165 + $0x18] sm:$0xff]
      %v175 = vld [vmem:[%s1] sm:$0xf]
      %v177 = vlaneseq
      %v178 = vshrl.u32 %v177, 7
      %v179 = vsub.s32 0, %v178
      %v180 = vrot.slane %v175, %v179
      %v181 = vlaneseq
      %v182 = vshrl.u32 %v181, 7
      %v183 = vsub.s32 1, %v182
      %v184 = vrot.slane %v175, %v183
      %v185 = vlaneseq
      %v186 = vshrl.u32 %v185, 7
      %v187 = vsub.s32 2, %v186
      %v188 = vrot.slane %v175, %v187
      %v189 = vlaneseq
      %v190 = vshrl.u32 %v189, 7
      %v191 = vsub.s32 3, %v190
      %v192 = vrot.slane %v175, %v191
      %v197 = vmul.f32 %v171, %v180
      %v198 = vmul.f32 %v172, %v184
      %v199 = vmul.f32 %v173, %v188
      %v200 = vmul.f32 %v174, %v192
      %v201 = vld [vmem:[%s2] sm:$0xf]
      %v203 = vlaneseq
      %v204 = vshrl.u32 %v203, 7
      %v205 = vsub.s32 0, %v204
      %v206 = vrot.slane %v201, %v205
      %v207 = vlaneseq
      %v208 = vshrl.u32 %v207, 7
      %v209 = vsub.s32 1, %v208
      %v210 = vrot.slane %v201, %v209
      %v211 = vlaneseq
      %v212 = vshrl.u32 %v211, 7
      %v213 = vsub.s32 2, %v212
      %v214 = vrot.slane %v201, %v213
      %v215 = vlaneseq
      %v216 = vshrl.u32 %v215, 7
      %v217 = vsub.s32 3, %v216
      %v218 = vrot.slane %v201, %v217
      %v223 = vadd.f32 %v197, %v206
      %v224 = vadd.f32 %v198, %v210
      %v225 = vadd.f32 %v199, %v214
      %v226 = vadd.f32 %v200, %v218
      %v227 = vmax.f32 %v223, 0.0
      %v228 = vmax.f32 %v224, 0.0
      %v229 = vmax.f32 %v225, 0.0
      %v230 = vmax.f32 %v226, 0.0
      %231 = vst [vmem:[%s170] sm:$0xff] %v227
      %232 = vst [vmem:[%s170 + $0x8] sm:$0xff] %v228
      %233 = vst [vmem:[%s170 + $0x10] sm:$0xff] %v229
      %234 = vst [vmem:[%s170 + $0x18] sm:$0xff] %v230
      %p235 = scmp.lt.s32.totalorder %s14, 1
      %s236 = scalar_select %p235, %s14, 1
      %s237 = smul.addr %s236, 4
      %s238 = smul.addr %s237, 8
      %s239 = scalar_lea.vmem %s3, %s238
      // Predicated region
      $region33: #{conv_block_forward.7} parent=31 // pred_check
        %p240 = pneg %p100
      $region34: #{conv_block_forward.7} parent=31 // pred_check_branch
        %242 = sbr.rel (%p240) target = $region36
      $region35: #{conv_block_forward.7} parent=31 // pred_region
        _
      $region36: #{conv_block_forward.7} parent=31 // pred_fallthru
        _
    $region32: #{conv_block_forward.7} parent=5 // pred_fallthru
      _
    %p243 = scmp.le.s32.totalorder 2, %s9
    // Predicated region
    $region37: #{conv_block_forward.7} parent=5 // pred_check
      %p244 = pneg %p243
    $region38: #{conv_block_forward.7} parent=5 // pred_check_branch
      %246 = sbr.rel (%p244) target = $region40
    $region39: #{conv_block_forward.7} parent=5 // pred_region
      %s247 = ssub.s32 %s9, 2
      // Predicated region
      $region41: #{conv_block_forward.7} parent=39 // pred_check
        %p248 = pneg %p106
      $region42: #{conv_block_forward.7} parent=39 // pred_check_branch
        %250 = sbr.rel (%p248) target = $region44
      $region43: #{conv_block_forward.7} parent=39 // pred_region
        %p251 = scmp.lt.s32.totalorder %s15, 1
        %s252 = scalar_select %p251, %s15, 1
        %s253 = smul.addr %s252, 4
        %s254 = smul.addr %s253, 8
        %s255 = scalar_lea.vmem %s3, %s254
      $region44: #{conv_block_forward.7} parent=39 // pred_fallthru
        _
    $region40: #{conv_block_forward.7} parent=5 // pred_fallthru
      _
  $region6: #{conv_block_forward.7} parent=0 // loop_footer
    %s13 = sadd.s32 1, %s9
  $region7: #{conv_block_forward.7} parent=0 // loop_footer_branch
    %8 = sbr.rel target = $region3
  $region8: #{conv_block_forward.7} parent=0 // loop_exit
    _

// kernel: conv_block_forward.6
$region0: #{conv_block_forward.6}
  #allocation0 [shape = 'u32[]', space=smem, size = 0x4, offset = 0x4, fixed_abs, tag = 'smem constant byte address 0x4 - core index']
  #allocation1 [shape = 'u32[144,128]{1,0:T(1,128)}', space=vmem, size = 0x12000, scoped, tag = 'internal scratch']
  %s0 = inlined_call_operand.vmem [shape: f32[2,10,800], index: 0, kind: input, shape index: {}]
  %s1 = inlined_call_operand.vmem [shape: f32[3,800,512], index: 1, kind: input, shape index: {}]
  %s2 = inlined_call_operand.vmem [shape: f32[2,8,512], index: 2, kind: output, shape index: {0}]
  %s3 = inlined_call_operand.vmem [shape: f32[2,1,512], index: 3, kind: output, shape index: {1}]
  %s4 = inlined_call_operand.vmem [shape: f32[2,1,512], index: 4, kind: output, shape index: {2}]
  %5 = xla_tuple %s2, %s3, %s4
  %s6 = sld [smem:[#allocation0]]
  $region57: #{conv_block_forward.6} parent=0
    _
  %s8 = ssub.s32 1, %s6
  %s9 = scalar_select 0, %s8, %s6
  loop: start=0, step=1, limit=4
  $region2: #{conv_block_forward.6} parent=0 // loop_pre_header
    _
  $region3: #{conv_block_forward.6} parent=0 // loop_header
    %s11 = sphi 0, %s15
    %p12 = scmp.ge.s32.totalorder %s11, 4
    %s21 = sphi 0, %s23
    %s24 = sphi 0, %s21
    %s25 = sphi 0, %s24
    %s41 = sphi 0, %s25
    %s45 = sphi 0, %s45
    %s47 = sphi 0, %s45
    %s48 = sphi 0, %s47
    %s62 = sphi 0, %s48
    %s68 = sphi 0, %s70
    %s71 = sphi 0, %s68
    %s72 = sphi 0, %s71
    %s88 = sphi 0, %s72
    %s94 = sphi 0, %s96
    %s97 = sphi 0, %s94
    %s98 = sphi 0, %s97
    %s114 = sphi 0, %s98
    %s120 = sphi 0, %s122
    %s123 = sphi 0, %s120
    %s124 = sphi 0, %s123
    %s140 = sphi 0, %s124
  $region4: #{conv_block_forward.6} parent=0 // loop_header_branch
    %14 = sbr.rel (%p12) target = $region8
  $region5: #{conv_block_forward.6} parent=0 // loop_body
    %s16 = ssub.s32 %s11, 1
    %s17 = ssub.s32 %s11, 2
    %s18 = sadd.s32 %s11, 1
    %s19 = ssub.s32 %s11, %s18
    %p20 = scmp.eq.s32.totalorder %s19, 0
    %s22 = sadd.s32 %s21, 1
    %s23 = scalar_select %p20, %s21, %s22
    %p26 = pneg %p20
    %p27 = scmp.eq.s32.totalorder %s11, 1
    %p28 = por %p26, %p27
    %p29 = scmp.ne.s32.totalorder %s21, %s24
    %p30 = scmp.eq.s32.totalorder %s11, 0
    %p31 = por %p29, %p30
    %p32 = scmp.ne.s32.totalorder %s21, %s24
    %p33 = scmp.eq.s32.totalorder %s16, 1
    %p34 = por %p32, %p33
    %p35 = scmp.ne.s32.totalorder %s24, %s25
    %p36 = scmp.eq.s32.totalorder %s16, 0
    %p37 = por %p35, %p36
    %p38 = scmp.ne.s32.totalorder %s24, %s25
    %p39 = scmp.eq.s32.totalorder %s17, 1
    %p40 = por %p38, %p39
    %p42 = scmp.ne.s32.totalorder %s25, %s41
    %p43 = scmp.eq.s32.totalorder %s17, 0
    %p44 = por %p42, %p43
    %s46 = sadd.s32 %s45, 1
    %p49 = scmp.eq.s32.totalorder %s11, 1
    %p50 = scmp.ne.s32.totalorder %s45, %s47
    %p51 = scmp.eq.s32.totalorder %s11, 0
    %p52 = por %p50, %p51
    %p53 = scmp.ne.s32.totalorder %s45, %s47
    %p54 = scmp.eq.s32.totalorder %s16, 1
    %p55 = por %p53, %p54
    %p56 = scmp.ne.s32.totalorder %s47, %s48
    %p57 = scmp.eq.s32.totalorder %s16, 0
    %p58 = por %p56, %p57
    %p59 = scmp.ne.s32.totalorder %s47, %s48
    %p60 = scmp.eq.s32.totalorder %s17, 1
    %p61 = por %p59, %p60
    %p63 = scmp.ne.s32.totalorder %s48, %s62
    %p64 = scmp.eq.s32.totalorder %s17, 0
    %p65 = por %p63, %p64
    %s66 = ssub.s32 %s11, %s18
    %p67 = scmp.eq.s32.totalorder %s66, 0
    %s69 = sadd.s32 %s68, 1
    %s70 = scalar_select %p67, %s68, %s69
    %p73 = pneg %p67
    %p74 = scmp.eq.s32.totalorder %s11, 1
    %p75 = por %p73, %p74
    %p76 = scmp.ne.s32.totalorder %s68, %s71
    %p77 = scmp.eq.s32.totalorder %s11, 0
    %p78 = por %p76, %p77
    %p79 = scmp.ne.s32.totalorder %s68, %s71
    %p80 = scmp.eq.s32.totalorder %s16, 1
    %p81 = por %p79, %p80
    %p82 = scmp.ne.s32.totalorder %s71, %s72
    %p83 = scmp.eq.s32.totalorder %s16, 0
    %p84 = por %p82, %p83
    %p85 = scmp.ne.s32.totalorder %s71, %s72
    %p86 = scmp.eq.s32.totalorder %s17, 1
    %p87 = por %p85, %p86
    %p89 = scmp.ne.s32.totalorder %s72, %s88
    %p90 = scmp.eq.s32.totalorder %s17, 0
    %p91 = por %p89, %p90
    %s92 = ssub.s32 %s11, %s18
    %p93 = scmp.eq.s32.totalorder %s92, 0
    %s95 = sadd.s32 %s94, 1
    %s96 = scalar_select %p93, %s94, %s95
    %p99 = pneg %p93
    %p100 = scmp.eq.s32.totalorder %s11, 1
    %p101 = por %p99, %p100
    %p102 = scmp.ne.s32.totalorder %s94, %s97
    %p103 = scmp.eq.s32.totalorder %s11, 0
    %p104 = por %p102, %p103
    %p105 = scmp.ne.s32.totalorder %s94, %s97
    %p106 = scmp.eq.s32.totalorder %s16, 1
    %p107 = por %p105, %p106
    %p108 = scmp.ne.s32.totalorder %s97, %s98
    %p109 = scmp.eq.s32.totalorder %s16, 0
    %p110 = por %p108, %p109
    %p111 = scmp.ne.s32.totalorder %s97, %s98
    %p112 = scmp.eq.s32.totalorder %s17, 1
    %p113 = por %p111, %p112
    %p115 = scmp.ne.s32.totalorder %s98, %s114
    %p116 = scmp.eq.s32.totalorder %s17, 0
    %p117 = por %p115, %p116
    %s118 = ssub.s32 %s11, %s18
    %p119 = scmp.eq.s32.totalorder %s118, 0
    %s121 = sadd.s32 %s120, 1
    %s122 = scalar_select %p119, %s120, %s121
    %p125 = pneg %p119
    %p126 = scmp.eq.s32.totalorder %s11, 1
    %p127 = por %p125, %p126
    %p128 = scmp.ne.s32.totalorder %s120, %s123
    %p129 = scmp.eq.s32.totalorder %s11, 0
    %p130 = por %p128, %p129
    %p131 = scmp.ne.s32.totalorder %s120, %s123
    %p132 = scmp.eq.s32.totalorder %s16, 1
    %p133 = por %p131, %p132
    %p134 = scmp.ne.s32.totalorder %s123, %s124
    %p135 = scmp.eq.s32.totalorder %s16, 0
    %p136 = por %p134, %p135
    %p137 = scmp.ne.s32.totalorder %s123, %s124
    %p138 = scmp.eq.s32.totalorder %s17, 1
    %p139 = por %p137, %p138
    %p141 = scmp.ne.s32.totalorder %s124, %s140
    %p142 = scmp.eq.s32.totalorder %s17, 0
    %p143 = por %p141, %p142
    %p144 = scmp.le.s32.totalorder 1, %s11
    %p145 = scmp.lt.s32.totalorder %s11, 3
    %p146 = pnand %p144, %p145
    %p147 = pneg %p146
    // Predicated region
    $region9: #{conv_block_forward.6} parent=5 // pred_check
      _
    $region10: #{conv_block_forward.6} parent=5 // pred_check_branch
      %149 = sbr.rel (%p146) target = $region12
    $region11: #{conv_block_forward.6} parent=5 // pred_region
      %s150 = ssub.s32 %s11, 1
      // Predicated region
      $region13: #{conv_block_forward.6} parent=11 // pred_check
        %p151 = pneg %p58
      $region14: #{conv_block_forward.6} parent=11 // pred_check_branch
        %153 = sbr.rel (%p151) target = $region16
      $region15: #{conv_block_forward.6} parent=11 // pred_region
        _
      $region16: #{conv_block_forward.6} parent=11 // pred_fallthru
        _
    $region12: #{conv_block_forward.6} parent=5 // pred_fallthru
      _
    %p154 = scmp.lt.s32.totalorder %s11, 2
    // Predicated region
    $region17: #{conv_block_forward.6} parent=5 // pred_check
      %p155 = pneg %p154
    $region18: #{conv_block_forward.6} parent=5 // pred_check_branch
      %157 = sbr.rel (%p155) target = $region20
    $region19: #{conv_block_forward.6} parent=5 // pred_region
      // Predicated region
      $region21: #{conv_block_forward.6} parent=19 // pred_check
        %p158 = pneg %p31
      $region22: #{conv_block_forward.6} parent=19 // pred_check_branch
        %160 = sbr.rel (%p158) target = $region24
      $region23: #{conv_block_forward.6} parent=19 // pred_region
        %p161 = scmp.lt.s32.totalorder %s11, 1
        %s162 = scalar_select %p161, %s11, 1
        %s163 = smul.addr %s162, 14
        %s164 = smul.addr %s163, 8
        %s165 = scalar_lea.vmem %s0, %s164
      $region24: #{conv_block_forward.6} parent=19 // pred_fallthru
        _
    $region20: #{conv_block_forward.6} parent=5 // pred_fallthru
      _
    %p166 = scmp.le.s32.totalorder 1, %s11
    %p167 = scmp.lt.s32.totalorder %s11, 3
    %p168 = pnand %p166, %p167
    %p169 = pneg %p168
    // Predicated region
    $region25: #{conv_block_forward.6} parent=5 // pred_check
      _
    $region26: #{conv_block_forward.6} parent=5 // pred_check_branch
      %171 = sbr.rel (%p168) target = $region28
    $region27: #{conv_block_forward.6} parent=5 // pred_region
      %s172 = ssub.s32 %s11, 1
      %p173 = scmp.lt.s32.totalorder %s16, 1
      %s174 = scalar_select %p173, %s16, 1
      %s175 = smul.addr %s174, 14
      %s176 = smul.addr %s175, 8
      %s177 = scalar_lea.vmem %s0, %s176
      %p178 = pneg %p37
      %p179 = pneg %p34
      %p180 = pneg %p58
      %p181 = pneg %p55
      %p182 = pneg %p84
      %p183 = pneg %p81
      %p184 = scmp.lt.s32.totalorder %s16, 1
      %s185 = scalar_select %p184, %s16, 1
      %s186 = smul.addr %s185, 4
      %s187 = smul.addr %s186, 8
      %s188 = scalar_lea.vmem %s2, %s187
      %p189 = pneg %p110
      %p190 = pneg %p107
      %p191 = scmp.lt.s32.totalorder %s16, 1
      %s192 = scalar_select %p191, %s16, 1
      %s193 = smul.addr %s192, 4
      %s194 = scalar_lea.vmem %s3, %s193
      %p195 = pneg %p136
      %p196 = pneg %p133
      %p197 = scmp.lt.s32.totalorder %s16, 1
      %s198 = scalar_select %p197, %s16, 1
      %s199 = smul.addr %s198, 4
      %s200 = scalar_lea.vmem %s4, %s199
      %p201 = scmp.lt.s32.totalorder %s16, 1
      %s202 = scalar_select %p201, %s16, 1
      %s203 = smul.addr %s202, 14
      %s204 = smul.addr %s203, 8
      %s205 = scalar_lea.vmem %s0, %s204
      %p206 = scmp.lt.s32.totalorder %s16, 1
      %s207 = scalar_select %p206, %s16, 1
      %s208 = smul.addr %s207, 4
      %s209 = smul.addr %s208, 8
      %s210 = scalar_lea.vmem %s2, %s209
      %p211 = scmp.lt.s32.totalorder %s16, 1
      %s212 = scalar_select %p211, %s16, 1
      %s213 = smul.addr %s212, 4
      %s214 = scalar_lea.vmem %s3, %s213
      %p215 = scmp.lt.s32.totalorder %s16, 1
      %s216 = scalar_select %p215, %s16, 1
      %s217 = smul.addr %s216, 4
      %s218 = scalar_lea.vmem %s4, %s217
      %v219 = vld [vmem:[%s205] sm:$0xff]
      %v220 = vld [vmem:[%s205 + $0x8] sm:$0xff]
      %v221 = vld [vmem:[%s205 + $0x10] sm:$0xff]
      %v222 = vld [vmem:[%s205 + $0x18] sm:$0xff]
      %v223 = vld [vmem:[%s205 + $0x20] sm:$0xff]
      %v224 = vld [vmem:[%s205 + $0x28] sm:$0xff]
      %v225 = vld [vmem:[%s205 + $0x30] sm:$0xff]
      %v226 = vld [vmem:[%s1] sm:$0xff]
      %v227 = vld [vmem:[%s1 + $0x8] sm:$0xff]
      %v228 = vld [vmem:[%s1 + $0x10] sm:$0xff]
      %v229 = vld [vmem:[%s1 + $0x18] sm:$0xff]
      %v230 = vld [vmem:[%s1 + $0x20] sm:$0xff]
      %v231 = vld [vmem:[%s1 + $0x28] sm:$0xff]
      %v232 = vld [vmem:[%s1 + $0x30] sm:$0xff]
      %v233 = vld [vmem:[%s1 + $0x38] sm:$0xff]
      %v234 = vld [vmem:[%s1 + $0x40] sm:$0xff]
      %v235 = vld [vmem:[%s1 + $0x48] sm:$0xff]
      %v236 = vld [vmem:[%s1 + $0x50] sm:$0xff]
      %v237 = vld [vmem:[%s1 + $0x58] sm:$0xff]
      %v238 = vld [vmem:[%s1 + $0x60] sm:$0xff]
      %v239 = vld [vmem:[%s1 + $0x68] sm:$0xff]
      %v240 = vld [vmem:[%s1 + $0x70] sm:$0xff]
      %v241 = vld [vmem:[%s1 + $0x78] sm:$0xff]
      %v242 = vld [vmem:[%s1 + $0x80] sm:$0xff]
      %v243 = vld [vmem:[%s1 + $0x88] sm:$0xff]
      %v244 = vld [vmem:[%s1 + $0x90] sm:$0xff]
      %v245 = vld [vmem:[%s1 + $0x98] sm:$0xff]
      %v246 = vld [vmem:[%s1 + $0xa0] sm:$0xff]
      %v247 = vld [vmem:[%s1 + $0xa8] sm:$0xff]
      %v248 = vld [vmem:[%s1 + $0xb0] sm:$0xff]
      %v249 = vld [vmem:[%s1 + $0xb8] sm:$0xff]
      %v250 = vld [vmem:[%s1 + $0xc0] sm:$0xff]
      %v251 = vld [vmem:[%s1 + $0xc8] sm:$0xff]
      %v252 = vld [vmem:[%s1 + $0xd0] sm:$0xff]
      %v253 = vld [vmem:[%s1 + $0xd8] sm:$0xff]
      %v254 = vld [vmem:[%s1 + $0xe0] sm:$0xff]
      %v255 = vld [vmem:[%s1 + $0xe8] sm:$0xff]
      %v256 = vld [vmem:[%s1 + $0xf0] sm:$0xff]
      %v257 = vld [vmem:[%s1 + $0xf8] sm:$0xff]
      %v258 = vld [vmem:[%s1 + $0x100] sm:$0xff]
      %v259 = vld [vmem:[%s1 + $0x108] sm:$0xff]
      %v260 = vld [vmem:[%s1 + $0x110] sm:$0xff]
      %v261 = vld [vmem:[%s1 + $0x118] sm:$0xff]
      %v262 = vld [vmem:[%s1 + $0x120] sm:$0xff]
      %v263 = vld [vmem:[%s1 + $0x128] sm:$0xff]
      %v264 = vld [vmem:[%s1 + $0x130] sm:$0xff]
      %v265 = vld [vmem:[%s1 + $0x138] sm:$0xff]
      %v266 = vld [vmem:[%s1 + $0x140] sm:$0xff]
      %v267 = vld [vmem:[%s1 + $0x148] sm:$0xff]
      %v268 = vld [vmem:[%s1 + $0x150] sm:$0xff]
      %v269 = vld [vmem:[%s1 + $0x158] sm:$0xff]
      %v270 = vld [vmem:[%s1 + $0x160] sm:$0xff]
      %v271 = vld [vmem:[%s1 + $0x168] sm:$0xff]
      %v272 = vld [vmem:[%s1 + $0x170] sm:$0xff]
      %v273 = vld [vmem:[%s1 + $0x178] sm:$0xff]
      %v274 = vld [vmem:[%s1 + $0x180] sm:$0xff]
      %v275 = vld [vmem:[%s1 + $0x188] sm:$0xff]
      %v276 = vld [vmem:[%s1 + $0x190] sm:$0xff]
      %v277 = vld [vmem:[%s1 + $0x198] sm:$0xff]
      %v278 = vld [vmem:[%s1 + $0x1a0] sm:$0xff]
      %v279 = vld [vmem:[%s1 + $0x1a8] sm:$0xff]
      %v280 = vld [vmem:[%s1 + $0x1b0] sm:$0xff]
      %v281 = vld [vmem:[%s1 + $0x1b8] sm:$0xff]
      %v282 = vld [vmem:[%s1 + $0x1c0] sm:$0xff]
      %v283 = vld [vmem:[%s1 + $0x1c8] sm:$0xff]
      %v284 = vld [vmem:[%s1 + $0x1d0] sm:$0xff]
      %v285 = vld [vmem:[%s1 + $0x1d8] sm:$0xff]
      %v286 = vld [vmem:[%s1 + $0x1e0] sm:$0xff]
      %v287 = vld [vmem:[%s1 + $0x1e8] sm:$0xff]
      %v288 = vld [vmem:[%s1 + $0x1f0] sm:$0xff]
      %v289 = vld [vmem:[%s1 + $0x1f8] sm:$0xff]
      %v290 = vld [vmem:[%s1 + $0x200] sm:$0xff]
      %v291 = vld [vmem:[%s1 + $0x208] sm:$0xff]
      %v292 = vld [vmem:[%s1 + $0x210] sm:$0xff]
      %v293 = vld [vmem:[%s1 + $0x218] sm:$0xff]
      %v294 = vld [vmem:[%s1 + $0x220] sm:$0xff]
      %v295 = vld [vmem:[%s1 + $0x228] sm:$0xff]
      %v296 = vld [vmem:[%s1 + $0x230] sm:$0xff]
      %v297 = vld [vmem:[%s1 + $0x238] sm:$0xff]
      %v298 = vld [vmem:[%s1 + $0x240] sm:$0xff]
      %v299 = vld [vmem:[%s1 + $0x248] sm:$0xff]
      %v300 = vld [vmem:[%s1 + $0x250] sm:$0xff]
      %v301 = vld [vmem:[%s1 + $0x258] sm:$0xff]
      %v302 = vld [vmem:[%s1 + $0x260] sm:$0xff]
      %v303 = vld [vmem:[%s1 + $0x268] sm:$0xff]
      %v304 = vld [vmem:[%s1 + $0x270] sm:$0xff]
      %v305 = vld [vmem:[%s1 + $0x278] sm:$0xff]
      %v306 = vld [vmem:[%s1 + $0x280] sm:$0xff]
      %v307 = vld [vmem:[%s1 + $0x288] sm:$0xff]
      %v308 = vld [vmem:[%s1 + $0x290] sm:$0xff]
      %v309 = vld [vmem:[%s1 + $0x298] sm:$0xff]
      %v310 = vld [vmem:[%s1 + $0x2a0] sm:$0xff]
      %v311 = vld [vmem:[%s1 + $0x2a8] sm:$0xff]
      %v312 = vld [vmem:[%s1 + $0x2b0] sm:$0xff]
      %v313 = vld [vmem:[%s1 + $0x2b8] sm:$0xff]
      %v314 = vld [vmem:[%s1 + $0x2c0] sm:$0xff]
      %v315 = vld [vmem:[%s1 + $0x2c8] sm:$0xff]
      %v316 = vld [vmem:[%s1 + $0x2d0] sm:$0xff]
      %v317 = vld [vmem:[%s1 + $0x2d8] sm:$0xff]
      %v318 = vld [vmem:[%s1 + $0x2e0] sm:$0xff]
      %v319 = vld [vmem:[%s1 + $0x2e8] sm:$0xff]
      %v320 = vld [vmem:[%s1 + $0x2f0] sm:$0xff]
      %v321 = vld [vmem:[%s1 + $0x2f8] sm:$0xff]
      %v322 = vld [vmem:[%s1 + $0x300] sm:$0xff]
      %v323 = vld [vmem:[%s1 + $0x308] sm:$0xff]
      %v324 = vld [vmem:[%s1 + $0x310] sm:$0xff]
      %v325 = vld [vmem:[%s1 + $0x318] sm:$0xff]
      %v326 = vld [vmem:[%s1 + $0x320] sm:$0xff]
      %v327 = vld [vmem:[%s1 + $0x328] sm:$0xff]
      %v328 = vld [vmem:[%s1 + $0x330] sm:$0xff]
      %v329 = vld [vmem:[%s1 + $0x338] sm:$0xff]
      %v330 = vld [vmem:[%s1 + $0x340] sm:$0xff]
      %v331 = vld [vmem:[%s1 + $0x348] sm:$0xff]
      %v332 = vld [vmem:[%s1 + $0x350] sm:$0xff]
      %v333 = vld [vmem:[%s1 + $0x358] sm:$0xff]
      %v334 = vld [vmem:[%s1 + $0x360] sm:$0xff]
      %v335 = vld [vmem:[%s1 + $0x368] sm:$0xff]
      %v336 = vld [vmem:[%s1 + $0x370] sm:$0xff]
      %v337 = vld [vmem:[%s1 + $0x378] sm:$0xff]
      %v338 = vld [vmem:[%s1 + $0x380] sm:$0xff]
      %v339 = vld [vmem:[%s1 + $0x388] sm:$0xff]
      %v340 = vld [vmem:[%s1 + $0x390] sm:$0xff]
      %v341 = vld [vmem:[%s1 + $0x398] sm:$0xff]
      %v342 = vld [vmem:[%s1 + $0x3a0] sm:$0xff]
      %v343 = vld [vmem:[%s1 + $0x3a8] sm:$0xff]
      %v344 = vld [vmem:[%s1 + $0x3b0] sm:$0xff]
      %v345 = vld [vmem:[%s1 + $0x3b8] sm:$0xff]
      %v346 = vld [vmem:[%s1 + $0x3c0] sm:$0xff]
      %v347 = vld [vmem:[%s1 + $0x3c8] sm:$0xff]
      %v348 = vld [vmem:[%s1 + $0x3d0] sm:$0xff]
      %v349 = vld [vmem:[%s1 + $0x3d8] sm:$0xff]
      %v350 = vld [vmem:[%s1 + $0x3e0] sm:$0xff]
      %v351 = vld [vmem:[%s1 + $0x3e8] sm:$0xff]
      %v352 = vld [vmem:[%s1 + $0x3f0] sm:$0xff]
      %v353 = vld [vmem:[%s1 + $0x3f8] sm:$0xff]
      %v354 = vld [vmem:[%s1 + $0x400] sm:$0xff]
      %v355 = vld [vmem:[%s1 + $0x408] sm:$0xff]
      %v356 = vld [vmem:[%s1 + $0x410] sm:$0xff]
      %v357 = vld [vmem:[%s1 + $0x418] sm:$0xff]
      %v358 = vld [vmem:[%s1 + $0x420] sm:$0xff]
      %v359 = vld [vmem:[%s1 + $0x428] sm:$0xff]
      %v360 = vld [vmem:[%s1 + $0x430] sm:$0xff]
      %v361 = vld [vmem:[%s1 + $0x438] sm:$0xff]
      %v362 = vld [vmem:[%s1 + $0x440] sm:$0xff]
      %v363 = vld [vmem:[%s1 + $0x448] sm:$0xff]
      %v364 = vld [vmem:[%s1 + $0x450] sm:$0xff]
      %v365 = vld [vmem:[%s1 + $0x458] sm:$0xff]
      %v366 = vld [vmem:[%s1 + $0x460] sm:$0xff]
      %v367 = vld [vmem:[%s1 + $0x468] sm:$0xff]
      %v368 = vld [vmem:[%s1 + $0x470] sm:$0xff]
      %v369 = vld [vmem:[%s1 + $0x478] sm:$0xff]
      %v370 = vld [vmem:[%s1 + $0x480] sm:$0xff]
      %v371 = vld [vmem:[%s1 + $0x488] sm:$0xff]
      %v372 = vld [vmem:[%s1 + $0x490] sm:$0xff]
      %v373 = vld [vmem:[%s1 + $0x498] sm:$0xff]
      %v374 = vld [vmem:[%s1 + $0x4a0] sm:$0xff]
      %v375 = vld [vmem:[%s1 + $0x4a8] sm:$0xff]
      %v376 = vld [vmem:[%s1 + $0x4b0] sm:$0xff]
      %v377 = vld [vmem:[%s1 + $0x4b8] sm:$0xff]
      %v378 = vld [vmem:[%s1 + $0x4c0] sm:$0xff]
      %v379 = vld [vmem:[%s1 + $0x4c8] sm:$0xff]
      %v380 = vld [vmem:[%s1 + $0x4d0] sm:$0xff]
      %v381 = vld [vmem:[%s1 + $0x4d8] sm:$0xff]
      %v382 = vld [vmem:[%s1 + $0x4e0] sm:$0xff]
      %v383 = vld [vmem:[%s1 + $0x4e8] sm:$0xff]
      %v384 = vld [vmem:[%s1 + $0x4f0] sm:$0xff]
      %v385 = vld [vmem:[%s1 + $0x4f8] sm:$0xff]
      %v386 = vld [vmem:[%s1 + $0x500] sm:$0xff]
      %v387 = vld [vmem:[%s1 + $0x508] sm:$0xff]
      %v388 = vld [vmem:[%s1 + $0x510] sm:$0xff]
      %v389 = vld [vmem:[%s1 + $0x518] sm:$0xff]
      %v390 = vld [vmem:[%s1 + $0x520] sm:$0xff]
      %v391 = vld [vmem:[%s1 + $0x528] sm:$0xff]
      %v392 = vld [vmem:[%s1 + $0x530] sm:$0xff]
      %v393 = vld [vmem:[%s1 + $0x538] sm:$0xff]
      %v394 = vld [vmem:[%s1 + $0x540] sm:$0xff]
      %v395 = vld [vmem:[%s1 + $0x548] sm:$0xff]
      %v396 = vld [vmem:[%s1 + $0x550] sm:$0xff]
      %v397 = vld [vmem:[%s1 + $0x558] sm:$0xff]
      %v398 = vld [vmem:[%s1 + $0x560] sm:$0xff]
      %v399 = vld [vmem:[%s1 + $0x568] sm:$0xff]
      %v400 = vld [vmem:[%s1 + $0x570] sm:$0xff]
      %v401 = vld [vmem:[%s1 + $0x578] sm:$0xff]
      %v402 = vld [vmem:[%s1 + $0x580] sm:$0xff]
      %v403 = vld [vmem:[%s1 + $0x588] sm:$0xff]
      %v404 = vld [vmem:[%s1 + $0x590] sm:$0xff]
      %v405 = vld [vmem:[%s1 + $0x598] sm:$0xff]
      %v406 = vld [vmem:[%s1 + $0x5a0] sm:$0xff]
      %v407 = vld [vmem:[%s1 + $0x5a8] sm:$0xff]
      %v408 = vld [vmem:[%s1 + $0x5b0] sm:$0xff]
      %v409 = vld [vmem:[%s1 + $0x5b8] sm:$0xff]
      %v410 = vld [vmem:[%s1 + $0x5c0] sm:$0xff]
      %v411 = vld [vmem:[%s1 + $0x5c8] sm:$0xff]
      %v412 = vld [vmem:[%s1 + $0x5d0] sm:$0xff]
      %v413 = vld [vmem:[%s1 + $0x5d8] sm:$0xff]
      %v414 = vld [vmem:[%s1 + $0x5e0] sm:$0xff]
      %v415 = vld [vmem:[%s1 + $0x5e8] sm:$0xff]
      %v416 = vld [vmem:[%s1 + $0x5f0] sm:$0xff]
      %v417 = vld [vmem:[%s1 + $0x5f8] sm:$0xff]
      %v418 = vld [vmem:[%s1 + $0x600] sm:$0xff]
      %v419 = vld [vmem:[%s1 + $0x608] sm:$0xff]
      %v420 = vld [vmem:[%s1 + $0x610] sm:$0xff]
      %v421 = vld [vmem:[%s1 + $0x618] sm:$0xff]
      %v422 = vld [vmem:[%s1 + $0x620] sm:$0xff]
      %v423 = vld [vmem:[%s1 + $0x628] sm:$0xff]
      %v424 = vld [vmem:[%s1 + $0x630] sm:$0xff]
      %v425 = vld [vmem:[%s1 + $0x638] sm:$0xff]
      %v426 = vld [vmem:[%s1 + $0x640] sm:$0xff]
      %v427 = vld [vmem:[%s1 + $0x648] sm:$0xff]
      %v428 = vld [vmem:[%s1 + $0x650] sm:$0xff]
      %v429 = vld [vmem:[%s1 + $0x658] sm:$0xff]
      %v430 = vld [vmem:[%s1 + $0x660] sm:$0xff]
      %v431 = vld [vmem:[%s1 + $0x668] sm:$0xff]
      %v432 = vld [vmem:[%s1 + $0x670] sm:$0xff]
      %v433 = vld [vmem:[%s1 + $0x678] sm:$0xff]
      %v434 = vld [vmem:[%s1 + $0x680] sm:$0xff]
      %v435 = vld [vmem:[%s1 + $0x688] sm:$0xff]
      %v436 = vld [vmem:[%s1 + $0x690] sm:$0xff]
      %v437 = vld [vmem:[%s1 + $0x698] sm:$0xff]
      %v438 = vld [vmem:[%s1 + $0x6a0] sm:$0xff]
      %v439 = vld [vmem:[%s1 + $0x6a8] sm:$0xff]
      %v440 = vld [vmem:[%s1 + $0x6b0] sm:$0xff]
      %v441 = vld [vmem:[%s1 + $0x6b8] sm:$0xff]
      %v442 = vld [vmem:[%s1 + $0x6c0] sm:$0xff]
      %v443 = vld [vmem:[%s1 + $0x6c8] sm:$0xff]
      %v444 = vld [vmem:[%s1 + $0x6d0] sm:$0xff]
      %v445 = vld [vmem:[%s1 + $0x6d8] sm:$0xff]
      %v446 = vld [vmem:[%s1 + $0x6e0] sm:$0xff]
      %v447 = vld [vmem:[%s1 + $0x6e8] sm:$0xff]
      %v448 = vld [vmem:[%s1 + $0x6f0] sm:$0xff]
      %v449 = vld [vmem:[%s1 + $0x6f8] sm:$0xff]
      %v450 = vld [vmem:[%s1 + $0x700] sm:$0xff]
      %v451 = vld [vmem:[%s1 + $0x708] sm:$0xff]
      %v452 = vld [vmem:[%s1 + $0x710] sm:$0xff]
      %v453 = vld [vmem:[%s1 + $0x718] sm:$0xff]
      %v454 = vld [vmem:[%s1 + $0x720] sm:$0xff]
      %v455 = vld [vmem:[%s1 + $0x728] sm:$0xff]
      %v456 = vld [vmem:[%s1 + $0x730] sm:$0xff]
      %v457 = vld [vmem:[%s1 + $0x738] sm:$0xff]
      %v458 = vld [vmem:[%s1 + $0x740] sm:$0xff]
      %v459 = vld [vmem:[%s1 + $0x748] sm:$0xff]
      %v460 = vld [vmem:[%s1 + $0x750] sm:$0xff]
      %v461 = vld [vmem:[%s1 + $0x758] sm:$0xff]
      %v462 = vld [vmem:[%s1 + $0x760] sm:$0xff]
      %v463 = vld [vmem:[%s1 + $0x768] sm:$0xff]
      %v464 = vld [vmem:[%s1 + $0x770] sm:$0xff]
      %v465 = vld [vmem:[%s1 + $0x778] sm:$0xff]
      %v466 = vld [vmem:[%s1 + $0x780] sm:$0xff]
      %v467 = vld [vmem:[%s1 + $0x788] sm:$0xff]
      %v468 = vld [vmem:[%s1 + $0x790] sm:$0xff]
      %v469 = vld [vmem:[%s1 + $0x798] sm:$0xff]
      %v470 = vld [vmem:[%s1 + $0x7a0] sm:$0xff]
      %v471 = vld [vmem:[%s1 + $0x7a8] sm:$0xff]
      %v472 = vld [vmem:[%s1 + $0x7b0] sm:$0xff]
      %v473 = vld [vmem:[%s1 + $0x7b8] sm:$0xff]
      %v474 = vld [vmem:[%s1 + $0x7c0] sm:$0xff]
      %v475 = vld [vmem:[%s1 + $0x7c8] sm:$0xff]
      %v476 = vld [vmem:[%s1 + $0x7d0] sm:$0xff]
      %v477 = vld [vmem:[%s1 + $0x7d8] sm:$0xff]
      %v478 = vld [vmem:[%s1 + $0x7e0] sm:$0xff]
      %v479 = vld [vmem:[%s1 + $0x7e8] sm:$0xff]
      %v480 = vld [vmem:[%s1 + $0x7f0] sm:$0xff]
      %v481 = vld [vmem:[%s1 + $0x7f8] sm:$0xff]
      %v482 = vld [vmem:[%s1 + $0x800] sm:$0xff]
      %v483 = vld [vmem:[%s1 + $0x808] sm:$0xff]
      %v484 = vld [vmem:[%s1 + $0x810] sm:$0xff]
      %v485 = vld [vmem:[%s1 + $0x818] sm:$0xff]
      %v486 = vld [vmem:[%s1 + $0x820] sm:$0xff]
      %v487 = vld [vmem:[%s1 + $0x828] sm:$0xff]
      %v488 = vld [vmem:[%s1 + $0x830] sm:$0xff]
      %v489 = vld [vmem:[%s1 + $0x838] sm:$0xff]
      %v490 = vld [vmem:[%s1 + $0x840] sm:$0xff]
      %v491 = vld [vmem:[%s1 + $0x848] sm:$0xff]
      %v492 = vld [vmem:[%s1 + $0x850] sm:$0xff]
      %v493 = vld [vmem:[%s1 + $0x858] sm:$0xff]
      %v494 = vld [vmem:[%s1 + $0x860] sm:$0xff]
      %v495 = vld [vmem:[%s1 + $0x868] sm:$0xff]
      %v496 = vld [vmem:[%s1 + $0x870] sm:$0xff]
      %v497 = vld [vmem:[%s1 + $0x878] sm:$0xff]
      %v498 = vld [vmem:[%s1 + $0x880] sm:$0xff]
      %v499 = vld [vmem:[%s1 + $0x888] sm:$0xff]
      %v500 = vld [vmem:[%s1 + $0x890] sm:$0xff]
      %v501 = vld [vmem:[%s1 + $0x898] sm:$0xff]
      %v502 = vld [vmem:[%s1 + $0x8a0] sm:$0xff]
      %v503 = vld [vmem:[%s1 + $0x8a8] sm:$0xff]
      %v504 = vld [vmem:[%s1 + $0x8b0] sm:$0xff]
      %v505 = vld [vmem:[%s1 + $0x8b8] sm:$0xff]
      %v506 = vld [vmem:[%s1 + $0x8c0] sm:$0xff]
      %v507 = vld [vmem:[%s1 + $0x8c8] sm:$0xff]
      %v508 = vld [vmem:[%s1 + $0x8d0] sm:$0xff]
      %v509 = vld [vmem:[%s1 + $0x8d8] sm:$0xff]
      %v510 = vld [vmem:[%s1 + $0x8e0] sm:$0xff]
      %v511 = vld [vmem:[%s1 + $0x8e8] sm:$0xff]
      %v512 = vld [vmem:[%s1 + $0x8f0] sm:$0xff]
      %v513 = vld [vmem:[%s1 + $0x8f8] sm:$0xff]
      %v514 = vld [vmem:[%s1 + $0x900] sm:$0xff]
      %v515 = vld [vmem:[%s1 + $0x908] sm:$0xff]
      %v516 = vld [vmem:[%s1 + $0x910] sm:$0xff]
      %v517 = vld [vmem:[%s1 + $0x918] sm:$0xff]
      %v518 = vld [vmem:[%s1 + $0x920] sm:$0xff]
      %v519 = vld [vmem:[%s1 + $0x928] sm:$0xff]
      %v520 = vld [vmem:[%s1 + $0x930] sm:$0xff]
      %v521 = vld [vmem:[%s1 + $0x938] sm:$0xff]
      %v522 = vld [vmem:[%s1 + $0x940] sm:$0xff]
      %v523 = vld [vmem:[%s1 + $0x948] sm:$0xff]
      %v524 = vld [vmem:[%s1 + $0x950] sm:$0xff]
      %v525 = vld [vmem:[%s1 + $0x958] sm:$0xff]
      %v526 = vld [vmem:[%s1 + $0x960] sm:$0xff]
      %v527 = vld [vmem:[%s1 + $0x968] sm:$0xff]
      %v528 = vld [vmem:[%s1 + $0x970] sm:$0xff]
      %v529 = vld [vmem:[%s1 + $0x978] sm:$0xff]
      %v530 = vld [vmem:[%s1 + $0x980] sm:$0xff]
      %v531 = vld [vmem:[%s1 + $0x988] sm:$0xff]
      %v532 = vld [vmem:[%s1 + $0x990] sm:$0xff]
      %v533 = vld [vmem:[%s1 + $0x998] sm:$0xff]
      %v534 = vld [vmem:[%s1 + $0x9a0] sm:$0xff]
      %v535 = vld [vmem:[%s1 + $0x9a8] sm:$0xff]
      %v536 = vld [vmem:[%s1 + $0x9b0] sm:$0xff]
      %v537 = vld [vmem:[%s1 + $0x9b8] sm:$0xff]
      %v538 = vld [vmem:[%s1 + $0x9c0] sm:$0xff]
      %v539 = vld [vmem:[%s1 + $0x9c8] sm:$0xff]
      %v540 = vld [vmem:[%s1 + $0x9d0] sm:$0xff]
      %v541 = vld [vmem:[%s1 + $0x9d8] sm:$0xff]
      %v542 = vld [vmem:[%s1 + $0x9e0] sm:$0xff]
      %v543 = vld [vmem:[%s1 + $0x9e8] sm:$0xff]
      %v544 = vld [vmem:[%s1 + $0x9f0] sm:$0xff]
      %v545 = vld [vmem:[%s1 + $0x9f8] sm:$0xff]
      %v546 = vld [vmem:[%s1 + $0xa00] sm:$0xff]
      %v547 = vld [vmem:[%s1 + $0xa08] sm:$0xff]
      %v548 = vld [vmem:[%s1 + $0xa10] sm:$0xff]
      %v549 = vld [vmem:[%s1 + $0xa18] sm:$0xff]
      %v550 = vld [vmem:[%s1 + $0xa20] sm:$0xff]
      %v551 = vld [vmem:[%s1 + $0xa28] sm:$0xff]
      %v552 = vld [vmem:[%s1 + $0xa30] sm:$0xff]
      %v553 = vld [vmem:[%s1 + $0xa38] sm:$0xff]
      %v554 = vld [vmem:[%s1 + $0xa40] sm:$0xff]
      %v555 = vld [vmem:[%s1 + $0xa48] sm:$0xff]
      %v556 = vld [vmem:[%s1 + $0xa50] sm:$0xff]
      %v557 = vld [vmem:[%s1 + $0xa58] sm:$0xff]
      %v558 = vld [vmem:[%s1 + $0xa60] sm:$0xff]
      %v559 = vld [vmem:[%s1 + $0xa68] sm:$0xff]
      %v560 = vld [vmem:[%s1 + $0xa70] sm:$0xff]
      %v561 = vld [vmem:[%s1 + $0xa78] sm:$0xff]
      %v562 = vld [vmem:[%s1 + $0xa80] sm:$0xff]
      %v563 = vld [vmem:[%s1 + $0xa88] sm:$0xff]
      %v564 = vld [vmem:[%s1 + $0xa90] sm:$0xff]
      %v565 = vld [vmem:[%s1 + $0xa98] sm:$0xff]
      %v566 = vld [vmem:[%s1 + $0xaa0] sm:$0xff]
      %v567 = vld [vmem:[%s1 + $0xaa8] sm:$0xff]
      %v568 = vld [vmem:[%s1 + $0xab0] sm:$0xff]
      %v569 = vld [vmem:[%s1 + $0xab8] sm:$0xff]
      %v570 = vld [vmem:[%s1 + $0xac0] sm:$0xff]
      %v571 = vld [vmem:[%s1 + $0xac8] sm:$0xff]
      %v572 = vld [vmem:[%s1 + $0xad0] sm:$0xff]
      %v573 = vld [vmem:[%s1 + $0xad8] sm:$0xff]
      %v574 = vld [vmem:[%s1 + $0xae0] sm:$0xff]
      %v575 = vld [vmem:[%s1 + $0xae8] sm:$0xff]
      %v576 = vld [vmem:[%s1 + $0xaf0] sm:$0xff]
      %v577 = vld [vmem:[%s1 + $0xaf8] sm:$0xff]
      %v578 = vld [vmem:[%s1 + $0xb00] sm:$0xff]
      %v579 = vld [vmem:[%s1 + $0xb08] sm:$0xff]
      %v580 = vld [vmem:[%s1 + $0xb10] sm:$0xff]
      %v581 = vld [vmem:[%s1 + $0xb18] sm:$0xff]
      %v582 = vld [vmem:[%s1 + $0xb20] sm:$0xff]
      %v583 = vld [vmem:[%s1 + $0xb28] sm:$0xff]
      %v584 = vld [vmem:[%s1 + $0xb30] sm:$0xff]
      %v585 = vld [vmem:[%s1 + $0xb38] sm:$0xff]
      %v586 = vld [vmem:[%s1 + $0xb40] sm:$0xff]
      %v587 = vld [vmem:[%s1 + $0xb48] sm:$0xff]
      %v588 = vld [vmem:[%s1 + $0xb50] sm:$0xff]
      %v589 = vld [vmem:[%s1 + $0xb58] sm:$0xff]
      %v590 = vld [vmem:[%s1 + $0xb60] sm:$0xff]
      %v591 = vld [vmem:[%s1 + $0xb68] sm:$0xff]
      %v592 = vld [vmem:[%s1 + $0xb70] sm:$0xff]
      %v593 = vld [vmem:[%s1 + $0xb78] sm:$0xff]
      %v594 = vld [vmem:[%s1 + $0xb80] sm:$0xff]
      %v595 = vld [vmem:[%s1 + $0xb88] sm:$0xff]
      %v596 = vld [vmem:[%s1 + $0xb90] sm:$0xff]
      %v597 = vld [vmem:[%s1 + $0xb98] sm:$0xff]
      %v598 = vld [vmem:[%s1 + $0xba0] sm:$0xff]
      %v599 = vld [vmem:[%s1 + $0xba8] sm:$0xff]
      %v600 = vld [vmem:[%s1 + $0xbb0] sm:$0xff]
      %v601 = vld [vmem:[%s1 + $0xbb8] sm:$0xff]
      %v602 = vld [vmem:[%s1 + $0xbc0] sm:$0xff]
      %v603 = vld [vmem:[%s1 + $0xbc8] sm:$0xff]
      %v604 = vld [vmem:[%s1 + $0xbd0] sm:$0xff]
      %v605 = vld [vmem:[%s1 + $0xbd8] sm:$0xff]
      %v606 = vld [vmem:[%s1 + $0xbe0] sm:$0xff]
      %v607 = vld [vmem:[%s1 + $0xbe8] sm:$0xff]
      %v608 = vld [vmem:[%s1 + $0xbf0] sm:$0xff]
      %v609 = vld [vmem:[%s1 + $0xbf8] sm:$0xff]
      %v610 = vld [vmem:[%s1 + $0xc00] sm:$0xff]
      %v611 = vld [vmem:[%s1 + $0xc08] sm:$0xff]
      %v612 = vld [vmem:[%s1 + $0xc10] sm:$0xff]
      %v613 = vld [vmem:[%s1 + $0xc18] sm:$0xff]
      %v614 = vld [vmem:[%s1 + $0xc20] sm:$0xff]
      %v615 = vld [vmem:[%s1 + $0xc28] sm:$0xff]
      %v616 = vld [vmem:[%s1 + $0xc30] sm:$0xff]
      %v617 = vld [vmem:[%s1 + $0xc38] sm:$0xff]
      %v618 = vld [vmem:[%s1 + $0xc40] sm:$0xff]
      %v619 = vld [vmem:[%s1 + $0xc48] sm:$0xff]
      %v620 = vld [vmem:[%s1 + $0xc50] sm:$0xff]
      %v621 = vld [vmem:[%s1 + $0xc58] sm:$0xff]
      %v622 = vld [vmem:[%s1 + $0xc60] sm:$0xff]
      %v623 = vld [vmem:[%s1 + $0xc68] sm:$0xff]
      %v624 = vld [vmem:[%s1 + $0xc70] sm:$0xff]
      %v625 = vld [vmem:[%s1 + $0xc78] sm:$0xff]
      %v626 = vld [vmem:[%s205] sm:$0xfe]
      %v627 = vld [vmem:[%s205 + $0x8] sm:$0xfe]
      %v628 = vld [vmem:[%s205 + $0x10] sm:$0xfe]
      %v629 = vld [vmem:[%s205 + $0x18] sm:$0xfe]
      %v630 = vld [vmem:[%s205 + $0x20] sm:$0xfe]
      %v631 = vld [vmem:[%s205 + $0x28] sm:$0xfe]
      %v632 = vld [vmem:[%s205 + $0x30] sm:$0xfe]
      %v633 = vld [vmem:[%s205 + $0x38] sm:$0x1]
      %v634 = vld [vmem:[%s205 + $0x40] sm:$0x1]
      %v635 = vld [vmem:[%s205 + $0x48] sm:$0x1]
      %v636 = vld [vmem:[%s205 + $0x50] sm:$0x1]
      %v637 = vld [vmem:[%s205 + $0x58] sm:$0x1]
      %v638 = vld [vmem:[%s205 + $0x60] sm:$0x1]
      %v639 = vld [vmem:[%s205 + $0x68] sm:$0x1]
      %s640 = scalar_lea.vmem %s1, 3200
      %v641 = vld [vmem:[%s640] sm:$0xff]
      %v642 = vld [vmem:[%s640 + $0x8] sm:$0xff]
      %v643 = vld [vmem:[%s640 + $0x10] sm:$0xff]
      %v644 = vld [vmem:[%s640 + $0x18] sm:$0xff]
      %v645 = vld [vmem:[%s640 + $0x20] sm:$0xff]
      %v646 = vld [vmem:[%s640 + $0x28] sm:$0xff]
      %v647 = vld [vmem:[%s640 + $0x30] sm:$0xff]
      %v648 = vld [vmem:[%s640 + $0x38] sm:$0xff]
      %v649 = vld [vmem:[%s640 + $0x40] sm:$0xff]
      %v650 = vld [vmem:[%s640 + $0x48] sm:$0xff]
      %v651 = vld [vmem:[%s640 + $0x50] sm:$0xff]
      %v652 = vld [vmem:[%s640 + $0x58] sm:$0xff]
      %v653 = vld [vmem:[%s640 + $0x60] sm:$0xff]
      %v654 = vld [vmem:[%s640 + $0x68] sm:$0xff]
      %v655 = vld [vmem:[%s640 + $0x70] sm:$0xff]
      %v656 = vld [vmem:[%s640 + $0x78] sm:$0xff]
      %v657 = vld [vmem:[%s640 + $0x80] sm:$0xff]
      %v658 = vld [vmem:[%s640 + $0x88] sm:$0xff]
      %v659 = vld [vmem:[%s640 + $0x90] sm:$0xff]
      %v660 = vld [vmem:[%s640 + $0x98] sm:$0xff]
      %v661 = vld [vmem:[%s640 + $0xa0] sm:$0xff]
      %v662 = vld [vmem:[%s640 + $0xa8] sm:$0xff]
      %v663 = vld [vmem:[%s640 + $0xb0] sm:$0xff]
      %v664 = vld [vmem:[%s640 + $0xb8] sm:$0xff]
      %v665 = vld [vmem:[%s640 + $0xc0] sm:$0xff]
      %v666 = vld [vmem:[%s640 + $0xc8] sm:$0xff]
      %v667 = vld [vmem:[%s640 + $0xd0] sm:$0xff]
      %v668 = vld [vmem:[%s640 + $0xd8] sm:$0xff]
      %v669 = vld [vmem:[%s640 + $0xe0] sm:$0xff]
      %v670 = vld [vmem:[%s640 + $0xe8] sm:$0xff]
      %v671 = vld [vmem:[%s640 + $0xf0] sm:$0xff]
      %v672 = vld [vmem:[%s640 + $0xf8] sm:$0xff]
      %v673 = vld [vmem:[%s640 + $0x100] sm:$0xff]
      %v674 = vld [vmem:[%s640 + $0x108] sm:$0xff]
      %v675 = vld [vmem:[%s640 + $0x110] sm:$0xff]
      %v676 = vld [vmem:[%s640 + $0x118] sm:$0xff]
      %v677 = vld [vmem:[%s640 + $0x120] sm:$0xff]
      %v678 = vld [vmem:[%s640 + $0x128] sm:$0xff]
      %v679 = vld [vmem:[%s640 + $0x130] sm:$0xff]
      %v680 = vld [vmem:[%s640 + $0x138] sm:$0xff]
      %v681 = vld [vmem:[%s640 + $0x140] sm:$0xff]
      %v682 = vld [vmem:[%s640 + $0x148] sm:$0xff]
      %v683 = vld [vmem:[%s640 + $0x150] sm:$0xff]
      %v684 = vld [vmem:[%s640 + $0x158] sm:$0xff]
      %v685 = vld [vmem:[%s640 + $0x160] sm:$0xff]
      %v686 = vld [vmem:[%s640 + $0x168] sm:$0xff]
      %v687 = vld [vmem:[%s640 + $0x170] sm:$0xff]
      %v688 = vld [vmem:[%s640 + $0x178] sm:$0xff]
      %v689 = vld [vmem:[%s640 + $0x180] sm:$0xff]
      %v690 = vld [vmem:[%s640 + $0x188] sm:$0xff]
      %v691 = vld [vmem:[%s640 + $0x190] sm:$0xff]
      %v692 = vld [vmem:[%s640 + $0x198] sm:$0xff]
      %v693 = vld [vmem:[%s640 + $0x1a0] sm:$0xff]
      %v694 = vld [vmem:[%s640 + $0x1a8] sm:$0xff]
      %v695 = vld [vmem:[%s640 + $0x1b0] sm:$0xff]
      %v696 = vld [vmem:[%s640 + $0x1b8] sm:$0xff]
      %v697 = vld [vmem:[%s640 + $0x1c0] sm:$0xff]
      %v698 = vld [vmem:[%s640 + $0x1c8] sm:$0xff]
      %v699 = vld [vmem:[%s640 + $0x1d0] sm:$0xff]
      %v700 = vld [vmem:[%s640 + $0x1d8] sm:$0xff]
      %v701 = vld [vmem:[%s640 + $0x1e0] sm:$0xff]
      %v702 = vld [vmem:[%s640 + $0x1e8] sm:$0xff]
      %v703 = vld [vmem:[%s640 + $0x1f0] sm:$0xff]
      %v704 = vld [vmem:[%s640 + $0x1f8] sm:$0xff]
      %v705 = vld [vmem:[%s640 + $0x200] sm:$0xff]
      %v706 = vld [vmem:[%s640 + $0x208] sm:$0xff]
      %v707 = vld [vmem:[%s640 + $0x210] sm:$0xff]
      %v708 = vld [vmem:[%s640 + $0x218] sm:$0xff]
      %v709 = vld [vmem:[%s640 + $0x220] sm:$0xff]
      %v710 = vld [vmem:[%s640 + $0x228] sm:$0xff]
      %v711 = vld [vmem:[%s640 + $0x230] sm:$0xff]
      %v712 = vld [vmem:[%s640 + $0x238] sm:$0xff]
      %v713 = vld [vmem:[%s640 + $0x240] sm:$0xff]
      %v714 = vld [vmem:[%s640 + $0x248] sm:$0xff]
      %v715 = vld [vmem:[%s640 + $0x250] sm:$0xff]
      %v716 = vld [vmem:[%s640 + $0x258] sm:$0xff]
      %v717 = vld [vmem:[%s640 + $0x260] sm:$0xff]
      %v718 = vld [vmem:[%s640 + $0x268] sm:$0xff]
      %v719 = vld [vmem:[%s640 + $0x270] sm:$0xff]
      %v720 = vld [vmem:[%s640 + $0x278] sm:$0xff]
      %v721 = vld [vmem:[%s640 + $0x280] sm:$0xff]
      %v722 = vld [vmem:[%s640 + $0x288] sm:$0xff]
      %v723 = vld [vmem:[%s640 + $0x290] sm:$0xff]
      %v724 = vld [vmem:[%s640 + $0x298] sm:$0xff]
      %v725 = vld [vmem:[%s640 + $0x2a0] sm:$0xff]
      %v726 = vld [vmem:[%s640 + $0x2a8] sm:$0xff]
      %v727 = vld [vmem:[%s640 + $0x2b0] sm:$0xff]
      %v728 = vld [vmem:[%s640 + $0x2b8] sm:$0xff]
      %v729 = vld [vmem:[%s640 + $0x2c0] sm:$0xff]
      %v730 = vld [vmem:[%s640 + $0x2c8] sm:$0xff]
      %v731 = vld [vmem:[%s640 + $0x2d0] sm:$0xff]
      %v732 = vld [vmem:[%s640 + $0x2d8] sm:$0xff]
      %v733 = vld [vmem:[%s640 + $0x2e0] sm:$0xff]
      %v734 = vld [vmem:[%s640 + $0x2e8] sm:$0xff]
      %v735 = vld [vmem:[%s640 + $0x2f0] sm:$0xff]
      %v736 = vld [vmem:[%s640 + $0x2f8] sm:$0xff]
      %v737 = vld [vmem:[%s640 + $0x300] sm:$0xff]
      %v738 = vld [vmem:[%s640 + $0x308] sm:$0xff]
      %v739 = vld [vmem:[%s640 + $0x310] sm:$0xff]
      %v740 = vld [vmem:[%s640 + $0x318] sm:$0xff]
      %v741 = vld [vmem:[%s640 + $0x320] sm:$0xff]
      %v742 = vld [vmem:[%s640 + $0x328] sm:$0xff]
      %v743 = vld [vmem:[%s640 + $0x330] sm:$0xff]
      %v744 = vld [vmem:[%s640 + $0x338] sm:$0xff]
      %v745 = vld [vmem:[%s640 + $0x340] sm:$0xff]
      %v746 = vld [vmem:[%s640 + $0x348] sm:$0xff]
      %v747 = vld [vmem:[%s640 + $0x350] sm:$0xff]
      %v748 = vld [vmem:[%s640 + $0x358] sm:$0xff]
      %v749 = vld [vmem:[%s640 + $0x360] sm:$0xff]
      %v750 = vld [vmem:[%s640 + $0x368] sm:$0xff]
      %v751 = vld [vmem:[%s640 + $0x370] sm:$0xff]
      %v752 = vld [vmem:[%s640 + $0x378] sm:$0xff]
      %v753 = vld [vmem:[%s640 + $0x380] sm:$0xff]
      %v754 = vld [vmem:[%s640 + $0x388] sm:$0xff]
      %v755 = vld [vmem:[%s640 + $0x390] sm:$0xff]
      %v756 = vld [vmem:[%s640 + $0x398] sm:$0xff]
      %v757 = vld [vmem:[%s640 + $0x3a0] sm:$0xff]
      %v758 = vld [vmem:[%s640 + $0x3a8] sm:$0xff]
      %v759 = vld [vmem:[%s640 + $0x3b0] sm:$0xff]
      %v760 = vld [vmem:[%s640 + $0x3b8] sm:$0xff]
      %v761 = vld [vmem:[%s640 + $0x3c0] sm:$0xff]
      %v762 = vld [vmem:[%s640 + $0x3c8] sm:$0xff]
      %v763 = vld [vmem:[%s640 + $0x3d0] sm:$0xff]
      %v764 = vld [vmem:[%s640 + $0x3d8] sm:$0xff]
      %v765 = vld [vmem:[%s640 + $0x3e0] sm:$0xff]
      %v766 = vld [vmem:[%s640 + $0x3e8] sm:$0xff]
      %v767 = vld [vmem:[%s640 + $0x3f0] sm:$0xff]
      %v768 = vld [vmem:[%s640 + $0x3f8] sm:$0xff]
      %v769 = vld [vmem:[%s640 + $0x400] sm:$0xff]
      %v770 = vld [vmem:[%s640 + $0x408] sm:$0xff]
      %v771 = vld [vmem:[%s640 + $0x410] sm:$0xff]
      %v772 = vld [vmem:[%s640 + $0x418] sm:$0xff]
      %v773 = vld [vmem:[%s640 + $0x420] sm:$0xff]
      %v774 = vld [vmem:[%s640 + $0x428] sm:$0xff]
      %v775 = vld [vmem:[%s640 + $0x430] sm:$0xff]
      %v776 = vld [vmem:[%s640 + $0x438] sm:$0xff]
      %v777 = vld [vmem:[%s640 + $0x440] sm:$0xff]
      %v778 = vld [vmem:[%s640 + $0x448] sm:$0xff]
      %v779 = vld [vmem:[%s640 + $0x450] sm:$0xff]
      %v780 = vld [vmem:[%s640 + $0x458] sm:$0xff]
      %v781 = vld [vmem:[%s640 + $0x460] sm:$0xff]
      %v782 = vld [vmem:[%s640 + $0x468] sm:$0xff]
      %v783 = vld [vmem:[%s640 + $0x470] sm:$0xff]
      %v784 = vld [vmem:[%s640 + $0x478] sm:$0xff]
      %v785 = vld [vmem:[%s640 + $0x480] sm:$0xff]
      %v786 = vld [vmem:[%s640 + $0x488] sm:$0xff]
      %v787 = vld [vmem:[%s640 + $0x490] sm:$0xff]
      %v788 = vld [vmem:[%s640 + $0x498] sm:$0xff]
      %v789 = vld [vmem:[%s640 + $0x4a0] sm:$0xff]
      %v790 = vld [vmem:[%s640 + $0x4a8] sm:$0xff]
      %v791 = vld [vmem:[%s640 + $0x4b0] sm:$0xff]
      %v792 = vld [vmem:[%s640 + $0x4b8] sm:$0xff]
      %v793 = vld [vmem:[%s640 + $0x4c0] sm:$0xff]
      %v794 = vld [vmem:[%s640 + $0x4c8] sm:$0xff]
      %v795 = vld [vmem:[%s640 + $0x4d0] sm:$0xff]
      %v796 = vld [vmem:[%s640 + $0x4d8] sm:$0xff]
      %v797 = vld [vmem:[%s640 + $0x4e0] sm:$0xff]
      %v798 = vld [vmem:[%s640 + $0x4e8] sm:$0xff]
      %v799 = vld [vmem:[%s640 + $0x4f0] sm:$0xff]
      %v800 = vld [vmem:[%s640 + $0x4f8] sm:$0xff]
      %v801 = vld [vmem:[%s640 + $0x500] sm:$0xff]
      %v802 = vld [vmem:[%s640 + $0x508] sm:$0xff]
      %v803 = vld [vmem:[%s640 + $0x510] sm:$0xff]
      %v804 = vld [vmem:[%s640 + $0x518] sm:$0xff]
      %v805 = vld [vmem:[%s640 + $0x520] sm:$0xff]
      %v806 = vld [vmem:[%s640 + $0x528] sm:$0xff]
      %v807 = vld [vmem:[%s640 + $0x530] sm:$0xff]
      %v808 = vld [vmem:[%s640 + $0x538] sm:$0xff]
      %v809 = vld [vmem:[%s640 + $0x540] sm:$0xff]
      %v810 = vld [vmem:[%s640 + $0x548] sm:$0xff]
      %v811 = vld [vmem:[%s640 + $0x550] sm:$0xff]
      %v812 = vld [vmem:[%s640 + $0x558] sm:$0xff]
      %v813 = vld [vmem:[%s640 + $0x560] sm:$0xff]
      %v814 = vld [vmem:[%s640 + $0x568] sm:$0xff]
      %v815 = vld [vmem:[%s640 + $0x570] sm:$0xff]
      %v816 = vld [vmem:[%s640 + $0x578] sm:$0xff]
      %v817 = vld [vmem:[%s640 + $0x580] sm:$0xff]
      %v818 = vld [vmem:[%s640 + $0x588] sm:$0xff]
      %v819 = vld [vmem:[%s640 + $0x590] sm:$0xff]
      %v820 = vld [vmem:[%s640 + $0x598] sm:$0xff]
      %v821 = vld [vmem:[%s640 + $0x5a0] sm:$0xff]
      %v822 = vld [vmem:[%s640 + $0x5a8] sm:$0xff]
      %v823 = vld [vmem:[%s640 + $0x5b0] sm:$0xff]
      %v824 = vld [vmem:[%s640 + $0x5b8] sm:$0xff]
      %v825 = vld [vmem:[%s640 + $0x5c0] sm:$0xff]
      %v826 = vld [vmem:[%s640 + $0x5c8] sm:$0xff]
      %v827 = vld [vmem:[%s640 + $0x5d0] sm:$0xff]
      %v828 = vld [vmem:[%s640 + $0x5d8] sm:$0xff]
      %v829 = vld [vmem:[%s640 + $0x5e0] sm:$0xff]
      %v830 = vld [vmem:[%s640 + $0x5e8] sm:$0xff]
      %v831 = vld [vmem:[%s640 + $0x5f0] sm:$0xff]
      %v832 = vld [vmem:[%s640 + $0x5f8] sm:$0xff]
      %v833 = vld [vmem:[%s640 + $0x600] sm:$0xff]
      %v834 = vld [vmem:[%s640 + $0x608] sm:$0xff]
      %v835 = vld [vmem:[%s640 + $0x610] sm:$0xff]
      %v836 = vld [vmem:[%s640 + $0x618] sm:$0xff]
      %v837 = vld [vmem:[%s640 + $0x620] sm:$0xff]
      %v838 = vld [vmem:[%s640 + $0x628] sm:$0xff]
      %v839 = vld [vmem:[%s640 + $0x630] sm:$0xff]
      %v840 = vld [vmem:[%s640 + $0x638] sm:$0xff]
      %v841 = vld [vmem:[%s640 + $0x640] sm:$0xff]
      %v842 = vld [vmem:[%s640 + $0x648] sm:$0xff]
      %v843 = vld [vmem:[%s640 + $0x650] sm:$0xff]
      %v844 = vld [vmem:[%s640 + $0x658] sm:$0xff]
      %v845 = vld [vmem:[%s640 + $0x660] sm:$0xff]
      %v846 = vld [vmem:[%s640 + $0x668] sm:$0xff]
      %v847 = vld [vmem:[%s640 + $0x670] sm:$0xff]
      %v848 = vld [vmem:[%s640 + $0x678] sm:$0xff]
      %v849 = vld [vmem:[%s640 + $0x680] sm:$0xff]
      %v850 = vld [vmem:[%s640 + $0x688] sm:$0xff]
      %v851 = vld [vmem:[%s640 + $0x690] sm:$0xff]
      %v852 = vld [vmem:[%s640 + $0x698] sm:$0xff]
      %v853 = vld [vmem:[%s640 + $0x6a0] sm:$0xff]
      %v854 = vld [vmem:[%s640 + $0x6a8] sm:$0xff]
      %v855 = vld [vmem:[%s640 + $0x6b0] sm:$0xff]
      %v856 = vld [vmem:[%s640 + $0x6b8] sm:$0xff]
      %v857 = vld [vmem:[%s640 + $0x6c0] sm:$0xff]
      %v858 = vld [vmem:[%s640 + $0x6c8] sm:$0xff]
      %v859 = vld [vmem:[%s640 + $0x6d0] sm:$0xff]
      %v860 = vld [vmem:[%s640 + $0x6d8] sm:$0xff]
      %v861 = vld [vmem:[%s640 + $0x6e0] sm:$0xff]
      %v862 = vld [vmem:[%s640 + $0x6e8] sm:$0xff]
      %v863 = vld [vmem:[%s640 + $0x6f0] sm:$0xff]
      %v864 = vld [vmem:[%s640 + $0x6f8] sm:$0xff]
      %v865 = vld [vmem:[%s640 + $0x700] sm:$0xff]
      %v866 = vld [vmem:[%s640 + $0x708] sm:$0xff]
      %v867 = vld [vmem:[%s640 + $0x710] sm:$0xff]
      %v868 = vld [vmem:[%s640 + $0x718] sm:$0xff]
      %v869 = vld [vmem:[%s640 + $0x720] sm:$0xff]
      %v870 = vld [vmem:[%s640 + $0x728] sm:$0xff]
      %v871 = vld [vmem:[%s640 + $0x730] sm:$0xff]
      %v872 = vld [vmem:[%s640 + $0x738] sm:$0xff]
      %v873 = vld [vmem:[%s640 + $0x740] sm:$0xff]
      %v874 = vld [vmem:[%s640 + $0x748] sm:$0xff]
      %v875 = vld [vmem:[%s640 + $0x750] sm:$0xff]
      %v876 = vld [vmem:[%s640 + $0x758] sm:$0xff]
      %v877 = vld [vmem:[%s640 + $0x760] sm:$0xff]
      %v878 = vld [vmem:[%s640 + $0x768] sm:$0xff]
      %v879 = vld [vmem:[%s640 + $0x770] sm:$0xff]
      %v880 = vld [vmem:[%s640 + $0x778] sm:$0xff]
      %v881 = vld [vmem:[%s640 + $0x780] sm:$0xff]
      %v882 = vld [vmem:[%s640 + $0x788] sm:$0xff]
      %v883 = vld [vmem:[%s640 + $0x790] sm:$0xff]
      %v884 = vld [vmem:[%s640 + $0x798] sm:$0xff]
      %v885 = vld [vmem:[%s640 + $0x7a0] sm:$0xff]
      %v886 = vld [vmem:[%s640 + $0x7a8] sm:$0xff]
      %v887 = vld [vmem:[%s640 + $0x7b0] sm:$0xff]
      %v888 = vld [vmem:[%s640 + $0x7b8] sm:$0xff]
      %v889 = vld [vmem:[%s640 + $0x7c0] sm:$0xff]
      %v890 = vld [vmem:[%s640 + $0x7c8] sm:$0xff]
      %v891 = vld [vmem:[%s640 + $0x7d0] sm:$0xff]
      %v892 = vld [vmem:[%s640 + $0x7d8] sm:$0xff]
      %v893 = vld [vmem:[%s640 + $0x7e0] sm:$0xff]
      %v894 = vld [vmem:[%s640 + $0x7e8] sm:$0xff]
      %v895 = vld [vmem:[%s640 + $0x7f0] sm:$0xff]
      %v896 = vld [vmem:[%s640 + $0x7f8] sm:$0xff]
      %v897 = vld [vmem:[%s640 + $0x800] sm:$0xff]
      %v898 = vld [vmem:[%s640 + $0x808] sm:$0xff]
      %v899 = vld [vmem:[%s640 + $0x810] sm:$0xff]
      %v900 = vld [vmem:[%s640 + $0x818] sm:$0xff]
      %v901 = vld [vmem:[%s640 + $0x820] sm:$0xff]
      %v902 = vld [vmem:[%s640 + $0x828] sm:$0xff]
      %v903 = vld [vmem:[%s640 + $0x830] sm:$0xff]
      %v904 = vld [vmem:[%s640 + $0x838] sm:$0xff]
      %v905 = vld [vmem:[%s640 + $0x840] sm:$0xff]
      %v906 = vld [vmem:[%s640 + $0x848] sm:$0xff]
      %v907 = vld [vmem:[%s640 + $0x850] sm:$0xff]
      %v908 = vld [vmem:[%s640 + $0x858] sm:$0xff]
      %v909 = vld [vmem:[%s640 + $0x860] sm:$0xff]
      %v910 = vld [vmem:[%s640 + $0x868] sm:$0xff]
      %v911 = vld [vmem:[%s640 + $0x870] sm:$0xff]
      %v912 = vld [vmem:[%s640 + $0x878] sm:$0xff]
      %v913 = vld [vmem:[%s640 + $0x880] sm:$0xff]
      %v914 = vld [vmem:[%s640 + $0x888] sm:$0xff]
      %v915 = vld [vmem:[%s640 + $0x890] sm:$0xff]
      %v916 = vld [vmem:[%s640 + $0x898] sm:$0xff]
      %v917 = vld [vmem:[%s640 + $0x8a0] sm:$0xff]
      %v918 = vld [vmem:[%s640 + $0x8a8] sm:$0xff]
      %v919 = vld [vmem:[%s640 + $0x8b0] sm:$0xff]
      %v920 = vld [vmem:[%s640 + $0x8b8] sm:$0xff]
      %v921 = vld [vmem:[%s640 + $0x8c0] sm:$0xff]
      %v922 = vld [vmem:[%s640 + $0x8c8] sm:$0xff]
      %v923 = vld [vmem:[%s640 + $0x8d0] sm:$0xff]
      %v924 = vld [vmem:[%s640 + $0x8d8] sm:$0xff]
      %v925 = vld [vmem:[%s640 + $0x8e0] sm:$0xff]
      %v926 = vld [vmem:[%s640 + $0x8e8] sm:$0xff]
      %v927 = vld [vmem:[%s640 + $0x8f0] sm:$0xff]
      %v928 = vld [vmem:[%s640 + $0x8f8] sm:$0xff]
      %v929 = vld [vmem:[%s640 + $0x900] sm:$0xff]
      %v930 = vld [vmem:[%s640 + $0x908] sm:$0xff]
      %v931 = vld [vmem:[%s640 + $0x910] sm:$0xff]
      %v932 = vld [vmem:[%s640 + $0x918] sm:$0xff]
      %v933 = vld [vmem:[%s640 + $0x920] sm:$0xff]
      %v934 = vld [vmem:[%s640 + $0x928] sm:$0xff]
      %v935 = vld [vmem:[%s640 + $0x930] sm:$0xff]
      %v936 = vld [vmem:[%s640 + $0x938] sm:$0xff]
      %v937 = vld [vmem:[%s640 + $0x940] sm:$0xff]
      %v938 = vld [vmem:[%s640 + $0x948] sm:$0xff]
      %v939 = vld [vmem:[%s640 + $0x950] sm:$0xff]
      %v940 = vld [vmem:[%s640 + $0x958] sm:$0xff]
      %v941 = vld [vmem:[%s640 + $0x960] sm:$0xff]
      %v942 = vld [vmem:[%s640 + $0x968] sm:$0xff]
      %v943 = vld [vmem:[%s640 + $0x970] sm:$0xff]
      %v944 = vld [vmem:[%s640 + $0x978] sm:$0xff]
      %v945 = vld [vmem:[%s640 + $0x980] sm:$0xff]
      %v946 = vld [vmem:[%s640 + $0x988] sm:$0xff]
      %v947 = vld [vmem:[%s640 + $0x990] sm:$0xff]
      %v948 = vld [vmem:[%s640 + $0x998] sm:$0xff]
      %v949 = vld [vmem:[%s640 + $0x9a0] sm:$0xff]
      %v950 = vld [vmem:[%s640 + $0x9a8] sm:$0xff]
      %v951 = vld [vmem:[%s640 + $0x9b0] sm:$0xff]
      %v952 = vld [vmem:[%s640 + $0x9b8] sm:$0xff]
      %v953 = vld [vmem:[%s640 + $0x9c0] sm:$0xff]
      %v954 = vld [vmem:[%s640 + $0x9c8] sm:$0xff]
      %v955 = vld [vmem:[%s640 + $0x9d0] sm:$0xff]
      %v956 = vld [vmem:[%s640 + $0x9d8] sm:$0xff]
      %v957 = vld [vmem:[%s640 + $0x9e0] sm:$0xff]
      %v958 = vld [vmem:[%s640 + $0x9e8] sm:$0xff]
      %v959 = vld [vmem:[%s640 + $0x9f0] sm:$0xff]
      %v960 = vld [vmem:[%s640 + $0x9f8] sm:$0xff]
      %v961 = vld [vmem:[%s640 + $0xa00] sm:$0xff]
      %v962 = vld [vmem:[%s640 + $0xa08] sm:$0xff]
      %v963 = vld [vmem:[%s640 + $0xa10] sm:$0xff]
      %v964 = vld [vmem:[%s640 + $0xa18] sm:$0xff]
      %v965 = vld [vmem:[%s640 + $0xa20] sm:$0xff]
      %v966 = vld [vmem:[%s640 + $0xa28] sm:$0xff]
      %v967 = vld [vmem:[%s640 + $0xa30] sm:$0xff]
      %v968 = vld [vmem:[%s640 + $0xa38] sm:$0xff]
      %v969 = vld [vmem:[%s640 + $0xa40] sm:$0xff]
      %v970 = vld [vmem:[%s640 + $0xa48] sm:$0xff]
      %v971 = vld [vmem:[%s640 + $0xa50] sm:$0xff]
      %v972 = vld [vmem:[%s640 + $0xa58] sm:$0xff]
      %v973 = vld [vmem:[%s640 + $0xa60] sm:$0xff]
      %v974 = vld [vmem:[%s640 + $0xa68] sm:$0xff]
      %v975 = vld [vmem:[%s640 + $0xa70] sm:$0xff]
      %v976 = vld [vmem:[%s640 + $0xa78] sm:$0xff]
      %v977 = vld [vmem:[%s640 + $0xa80] sm:$0xff]
      %v978 = vld [vmem:[%s640 + $0xa88] sm:$0xff]
      %v979 = vld [vmem:[%s640 + $0xa90] sm:$0xff]
      %v980 = vld [vmem:[%s640 + $0xa98] sm:$0xff]
      %v981 = vld [vmem:[%s640 + $0xaa0] sm:$0xff]
      %v982 = vld [vmem:[%s640 + $0xaa8] sm:$0xff]
      %v983 = vld [vmem:[%s640 + $0xab0] sm:$0xff]
      %v984 = vld [vmem:[%s640 + $0xab8] sm:$0xff]
      %v985 = vld [vmem:[%s640 + $0xac0] sm:$0xff]
      %v986 = vld [vmem:[%s640 + $0xac8] sm:$0xff]
      %v987 = vld [vmem:[%s640 + $0xad0] sm:$0xff]
      %v988 = vld [vmem:[%s640 + $0xad8] sm:$0xff]
      %v989 = vld [vmem:[%s640 + $0xae0] sm:$0xff]
      %v990 = vld [vmem:[%s640 + $0xae8] sm:$0xff]
      %v991 = vld [vmem:[%s640 + $0xaf0] sm:$0xff]
      %v992 = vld [vmem:[%s640 + $0xaf8] sm:$0xff]
      %v993 = vld [vmem:[%s640 + $0xb00] sm:$0xff]
      %v994 = vld [vmem:[%s640 + $0xb08] sm:$0xff]
      %v995 = vld [vmem:[%s640 + $0xb10] sm:$0xff]
      %v996 = vld [vmem:[%s640 + $0xb18] sm:$0xff]
      %v997 = vld [vmem:[%s640 + $0xb20] sm:$0xff]
      %v998 = vld [vmem:[%s640 + $0xb28] sm:$0xff]
      %v999 = vld [vmem:[%s640 + $0xb30] sm:$0xff]
      %v1000 = vld [vmem:[%s640 + $0xb38] sm:$0xff]
      %v1001 = vld [vmem:[%s640 + $0xb40] sm:$0xff]
      %v1002 = vld [vmem:[%s640 + $0xb48] sm:$0xff]
      %v1003 = vld [vmem:[%s640 + $0xb50] sm:$0xff]
      %v1004 = vld [vmem:[%s640 + $0xb58] sm:$0xff]
      %v1005 = vld [vmem:[%s640 + $0xb60] sm:$0xff]
      %v1006 = vld [vmem:[%s640 + $0xb68] sm:$0xff]
      %v1007 = vld [vmem:[%s640 + $0xb70] sm:$0xff]
      %v1008 = vld [vmem:[%s640 + $0xb78] sm:$0xff]
      %v1009 = vld [vmem:[%s640 + $0xb80] sm:$0xff]
      %v1010 = vld [vmem:[%s640 + $0xb88] sm:$0xff]
      %v1011 = vld [vmem:[%s640 + $0xb90] sm:$0xff]
      %v1012 = vld [vmem:[%s640 + $0xb98] sm:$0xff]
      %v1013 = vld [vmem:[%s640 + $0xba0] sm:$0xff]
      %v1014 = vld [vmem:[%s640 + $0xba8] sm:$0xff]
      %v1015 = vld [vmem:[%s640 + $0xbb0] sm:$0xff]
      %v1016 = vld [vmem:[%s640 + $0xbb8] sm:$0xff]
      %v1017 = vld [vmem:[%s640 + $0xbc0] sm:$0xff]
      %v1018 = vld [vmem:[%s640 + $0xbc8] sm:$0xff]
      %v1019 = vld [vmem:[%s640 + $0xbd0] sm:$0xff]
      %v1020 = vld [vmem:[%s640 + $0xbd8] sm:$0xff]
      %v1021 = vld [vmem:[%s640 + $0xbe0] sm:$0xff]
      %v1022 = vld [vmem:[%s640 + $0xbe8] sm:$0xff]
      %v1023 = vld [vmem:[%s640 + $0xbf0] sm:$0xff]
      %v1024 = vld [vmem:[%s640 + $0xbf8] sm:$0xff]
      %v1025 = vld [vmem:[%s640 + $0xc00] sm:$0xff]
      %v1026 = vld [vmem:[%s640 + $0xc08] sm:$0xff]
      %v1027 = vld [vmem:[%s640 + $0xc10] sm:$0xff]
      %v1028 = vld [vmem:[%s640 + $0xc18] sm:$0xff]
      %v1029 = vld [vmem:[%s640 + $0xc20] sm:$0xff]
      %v1030 = vld [vmem:[%s640 + $0xc28] sm:$0xff]
      %v1031 = vld [vmem:[%s640 + $0xc30] sm:$0xff]
      %v1032 = vld [vmem:[%s640 + $0xc38] sm:$0xff]
      %v1033 = vld [vmem:[%s640 + $0xc40] sm:$0xff]
      %v1034 = vld [vmem:[%s640 + $0xc48] sm:$0xff]
      %v1035 = vld [vmem:[%s640 + $0xc50] sm:$0xff]
      %v1036 = vld [vmem:[%s640 + $0xc58] sm:$0xff]
      %v1037 = vld [vmem:[%s640 + $0xc60] sm:$0xff]
      %v1038 = vld [vmem:[%s640 + $0xc68] sm:$0xff]
      %v1039 = vld [vmem:[%s640 + $0xc70] sm:$0xff]
      %v1040 = vld [vmem:[%s640 + $0xc78] sm:$0xff]
      %vm1055 = vcmask 1046528
      %v1056 = vrot.slane %v626, 1
      %v1057 = vrot.slane %v633, 1
      %v1058 = vsel %vm1055, %v1056, %v1057
      %v1059 = vrot.slane %v627, 1
      %v1060 = vrot.slane %v634, 1
      %v1061 = vsel %vm1055, %v1059, %v1060
      %v1062 = vrot.slane %v628, 1
      %v1063 = vrot.slane %v635, 1
      %v1064 = vsel %vm1055, %v1062, %v1063
      %v1065 = vrot.slane %v629, 1
      %v1066 = vrot.slane %v636, 1
      %v1067 = vsel %vm1055, %v1065, %v1066
      %v1068 = vrot.slane %v630, 1
      %v1069 = vrot.slane %v637, 1
      %v1070 = vsel %vm1055, %v1068, %v1069
      %v1071 = vrot.slane %v631, 1
      %v1072 = vrot.slane %v638, 1
      %v1073 = vsel %vm1055, %v1071, %v1072
      %v1074 = vrot.slane %v632, 1
      %v1075 = vrot.slane %v639, 1
      %v1076 = vsel %vm1055, %v1074, %v1075
      %vm1083 = vcmask 261120
      %v1084 = vsel %vm1083, %v1076, 0
      %1086 = vmatprep.subr.mxu0 %v702
      %1087 = vmatpush1.msra.mxu0 %v701
      %1088 = vmatprep.subr.mxu0 %v698
      %1089 = vmatpush1.msra.mxu0 %v697
      %1090 = vmatprep.subr.mxu0 %v694
      %1091 = vmatpush1.msra.mxu0 %v693
      %1092 = vmatprep.subr.mxu0 %v690
      %1093 = vmatpush1.msra.mxu0 %v689
      %1094 = vmatprep.subr.mxu0 %v686
      %1095 = vmatpush1.msra.mxu0 %v685
      %1096 = vmatprep.subr.mxu0 %v682
      %1097 = vmatpush1.msra.mxu0 %v681
      %1098 = vmatprep.subr.mxu0 %v678
      %1099 = vmatpush1.msra.mxu0 %v677
      %1100 = vmatprep.subr.mxu0 %v674
      %1101 = vmatpush1.msra.mxu0 %v673
      %1102 = vmatprep.subr.mxu0 %v670
      %1103 = vmatpush1.msra.mxu0 %v669
      %1104 = vmatprep.subr.mxu0 %v666
      %1105 = vmatpush1.msra.mxu0 %v665
      %1106 = vmatprep.subr.mxu0 %v662
      %1107 = vmatpush1.msra.mxu0 %v661
      %1108 = vmatprep.subr.mxu0 %v658
      %1109 = vmatpush1.msra.mxu0 %v657
      %1110 = vmatprep.subr.mxu0 %v654
      %1111 = vmatpush1.msra.mxu0 %v653
      %1112 = vmatprep.subr.mxu0 %v650
      %1113 = vmatpush1.msra.mxu0 %v649
      %1114 = vmatprep.subr.mxu0 %v646
      %1115 = vmatpush1.msra.mxu0 %v645
      %1116 = vmatprep.subr.mxu0 %v642
      %1117 = vmatpush1.msra.mxu0 %v641
      %1118 = vmatprep.subr.mxu0 %v766
      %1119 = vmatpush2.msra.mxu0 %v765
      %1120 = vmatprep.subr.mxu0 %v762
      %1121 = vmatpush2.msra.mxu0 %v761
      %1122 = vmatprep.subr.mxu0 %v758
      %1123 = vmatpush2.msra.mxu0 %v757
      %1124 = vmatprep.subr.mxu0 %v754
      %1125 = vmatpush2.msra.mxu0 %v753
      %1126 = vmatprep.subr.mxu0 %v750
      %1127 = vmatpush2.msra.mxu0 %v749
      %1128 = vmatprep.subr.mxu0 %v746
      %1129 = vmatpush2.msra.mxu0 %v745
      %1130 = vmatprep.subr.mxu0 %v742
      %1131 = vmatpush2.msra.mxu0 %v741
      %1132 = vmatprep.subr.mxu0 %v738
      %1133 = vmatpush2.msra.mxu0 %v737
      %1134 = vmatprep.subr.mxu0 %v734
      %1135 = vmatpush2.msra.mxu0 %v733
      %1136 = vmatprep.subr.mxu0 %v730
      %1137 = vmatpush2.msra.mxu0 %v729
      %1138 = vmatprep.subr.mxu0 %v726
      %1139 = vmatpush2.msra.mxu0 %v725
      %1140 = vmatprep.subr.mxu0 %v722
      %1141 = vmatpush2.msra.mxu0 %v721
      %1142 = vmatprep.subr.mxu0 %v718
      %1143 = vmatpush2.msra.mxu0 %v717
      %1144 = vmatprep.subr.mxu0 %v714
      %1145 = vmatpush2.msra.mxu0 %v713
      %1146 = vmatprep.subr.mxu0 %v710
      %1147 = vmatpush2.msra.mxu0 %v709
      %1148 = vmatprep.subr.mxu0 %v706
      %1149 = vmatpush2.msra.mxu0 %v705
      %1150 = vmatprep.mubr.f32.mxu0 %v1061
      %1151 = vmatmul.mubr.f32.gmra.mxu0 %v1058
      %v1152 = vpop.f32.mrf.mxu0
      %v1153 = vadd.f32 0.0, %v1152
      %v1154 = vpop.f32.mrf.mxu0
      %v1155 = vadd.f32 0.0, %v1154
      %1156 = vdwg.mxu0
      %1157 = vmatprep.subr.mxu0 %v830
      %1158 = vmatpush1.msra.mxu0 %v829
      %1159 = vmatprep.subr.mxu0 %v826
      %1160 = vmatpush1.msra.mxu0 %v825
      %1161 = vmatprep.subr.mxu0 %v822
      %1162 = vmatpush1.msra.mxu0 %v821
      %1163 = vmatprep.subr.mxu0 %v818
      %1164 = vmatpush1.msra.mxu0 %v817
      %1165 = vmatprep.subr.mxu0 %v814
      %1166 = vmatpush1.msra.mxu0 %v813
      %1167 = vmatprep.subr.mxu0 %v810
      %1168 = vmatpush1.msra.mxu0 %v809
      %1169 = vmatprep.subr.mxu0 %v806
      %1170 = vmatpush1.msra.mxu0 %v805
      %1171 = vmatprep.subr.mxu0 %v802
      %1172 = vmatpush1.msra.mxu0 %v801
      %1173 = vmatprep.subr.mxu0 %v798
      %1174 = vmatpush1.msra.mxu0 %v797
      %1175 = vmatprep.subr.mxu0 %v794
      %1176 = vmatpush1.msra.mxu0 %v793
      %1177 = vmatprep.subr.mxu0 %v790
      %1178 = vmatpush1.msra.mxu0 %v789
      %1179 = vmatprep.subr.mxu0 %v786
      %1180 = vmatpush1.msra.mxu0 %v785
      %1181 = vmatprep.subr.mxu0 %v782
      %1182 = vmatpush1.msra.mxu0 %v781
      %1183 = vmatprep.subr.mxu0 %v778
      %1184 = vmatpush1.msra.mxu0 %v777
      %1185 = vmatprep.subr.mxu0 %v774
      %1186 = vmatpush1.msra.mxu0 %v773
      %1187 = vmatprep.subr.mxu0 %v770
      %1188 = vmatpush1.msra.mxu0 %v769
      %1189 = vmatprep.subr.mxu0 %v894
      %1190 = vmatpush2.msra.mxu0 %v893
      %1191 = vmatprep.subr.mxu0 %v890
      %1192 = vmatpush2.msra.mxu0 %v889
      %1193 = vmatprep.subr.mxu0 %v886
      %1194 = vmatpush2.msra.mxu0 %v885
      %1195 = vmatprep.subr.mxu0 %v882
      %1196 = vmatpush2.msra.mxu0 %v881
      %1197 = vmatprep.subr.mxu0 %v878
      %1198 = vmatpush2.msra.mxu0 %v877
      %1199 = vmatprep.subr.mxu0 %v874
      %1200 = vmatpush2.msra.mxu0 %v873
      %1201 = vmatprep.subr.mxu0 %v870
      %1202 = vmatpush2.msra.mxu0 %v869
      %1203 = vmatprep.subr.mxu0 %v866
      %1204 = vmatpush2.msra.mxu0 %v865
      %1205 = vmatprep.subr.mxu0 %v862
      %1206 = vmatpush2.msra.mxu0 %v861
      %1207 = vmatprep.subr.mxu0 %v858
      %1208 = vmatpush2.msra.mxu0 %v857
      %1209 = vmatprep.subr.mxu0 %v854
      %1210 = vmatpush2.msra.mxu0 %v853
      %1211 = vmatprep.subr.mxu0 %v850
      %1212 = vmatpush2.msra.mxu0 %v849
      %1213 = vmatprep.subr.mxu0 %v846
      %1214 = vmatpush2.msra.mxu0 %v845
      %1215 = vmatprep.subr.mxu0 %v842
      %1216 = vmatpush2.msra.mxu0 %v841
      %1217 = vmatprep.subr.mxu0 %v838
      %1218 = vmatpush2.msra.mxu0 %v837
      %1219 = vmatprep.subr.mxu0 %v834
      %1220 = vmatpush2.msra.mxu0 %v833
      %1221 = vmatprep.mubr.f32.mxu0 %v1067
      %1222 = vmatmul.mubr.f32.gmra.mxu0 %v1064
      %v1223 = vpop.f32.mrf.mxu0
      %v1224 = vadd.f32 %v1153, %v1223
      %v1225 = vpop.f32.mrf.mxu0
      %v1226 = vadd.f32 %v1155, %v1225
      %1227 = vdwg.mxu0
      %1228 = vmatprep.subr.mxu0 %v958
      %1229 = vmatpush1.msra.mxu0 %v957
      %1230 = vmatprep.subr.mxu0 %v954
      %1231 = vmatpush1.msra.mxu0 %v953
      %1232 = vmatprep.subr.mxu0 %v950
      %1233 = vmatpush1.msra.mxu0 %v949
      %1234 = vmatprep.subr.mxu0 %v946
      %1235 = vmatpush1.msra.mxu0 %v945
      %1236 = vmatprep.subr.mxu0 %v942
      %1237 = vmatpush1.msra.mxu0 %v941
      %1238 = vmatprep.subr.mxu0 %v938
      %1239 = vmatpush1.msra.mxu0 %v937
      %1240 = vmatprep.subr.mxu0 %v934
      %1241 = vmatpush1.msra.mxu0 %v933
      %1242 = vmatprep.subr.mxu0 %v930
      %1243 = vmatpush1.msra.mxu0 %v929
      %1244 = vmatprep.subr.mxu0 %v926
      %1245 = vmatpush1.msra.mxu0 %v925
      %1246 = vmatprep.subr.mxu0 %v922
      %1247 = vmatpush1.msra.mxu0 %v921
      %1248 = vmatprep.subr.mxu0 %v918
      %1249 = vmatpush1.msra.mxu0 %v917
      %1250 = vmatprep.subr.mxu0 %v914
      %1251 = vmatpush1.msra.mxu0 %v913
      %1252 = vmatprep.subr.mxu0 %v910
      %1253 = vmatpush1.msra.mxu0 %v909
      %1254 = vmatprep.subr.mxu0 %v906
      %1255 = vmatpush1.msra.mxu0 %v905
      %1256 = vmatprep.subr.mxu0 %v902
      %1257 = vmatpush1.msra.mxu0 %v901
      %1258 = vmatprep.subr.mxu0 %v898
      %1259 = vmatpush1.msra.mxu0 %v897
      %1260 = vmatprep.subr.mxu0 %v1022
      %1261 = vmatpush2.msra.mxu0 %v1021
      %1262 = vmatprep.subr.mxu0 %v1018
      %1263 = vmatpush2.msra.mxu0 %v1017
      %1264 = vmatprep.subr.mxu0 %v1014
      %1265 = vmatpush2.msra.mxu0 %v1013
      %1266 = vmatprep.subr.mxu0 %v1010
      %1267 = vmatpush2.msra.mxu0 %v1009
      %1268 = vmatprep.subr.mxu0 %v1006
      %1269 = vmatpush2.msra.mxu0 %v1005
      %1270 = vmatprep.subr.mxu0 %v1002
      %1271 = vmatpush2.msra.mxu0 %v1001
      %1272 = vmatprep.subr.mxu0 %v998
      %1273 = vmatpush2.msra.mxu0 %v997
      %1274 = vmatprep.subr.mxu0 %v994
      %1275 = vmatpush2.msra.mxu0 %v993
      %1276 = vmatprep.subr.mxu0 %v990
      %1277 = vmatpush2.msra.mxu0 %v989
      %1278 = vmatprep.subr.mxu0 %v986
      %1279 = vmatpush2.msra.mxu0 %v985
      %1280 = vmatprep.subr.mxu0 %v982
      %1281 = vmatpush2.msra.mxu0 %v981
      %1282 = vmatprep.subr.mxu0 %v978
      %1283 = vmatpush2.msra.mxu0 %v977
      %1284 = vmatprep.subr.mxu0 %v974
      %1285 = vmatpush2.msra.mxu0 %v973
      %1286 = vmatprep.subr.mxu0 %v970
      %1287 = vmatpush2.msra.mxu0 %v969
      %1288 = vmatprep.subr.mxu0 %v966
      %1289 = vmatpush2.msra.mxu0 %v965
      %1290 = vmatprep.subr.mxu0 %v962
      %1291 = vmatpush2.msra.mxu0 %v961
      %1292 = vmatprep.mubr.f32.mxu0 %v1073
      %1293 = vmatmul.mubr.f32.gmra.mxu0 %v1070
      %v1294 = vpop.f32.mrf.mxu0
      %v1295 = vadd.f32 %v1224, %v1294
      %v1296 = vpop.f32.mrf.mxu0
      %v1297 = vadd.f32 %v1226, %v1296
      %1298 = vdwg.mxu0
      %1299 = vmatprep.subr.mxu0 0.0
      %1300 = vmatpush1.msra.mxu0 0.0
      %1301 = vmatprep.subr.mxu0 0.0
      %1302 = vmatpush1.msra.mxu0 0.0
      %1303 = vmatprep.subr.mxu0 0.0
      %1304 = vmatpush1.msra.mxu0 0.0
      %1305 = vmatprep.subr.mxu0 0.0
      %1306 = vmatpush1.msra.mxu0 0.0
      %1307 = vmatprep.subr.mxu0 0.0
      %1308 = vmatpush1.msra.mxu0 0.0
      %1309 = vmatprep.subr.mxu0 0.0
      %1310 = vmatpush1.msra.mxu0 0.0
      %1311 = vmatprep.subr.mxu0 0.0
      %1312 = vmatpush1.msra.mxu0 0.0
      %1313 = vmatprep.subr.mxu0 0.0
      %1314 = vmatpush1.msra.mxu0 0.0
      %1315 = vmatprep.subr.mxu0 0.0
      %1316 = vmatpush1.msra.mxu0 0.0
      %1317 = vmatprep.subr.mxu0 0.0
      %1318 = vmatpush1.msra.mxu0 0.0
      %1319 = vmatprep.subr.mxu0 0.0
      %1320 = vmatpush1.msra.mxu0 0.0
      %1321 = vmatprep.subr.mxu0 0.0
      %1322 = vmatpush1.msra.mxu0 0.0
      %1323 = vmatprep.subr.mxu0 %v1038
      %1324 = vmatpush1.msra.mxu0 %v1037
      %1325 = vmatprep.subr.mxu0 %v1034
      %1326 = vmatpush1.msra.mxu0 %v1033
      %1327 = vmatprep.subr.mxu0 %v1030
      %1328 = vmatpush1.msra.mxu0 %v1029
      %1329 = vmatprep.subr.mxu0 %v1026
      %1330 = vmatpush1.msra.mxu0 %v1025
      %1331 = vmatprep.subr.mxu0 0.0
      %1332 = vmatpush2.msra.mxu0 0.0
      %1333 = vmatprep.subr.mxu0 0.0
      %1334 = vmatpush2.msra.mxu0 0.0
      %1335 = vmatprep.subr.mxu0 0.0
      %1336 = vmatpush2.msra.mxu0 0.0
      %1337 = vmatprep.subr.mxu0 0.0
      %1338 = vmatpush2.msra.mxu0 0.0
      %1339 = vmatprep.subr.mxu0 0.0
      %1340 = vmatpush2.msra.mxu0 0.0
      %1341 = vmatprep.subr.mxu0 0.0
      %1342 = vmatpush2.msra.mxu0 0.0
      %1343 = vmatprep.subr.mxu0 0.0
      %1344 = vmatpush2.msra.mxu0 0.0
      %1345 = vmatprep.subr.mxu0 0.0
      %1346 = vmatpush2.msra.mxu0 0.0
      %1347 = vmatprep.subr.mxu0 0.0
      %1348 = vmatpush2.msra.mxu0 0.0
      %1349 = vmatprep.subr.mxu0 0.0
      %1350 = vmatpush2.msra.mxu0 0.0
      %1351 = vmatprep.subr.mxu0 0.0
      %1352 = vmatpush2.msra.mxu0 0.0
      %1353 = vmatprep.subr.mxu0 0.0
      %1354 = vmatpush2.msra.mxu0 0.0
      %1355 = vmatprep.subr.mxu0 0.0
      %1356 = vmatpush2.msra.mxu0 0.0
      %1357 = vmatprep.subr.mxu0 0.0
      %1358 = vmatpush2.msra.mxu0 0.0
      %1359 = vmatprep.subr.mxu0 0.0
      %1360 = vmatpush2.msra.mxu0 0.0
      %1361 = vmatprep.subr.mxu0 0.0
      %1362 = vmatpush2.msra.mxu0 0.0
      %1363 = vmatprep.mubr.f32.mxu0 0.0
      %1364 = vmatmul.mubr.f32.gmra.mxu0 %v1084
      %v1365 = vpop.f32.mrf.mxu0
      %v1366 = vadd.f32 %v1295, %v1365
      %v1367 = vpop.f32.mrf.mxu0
      %v1368 = vadd.f32 %v1297, %v1367
      %1369 = vdwg.mxu0
      %1370 = vmatprep.subr.mxu0 %v704
      %1371 = vmatpush1.msra.mxu0 %v703
      %1372 = vmatprep.subr.mxu0 %v700
      %1373 = vmatpush1.msra.mxu0 %v699
      %1374 = vmatprep.subr.mxu0 %v696
      %1375 = vmatpush1.msra.mxu0 %v695
      %1376 = vmatprep.subr.mxu0 %v692
      %1377 = vmatpush1.msra.mxu0 %v691
      %1378 = vmatprep.subr.mxu0 %v688
      %1379 = vmatpush1.msra.mxu0 %v687
      %1380 = vmatprep.subr.mxu0 %v684
      %1381 = vmatpush1.msra.mxu0 %v683
      %1382 = vmatprep.subr.mxu0 %v680
      %1383 = vmatpush1.msra.mxu0 %v679
      %1384 = vmatprep.subr.mxu0 %v676
      %1385 = vmatpush1.msra.mxu0 %v675
      %1386 = vmatprep.subr.mxu0 %v672
      %1387 = vmatpush1.msra.mxu0 %v671
      %1388 = vmatprep.subr.mxu0 %v668
      %1389 = vmatpush1.msra.mxu0 %v667
      %1390 = vmatprep.subr.mxu0 %v664
      %1391 = vmatpush1.msra.mxu0 %v663
      %1392 = vmatprep.subr.mxu0 %v660
      %1393 = vmatpush1.msra.mxu0 %v659
      %1394 = vmatprep.subr.mxu0 %v656
      %1395 = vmatpush1.msra.mxu0 %v655
      %1396 = vmatprep.subr.mxu0 %v652
      %1397 = vmatpush1.msra.mxu0 %v651
      %1398 = vmatprep.subr.mxu0 %v648
      %1399 = vmatpush1.msra.mxu0 %v647
      %1400 = vmatprep.subr.mxu0 %v644
      %1401 = vmatpush1.msra.mxu0 %v643
      %1402 = vmatprep.subr.mxu0 %v768
      %1403 = vmatpush2.msra.mxu0 %v767
      %1404 = vmatprep.subr.mxu0 %v764
      %1405 = vmatpush2.msra.mxu0 %v763
      %1406 = vmatprep.subr.mxu0 %v760
      %1407 = vmatpush2.msra.mxu0 %v759
      %1408 = vmatprep.subr.mxu0 %v756
      %1409 = vmatpush2.msra.mxu0 %v755
      %1410 = vmatprep.subr.mxu0 %v752
      %1411 = vmatpush2.msra.mxu0 %v751
      %1412 = vmatprep.subr.mxu0 %v748
      %1413 = vmatpush2.msra.mxu0 %v747
      %1414 = vmatprep.subr.mxu0 %v744
      %1415 = vmatpush2.msra.mxu0 %v743
      %1416 = vmatprep.subr.mxu0 %v740
      %1417 = vmatpush2.msra.mxu0 %v739
      %1418 = vmatprep.subr.mxu0 %v736
      %1419 = vmatpush2.msra.mxu0 %v735
      %1420 = vmatprep.subr.mxu0 %v732
      %1421 = vmatpush2.msra.mxu0 %v731
      %1422 = vmatprep.subr.mxu0 %v728
      %1423 = vmatpush2.msra.mxu0 %v727
      %1424 = vmatprep.subr.mxu0 %v724
      %1425 = vmatpush2.msra.mxu0 %v723
      %1426 = vmatprep.subr.mxu0 %v720
      %1427 = vmatpush2.msra.mxu0 %v719
      %1428 = vmatprep.subr.mxu0 %v716
      %1429 = vmatpush2.msra.mxu0 %v715
      %1430 = vmatprep.subr.mxu0 %v712
      %1431 = vmatpush2.msra.mxu0 %v711
      %1432 = vmatprep.subr.mxu0 %v708
      %1433 = vmatpush2.msra.mxu0 %v707
      %1434 = vmatprep.mubr.f32.mxu0 %v1061
      %1435 = vmatmul.mubr.f32.gmra.mxu0 %v1058
      %v1436 = vpop.f32.mrf.mxu0
      %v1437 = vadd.f32 0.0, %v1436
      %v1438 = vpop.f32.mrf.mxu0
      %v1439 = vadd.f32 0.0, %v1438
      %1440 = vdwg.mxu0
      %1441 = vmatprep.subr.mxu0 %v832
      %1442 = vmatpush1.msra.mxu0 %v831
      %1443 = vmatprep.subr.mxu0 %v828
      %1444 = vmatpush1.msra.mxu0 %v827
      %1445 = vmatprep.subr.mxu0 %v824
      %1446 = vmatpush1.msra.mxu0 %v823
      %1447 = vmatprep.subr.mxu0 %v820
      %1448 = vmatpush1.msra.mxu0 %v819
      %1449 = vmatprep.subr.mxu0 %v816
      %1450 = vmatpush1.msra.mxu0 %v815
      %1451 = vmatprep.subr.mxu0 %v812
      %1452 = vmatpush1.msra.mxu0 %v811
      %1453 = vmatprep.subr.mxu0 %v808
      %1454 = vmatpush1.msra.mxu0 %v807
      %1455 = vmatprep.subr.mxu0 %v804
      %1456 = vmatpush1.msra.mxu0 %v803
      %1457 = vmatprep.subr.mxu0 %v800
      %1458 = vmatpush1.msra.mxu0 %v799
      %1459 = vmatprep.subr.mxu0 %v796
      %1460 = vmatpush1.msra.mxu0 %v795
      %1461 = vmatprep.subr.mxu0 %v792
      %1462 = vmatpush1.msra.mxu0 %v791
      %1463 = vmatprep.subr.mxu0 %v788
      %1464 = vmatpush1.msra.mxu0 %v787
      %1465 = vmatprep.subr.mxu0 %v784
      %1466 = vmatpush1.msra.mxu0 %v783
      %1467 = vmatprep.subr.mxu0 %v780
      %1468 = vmatpush1.msra.mxu0 %v779
      %1469 = vmatprep.subr.mxu0 %v776
      %1470 = vmatpush1.msra.mxu0 %v775
      %1471 = vmatprep.subr.mxu0 %v772
      %1472 = vmatpush1.msra.mxu0 %v771
      %1473 = vmatprep.subr.mxu0 %v896
      %1474 = vmatpush2.msra.mxu0 %v895
      %1475 = vmatprep.subr.mxu0 %v892
      %1476 = vmatpush2.msra.mxu0 %v891
      %1477 = vmatprep.subr.mxu0 %v888
      %1478 = vmatpush2.msra.mxu0 %v887
      %1479 = vmatprep.subr.mxu0 %v884
      %1480 = vmatpush2.msra.mxu0 %v883
      %1481 = vmatprep.subr.mxu0 %v880
      %1482 = vmatpush2.msra.mxu0 %v879
      %1483 = vmatprep.subr.mxu0 %v876
      %1484 = vmatpush2.msra.mxu0 %v875
      %1485 = vmatprep.subr.mxu0 %v872
      %1486 = vmatpush2.msra.mxu0 %v871
      %1487 = vmatprep.subr.mxu0 %v868
      %1488 = vmatpush2.msra.mxu0 %v867
      %1489 = vmatprep.subr.mxu0 %v864
      %1490 = vmatpush2.msra.mxu0 %v863
      %1491 = vmatprep.subr.mxu0 %v860
      %1492 = vmatpush2.msra.mxu0 %v859
      %1493 = vmatprep.subr.mxu0 %v856
      %1494 = vmatpush2.msra.mxu0 %v855
      %1495 = vmatprep.subr.mxu0 %v852
      %1496 = vmatpush2.msra.mxu0 %v851
      %1497 = vmatprep.subr.mxu0 %v848
      %1498 = vmatpush2.msra.mxu0 %v847
      %1499 = vmatprep.subr.mxu0 %v844
      %1500 = vmatpush2.msra.mxu0 %v843
      %1501 = vmatprep.subr.mxu0 %v840
      %1502 = vmatpush2.msra.mxu0 %v839
      %1503 = vmatprep.subr.mxu0 %v836
      %1504 = vmatpush2.msra.mxu0 %v835
      %1505 = vmatprep.mubr.f32.mxu0 %v1067
      %1506 = vmatmul.mubr.f32.gmra.mxu0 %v1064
      %v1507 = vpop.f32.mrf.mxu0
      %v1508 = vadd.f32 %v1437, %v1507
      %v1509 = vpop.f32.mrf.mxu0
      %v1510 = vadd.f32 %v1439, %v1509
      %1511 = vdwg.mxu0
      %1512 = vmatprep.subr.mxu0 %v960
      %1513 = vmatpush1.msra.mxu0 %v959
      %1514 = vmatprep.subr.mxu0 %v956
      %1515 = vmatpush1.msra.mxu0 %v955
      %1516 = vmatprep.subr.mxu0 %v952
      %1517 = vmatpush1.msra.mxu0 %v951
      %1518 = vmatprep.subr.mxu0 %v948
      %1519 = vmatpush1.msra.mxu0 %v947
      %1520 = vmatprep.subr.mxu0 %v944
      %1521 = vmatpush1.msra.mxu0 %v943
      %1522 = vmatprep.subr.mxu0 %v940
      %1523 = vmatpush1.msra.mxu0 %v939
      %1524 = vmatprep.subr.mxu0 %v936
      %1525 = vmatpush1.msra.mxu0 %v935
      %1526 = vmatprep.subr.mxu0 %v932
      %1527 = vmatpush1.msra.mxu0 %v931
      %1528 = vmatprep.subr.mxu0 %v928
      %1529 = vmatpush1.msra.mxu0 %v927
      %1530 = vmatprep.subr.mxu0 %v924
      %1531 = vmatpush1.msra.mxu0 %v923
      %1532 = vmatprep.subr.mxu0 %v920
      %1533 = vmatpush1.msra.mxu0 %v919
      %1534 = vmatprep.subr.mxu0 %v916
      %1535 = vmatpush1.msra.mxu0 %v915
      %1536 = vmatprep.subr.mxu0 %v912
      %1537 = vmatpush1.msra.mxu0 %v911
      %1538 = vmatprep.subr.mxu0 %v908
      %1539 = vmatpush1.msra.mxu0 %v907
      %1540 = vmatprep.subr.mxu0 %v904
      %1541 = vmatpush1.msra.mxu0 %v903
      %1542 = vmatprep.subr.mxu0 %v900
      %1543 = vmatpush1.msra.mxu0 %v899
      %1544 = vmatprep.subr.mxu0 %v1024
      %1545 = vmatpush2.msra.mxu0 %v1023
      %1546 = vmatprep.subr.mxu0 %v1020
      %1547 = vmatpush2.msra.mxu0 %v1019
      %1548 = vmatprep.subr.mxu0 %v1016
      %1549 = vmatpush2.msra.mxu0 %v1015
      %1550 = vmatprep.subr.mxu0 %v1012
      %1551 = vmatpush2.msra.mxu0 %v1011
      %1552 = vmatprep.subr.mxu0 %v1008
      %1553 = vmatpush2.msra.mxu0 %v1007
      %1554 = vmatprep.subr.mxu0 %v1004
      %1555 = vmatpush2.msra.mxu0 %v1003
      %1556 = vmatprep.subr.mxu0 %v1000
      %1557 = vmatpush2.msra.mxu0 %v999
      %1558 = vmatprep.subr.mxu0 %v996
      %1559 = vmatpush2.msra.mxu0 %v995
      %1560 = vmatprep.subr.mxu0 %v992
      %1561 = vmatpush2.msra.mxu0 %v991
      %1562 = vmatprep.subr.mxu0 %v988
      %1563 = vmatpush2.msra.mxu0 %v987
      %1564 = vmatprep.subr.mxu0 %v984
      %1565 = vmatpush2.msra.mxu0 %v983
      %1566 = vmatprep.subr.mxu0 %v980
      %1567 = vmatpush2.msra.mxu0 %v979
      %1568 = vmatprep.subr.mxu0 %v976
      %1569 = vmatpush2.msra.mxu0 %v975
      %1570 = vmatprep.subr.mxu0 %v972
      %1571 = vmatpush2.msra.mxu0 %v971
      %1572 = vmatprep.subr.mxu0 %v968
      %1573 = vmatpush2.msra.mxu0 %v967
      %1574 = vmatprep.subr.mxu0 %v964
      %1575 = vmatpush2.msra.mxu0 %v963
      %1576 = vmatprep.mubr.f32.mxu0 %v1073
      %1577 = vmatmul.mubr.f32.gmra.mxu0 %v1070
      %v1578 = vpop.f32.mrf.mxu0
      %v1579 = vadd.f32 %v1508, %v1578
      %v1580 = vpop.f32.mrf.mxu0
      %v1581 = vadd.f32 %v1510, %v1580
      %1582 = vdwg.mxu0
      %1583 = vmatprep.subr.mxu0 0.0
      %1584 = vmatpush1.msra.mxu0 0.0
      %1585 = vmatprep.subr.mxu0 0.0
      %1586 = vmatpush1.msra.mxu0 0.0
      %1587 = vmatprep.subr.mxu0 0.0
      %1588 = vmatpush1.msra.mxu0 0.0
      %1589 = vmatprep.subr.mxu0 0.0
      %1590 = vmatpush1.msra.mxu0 0.0
      %1591 = vmatprep.subr.mxu0 0.0
      %1592 = vmatpush1.msra.mxu0 0.0
      %1593 = vmatprep.subr.mxu0 0.0
      %1594 = vmatpush1.msra.mxu0 0.0
      %1595 = vmatprep.subr.mxu0 0.0
      %1596 = vmatpush1.msra.mxu0 0.0
      %1597 = vmatprep.subr.mxu0 0.0
      %1598 = vmatpush1.msra.mxu0 0.0
      %1599 = vmatprep.subr.mxu0 0.0
      %1600 = vmatpush1.msra.mxu0 0.0
      %1601 = vmatprep.subr.mxu0 0.0
      %1602 = vmatpush1.msra.mxu0 0.0
      %1603 = vmatprep.subr.mxu0 0.0
      %1604 = vmatpush1.msra.mxu0 0.0
      %1605 = vmatprep.subr.mxu0 0.0
      %1606 = vmatpush1.msra.mxu0 0.0
      %1607 = vmatprep.subr.mxu0 %v1040
      %1608 = vmatpush1.msra.mxu0 %v1039
      %1609 = vmatprep.subr.mxu0 %v1036
      %1610 = vmatpush1.msra.mxu0 %v1035
      %1611 = vmatprep.subr.mxu0 %v1032
      %1612 = vmatpush1.msra.mxu0 %v1031
      %1613 = vmatprep.subr.mxu0 %v1028
      %1614 = vmatpush1.msra.mxu0 %v1027
      %1615 = vmatprep.subr.mxu0 0.0
      %1616 = vmatpush2.msra.mxu0 0.0
      %1617 = vmatprep.subr.mxu0 0.0
      %1618 = vmatpush2.msra.mxu0 0.0
      %1619 = vmatprep.subr.mxu0 0.0
      %1620 = vmatpush2.msra.mxu0 0.0
      %1621 = vmatprep.subr.mxu0 0.0
      %1622 = vmatpush2.msra.mxu0 0.0
      %1623 = vmatprep.subr.mxu0 0.0
      %1624 = vmatpush2.msra.mxu0 0.0
      %1625 = vmatprep.subr.mxu0 0.0
      %1626 = vmatpush2.msra.mxu0 0.0
      %1627 = vmatprep.subr.mxu0 0.0
      %1628 = vmatpush2.msra.mxu0 0.0
      %1629 = vmatprep.subr.mxu0 0.0
      %1630 = vmatpush2.msra.mxu0 0.0
      %1631 = vmatprep.subr.mxu0 0.0
      %1632 = vmatpush2.msra.mxu0 0.0
      %1633 = vmatprep.subr.mxu0 0.0
      %1634 = vmatpush2.msra.mxu0 0.0
      %1635 = vmatprep.subr.mxu0 0.0
      %1636 = vmatpush2.msra.mxu0 0.0
      %1637 = vmatprep.subr.mxu0 0.0
      %1638 = vmatpush2.msra.mxu0 0.0
      %1639 = vmatprep.subr.mxu0 0.0
      %1640 = vmatpush2.msra.mxu0 0.0
      %1641 = vmatprep.subr.mxu0 0.0
      %1642 = vmatpush2.msra.mxu0 0.0
      %1643 = vmatprep.subr.mxu0 0.0
      %1644 = vmatpush2.msra.mxu0 0.0
      %1645 = vmatprep.subr.mxu0 0.0
      %1646 = vmatpush2.msra.mxu0 0.0
      %1647 = vmatprep.mubr.f32.mxu0 0.0
      %1648 = vmatmul.mubr.f32.gmra.mxu0 %v1084
      %v1649 = vpop.f32.mrf.mxu0
      %v1650 = vadd.f32 %v1579, %v1649
      %v1651 = vpop.f32.mrf.mxu0
      %v1652 = vadd.f32 %v1581, %v1651
      %1653 = vdwg.mxu0
      %v1655 = vsel %vm1083, %v225, 0
      %1657 = vmatprep.subr.mxu0 %v287
      %1658 = vmatpush1.msra.mxu0 %v286
      %1659 = vmatprep.subr.mxu0 %v283
      %1660 = vmatpush1.msra.mxu0 %v282
      %1661 = vmatprep.subr.mxu0 %v279
      %1662 = vmatpush1.msra.mxu0 %v278
      %1663 = vmatprep.subr.mxu0 %v275
      %1664 = vmatpush1.msra.mxu0 %v274
      %1665 = vmatprep.subr.mxu0 %v271
      %1666 = vmatpush1.msra.mxu0 %v270
      %1667 = vmatprep.subr.mxu0 %v267
      %1668 = vmatpush1.msra.mxu0 %v266
      %1669 = vmatprep.subr.mxu0 %v263
      %1670 = vmatpush1.msra.mxu0 %v262
      %1671 = vmatprep.subr.mxu0 %v259
      %1672 = vmatpush1.msra.mxu0 %v258
      %1673 = vmatprep.subr.mxu0 %v255
      %1674 = vmatpush1.msra.mxu0 %v254
      %1675 = vmatprep.subr.mxu0 %v251
      %1676 = vmatpush1.msra.mxu0 %v250
      %1677 = vmatprep.subr.mxu0 %v247
      %1678 = vmatpush1.msra.mxu0 %v246
      %1679 = vmatprep.subr.mxu0 %v243
      %1680 = vmatpush1.msra.mxu0 %v242
      %1681 = vmatprep.subr.mxu0 %v239
      %1682 = vmatpush1.msra.mxu0 %v238
      %1683 = vmatprep.subr.mxu0 %v235
      %1684 = vmatpush1.msra.mxu0 %v234
      %1685 = vmatprep.subr.mxu0 %v231
      %1686 = vmatpush1.msra.mxu0 %v230
      %1687 = vmatprep.subr.mxu0 %v227
      %1688 = vmatpush1.msra.mxu0 %v226
      %1689 = vmatprep.subr.mxu0 %v351
      %1690 = vmatpush2.msra.mxu0 %v350
      %1691 = vmatprep.subr.mxu0 %v347
      %1692 = vmatpush2.msra.mxu0 %v346
      %1693 = vmatprep.subr.mxu0 %v343
      %1694 = vmatpush2.msra.mxu0 %v342
      %1695 = vmatprep.subr.mxu0 %v339
      %1696 = vmatpush2.msra.mxu0 %v338
      %1697 = vmatprep.subr.mxu0 %v335
      %1698 = vmatpush2.msra.mxu0 %v334
      %1699 = vmatprep.subr.mxu0 %v331
      %1700 = vmatpush2.msra.mxu0 %v330
      %1701 = vmatprep.subr.mxu0 %v327
      %1702 = vmatpush2.msra.mxu0 %v326
      %1703 = vmatprep.subr.mxu0 %v323
      %1704 = vmatpush2.msra.mxu0 %v322
      %1705 = vmatprep.subr.mxu0 %v319
      %1706 = vmatpush2.msra.mxu0 %v318
      %1707 = vmatprep.subr.mxu0 %v315
      %1708 = vmatpush2.msra.mxu0 %v314
      %1709 = vmatprep.subr.mxu0 %v311
      %1710 = vmatpush2.msra.mxu0 %v310
      %1711 = vmatprep.subr.mxu0 %v307
      %1712 = vmatpush2.msra.mxu0 %v306
      %1713 = vmatprep.subr.mxu0 %v303
      %1714 = vmatpush2.msra.mxu0 %v302
      %1715 = vmatprep.subr.mxu0 %v299
      %1716 = vmatpush2.msra.mxu0 %v298
      %1717 = vmatprep.subr.mxu0 %v295
      %1718 = vmatpush2.msra.mxu0 %v294
      %1719 = vmatprep.subr.mxu0 %v291
      %1720 = vmatpush2.msra.mxu0 %v290
      %1721 = vmatprep.mubr.f32.mxu0 %v220
      %1722 = vmatmul.mubr.f32.gmra.mxu0 %v219
      %v1723 = vpop.f32.mrf.mxu0
      %v1724 = vadd.f32 %v1366, %v1723
      %v1725 = vpop.f32.mrf.mxu0
      %v1726 = vadd.f32 %v1368, %v1725
      %1727 = vdwg.mxu0
      %1728 = vmatprep.subr.mxu0 %v415
      %1729 = vmatpush1.msra.mxu0 %v414
      %1730 = vmatprep.subr.mxu0 %v411
      %1731 = vmatpush1.msra.mxu0 %v410
      %1732 = vmatprep.subr.mxu0 %v407
      %1733 = vmatpush1.msra.mxu0 %v406
      %1734 = vmatprep.subr.mxu0 %v403
      %1735 = vmatpush1.msra.mxu0 %v402
      %1736 = vmatprep.subr.mxu0 %v399
      %1737 = vmatpush1.msra.mxu0 %v398
      %1738 = vmatprep.subr.mxu0 %v395
      %1739 = vmatpush1.msra.mxu0 %v394
      %1740 = vmatprep.subr.mxu0 %v391
      %1741 = vmatpush1.msra.mxu0 %v390
      %1742 = vmatprep.subr.mxu0 %v387
      %1743 = vmatpush1.msra.mxu0 %v386
      %1744 = vmatprep.subr.mxu0 %v383
      %1745 = vmatpush1.msra.mxu0 %v382
      %1746 = vmatprep.subr.mxu0 %v379
      %1747 = vmatpush1.msra.mxu0 %v378
      %1748 = vmatprep.subr.mxu0 %v375
      %1749 = vmatpush1.msra.mxu0 %v374
      %1750 = vmatprep.subr.mxu0 %v371
      %1751 = vmatpush1.msra.mxu0 %v370
      %1752 = vmatprep.subr.mxu0 %v367
      %1753 = vmatpush1.msra.mxu0 %v366
      %1754 = vmatprep.subr.mxu0 %v363
      %1755 = vmatpush1.msra.mxu0 %v362
      %1756 = vmatprep.subr.mxu0 %v359
      %1757 = vmatpush1.msra.mxu0 %v358
      %1758 = vmatprep.subr.mxu0 %v355
      %1759 = vmatpush1.msra.mxu0 %v354
      %1760 = vmatprep.subr.mxu0 %v479
      %1761 = vmatpush2.msra.mxu0 %v478
      %1762 = vmatprep.subr.mxu0 %v475
      %1763 = vmatpush2.msra.mxu0 %v474
      %1764 = vmatprep.subr.mxu0 %v471
      %1765 = vmatpush2.msra.mxu0 %v470
      %1766 = vmatprep.subr.mxu0 %v467
      %1767 = vmatpush2.msra.mxu0 %v466
      %1768 = vmatprep.subr.mxu0 %v463
      %1769 = vmatpush2.msra.mxu0 %v462
      %1770 = vmatprep.subr.mxu0 %v459
      %1771 = vmatpush2.msra.mxu0 %v458
      %1772 = vmatprep.subr.mxu0 %v455
      %1773 = vmatpush2.msra.mxu0 %v454
      %1774 = vmatprep.subr.mxu0 %v451
      %1775 = vmatpush2.msra.mxu0 %v450
      %1776 = vmatprep.subr.mxu0 %v447
      %1777 = vmatpush2.msra.mxu0 %v446
      %1778 = vmatprep.subr.mxu0 %v443
      %1779 = vmatpush2.msra.mxu0 %v442
      %1780 = vmatprep.subr.mxu0 %v439
      %1781 = vmatpush2.msra.mxu0 %v438
      %1782 = vmatprep.subr.mxu0 %v435
      %1783 = vmatpush2.msra.mxu0 %v434
      %1784 = vmatprep.subr.mxu0 %v431
      %1785 = vmatpush2.msra.mxu0 %v430
      %1786 = vmatprep.subr.mxu0 %v427
      %1787 = vmatpush2.msra.mxu0 %v426
      %1788 = vmatprep.subr.mxu0 %v423
      %1789 = vmatpush2.msra.mxu0 %v422
      %1790 = vmatprep.subr.mxu0 %v419
      %1791 = vmatpush2.msra.mxu0 %v418
      %1792 = vmatprep.mubr.f32.mxu0 %v222
      %1793 = vmatmul.mubr.f32.gmra.mxu0 %v221
      %v1794 = vpop.f32.mrf.mxu0
      %v1795 = vadd.f32 %v1724, %v1794
      %v1796 = vpop.f32.mrf.mxu0
      %v1797 = vadd.f32 %v1726, %v1796
      %1798 = vdwg.mxu0
      %1799 = vmatprep.subr.mxu0 %v543
      %1800 = vmatpush1.msra.mxu0 %v542
      %1801 = vmatprep.subr.mxu0 %v539
      %1802 = vmatpush1.msra.mxu0 %v538
      %1803 = vmatprep.subr.mxu0 %v535
      %1804 = vmatpush1.msra.mxu0 %v534
      %1805 = vmatprep.subr.mxu0 %v531
      %1806 = vmatpush1.msra.mxu0 %v530
      %1807 = vmatprep.subr.mxu0 %v527
      %1808 = vmatpush1.msra.mxu0 %v526
      %1809 = vmatprep.subr.mxu0 %v523
      %1810 = vmatpush1.msra.mxu0 %v522
      %1811 = vmatprep.subr.mxu0 %v519
      %1812 = vmatpush1.msra.mxu0 %v518
      %1813 = vmatprep.subr.mxu0 %v515
      %1814 = vmatpush1.msra.mxu0 %v514
      %1815 = vmatprep.subr.mxu0 %v511
      %1816 = vmatpush1.msra.mxu0 %v510
      %1817 = vmatprep.subr.mxu0 %v507
      %1818 = vmatpush1.msra.mxu0 %v506
      %1819 = vmatprep.subr.mxu0 %v503
      %1820 = vmatpush1.msra.mxu0 %v502
      %1821 = vmatprep.subr.mxu0 %v499
      %1822 = vmatpush1.msra.mxu0 %v498
      %1823 = vmatprep.subr.mxu0 %v495
      %1824 = vmatpush1.msra.mxu0 %v494
      %1825 = vmatprep.subr.mxu0 %v491
      %1826 = vmatpush1.msra.mxu0 %v490
      %1827 = vmatprep.subr.mxu0 %v487
      %1828 = vmatpush1.msra.mxu0 %v486
      %1829 = vmatprep.subr.mxu0 %v483
      %1830 = vmatpush1.msra.mxu0 %v482
      %1831 = vmatprep.subr.mxu0 %v607
      %1832 = vmatpush2.msra.mxu0 %v606
      %1833 = vmatprep.subr.mxu0 %v603
      %1834 = vmatpush2.msra.mxu0 %v602
      %1835 = vmatprep.subr.mxu0 %v599
      %1836 = vmatpush2.msra.mxu0 %v598
      %1837 = vmatprep.subr.mxu0 %v595
      %1838 = vmatpush2.msra.mxu0 %v594
      %1839 = vmatprep.subr.mxu0 %v591
      %1840 = vmatpush2.msra.mxu0 %v590
      %1841 = vmatprep.subr.mxu0 %v587
      %1842 = vmatpush2.msra.mxu0 %v586
      %1843 = vmatprep.subr.mxu0 %v583
      %1844 = vmatpush2.msra.mxu0 %v582
      %1845 = vmatprep.subr.mxu0 %v579
      %1846 = vmatpush2.msra.mxu0 %v578
      %1847 = vmatprep.subr.mxu0 %v575
      %1848 = vmatpush2.msra.mxu0 %v574
      %1849 = vmatprep.subr.mxu0 %v571
      %1850 = vmatpush2.msra.mxu0 %v570
      %1851 = vmatprep.subr.mxu0 %v567
      %1852 = vmatpush2.msra.mxu0 %v566
      %1853 = vmatprep.subr.mxu0 %v563
      %1854 = vmatpush2.msra.mxu0 %v562
      %1855 = vmatprep.subr.mxu0 %v559
      %1856 = vmatpush2.msra.mxu0 %v558
      %1857 = vmatprep.subr.mxu0 %v555
      %1858 = vmatpush2.msra.mxu0 %v554
      %1859 = vmatprep.subr.mxu0 %v551
      %1860 = vmatpush2.msra.mxu0 %v550
      %1861 = vmatprep.subr.mxu0 %v547
      %1862 = vmatpush2.msra.mxu0 %v546
      %1863 = vmatprep.mubr.f32.mxu0 %v224
      %1864 = vmatmul.mubr.f32.gmra.mxu0 %v223
      %v1865 = vpop.f32.mrf.mxu0
      %v1866 = vadd.f32 %v1795, %v1865
      %v1867 = vpop.f32.mrf.mxu0
      %v1868 = vadd.f32 %v1797, %v1867
      %1869 = vdwg.mxu0
      %1870 = vmatprep.subr.mxu0 0.0
      %1871 = vmatpush1.msra.mxu0 0.0
      %1872 = vmatprep.subr.mxu0 0.0
      %1873 = vmatpush1.msra.mxu0 0.0
      %1874 = vmatprep.subr.mxu0 0.0
      %1875 = vmatpush1.msra.mxu0 0.0
      %1876 = vmatprep.subr.mxu0 0.0
      %1877 = vmatpush1.msra.mxu0 0.0
      %1878 = vmatprep.subr.mxu0 0.0
      %1879 = vmatpush1.msra.mxu0 0.0
      %1880 = vmatprep.subr.mxu0 0.0
      %1881 = vmatpush1.msra.mxu0 0.0
      %1882 = vmatprep.subr.mxu0 0.0
      %1883 = vmatpush1.msra.mxu0 0.0
      %1884 = vmatprep.subr.mxu0 0.0
      %1885 = vmatpush1.msra.mxu0 0.0
      %1886 = vmatprep.subr.mxu0 0.0
      %1887 = vmatpush1.msra.mxu0 0.0
      %1888 = vmatprep.subr.mxu0 0.0
      %1889 = vmatpush1.msra.mxu0 0.0
      %1890 = vmatprep.subr.mxu0 0.0
      %1891 = vmatpush1.msra.mxu0 0.0
      %1892 = vmatprep.subr.mxu0 0.0
      %1893 = vmatpush1.msra.mxu0 0.0
      %1894 = vmatprep.subr.mxu0 %v623
      %1895 = vmatpush1.msra.mxu0 %v622
      %1896 = vmatprep.subr.mxu0 %v619
      %1897 = vmatpush1.msra.mxu0 %v618
      %1898 = vmatprep.subr.mxu0 %v615
      %1899 = vmatpush1.msra.mxu0 %v614
      %1900 = vmatprep.subr.mxu0 %v611
      %1901 = vmatpush1.msra.mxu0 %v610
      %1902 = vmatprep.subr.mxu0 0.0
      %1903 = vmatpush2.msra.mxu0 0.0
      %1904 = vmatprep.subr.mxu0 0.0
      %1905 = vmatpush2.msra.mxu0 0.0
      %1906 = vmatprep.subr.mxu0 0.0
      %1907 = vmatpush2.msra.mxu0 0.0
      %1908 = vmatprep.subr.mxu0 0.0
      %1909 = vmatpush2.msra.mxu0 0.0
      %1910 = vmatprep.subr.mxu0 0.0
      %1911 = vmatpush2.msra.mxu0 0.0
      %1912 = vmatprep.subr.mxu0 0.0
      %1913 = vmatpush2.msra.mxu0 0.0
      %1914 = vmatprep.subr.mxu0 0.0
      %1915 = vmatpush2.msra.mxu0 0.0
      %1916 = vmatprep.subr.mxu0 0.0
      %1917 = vmatpush2.msra.mxu0 0.0
      %1918 = vmatprep.subr.mxu0 0.0
      %1919 = vmatpush2.msra.mxu0 0.0
      %1920 = vmatprep.subr.mxu0 0.0
      %1921 = vmatpush2.msra.mxu0 0.0
      %1922 = vmatprep.subr.mxu0 0.0
      %1923 = vmatpush2.msra.mxu0 0.0
      %1924 = vmatprep.subr.mxu0 0.0
      %1925 = vmatpush2.msra.mxu0 0.0
      %1926 = vmatprep.subr.mxu0 0.0
      %1927 = vmatpush2.msra.mxu0 0.0
      %1928 = vmatprep.subr.mxu0 0.0
      %1929 = vmatpush2.msra.mxu0 0.0
      %1930 = vmatprep.subr.mxu0 0.0
      %1931 = vmatpush2.msra.mxu0 0.0
      %1932 = vmatprep.subr.mxu0 0.0
      %1933 = vmatpush2.msra.mxu0 0.0
      %1934 = vmatprep.mubr.f32.mxu0 0.0
      %1935 = vmatmul.mubr.f32.gmra.mxu0 %v1655
      %v1936 = vpop.f32.mrf.mxu0
      %v1937 = vadd.f32 %v1866, %v1936
      %v1938 = vpop.f32.mrf.mxu0
      %v1939 = vadd.f32 %v1868, %v1938
      %1940 = vdwg.mxu0
      %1941 = vmatprep.subr.mxu0 %v289
      %1942 = vmatpush1.msra.mxu0 %v288
      %1943 = vmatprep.subr.mxu0 %v285
      %1944 = vmatpush1.msra.mxu0 %v284
      %1945 = vmatprep.subr.mxu0 %v281
      %1946 = vmatpush1.msra.mxu0 %v280
      %1947 = vmatprep.subr.mxu0 %v277
      %1948 = vmatpush1.msra.mxu0 %v276
      %1949 = vmatprep.subr.mxu0 %v273
      %1950 = vmatpush1.msra.mxu0 %v272
      %1951 = vmatprep.subr.mxu0 %v269
      %1952 = vmatpush1.msra.mxu0 %v268
      %1953 = vmatprep.subr.mxu0 %v265
      %1954 = vmatpush1.msra.mxu0 %v264
      %1955 = vmatprep.subr.mxu0 %v261
      %1956 = vmatpush1.msra.mxu0 %v260
      %1957 = vmatprep.subr.mxu0 %v257
      %1958 = vmatpush1.msra.mxu0 %v256
      %1959 = vmatprep.subr.mxu0 %v253
      %1960 = vmatpush1.msra.mxu0 %v252
      %1961 = vmatprep.subr.mxu0 %v249
      %1962 = vmatpush1.msra.mxu0 %v248
      %1963 = vmatprep.subr.mxu0 %v245
      %1964 = vmatpush1.msra.mxu0 %v244
      %1965 = vmatprep.subr.mxu0 %v241
      %1966 = vmatpush1.msra.mxu0 %v240
      %1967 = vmatprep.subr.mxu0 %v237
      %1968 = vmatpush1.msra.mxu0 %v236
      %1969 = vmatprep.subr.mxu0 %v233
      %1970 = vmatpush1.msra.mxu0 %v232
      %1971 = vmatprep.subr.mxu0 %v229
      %1972 = vmatpush1.msra.mxu0 %v228
      %1973 = vmatprep.subr.mxu0 %v353
      %1974 = vmatpush2.msra.mxu0 %v352
      %1975 = vmatprep.subr.mxu0 %v349
      %1976 = vmatpush2.msra.mxu0 %v348
      %1977 = vmatprep.subr.mxu0 %v345
      %1978 = vmatpush2.msra.mxu0 %v344
      %1979 = vmatprep.subr.mxu0 %v341
      %1980 = vmatpush2.msra.mxu0 %v340
      %1981 = vmatprep.subr.mxu0 %v337
      %1982 = vmatpush2.msra.mxu0 %v336
      %1983 = vmatprep.subr.mxu0 %v333
      %1984 = vmatpush2.msra.mxu0 %v332
      %1985 = vmatprep.subr.mxu0 %v329
      %1986 = vmatpush2.msra.mxu0 %v328
      %1987 = vmatprep.subr.mxu0 %v325
      %1988 = vmatpush2.msra.mxu0 %v324
      %1989 = vmatprep.subr.mxu0 %v321
      %1990 = vmatpush2.msra.mxu0 %v320
      %1991 = vmatprep.subr.mxu0 %v317
      %1992 = vmatpush2.msra.mxu0 %v316
      %1993 = vmatprep.subr.mxu0 %v313
      %1994 = vmatpush2.msra.mxu0 %v312
      %1995 = vmatprep.subr.mxu0 %v309
      %1996 = vmatpush2.msra.mxu0 %v308
      %1997 = vmatprep.subr.mxu0 %v305
      %1998 = vmatpush2.msra.mxu0 %v304
      %1999 = vmatprep.subr.mxu0 %v301
      %2000 = vmatpush2.msra.mxu0 %v300
      %2001 = vmatprep.subr.mxu0 %v297
      %2002 = vmatpush2.msra.mxu0 %v296
      %2003 = vmatprep.subr.mxu0 %v293
      %2004 = vmatpush2.msra.mxu0 %v292
      %2005 = vmatprep.mubr.f32.mxu0 %v220
      %2006 = vmatmul.mubr.f32.gmra.mxu0 %v219
      %v2007 = vpop.f32.mrf.mxu0
      %v2008 = vadd.f32 %v1650, %v2007
      %v2009 = vpop.f32.mrf.mxu0
      %v2010 = vadd.f32 %v1652, %v2009
      %2011 = vdwg.mxu0
      %2012 = vmatprep.subr.mxu0 %v417
      %2013 = vmatpush1.msra.mxu0 %v416
      %2014 = vmatprep.subr.mxu0 %v413
      %2015 = vmatpush1.msra.mxu0 %v412
      %2016 = vmatprep.subr.mxu0 %v409
      %2017 = vmatpush1.msra.mxu0 %v408
      %2018 = vmatprep.subr.mxu0 %v405
      %2019 = vmatpush1.msra.mxu0 %v404
      %2020 = vmatprep.subr.mxu0 %v401
      %2021 = vmatpush1.msra.mxu0 %v400
      %2022 = vmatprep.subr.mxu0 %v397
      %2023 = vmatpush1.msra.mxu0 %v396
      %2024 = vmatprep.subr.mxu0 %v393
      %2025 = vmatpush1.msra.mxu0 %v392
      %2026 = vmatprep.subr.mxu0 %v389
      %2027 = vmatpush1.msra.mxu0 %v388
      %2028 = vmatprep.subr.mxu0 %v385
      %2029 = vmatpush1.msra.mxu0 %v384
      %2030 = vmatprep.subr.mxu0 %v381
      %2031 = vmatpush1.msra.mxu0 %v380
      %2032 = vmatprep.subr.mxu0 %v377
      %2033 = vmatpush1.msra.mxu0 %v376
      %2034 = vmatprep.subr.mxu0 %v373
      %2035 = vmatpush1.msra.mxu0 %v372
      %2036 = vmatprep.subr.mxu0 %v369
      %2037 = vmatpush1.msra.mxu0 %v368
      %2038 = vmatprep.subr.mxu0 %v365
      %2039 = vmatpush1.msra.mxu0 %v364
      %2040 = vmatprep.subr.mxu0 %v361
      %2041 = vmatpush1.msra.mxu0 %v360
      %2042 = vmatprep.subr.mxu0 %v357
      %2043 = vmatpush1.msra.mxu0 %v356
      %2044 = vmatprep.subr.mxu0 %v481
      %2045 = vmatpush2.msra.mxu0 %v480
      %2046 = vmatprep.subr.mxu0 %v477
      %2047 = vmatpush2.msra.mxu0 %v476
      %2048 = vmatprep.subr.mxu0 %v473
      %2049 = vmatpush2.msra.mxu0 %v472
      %2050 = vmatprep.subr.mxu0 %v469
      %2051 = vmatpush2.msra.mxu0 %v468
      %2052 = vmatprep.subr.mxu0 %v465
      %2053 = vmatpush2.msra.mxu0 %v464
      %2054 = vmatprep.subr.mxu0 %v461
      %2055 = vmatpush2.msra.mxu0 %v460
      %2056 = vmatprep.subr.mxu0 %v457
      %2057 = vmatpush2.msra.mxu0 %v456
      %2058 = vmatprep.subr.mxu0 %v453
      %2059 = vmatpush2.msra.mxu0 %v452
      %2060 = vmatprep.subr.mxu0 %v449
      %2061 = vmatpush2.msra.mxu0 %v448
      %2062 = vmatprep.subr.mxu0 %v445
      %2063 = vmatpush2.msra.mxu0 %v444
      %2064 = vmatprep.subr.mxu0 %v441
      %2065 = vmatpush2.msra.mxu0 %v440
      %2066 = vmatprep.subr.mxu0 %v437
      %2067 = vmatpush2.msra.mxu0 %v436
      %2068 = vmatprep.subr.mxu0 %v433
      %2069 = vmatpush2.msra.mxu0 %v432
      %2070 = vmatprep.subr.mxu0 %v429
      %2071 = vmatpush2.msra.mxu0 %v428
      %2072 = vmatprep.subr.mxu0 %v425
      %2073 = vmatpush2.msra.mxu0 %v424
      %2074 = vmatprep.subr.mxu0 %v421
      %2075 = vmatpush2.msra.mxu0 %v420
      %2076 = vmatprep.mubr.f32.mxu0 %v222
      %2077 = vmatmul.mubr.f32.gmra.mxu0 %v221
      %v2078 = vpop.f32.mrf.mxu0
      %v2079 = vadd.f32 %v2008, %v2078
      %v2080 = vpop.f32.mrf.mxu0
      %v2081 = vadd.f32 %v2010, %v2080
      %2082 = vdwg.mxu0
      %2083 = vmatprep.subr.mxu0 %v545
      %2084 = vmatpush1.msra.mxu0 %v544
      %2085 = vmatprep.subr.mxu0 %v541
      %2086 = vmatpush1.msra.mxu0 %v540
      %2087 = vmatprep.subr.mxu0 %v537
      %2088 = vmatpush1.msra.mxu0 %v536
      %2089 = vmatprep.subr.mxu0 %v533
      %2090 = vmatpush1.msra.mxu0 %v532
      %2091 = vmatprep.subr.mxu0 %v529
      %2092 = vmatpush1.msra.mxu0 %v528
      %2093 = vmatprep.subr.mxu0 %v525
      %2094 = vmatpush1.msra.mxu0 %v524
      %2095 = vmatprep.subr.mxu0 %v521
      %2096 = vmatpush1.msra.mxu0 %v520
      %2097 = vmatprep.subr.mxu0 %v517
      %2098 = vmatpush1.msra.mxu0 %v516
      %2099 = vmatprep.subr.mxu0 %v513
      %2100 = vmatpush1.msra.mxu0 %v512
      %2101 = vmatprep.subr.mxu0 %v509
      %2102 = vmatpush1.msra.mxu0 %v508
      %2103 = vmatprep.subr.mxu0 %v505
      %2104 = vmatpush1.msra.mxu0 %v504
      %2105 = vmatprep.subr.mxu0 %v501
      %2106 = vmatpush1.msra.mxu0 %v500
      %2107 = vmatprep.subr.mxu0 %v497
      %2108 = vmatpush1.msra.mxu0 %v496
      %2109 = vmatprep.subr.mxu0 %v493
      %2110 = vmatpush1.msra.mxu0 %v492
      %2111 = vmatprep.subr.mxu0 %v489
      %2112 = vmatpush1.msra.mxu0 %v488
      %2113 = vmatprep.subr.mxu0 %v485
      %2114 = vmatpush1.msra.mxu0 %v484
      %2115 = vmatprep.subr.mxu0 %v609
      %2116 = vmatpush2.msra.mxu0 %v608
      %2117 = vmatprep.subr.mxu0 %v605
      %2118 = vmatpush2.msra.mxu0 %v604
      %2119 = vmatprep.subr.mxu0 %v601
      %2120 = vmatpush2.msra.mxu0 %v600
      %2121 = vmatprep.subr.mxu0 %v597
      %2122 = vmatpush2.msra.mxu0 %v596
      %2123 = vmatprep.subr.mxu0 %v593
      %2124 = vmatpush2.msra.mxu0 %v592
      %2125 = vmatprep.subr.mxu0 %v589
      %2126 = vmatpush2.msra.mxu0 %v588
      %2127 = vmatprep.subr.mxu0 %v585
      %2128 = vmatpush2.msra.mxu0 %v584
      %2129 = vmatprep.subr.mxu0 %v581
      %2130 = vmatpush2.msra.mxu0 %v580
      %2131 = vmatprep.subr.mxu0 %v577
      %2132 = vmatpush2.msra.mxu0 %v576
      %2133 = vmatprep.subr.mxu0 %v573
      %2134 = vmatpush2.msra.mxu0 %v572
      %2135 = vmatprep.subr.mxu0 %v569
      %2136 = vmatpush2.msra.mxu0 %v568
      %2137 = vmatprep.subr.mxu0 %v565
      %2138 = vmatpush2.msra.mxu0 %v564
      %2139 = vmatprep.subr.mxu0 %v561
      %2140 = vmatpush2.msra.mxu0 %v560
      %2141 = vmatprep.subr.mxu0 %v557
      %2142 = vmatpush2.msra.mxu0 %v556
      %2143 = vmatprep.subr.mxu0 %v553
      %2144 = vmatpush2.msra.mxu0 %v552
      %2145 = vmatprep.subr.mxu0 %v549
      %2146 = vmatpush2.msra.mxu0 %v548
      %2147 = vmatprep.mubr.f32.mxu0 %v224
      %2148 = vmatmul.mubr.f32.gmra.mxu0 %v223
      %v2149 = vpop.f32.mrf.mxu0
      %v2150 = vadd.f32 %v2079, %v2149
      %v2151 = vpop.f32.mrf.mxu0
      %v2152 = vadd.f32 %v2081, %v2151
      %2153 = vdwg.mxu0
      %2154 = vmatprep.subr.mxu0 0.0
      %2155 = vmatpush1.msra.mxu0 0.0
      %2156 = vmatprep.subr.mxu0 0.0
      %2157 = vmatpush1.msra.mxu0 0.0
      %2158 = vmatprep.subr.mxu0 0.0
      %2159 = vmatpush1.msra.mxu0 0.0
      %2160 = vmatprep.subr.mxu0 0.0
      %2161 = vmatpush1.msra.mxu0 0.0
      %2162 = vmatprep.subr.mxu0 0.0
      %2163 = vmatpush1.msra.mxu0 0.0
      %2164 = vmatprep.subr.mxu0 0.0
      %2165 = vmatpush1.msra.mxu0 0.0
      %2166 = vmatprep.subr.mxu0 0.0
      %2167 = vmatpush1.msra.mxu0 0.0
      %2168 = vmatprep.subr.mxu0 0.0
      %2169 = vmatpush1.msra.mxu0 0.0
      %2170 = vmatprep.subr.mxu0 0.0
      %2171 = vmatpush1.msra.mxu0 0.0
      %2172 = vmatprep.subr.mxu0 0.0
      %2173 = vmatpush1.msra.mxu0 0.0
      %2174 = vmatprep.subr.mxu0 0.0
      %2175 = vmatpush1.msra.mxu0 0.0
      %2176 = vmatprep.subr.mxu0 0.0
      %2177 = vmatpush1.msra.mxu0 0.0
      %2178 = vmatprep.subr.mxu0 %v625
      %2179 = vmatpush1.msra.mxu0 %v624
      %2180 = vmatprep.subr.mxu0 %v621
      %2181 = vmatpush1.msra.mxu0 %v620
      %2182 = vmatprep.subr.mxu0 %v617
      %2183 = vmatpush1.msra.mxu0 %v616
      %2184 = vmatprep.subr.mxu0 %v613
      %2185 = vmatpush1.msra.mxu0 %v612
      %2186 = vmatprep.subr.mxu0 0.0
      %2187 = vmatpush2.msra.mxu0 0.0
      %2188 = vmatprep.subr.mxu0 0.0
      %2189 = vmatpush2.msra.mxu0 0.0
      %2190 = vmatprep.subr.mxu0 0.0
      %2191 = vmatpush2.msra.mxu0 0.0
      %2192 = vmatprep.subr.mxu0 0.0
      %2193 = vmatpush2.msra.mxu0 0.0
      %2194 = vmatprep.subr.mxu0 0.0
      %2195 = vmatpush2.msra.mxu0 0.0
      %2196 = vmatprep.subr.mxu0 0.0
      %2197 = vmatpush2.msra.mxu0 0.0
      %2198 = vmatprep.subr.mxu0 0.0
      %2199 = vmatpush2.msra.mxu0 0.0
      %2200 = vmatprep.subr.mxu0 0.0
      %2201 = vmatpush2.msra.mxu0 0.0
      %2202 = vmatprep.subr.mxu0 0.0
      %2203 = vmatpush2.msra.mxu0 0.0
      %2204 = vmatprep.subr.mxu0 0.0
      %2205 = vmatpush2.msra.mxu0 0.0
      %2206 = vmatprep.subr.mxu0 0.0
      %2207 = vmatpush2.msra.mxu0 0.0
      %2208 = vmatprep.subr.mxu0 0.0
      %2209 = vmatpush2.msra.mxu0 0.0
      %2210 = vmatprep.subr.mxu0 0.0
      %2211 = vmatpush2.msra.mxu0 0.0
      %2212 = vmatprep.subr.mxu0 0.0
      %2213 = vmatpush2.msra.mxu0 0.0
      %2214 = vmatprep.subr.mxu0 0.0
      %2215 = vmatpush2.msra.mxu0 0.0
      %2216 = vmatprep.subr.mxu0 0.0
      %2217 = vmatpush2.msra.mxu0 0.0
      %2218 = vmatprep.mubr.f32.mxu0 0.0
      %2219 = vmatmul.mubr.f32.gmra.mxu0 %v1655
      %v2220 = vpop.f32.mrf.mxu0
      %v2221 = vadd.f32 %v2150, %v2220
      %v2222 = vpop.f32.mrf.mxu0
      %v2223 = vadd.f32 %v2152, %v2222
      %2224 = vdwg.mxu0
      %v2225 = vld [vmem:[%s205] sm:$0xfc]
      %v2226 = vld [vmem:[%s205 + $0x8] sm:$0xfc]
      %v2227 = vld [vmem:[%s205 + $0x10] sm:$0xfc]
      %v2228 = vld [vmem:[%s205 + $0x18] sm:$0xfc]
      %v2229 = vld [vmem:[%s205 + $0x20] sm:$0xfc]
      %v2230 = vld [vmem:[%s205 + $0x28] sm:$0xfc]
      %v2231 = vld [vmem:[%s205 + $0x30] sm:$0xfc]
      %v2232 = vld [vmem:[%s205 + $0x38] sm:$0x3]
      %v2233 = vld [vmem:[%s205 + $0x40] sm:$0x3]
      %v2234 = vld [vmem:[%s205 + $0x48] sm:$0x3]
      %v2235 = vld [vmem:[%s205 + $0x50] sm:$0x3]
      %v2236 = vld [vmem:[%s205 + $0x58] sm:$0x3]
      %v2237 = vld [vmem:[%s205 + $0x60] sm:$0x3]
      %v2238 = vld [vmem:[%s205 + $0x68] sm:$0x3]
      %s2239 = scalar_lea.vmem %s1, 6400
      %v2240 = vld [vmem:[%s2239] sm:$0xff]
      %v2241 = vld [vmem:[%s2239 + $0x8] sm:$0xff]
      %v2242 = vld [vmem:[%s2239 + $0x10] sm:$0xff]
      %v2243 = vld [vmem:[%s2239 + $0x18] sm:$0xff]
      %v2244 = vld [vmem:[%s2239 + $0x20] sm:$0xff]
      %v2245 = vld [vmem:[%s2239 + $0x28] sm:$0xff]
      %v2246 = vld [vmem:[%s2239 + $0x30] sm:$0xff]
      %v2247 = vld [vmem:[%s2239 + $0x38] sm:$0xff]
      %v2248 = vld [vmem:[%s2239 + $0x40] sm:$0xff]
      %v2249 = vld [vmem:[%s2239 + $0x48] sm:$0xff]
      %v2250 = vld [vmem:[%s2239 + $0x50] sm:$0xff]
      %v2251 = vld [vmem:[%s2239 + $0x58] sm:$0xff]
      %v2252 = vld [vmem:[%s2239 + $0x60] sm:$0xff]
      %v2253 = vld [vmem:[%s2239 + $0x68] sm:$0xff]
      %v2254 = vld [vmem:[%s2239 + $0x70] sm:$0xff]
      %v2255 = vld [vmem:[%s2239 + $0x78] sm:$0xff]
      %v2256 = vld [vmem:[%s2239 + $0x80] sm:$0xff]
      %v2257 = vld [vmem:[%s2239 + $0x88] sm:$0xff]
      %v2258 = vld [vmem:[%s2239 + $0x90] sm:$0xff]
      %v2259 = vld [vmem:[%s2239 + $0x98] sm:$0xff]
      %v2260 = vld [vmem:[%s2239 + $0xa0] sm:$0xff]
      %v2261 = vld [vmem:[%s2239 + $0xa8] sm:$0xff]
      %v2262 = vld [vmem:[%s2239 + $0xb0] sm:$0xff]
      %v2263 = vld [vmem:[%s2239 + $0xb8] sm:$0xff]
      %v2264 = vld [vmem:[%s2239 + $0xc0] sm:$0xff]
      %v2265 = vld [vmem:[%s2239 + $0xc8] sm:$0xff]
      %v2266 = vld [vmem:[%s2239 + $0xd0] sm:$0xff]
      %v2267 = vld [vmem:[%s2239 + $0xd8] sm:$0xff]
      %v2268 = vld [vmem:[%s2239 + $0xe0] sm:$0xff]
      %v2269 = vld [vmem:[%s2239 + $0xe8] sm:$0xff]
      %v2270 = vld [vmem:[%s2239 + $0xf0] sm:$0xff]
      %v2271 = vld [vmem:[%s2239 + $0xf8] sm:$0xff]
      %v2272 = vld [vmem:[%s2239 + $0x100] sm:$0xff]
      %v2273 = vld [vmem:[%s2239 + $0x108] sm:$0xff]
      %v2274 = vld [vmem:[%s2239 + $0x110] sm:$0xff]
      %v2275 = vld [vmem:[%s2239 + $0x118] sm:$0xff]
      %v2276 = vld [vmem:[%s2239 + $0x120] sm:$0xff]
      %v2277 = vld [vmem:[%s2239 + $0x128] sm:$0xff]
      %v2278 = vld [vmem:[%s2239 + $0x130] sm:$0xff]
      %v2279 = vld [vmem:[%s2239 + $0x138] sm:$0xff]
      %v2280 = vld [vmem:[%s2239 + $0x140] sm:$0xff]
      %v2281 = vld [vmem:[%s2239 + $0x148] sm:$0xff]
      %v2282 = vld [vmem:[%s2239 + $0x150] sm:$0xff]
      %v2283 = vld [vmem:[%s2239 + $0x158] sm:$0xff]
      %v2284 = vld [vmem:[%s2239 + $0x160] sm:$0xff]
      %v2285 = vld [vmem:[%s2239 + $0x168] sm:$0xff]
      %v2286 = vld [vmem:[%s2239 + $0x170] sm:$0xff]
      %v2287 = vld [vmem:[%s2239 + $0x178] sm:$0xff]
      %v2288 = vld [vmem:[%s2239 + $0x180] sm:$0xff]
      %v2289 = vld [vmem:[%s2239 + $0x188] sm:$0xff]
      %v2290 = vld [vmem:[%s2239 + $0x190] sm:$0xff]
      %v2291 = vld [vmem:[%s2239 + $0x198] sm:$0xff]
      %v2292 = vld [vmem:[%s2239 + $0x1a0] sm:$0xff]
      %v2293 = vld [vmem:[%s2239 + $0x1a8] sm:$0xff]
      %v2294 = vld [vmem:[%s2239 + $0x1b0] sm:$0xff]
      %v2295 = vld [vmem:[%s2239 + $0x1b8] sm:$0xff]
      %v2296 = vld [vmem:[%s2239 + $0x1c0] sm:$0xff]
      %v2297 = vld [vmem:[%s2239 + $0x1c8] sm:$0xff]
      %v2298 = vld [vmem:[%s2239 + $0x1d0] sm:$0xff]
      %v2299 = vld [vmem:[%s2239 + $0x1d8] sm:$0xff]
      %v2300 = vld [vmem:[%s2239 + $0x1e0] sm:$0xff]
      %v2301 = vld [vmem:[%s2239 + $0x1e8] sm:$0xff]
      %v2302 = vld [vmem:[%s2239 + $0x1f0] sm:$0xff]
      %v2303 = vld [vmem:[%s2239 + $0x1f8] sm:$0xff]
      %v2304 = vld [vmem:[%s2239 + $0x200] sm:$0xff]
      %v2305 = vld [vmem:[%s2239 + $0x208] sm:$0xff]
      %v2306 = vld [vmem:[%s2239 + $0x210] sm:$0xff]
      %v2307 = vld [vmem:[%s2239 + $0x218] sm:$0xff]
      %v2308 = vld [vmem:[%s2239 + $0x220] sm:$0xff]
      %v2309 = vld [vmem:[%s2239 + $0x228] sm:$0xff]
      %v2310 = vld [vmem:[%s2239 + $0x230] sm:$0xff]
      %v2311 = vld [vmem:[%s2239 + $0x238] sm:$0xff]
      %v2312 = vld [vmem:[%s2239 + $0x240] sm:$0xff]
      %v2313 = vld [vmem:[%s2239 + $0x248] sm:$0xff]
      %v2314 = vld [vmem:[%s2239 + $0x250] sm:$0xff]
      %v2315 = vld [vmem:[%s2239 + $0x258] sm:$0xff]
      %v2316 = vld [vmem:[%s2239 + $0x260] sm:$0xff]
      %v2317 = vld [vmem:[%s2239 + $0x268] sm:$0xff]
      %v2318 = vld [vmem:[%s2239 + $0x270] sm:$0xff]
      %v2319 = vld [vmem:[%s2239 + $0x278] sm:$0xff]
      %v2320 = vld [vmem:[%s2239 + $0x280] sm:$0xff]
      %v2321 = vld [vmem:[%s2239 + $0x288] sm:$0xff]
      %v2322 = vld [vmem:[%s2239 + $0x290] sm:$0xff]
      %v2323 = vld [vmem:[%s2239 + $0x298] sm:$0xff]
      %v2324 = vld [vmem:[%s2239 + $0x2a0] sm:$0xff]
      %v2325 = vld [vmem:[%s2239 + $0x2a8] sm:$0xff]
      %v2326 = vld [vmem:[%s2239 + $0x2b0] sm:$0xff]
      %v2327 = vld [vmem:[%s2239 + $0x2b8] sm:$0xff]
      %v2328 = vld [vmem:[%s2239 + $0x2c0] sm:$0xff]
      %v2329 = vld [vmem:[%s2239 + $0x2c8] sm:$0xff]
      %v2330 = vld [vmem:[%s2239 + $0x2d0] sm:$0xff]
      %v2331 = vld [vmem:[%s2239 + $0x2d8] sm:$0xff]
      %v2332 = vld [vmem:[%s2239 + $0x2e0] sm:$0xff]
      %v2333 = vld [vmem:[%s2239 + $0x2e8] sm:$0xff]
      %v2334 = vld [vmem:[%s2239 + $0x2f0] sm:$0xff]
      %v2335 = vld [vmem:[%s2239 + $0x2f8] sm:$0xff]
      %v2336 = vld [vmem:[%s2239 + $0x300] sm:$0xff]
      %v2337 = vld [vmem:[%s2239 + $0x308] sm:$0xff]
      %v2338 = vld [vmem:[%s2239 + $0x310] sm:$0xff]
      %v2339 = vld [vmem:[%s2239 + $0x318] sm:$0xff]
      %v2340 = vld [vmem:[%s2239 + $0x320] sm:$0xff]
      %v2341 = vld [vmem:[%s2239 + $0x328] sm:$0xff]
      %v2342 = vld [vmem:[%s2239 + $0x330] sm:$0xff]
      %v2343 = vld [vmem:[%s2239 + $0x338] sm:$0xff]
      %v2344 = vld [vmem:[%s2239 + $0x340] sm:$0xff]
      %v2345 = vld [vmem:[%s2239 + $0x348] sm:$0xff]
      %v2346 = vld [vmem:[%s2239 + $0x350] sm:$0xff]
      %v2347 = vld [vmem:[%s2239 + $0x358] sm:$0xff]
      %v2348 = vld [vmem:[%s2239 + $0x360] sm:$0xff]
      %v2349 = vld [vmem:[%s2239 + $0x368] sm:$0xff]
      %v2350 = vld [vmem:[%s2239 + $0x370] sm:$0xff]
      %v2351 = vld [vmem:[%s2239 + $0x378] sm:$0xff]
      %v2352 = vld [vmem:[%s2239 + $0x380] sm:$0xff]
      %v2353 = vld [vmem:[%s2239 + $0x388] sm:$0xff]
      %v2354 = vld [vmem:[%s2239 + $0x390] sm:$0xff]
      %v2355 = vld [vmem:[%s2239 + $0x398] sm:$0xff]
      %v2356 = vld [vmem:[%s2239 + $0x3a0] sm:$0xff]
      %v2357 = vld [vmem:[%s2239 + $0x3a8] sm:$0xff]
      %v2358 = vld [vmem:[%s2239 + $0x3b0] sm:$0xff]
      %v2359 = vld [vmem:[%s2239 + $0x3b8] sm:$0xff]
      %v2360 = vld [vmem:[%s2239 + $0x3c0] sm:$0xff]
      %v2361 = vld [vmem:[%s2239 + $0x3c8] sm:$0xff]
      %v2362 = vld [vmem:[%s2239 + $0x3d0] sm:$0xff]
      %v2363 = vld [vmem:[%s2239 + $0x3d8] sm:$0xff]
      %v2364 = vld [vmem:[%s2239 + $0x3e0] sm:$0xff]
      %v2365 = vld [vmem:[%s2239 + $0x3e8] sm:$0xff]
      %v2366 = vld [vmem:[%s2239 + $0x3f0] sm:$0xff]
      %v2367 = vld [vmem:[%s2239 + $0x3f8] sm:$0xff]
      %v2368 = vld [vmem:[%s2239 + $0x400] sm:$0xff]
      %v2369 = vld [vmem:[%s2239 + $0x408] sm:$0xff]
      %v2370 = vld [vmem:[%s2239 + $0x410] sm:$0xff]
      %v2371 = vld [vmem:[%s2239 + $0x418] sm:$0xff]
      %v2372 = vld [vmem:[%s2239 + $0x420] sm:$0xff]
      %v2373 = vld [vmem:[%s2239 + $0x428] sm:$0xff]
      %v2374 = vld [vmem:[%s2239 + $0x430] sm:$0xff]
      %v2375 = vld [vmem:[%s2239 + $0x438] sm:$0xff]
      %v2376 = vld [vmem:[%s2239 + $0x440] sm:$0xff]
      %v2377 = vld [vmem:[%s2239 + $0x448] sm:$0xff]
      %v2378 = vld [vmem:[%s2239 + $0x450] sm:$0xff]
      %v2379 = vld [vmem:[%s2239 + $0x458] sm:$0xff]
      %v2380 = vld [vmem:[%s2239 + $0x460] sm:$0xff]
      %v2381 = vld [vmem:[%s2239 + $0x468] sm:$0xff]
      %v2382 = vld [vmem:[%s2239 + $0x470] sm:$0xff]
      %v2383 = vld [vmem:[%s2239 + $0x478] sm:$0xff]
      %v2384 = vld [vmem:[%s2239 + $0x480] sm:$0xff]
      %v2385 = vld [vmem:[%s2239 + $0x488] sm:$0xff]
      %v2386 = vld [vmem:[%s2239 + $0x490] sm:$0xff]
      %v2387 = vld [vmem:[%s2239 + $0x498] sm:$0xff]
      %v2388 = vld [vmem:[%s2239 + $0x4a0] sm:$0xff]
      %v2389 = vld [vmem:[%s2239 + $0x4a8] sm:$0xff]
      %v2390 = vld [vmem:[%s2239 + $0x4b0] sm:$0xff]
      %v2391 = vld [vmem:[%s2239 + $0x4b8] sm:$0xff]
      %v2392 = vld [vmem:[%s2239 + $0x4c0] sm:$0xff]
      %v2393 = vld [vmem:[%s2239 + $0x4c8] sm:$0xff]
      %v2394 = vld [vmem:[%s2239 + $0x4d0] sm:$0xff]
      %v2395 = vld [vmem:[%s2239 + $0x4d8] sm:$0xff]
      %v2396 = vld [vmem:[%s2239 + $0x4e0] sm:$0xff]
      %v2397 = vld [vmem:[%s2239 + $0x4e8] sm:$0xff]
      %v2398 = vld [vmem:[%s2239 + $0x4f0] sm:$0xff]
      %v2399 = vld [vmem:[%s2239 + $0x4f8] sm:$0xff]
      %v2400 = vld [vmem:[%s2239 + $0x500] sm:$0xff]
      %v2401 = vld [vmem:[%s2239 + $0x508] sm:$0xff]
      %v2402 = vld [vmem:[%s2239 + $0x510] sm:$0xff]
      %v2403 = vld [vmem:[%s2239 + $0x518] sm:$0xff]
      %v2404 = vld [vmem:[%s2239 + $0x520] sm:$0xff]
      %v2405 = vld [vmem:[%s2239 + $0x528] sm:$0xff]
      %v2406 = vld [vmem:[%s2239 + $0x530] sm:$0xff]
      %v2407 = vld [vmem:[%s2239 + $0x538] sm:$0xff]
      %v2408 = vld [vmem:[%s2239 + $0x540] sm:$0xff]
      %v2409 = vld [vmem:[%s2239 + $0x548] sm:$0xff]
      %v2410 = vld [vmem:[%s2239 + $0x550] sm:$0xff]
      %v2411 = vld [vmem:[%s2239 + $0x558] sm:$0xff]
      %v2412 = vld [vmem:[%s2239 + $0x560] sm:$0xff]
      %v2413 = vld [vmem:[%s2239 + $0x568] sm:$0xff]
      %v2414 = vld [vmem:[%s2239 + $0x570] sm:$0xff]
      %v2415 = vld [vmem:[%s2239 + $0x578] sm:$0xff]
      %v2416 = vld [vmem:[%s2239 + $0x580] sm:$0xff]
      %v2417 = vld [vmem:[%s2239 + $0x588] sm:$0xff]
      %v2418 = vld [vmem:[%s2239 + $0x590] sm:$0xff]
      %v2419 = vld [vmem:[%s2239 + $0x598] sm:$0xff]
      %v2420 = vld [vmem:[%s2239 + $0x5a0] sm:$0xff]
      %v2421 = vld [vmem:[%s2239 + $0x5a8] sm:$0xff]
      %v2422 = vld [vmem:[%s2239 + $0x5b0] sm:$0xff]
      %v2423 = vld [vmem:[%s2239 + $0x5b8] sm:$0xff]
      %v2424 = vld [vmem:[%s2239 + $0x5c0] sm:$0xff]
      %v2425 = vld [vmem:[%s2239 + $0x5c8] sm:$0xff]
      %v2426 = vld [vmem:[%s2239 + $0x5d0] sm:$0xff]
      %v2427 = vld [vmem:[%s2239 + $0x5d8] sm:$0xff]
      %v2428 = vld [vmem:[%s2239 + $0x5e0] sm:$0xff]
      %v2429 = vld [vmem:[%s2239 + $0x5e8] sm:$0xff]
      %v2430 = vld [vmem:[%s2239 + $0x5f0] sm:$0xff]
      %v2431 = vld [vmem:[%s2239 + $0x5f8] sm:$0xff]
      %v2432 = vld [vmem:[%s2239 + $0x600] sm:$0xff]
      %v2433 = vld [vmem:[%s2239 + $0x608] sm:$0xff]
      %v2434 = vld [vmem:[%s2239 + $0x610] sm:$0xff]
      %v2435 = vld [vmem:[%s2239 + $0x618] sm:$0xff]
      %v2436 = vld [vmem:[%s2239 + $0x620] sm:$0xff]
      %v2437 = vld [vmem:[%s2239 + $0x628] sm:$0xff]
      %v2438 = vld [vmem:[%s2239 + $0x630] sm:$0xff]
      %v2439 = vld [vmem:[%s2239 + $0x638] sm:$0xff]
      %v2440 = vld [vmem:[%s2239 + $0x640] sm:$0xff]
      %v2441 = vld [vmem:[%s2239 + $0x648] sm:$0xff]
      %v2442 = vld [vmem:[%s2239 + $0x650] sm:$0xff]
      %v2443 = vld [vmem:[%s2239 + $0x658] sm:$0xff]
      %v2444 = vld [vmem:[%s2239 + $0x660] sm:$0xff]
      %v2445 = vld [vmem:[%s2239 + $0x668] sm:$0xff]
      %v2446 = vld [vmem:[%s2239 + $0x670] sm:$0xff]
      %v2447 = vld [vmem:[%s2239 + $0x678] sm:$0xff]
      %v2448 = vld [vmem:[%s2239 + $0x680] sm:$0xff]
      %v2449 = vld [vmem:[%s2239 + $0x688] sm:$0xff]
      %v2450 = vld [vmem:[%s2239 + $0x690] sm:$0xff]
      %v2451 = vld [vmem:[%s2239 + $0x698] sm:$0xff]
      %v2452 = vld [vmem:[%s2239 + $0x6a0] sm:$0xff]
      %v2453 = vld [vmem:[%s2239 + $0x6a8] sm:$0xff]
      %v2454 = vld [vmem:[%s2239 + $0x6b0] sm:$0xff]
      %v2455 = vld [vmem:[%s2239 + $0x6b8] sm:$0xff]
      %v2456 = vld [vmem:[%s2239 + $0x6c0] sm:$0xff]
      %v2457 = vld [vmem:[%s2239 + $0x6c8] sm:$0xff]
      %v2458 = vld [vmem:[%s2239 + $0x6d0] sm:$0xff]
      %v2459 = vld [vmem:[%s2239 + $0x6d8] sm:$0xff]
      %v2460 = vld [vmem:[%s2239 + $0x6e0] sm:$0xff]
      %v2461 = vld [vmem:[%s2239 + $0x6e8] sm:$0xff]
      %v2462 = vld [vmem:[%s2239 + $0x6f0] sm:$0xff]
      %v2463 = vld [vmem:[%s2239 + $0x6f8] sm:$0xff]
      %v2464 = vld [vmem:[%s2239 + $0x700] sm:$0xff]
      %v2465 = vld [vmem:[%s2239 + $0x708] sm:$0xff]
      %v2466 = vld [vmem:[%s2239 + $0x710] sm:$0xff]
      %v2467 = vld [vmem:[%s2239 + $0x718] sm:$0xff]
      %v2468 = vld [vmem:[%s2239 + $0x720] sm:$0xff]
      %v2469 = vld [vmem:[%s2239 + $0x728] sm:$0xff]
      %v2470 = vld [vmem:[%s2239 + $0x730] sm:$0xff]
      %v2471 = vld [vmem:[%s2239 + $0x738] sm:$0xff]
      %v2472 = vld [vmem:[%s2239 + $0x740] sm:$0xff]
      %v2473 = vld [vmem:[%s2239 + $0x748] sm:$0xff]
      %v2474 = vld [vmem:[%s2239 + $0x750] sm:$0xff]
      %v2475 = vld [vmem:[%s2239 + $0x758] sm:$0xff]
      %v2476 = vld [vmem:[%s2239 + $0x760] sm:$0xff]
      %v2477 = vld [vmem:[%s2239 + $0x768] sm:$0xff]
      %v2478 = vld [vmem:[%s2239 + $0x770] sm:$0xff]
      %v2479 = vld [vmem:[%s2239 + $0x778] sm:$0xff]
      %v2480 = vld [vmem:[%s2239 + $0x780] sm:$0xff]
      %v2481 = vld [vmem:[%s2239 + $0x788] sm:$0xff]
      %v2482 = vld [vmem:[%s2239 + $0x790] sm:$0xff]
      %v2483 = vld [vmem:[%s2239 + $0x798] sm:$0xff]
      %v2484 = vld [vmem:[%s2239 + $0x7a0] sm:$0xff]
      %v2485 = vld [vmem:[%s2239 + $0x7a8] sm:$0xff]
      %v2486 = vld [vmem:[%s2239 + $0x7b0] sm:$0xff]
      %v2487 = vld [vmem:[%s2239 + $0x7b8] sm:$0xff]
      %v2488 = vld [vmem:[%s2239 + $0x7c0] sm:$0xff]
      %v2489 = vld [vmem:[%s2239 + $0x7c8] sm:$0xff]
      %v2490 = vld [vmem:[%s2239 + $0x7d0] sm:$0xff]
      %v2491 = vld [vmem:[%s2239 + $0x7d8] sm:$0xff]
      %v2492 = vld [vmem:[%s2239 + $0x7e0] sm:$0xff]
      %v2493 = vld [vmem:[%s2239 + $0x7e8] sm:$0xff]
      %v2494 = vld [vmem:[%s2239 + $0x7f0] sm:$0xff]
      %v2495 = vld [vmem:[%s2239 + $0x7f8] sm:$0xff]
      %v2496 = vld [vmem:[%s2239 + $0x800] sm:$0xff]
      %v2497 = vld [vmem:[%s2239 + $0x808] sm:$0xff]
      %v2498 = vld [vmem:[%s2239 + $0x810] sm:$0xff]
      %v2499 = vld [vmem:[%s2239 + $0x818] sm:$0xff]
      %v2500 = vld [vmem:[%s2239 + $0x820] sm:$0xff]
      %v2501 = vld [vmem:[%s2239 + $0x828] sm:$0xff]
      %v2502 = vld [vmem:[%s2239 + $0x830] sm:$0xff]
      %v2503 = vld [vmem:[%s2239 + $0x838] sm:$0xff]
      %v2504 = vld [vmem:[%s2239 + $0x840] sm:$0xff]
      %v2505 = vld [vmem:[%s2239 + $0x848] sm:$0xff]
      %v2506 = vld [vmem:[%s2239 + $0x850] sm:$0xff]
      %v2507 = vld [vmem:[%s2239 + $0x858] sm:$0xff]
      %v2508 = vld [vmem:[%s2239 + $0x860] sm:$0xff]
      %v2509 = vld [vmem:[%s2239 + $0x868] sm:$0xff]
      %v2510 = vld [vmem:[%s2239 + $0x870] sm:$0xff]
      %v2511 = vld [vmem:[%s2239 + $0x878] sm:$0xff]
      %v2512 = vld [vmem:[%s2239 + $0x880] sm:$0xff]
      %v2513 = vld [vmem:[%s2239 + $0x888] sm:$0xff]
      %v2514 = vld [vmem:[%s2239 + $0x890] sm:$0xff]
      %v2515 = vld [vmem:[%s2239 + $0x898] sm:$0xff]
      %v2516 = vld [vmem:[%s2239 + $0x8a0] sm:$0xff]
      %v2517 = vld [vmem:[%s2239 + $0x8a8] sm:$0xff]
      %v2518 = vld [vmem:[%s2239 + $0x8b0] sm:$0xff]
      %v2519 = vld [vmem:[%s2239 + $0x8b8] sm:$0xff]
      %v2520 = vld [vmem:[%s2239 + $0x8c0] sm:$0xff]
      %v2521 = vld [vmem:[%s2239 + $0x8c8] sm:$0xff]
      %v2522 = vld [vmem:[%s2239 + $0x8d0] sm:$0xff]
      %v2523 = vld [vmem:[%s2239 + $0x8d8] sm:$0xff]
      %v2524 = vld [vmem:[%s2239 + $0x8e0] sm:$0xff]
      %v2525 = vld [vmem:[%s2239 + $0x8e8] sm:$0xff]
      %v2526 = vld [vmem:[%s2239 + $0x8f0] sm:$0xff]
      %v2527 = vld [vmem:[%s2239 + $0x8f8] sm:$0xff]
      %v2528 = vld [vmem:[%s2239 + $0x900] sm:$0xff]
      %v2529 = vld [vmem:[%s2239 + $0x908] sm:$0xff]
      %v2530 = vld [vmem:[%s2239 + $0x910] sm:$0xff]
      %v2531 = vld [vmem:[%s2239 + $0x918] sm:$0xff]
      %v2532 = vld [vmem:[%s2239 + $0x920] sm:$0xff]
      %v2533 = vld [vmem:[%s2239 + $0x928] sm:$0xff]
      %v2534 = vld [vmem:[%s2239 + $0x930] sm:$0xff]
      %v2535 = vld [vmem:[%s2239 + $0x938] sm:$0xff]
      %v2536 = vld [vmem:[%s2239 + $0x940] sm:$0xff]
      %v2537 = vld [vmem:[%s2239 + $0x948] sm:$0xff]
      %v2538 = vld [vmem:[%s2239 + $0x950] sm:$0xff]
      %v2539 = vld [vmem:[%s2239 + $0x958] sm:$0xff]
      %v2540 = vld [vmem:[%s2239 + $0x960] sm:$0xff]
      %v2541 = vld [vmem:[%s2239 + $0x968] sm:$0xff]
      %v2542 = vld [vmem:[%s2239 + $0x970] sm:$0xff]
      %v2543 = vld [vmem:[%s2239 + $0x978] sm:$0xff]
      %v2544 = vld [vmem:[%s2239 + $0x980] sm:$0xff]
      %v2545 = vld [vmem:[%s2239 + $0x988] sm:$0xff]
      %v2546 = vld [vmem:[%s2239 + $0x990] sm:$0xff]
      %v2547 = vld [vmem:[%s2239 + $0x998] sm:$0xff]
      %v2548 = vld [vmem:[%s2239 + $0x9a0] sm:$0xff]
      %v2549 = vld [vmem:[%s2239 + $0x9a8] sm:$0xff]
      %v2550 = vld [vmem:[%s2239 + $0x9b0] sm:$0xff]
      %v2551 = vld [vmem:[%s2239 + $0x9b8] sm:$0xff]
      %v2552 = vld [vmem:[%s2239 + $0x9c0] sm:$0xff]
      %v2553 = vld [vmem:[%s2239 + $0x9c8] sm:$0xff]
      %v2554 = vld [vmem:[%s2239 + $0x9d0] sm:$0xff]
      %v2555 = vld [vmem:[%s2239 + $0x9d8] sm:$0xff]
      %v2556 = vld [vmem:[%s2239 + $0x9e0] sm:$0xff]
      %v2557 = vld [vmem:[%s2239 + $0x9e8] sm:$0xff]
      %v2558 = vld [vmem:[%s2239 + $0x9f0] sm:$0xff]
      %v2559 = vld [vmem:[%s2239 + $0x9f8] sm:$0xff]
      %v2560 = vld [vmem:[%s2239 + $0xa00] sm:$0xff]
      %v2561 = vld [vmem:[%s2239 + $0xa08] sm:$0xff]
      %v2562 = vld [vmem:[%s2239 + $0xa10] sm:$0xff]
      %v2563 = vld [vmem:[%s2239 + $0xa18] sm:$0xff]
      %v2564 = vld [vmem:[%s2239 + $0xa20] sm:$0xff]
      %v2565 = vld [vmem:[%s2239 + $0xa28] sm:$0xff]
      %v2566 = vld [vmem:[%s2239 + $0xa30] sm:$0xff]
      %v2567 = vld [vmem:[%s2239 + $0xa38] sm:$0xff]
      %v2568 = vld [vmem:[%s2239 + $0xa40] sm:$0xff]
      %v2569 = vld [vmem:[%s2239 + $0xa48] sm:$0xff]
      %v2570 = vld [vmem:[%s2239 + $0xa50] sm:$0xff]
      %v2571 = vld [vmem:[%s2239 + $0xa58] sm:$0xff]
      %v2572 = vld [vmem:[%s2239 + $0xa60] sm:$0xff]
      %v2573 = vld [vmem:[%s2239 + $0xa68] sm:$0xff]
      %v2574 = vld [vmem:[%s2239 + $0xa70] sm:$0xff]
      %v2575 = vld [vmem:[%s2239 + $0xa78] sm:$0xff]
      %v2576 = vld [vmem:[%s2239 + $0xa80] sm:$0xff]
      %v2577 = vld [vmem:[%s2239 + $0xa88] sm:$0xff]
      %v2578 = vld [vmem:[%s2239 + $0xa90] sm:$0xff]
      %v2579 = vld [vmem:[%s2239 + $0xa98] sm:$0xff]
      %v2580 = vld [vmem:[%s2239 + $0xaa0] sm:$0xff]
      %v2581 = vld [vmem:[%s2239 + $0xaa8] sm:$0xff]
      %v2582 = vld [vmem:[%s2239 + $0xab0] sm:$0xff]
      %v2583 = vld [vmem:[%s2239 + $0xab8] sm:$0xff]
      %v2584 = vld [vmem:[%s2239 + $0xac0] sm:$0xff]
      %v2585 = vld [vmem:[%s2239 + $0xac8] sm:$0xff]
      %v2586 = vld [vmem:[%s2239 + $0xad0] sm:$0xff]
      %v2587 = vld [vmem:[%s2239 + $0xad8] sm:$0xff]
      %v2588 = vld [vmem:[%s2239 + $0xae0] sm:$0xff]
      %v2589 = vld [vmem:[%s2239 + $0xae8] sm:$0xff]
      %v2590 = vld [vmem:[%s2239 + $0xaf0] sm:$0xff]
      %v2591 = vld [vmem:[%s2239 + $0xaf8] sm:$0xff]
      %v2592 = vld [vmem:[%s2239 + $0xb00] sm:$0xff]
      %v2593 = vld [vmem:[%s2239 + $0xb08] sm:$0xff]
      %v2594 = vld [vmem:[%s2239 + $0xb10] sm:$0xff]
      %v2595 = vld [vmem:[%s2239 + $0xb18] sm:$0xff]
      %v2596 = vld [vmem:[%s2239 + $0xb20] sm:$0xff]
      %v2597 = vld [vmem:[%s2239 + $0xb28] sm:$0xff]
      %v2598 = vld [vmem:[%s2239 + $0xb30] sm:$0xff]
      %v2599 = vld [vmem:[%s2239 + $0xb38] sm:$0xff]
      %v2600 = vld [vmem:[%s2239 + $0xb40] sm:$0xff]
      %v2601 = vld [vmem:[%s2239 + $0xb48] sm:$0xff]
      %v2602 = vld [vmem:[%s2239 + $0xb50] sm:$0xff]
      %v2603 = vld [vmem:[%s2239 + $0xb58] sm:$0xff]
      %v2604 = vld [vmem:[%s2239 + $0xb60] sm:$0xff]
      %v2605 = vld [vmem:[%s2239 + $0xb68] sm:$0xff]
      %v2606 = vld [vmem:[%s2239 + $0xb70] sm:$0xff]
      %v2607 = vld [vmem:[%s2239 + $0xb78] sm:$0xff]
      %v2608 = vld [vmem:[%s2239 + $0xb80] sm:$0xff]
      %v2609 = vld [vmem:[%s2239 + $0xb88] sm:$0xff]
      %v2610 = vld [vmem:[%s2239 + $0xb90] sm:$0xff]
      %v2611 = vld [vmem:[%s2239 + $0xb98] sm:$0xff]
      %v2612 = vld [vmem:[%s2239 + $0xba0] sm:$0xff]
      %v2613 = vld [vmem:[%s2239 + $0xba8] sm:$0xff]
      %v2614 = vld [vmem:[%s2239 + $0xbb0] sm:$0xff]
      %v2615 = vld [vmem:[%s2239 + $0xbb8] sm:$0xff]
      %v2616 = vld [vmem:[%s2239 + $0xbc0] sm:$0xff]
      %v2617 = vld [vmem:[%s2239 + $0xbc8] sm:$0xff]
      %v2618 = vld [vmem:[%s2239 + $0xbd0] sm:$0xff]
      %v2619 = vld [vmem:[%s2239 + $0xbd8] sm:$0xff]
      %v2620 = vld [vmem:[%s2239 + $0xbe0] sm:$0xff]
      %v2621 = vld [vmem:[%s2239 + $0xbe8] sm:$0xff]
      %v2622 = vld [vmem:[%s2239 + $0xbf0] sm:$0xff]
      %v2623 = vld [vmem:[%s2239 + $0xbf8] sm:$0xff]
      %v2624 = vld [vmem:[%s2239 + $0xc00] sm:$0xff]
      %v2625 = vld [vmem:[%s2239 + $0xc08] sm:$0xff]
      %v2626 = vld [vmem:[%s2239 + $0xc10] sm:$0xff]
      %v2627 = vld [vmem:[%s2239 + $0xc18] sm:$0xff]
      %v2628 = vld [vmem:[%s2239 + $0xc20] sm:$0xff]
      %v2629 = vld [vmem:[%s2239 + $0xc28] sm:$0xff]
      %v2630 = vld [vmem:[%s2239 + $0xc30] sm:$0xff]
      %v2631 = vld [vmem:[%s2239 + $0xc38] sm:$0xff]
      %v2632 = vld [vmem:[%s2239 + $0xc40] sm:$0xff]
      %v2633 = vld [vmem:[%s2239 + $0xc48] sm:$0xff]
      %v2634 = vld [vmem:[%s2239 + $0xc50] sm:$0xff]
      %v2635 = vld [vmem:[%s2239 + $0xc58] sm:$0xff]
      %v2636 = vld [vmem:[%s2239 + $0xc60] sm:$0xff]
      %v2637 = vld [vmem:[%s2239 + $0xc68] sm:$0xff]
      %v2638 = vld [vmem:[%s2239 + $0xc70] sm:$0xff]
      %v2639 = vld [vmem:[%s2239 + $0xc78] sm:$0xff]
      %vm2654 = vcmask 1045504
      %v2655 = vrot.slane %v2225, 2
      %v2656 = vrot.slane %v2232, 2
      %v2657 = vsel %vm2654, %v2655, %v2656
      %v2658 = vrot.slane %v2226, 2
      %v2659 = vrot.slane %v2233, 2
      %v2660 = vsel %vm2654, %v2658, %v2659
      %v2661 = vrot.slane %v2227, 2
      %v2662 = vrot.slane %v2234, 2
      %v2663 = vsel %vm2654, %v2661, %v2662
      %v2664 = vrot.slane %v2228, 2
      %v2665 = vrot.slane %v2235, 2
      %v2666 = vsel %vm2654, %v2664, %v2665
      %v2667 = vrot.slane %v2229, 2
      %v2668 = vrot.slane %v2236, 2
      %v2669 = vsel %vm2654, %v2667, %v2668
      %v2670 = vrot.slane %v2230, 2
      %v2671 = vrot.slane %v2237, 2
      %v2672 = vsel %vm2654, %v2670, %v2671
      %v2673 = vrot.slane %v2231, 2
      %v2674 = vrot.slane %v2238, 2
      %v2675 = vsel %vm2654, %v2673, %v2674
      %v2682 = vsel %vm1083, %v2675, 0
      %2684 = vmatprep.subr.mxu0 %v2301
      %2685 = vmatpush1.msra.mxu0 %v2300
      %2686 = vmatprep.subr.mxu0 %v2297
      %2687 = vmatpush1.msra.mxu0 %v2296
      %2688 = vmatprep.subr.mxu0 %v2293
      %2689 = vmatpush1.msra.mxu0 %v2292
      %2690 = vmatprep.subr.mxu0 %v2289
      %2691 = vmatpush1.msra.mxu0 %v2288
      %2692 = vmatprep.subr.mxu0 %v2285
      %2693 = vmatpush1.msra.mxu0 %v2284
      %2694 = vmatprep.subr.mxu0 %v2281
      %2695 = vmatpush1.msra.mxu0 %v2280
      %2696 = vmatprep.subr.mxu0 %v2277
      %2697 = vmatpush1.msra.mxu0 %v2276
      %2698 = vmatprep.subr.mxu0 %v2273
      %2699 = vmatpush1.msra.mxu0 %v2272
      %2700 = vmatprep.subr.mxu0 %v2269
      %2701 = vmatpush1.msra.mxu0 %v2268
      %2702 = vmatprep.subr.mxu0 %v2265
      %2703 = vmatpush1.msra.mxu0 %v2264
      %2704 = vmatprep.subr.mxu0 %v2261
      %2705 = vmatpush1.msra.mxu0 %v2260
      %2706 = vmatprep.subr.mxu0 %v2257
      %2707 = vmatpush1.msra.mxu0 %v2256
      %2708 = vmatprep.subr.mxu0 %v2253
      %2709 = vmatpush1.msra.mxu0 %v2252
      %2710 = vmatprep.subr.mxu0 %v2249
      %2711 = vmatpush1.msra.mxu0 %v2248
      %2712 = vmatprep.subr.mxu0 %v2245
      %2713 = vmatpush1.msra.mxu0 %v2244
      %2714 = vmatprep.subr.mxu0 %v2241
      %2715 = vmatpush1.msra.mxu0 %v2240
      %2716 = vmatprep.subr.mxu0 %v2365
      %2717 = vmatpush2.msra.mxu0 %v2364
      %2718 = vmatprep.subr.mxu0 %v2361
      %2719 = vmatpush2.msra.mxu0 %v2360
      %2720 = vmatprep.subr.mxu0 %v2357
      %2721 = vmatpush2.msra.mxu0 %v2356
      %2722 = vmatprep.subr.mxu0 %v2353
      %2723 = vmatpush2.msra.mxu0 %v2352
      %2724 = vmatprep.subr.mxu0 %v2349
      %2725 = vmatpush2.msra.mxu0 %v2348
      %2726 = vmatprep.subr.mxu0 %v2345
      %2727 = vmatpush2.msra.mxu0 %v2344
      %2728 = vmatprep.subr.mxu0 %v2341
      %2729 = vmatpush2.msra.mxu0 %v2340
      %2730 = vmatprep.subr.mxu0 %v2337
      %2731 = vmatpush2.msra.mxu0 %v2336
      %2732 = vmatprep.subr.mxu0 %v2333
      %2733 = vmatpush2.msra.mxu0 %v2332
      %2734 = vmatprep.subr.mxu0 %v2329
      %2735 = vmatpush2.msra.mxu0 %v2328
      %2736 = vmatprep.subr.mxu0 %v2325
      %2737 = vmatpush2.msra.mxu0 %v2324
      %2738 = vmatprep.subr.mxu0 %v2321
      %2739 = vmatpush2.msra.mxu0 %v2320
      %2740 = vmatprep.subr.mxu0 %v2317
      %2741 = vmatpush2.msra.mxu0 %v2316
      %2742 = vmatprep.subr.mxu0 %v2313
      %2743 = vmatpush2.msra.mxu0 %v2312
      %2744 = vmatprep.subr.mxu0 %v2309
      %2745 = vmatpush2.msra.mxu0 %v2308
      %2746 = vmatprep.subr.mxu0 %v2305
      %2747 = vmatpush2.msra.mxu0 %v2304
      %2748 = vmatprep.mubr.f32.mxu0 %v2660
      %2749 = vmatmul.mubr.f32.gmra.mxu0 %v2657
      %v2750 = vpop.f32.mrf.mxu0
      %v2751 = vadd.f32 0.0, %v2750
      %v2752 = vpop.f32.mrf.mxu0
      %v2753 = vadd.f32 0.0, %v2752
      %2754 = vdwg.mxu0
      %2755 = vmatprep.subr.mxu0 %v2429
      %2756 = vmatpush1.msra.mxu0 %v2428
      %2757 = vmatprep.subr.mxu0 %v2425
      %2758 = vmatpush1.msra.mxu0 %v2424
      %2759 = vmatprep.subr.mxu0 %v2421
      %2760 = vmatpush1.msra.mxu0 %v2420
      %2761 = vmatprep.subr.mxu0 %v2417
      %2762 = vmatpush1.msra.mxu0 %v2416
      %2763 = vmatprep.subr.mxu0 %v2413
      %2764 = vmatpush1.msra.mxu0 %v2412
      %2765 = vmatprep.subr.mxu0 %v2409
      %2766 = vmatpush1.msra.mxu0 %v2408
      %2767 = vmatprep.subr.mxu0 %v2405
      %2768 = vmatpush1.msra.mxu0 %v2404
      %2769 = vmatprep.subr.mxu0 %v2401
      %2770 = vmatpush1.msra.mxu0 %v2400
      %2771 = vmatprep.subr.mxu0 %v2397
      %2772 = vmatpush1.msra.mxu0 %v2396
      %2773 = vmatprep.subr.mxu0 %v2393
      %2774 = vmatpush1.msra.mxu0 %v2392
      %2775 = vmatprep.subr.mxu0 %v2389
      %2776 = vmatpush1.msra.mxu0 %v2388
      %2777 = vmatprep.subr.mxu0 %v2385
      %2778 = vmatpush1.msra.mxu0 %v2384
      %2779 = vmatprep.subr.mxu0 %v2381
      %2780 = vmatpush1.msra.mxu0 %v2380
      %2781 = vmatprep.subr.mxu0 %v2377
      %2782 = vmatpush1.msra.mxu0 %v2376
      %2783 = vmatprep.subr.mxu0 %v2373
      %2784 = vmatpush1.msra.mxu0 %v2372
      %2785 = vmatprep.subr.mxu0 %v2369
      %2786 = vmatpush1.msra.mxu0 %v2368
      %2787 = vmatprep.subr.mxu0 %v2493
      %2788 = vmatpush2.msra.mxu0 %v2492
      %2789 = vmatprep.subr.mxu0 %v2489
      %2790 = vmatpush2.msra.mxu0 %v2488
      %2791 = vmatprep.subr.mxu0 %v2485
      %2792 = vmatpush2.msra.mxu0 %v2484
      %2793 = vmatprep.subr.mxu0 %v2481
      %2794 = vmatpush2.msra.mxu0 %v2480
      %2795 = vmatprep.subr.mxu0 %v2477
      %2796 = vmatpush2.msra.mxu0 %v2476
      %2797 = vmatprep.subr.mxu0 %v2473
      %2798 = vmatpush2.msra.mxu0 %v2472
      %2799 = vmatprep.subr.mxu0 %v2469
      %2800 = vmatpush2.msra.mxu0 %v2468
      %2801 = vmatprep.subr.mxu0 %v2465
      %2802 = vmatpush2.msra.mxu0 %v2464
      %2803 = vmatprep.subr.mxu0 %v2461
      %2804 = vmatpush2.msra.mxu0 %v2460
      %2805 = vmatprep.subr.mxu0 %v2457
      %2806 = vmatpush2.msra.mxu0 %v2456
      %2807 = vmatprep.subr.mxu0 %v2453
      %2808 = vmatpush2.msra.mxu0 %v2452
      %2809 = vmatprep.subr.mxu0 %v2449
      %2810 = vmatpush2.msra.mxu0 %v2448
      %2811 = vmatprep.subr.mxu0 %v2445
      %2812 = vmatpush2.msra.mxu0 %v2444
      %2813 = vmatprep.subr.mxu0 %v2441
      %2814 = vmatpush2.msra.mxu0 %v2440
      %2815 = vmatprep.subr.mxu0 %v2437
      %2816 = vmatpush2.msra.mxu0 %v2436
      %2817 = vmatprep.subr.mxu0 %v2433
      %2818 = vmatpush2.msra.mxu0 %v2432
      %2819 = vmatprep.mubr.f32.mxu0 %v2666
      %2820 = vmatmul.mubr.f32.gmra.mxu0 %v2663
      %v2821 = vpop.f32.mrf.mxu0
      %v2822 = vadd.f32 %v2751, %v2821
      %v2823 = vpop.f32.mrf.mxu0
      %v2824 = vadd.f32 %v2753, %v2823
      %2825 = vdwg.mxu0
      %2826 = vmatprep.subr.mxu0 %v2557
      %2827 = vmatpush1.msra.mxu0 %v2556
      %2828 = vmatprep.subr.mxu0 %v2553
      %2829 = vmatpush1.msra.mxu0 %v2552
      %2830 = vmatprep.subr.mxu0 %v2549
      %2831 = vmatpush1.msra.mxu0 %v2548
      %2832 = vmatprep.subr.mxu0 %v2545
      %2833 = vmatpush1.msra.mxu0 %v2544
      %2834 = vmatprep.subr.mxu0 %v2541
      %2835 = vmatpush1.msra.mxu0 %v2540
      %2836 = vmatprep.subr.mxu0 %v2537
      %2837 = vmatpush1.msra.mxu0 %v2536
      %2838 = vmatprep.subr.mxu0 %v2533
      %2839 = vmatpush1.msra.mxu0 %v2532
      %2840 = vmatprep.subr.mxu0 %v2529
      %2841 = vmatpush1.msra.mxu0 %v2528
      %2842 = vmatprep.subr.mxu0 %v2525
      %2843 = vmatpush1.msra.mxu0 %v2524
      %2844 = vmatprep.subr.mxu0 %v2521
      %2845 = vmatpush1.msra.mxu0 %v2520
      %2846 = vmatprep.subr.mxu0 %v2517
      %2847 = vmatpush1.msra.mxu0 %v2516
      %2848 = vmatprep.subr.mxu0 %v2513
      %2849 = vmatpush1.msra.mxu0 %v2512
      %2850 = vmatprep.subr.mxu0 %v2509
      %2851 = vmatpush1.msra.mxu0 %v2508
      %2852 = vmatprep.subr.mxu0 %v2505
      %2853 = vmatpush1.msra.mxu0 %v2504
      %2854 = vmatprep.subr.mxu0 %v2501
      %2855 = vmatpush1.msra.mxu0 %v2500
      %2856 = vmatprep.subr.mxu0 %v2497
      %2857 = vmatpush1.msra.mxu0 %v2496
      %2858 = vmatprep.subr.mxu0 %v2621
      %2859 = vmatpush2.msra.mxu0 %v2620
      %2860 = vmatprep.subr.mxu0 %v2617
      %2861 = vmatpush2.msra.mxu0 %v2616
      %2862 = vmatprep.subr.mxu0 %v2613
      %2863 = vmatpush2.msra.mxu0 %v2612
      %2864 = vmatprep.subr.mxu0 %v2609
      %2865 = vmatpush2.msra.mxu0 %v2608
      %2866 = vmatprep.subr.mxu0 %v2605
      %2867 = vmatpush2.msra.mxu0 %v2604
      %2868 = vmatprep.subr.mxu0 %v2601
      %2869 = vmatpush2.msra.mxu0 %v2600
      %2870 = vmatprep.subr.mxu0 %v2597
      %2871 = vmatpush2.msra.mxu0 %v2596
      %2872 = vmatprep.subr.mxu0 %v2593
      %2873 = vmatpush2.msra.mxu0 %v2592
      %2874 = vmatprep.subr.mxu0 %v2589
      %2875 = vmatpush2.msra.mxu0 %v2588
      %2876 = vmatprep.subr.mxu0 %v2585
      %2877 = vmatpush2.msra.mxu0 %v2584
      %2878 = vmatprep.subr.mxu0 %v2581
      %2879 = vmatpush2.msra.mxu0 %v2580
      %2880 = vmatprep.subr.mxu0 %v2577
      %2881 = vmatpush2.msra.mxu0 %v2576
      %2882 = vmatprep.subr.mxu0 %v2573
      %2883 = vmatpush2.msra.mxu0 %v2572
      %2884 = vmatprep.subr.mxu0 %v2569
      %2885 = vmatpush2.msra.mxu0 %v2568
      %2886 = vmatprep.subr.mxu0 %v2565
      %2887 = vmatpush2.msra.mxu0 %v2564
      %2888 = vmatprep.subr.mxu0 %v2561
      %2889 = vmatpush2.msra.mxu0 %v2560
      %2890 = vmatprep.mubr.f32.mxu0 %v2672
      %2891 = vmatmul.mubr.f32.gmra.mxu0 %v2669
      %v2892 = vpop.f32.mrf.mxu0
      %v2893 = vadd.f32 %v2822, %v2892
      %v2894 = vpop.f32.mrf.mxu0
      %v2895 = vadd.f32 %v2824, %v2894
      %2896 = vdwg.mxu0
      %2897 = vmatprep.subr.mxu0 0.0
      %2898 = vmatpush1.msra.mxu0 0.0
      %2899 = vmatprep.subr.mxu0 0.0
      %2900 = vmatpush1.msra.mxu0 0.0
      %2901 = vmatprep.subr.mxu0 0.0
      %2902 = vmatpush1.msra.mxu0 0.0
      %2903 = vmatprep.subr.mxu0 0.0
      %2904 = vmatpush1.msra.mxu0 0.0
      %2905 = vmatprep.subr.mxu0 0.0
      %2906 = vmatpush1.msra.mxu0 0.0
      %2907 = vmatprep.subr.mxu0 0.0
      %2908 = vmatpush1.msra.mxu0 0.0
      %2909 = vmatprep.subr.mxu0 0.0
      %2910 = vmatpush1.msra.mxu0 0.0
      %2911 = vmatprep.subr.mxu0 0.0
      %2912 = vmatpush1.msra.mxu0 0.0
      %2913 = vmatprep.subr.mxu0 0.0
      %2914 = vmatpush1.msra.mxu0 0.0
      %2915 = vmatprep.subr.mxu0 0.0
      %2916 = vmatpush1.msra.mxu0 0.0
      %2917 = vmatprep.subr.mxu0 0.0
      %2918 = vmatpush1.msra.mxu0 0.0
      %2919 = vmatprep.subr.mxu0 0.0
      %2920 = vmatpush1.msra.mxu0 0.0
      %2921 = vmatprep.subr.mxu0 %v2637
      %2922 = vmatpush1.msra.mxu0 %v2636
      %2923 = vmatprep.subr.mxu0 %v2633
      %2924 = vmatpush1.msra.mxu0 %v2632
      %2925 = vmatprep.subr.mxu0 %v2629
      %2926 = vmatpush1.msra.mxu0 %v2628
      %2927 = vmatprep.subr.mxu0 %v2625
      %2928 = vmatpush1.msra.mxu0 %v2624
      %2929 = vmatprep.subr.mxu0 0.0
      %2930 = vmatpush2.msra.mxu0 0.0
      %2931 = vmatprep.subr.mxu0 0.0
      %2932 = vmatpush2.msra.mxu0 0.0
      %2933 = vmatprep.subr.mxu0 0.0
      %2934 = vmatpush2.msra.mxu0 0.0
      %2935 = vmatprep.subr.mxu0 0.0
      %2936 = vmatpush2.msra.mxu0 0.0
      %2937 = vmatprep.subr.mxu0 0.0
      %2938 = vmatpush2.msra.mxu0 0.0
      %2939 = vmatprep.subr.mxu0 0.0
      %2940 = vmatpush2.msra.mxu0 0.0
      %2941 = vmatprep.subr.mxu0 0.0
      %2942 = vmatpush2.msra.mxu0 0.0
      %2943 = vmatprep.subr.mxu0 0.0
      %2944 = vmatpush2.msra.mxu0 0.0
      %2945 = vmatprep.subr.mxu0 0.0
      %2946 = vmatpush2.msra.mxu0 0.0
      %2947 = vmatprep.subr.mxu0 0.0
      %2948 = vmatpush2.msra.mxu0 0.0
      %2949 = vmatprep.subr.mxu0 0.0
      %2950 = vmatpush2.msra.mxu0 0.0
      %2951 = vmatprep.subr.mxu0 0.0
      %2952 = vmatpush2.msra.mxu0 0.0
      %2953 = vmatprep.subr.mxu0 0.0
      %2954 = vmatpush2.msra.mxu0 0.0
      %2955 = vmatprep.subr.mxu0 0.0
      %2956 = vmatpush2.msra.mxu0 0.0
      %2957 = vmatprep.subr.mxu0 0.0
      %2958 = vmatpush2.msra.mxu0 0.0
      %2959 = vmatprep.subr.mxu0 0.0
      %2960 = vmatpush2.msra.mxu0 0.0
      %2961 = vmatprep.mubr.f32.mxu0 0.0
      %2962 = vmatmul.mubr.f32.gmra.mxu0 %v2682
      %v2963 = vpop.f32.mrf.mxu0
      %v2964 = vadd.f32 %v2893, %v2963
      %v2965 = vpop.f32.mrf.mxu0
      %v2966 = vadd.f32 %v2895, %v2965
      %2967 = vdwg.mxu0
      %2968 = vmatprep.subr.mxu0 %v2303
      %2969 = vmatpush1.msra.mxu0 %v2302
      %2970 = vmatprep.subr.mxu0 %v2299
      %2971 = vmatpush1.msra.mxu0 %v2298
      %2972 = vmatprep.subr.mxu0 %v2295
      %2973 = vmatpush1.msra.mxu0 %v2294
      %2974 = vmatprep.subr.mxu0 %v2291
      %2975 = vmatpush1.msra.mxu0 %v2290
      %2976 = vmatprep.subr.mxu0 %v2287
      %2977 = vmatpush1.msra.mxu0 %v2286
      %2978 = vmatprep.subr.mxu0 %v2283
      %2979 = vmatpush1.msra.mxu0 %v2282
      %2980 = vmatprep.subr.mxu0 %v2279
      %2981 = vmatpush1.msra.mxu0 %v2278
      %2982 = vmatprep.subr.mxu0 %v2275
      %2983 = vmatpush1.msra.mxu0 %v2274
      %2984 = vmatprep.subr.mxu0 %v2271
      %2985 = vmatpush1.msra.mxu0 %v2270
      %2986 = vmatprep.subr.mxu0 %v2267
      %2987 = vmatpush1.msra.mxu0 %v2266
      %2988 = vmatprep.subr.mxu0 %v2263
      %2989 = vmatpush1.msra.mxu0 %v2262
      %2990 = vmatprep.subr.mxu0 %v2259
      %2991 = vmatpush1.msra.mxu0 %v2258
      %2992 = vmatprep.subr.mxu0 %v2255
      %2993 = vmatpush1.msra.mxu0 %v2254
      %2994 = vmatprep.subr.mxu0 %v2251
      %2995 = vmatpush1.msra.mxu0 %v2250
      %2996 = vmatprep.subr.mxu0 %v2247
      %2997 = vmatpush1.msra.mxu0 %v2246
      %2998 = vmatprep.subr.mxu0 %v2243
      %2999 = vmatpush1.msra.mxu0 %v2242
      %3000 = vmatprep.subr.mxu0 %v2367
      %3001 = vmatpush2.msra.mxu0 %v2366
      %3002 = vmatprep.subr.mxu0 %v2363
      %3003 = vmatpush2.msra.mxu0 %v2362
      %3004 = vmatprep.subr.mxu0 %v2359
      %3005 = vmatpush2.msra.mxu0 %v2358
      %3006 = vmatprep.subr.mxu0 %v2355
      %3007 = vmatpush2.msra.mxu0 %v2354
      %3008 = vmatprep.subr.mxu0 %v2351
      %3009 = vmatpush2.msra.mxu0 %v2350
      %3010 = vmatprep.subr.mxu0 %v2347
      %3011 = vmatpush2.msra.mxu0 %v2346
      %3012 = vmatprep.subr.mxu0 %v2343
      %3013 = vmatpush2.msra.mxu0 %v2342
      %3014 = vmatprep.subr.mxu0 %v2339
      %3015 = vmatpush2.msra.mxu0 %v2338
      %3016 = vmatprep.subr.mxu0 %v2335
      %3017 = vmatpush2.msra.mxu0 %v2334
      %3018 = vmatprep.subr.mxu0 %v2331
      %3019 = vmatpush2.msra.mxu0 %v2330
      %3020 = vmatprep.subr.mxu0 %v2327
      %3021 = vmatpush2.msra.mxu0 %v2326
      %3022 = vmatprep.subr.mxu0 %v2323
      %3023 = vmatpush2.msra.mxu0 %v2322
      %3024 = vmatprep.subr.mxu0 %v2319
      %3025 = vmatpush2.msra.mxu0 %v2318
      %3026 = vmatprep.subr.mxu0 %v2315
      %3027 = vmatpush2.msra.mxu0 %v2314
      %3028 = vmatprep.subr.mxu0 %v2311
      %3029 = vmatpush2.msra.mxu0 %v2310
      %3030 = vmatprep.subr.mxu0 %v2307
      %3031 = vmatpush2.msra.mxu0 %v2306
      %3032 = vmatprep.mubr.f32.mxu0 %v2660
      %3033 = vmatmul.mubr.f32.gmra.mxu0 %v2657
      %v3034 = vpop.f32.mrf.mxu0
      %v3035 = vadd.f32 0.0, %v3034
      %v3036 = vpop.f32.mrf.mxu0
      %v3037 = vadd.f32 0.0, %v3036
      %3038 = vdwg.mxu0
      %3039 = vmatprep.subr.mxu0 %v2431
      %3040 = vmatpush1.msra.mxu0 %v2430
      %3041 = vmatprep.subr.mxu0 %v2427
      %3042 = vmatpush1.msra.mxu0 %v2426
      %3043 = vmatprep.subr.mxu0 %v2423
      %3044 = vmatpush1.msra.mxu0 %v2422
      %3045 = vmatprep.subr.mxu0 %v2419
      %3046 = vmatpush1.msra.mxu0 %v2418
      %3047 = vmatprep.subr.mxu0 %v2415
      %3048 = vmatpush1.msra.mxu0 %v2414
      %3049 = vmatprep.subr.mxu0 %v2411
      %3050 = vmatpush1.msra.mxu0 %v2410
      %3051 = vmatprep.subr.mxu0 %v2407
      %3052 = vmatpush1.msra.mxu0 %v2406
      %3053 = vmatprep.subr.mxu0 %v2403
      %3054 = vmatpush1.msra.mxu0 %v2402
      %3055 = vmatprep.subr.mxu0 %v2399
      %3056 = vmatpush1.msra.mxu0 %v2398
      %3057 = vmatprep.subr.mxu0 %v2395
      %3058 = vmatpush1.msra.mxu0 %v2394
      %3059 = vmatprep.subr.mxu0 %v2391
      %3060 = vmatpush1.msra.mxu0 %v2390
      %3061 = vmatprep.subr.mxu0 %v2387
      %3062 = vmatpush1.msra.mxu0 %v2386
      %3063 = vmatprep.subr.mxu0 %v2383
      %3064 = vmatpush1.msra.mxu0 %v2382
      %3065 = vmatprep.subr.mxu0 %v2379
      %3066 = vmatpush1.msra.mxu0 %v2378
      %3067 = vmatprep.subr.mxu0 %v2375
      %3068 = vmatpush1.msra.mxu0 %v2374
      %3069 = vmatprep.subr.mxu0 %v2371
      %3070 = vmatpush1.msra.mxu0 %v2370
      %3071 = vmatprep.subr.mxu0 %v2495
      %3072 = vmatpush2.msra.mxu0 %v2494
      %3073 = vmatprep.subr.mxu0 %v2491
      %3074 = vmatpush2.msra.mxu0 %v2490
      %3075 = vmatprep.subr.mxu0 %v2487
      %3076 = vmatpush2.msra.mxu0 %v2486
      %3077 = vmatprep.subr.mxu0 %v2483
      %3078 = vmatpush2.msra.mxu0 %v2482
      %3079 = vmatprep.subr.mxu0 %v2479
      %3080 = vmatpush2.msra.mxu0 %v2478
      %3081 = vmatprep.subr.mxu0 %v2475
      %3082 = vmatpush2.msra.mxu0 %v2474
      %3083 = vmatprep.subr.mxu0 %v2471
      %3084 = vmatpush2.msra.mxu0 %v2470
      %3085 = vmatprep.subr.mxu0 %v2467
      %3086 = vmatpush2.msra.mxu0 %v2466
      %3087 = vmatprep.subr.mxu0 %v2463
      %3088 = vmatpush2.msra.mxu0 %v2462
      %3089 = vmatprep.subr.mxu0 %v2459
      %3090 = vmatpush2.msra.mxu0 %v2458
      %3091 = vmatprep.subr.mxu0 %v2455
      %3092 = vmatpush2.msra.mxu0 %v2454
      %3093 = vmatprep.subr.mxu0 %v2451
      %3094 = vmatpush2.msra.mxu0 %v2450
      %3095 = vmatprep.subr.mxu0 %v2447
      %3096 = vmatpush2.msra.mxu0 %v2446
      %3097 = vmatprep.subr.mxu0 %v2443
      %3098 = vmatpush2.msra.mxu0 %v2442
      %3099 = vmatprep.subr.mxu0 %v2439
      %3100 = vmatpush2.msra.mxu0 %v2438
      %3101 = vmatprep.subr.mxu0 %v2435
      %3102 = vmatpush2.msra.mxu0 %v2434
      %3103 = vmatprep.mubr.f32.mxu0 %v2666
      %3104 = vmatmul.mubr.f32.gmra.mxu0 %v2663
      %v3105 = vpop.f32.mrf.mxu0
      %v3106 = vadd.f32 %v3035, %v3105
      %v3107 = vpop.f32.mrf.mxu0
      %v3108 = vadd.f32 %v3037, %v3107
      %3109 = vdwg.mxu0
      %3110 = vmatprep.subr.mxu0 %v2559
      %3111 = vmatpush1.msra.mxu0 %v2558
      %3112 = vmatprep.subr.mxu0 %v2555
      %3113 = vmatpush1.msra.mxu0 %v2554
      %3114 = vmatprep.subr.mxu0 %v2551
      %3115 = vmatpush1.msra.mxu0 %v2550
      %3116 = vmatprep.subr.mxu0 %v2547
      %3117 = vmatpush1.msra.mxu0 %v2546
      %3118 = vmatprep.subr.mxu0 %v2543
      %3119 = vmatpush1.msra.mxu0 %v2542
      %3120 = vmatprep.subr.mxu0 %v2539
      %3121 = vmatpush1.msra.mxu0 %v2538
      %3122 = vmatprep.subr.mxu0 %v2535
      %3123 = vmatpush1.msra.mxu0 %v2534
      %3124 = vmatprep.subr.mxu0 %v2531
      %3125 = vmatpush1.msra.mxu0 %v2530
      %3126 = vmatprep.subr.mxu0 %v2527
      %3127 = vmatpush1.msra.mxu0 %v2526
      %3128 = vmatprep.subr.mxu0 %v2523
      %3129 = vmatpush1.msra.mxu0 %v2522
      %3130 = vmatprep.subr.mxu0 %v2519
      %3131 = vmatpush1.msra.mxu0 %v2518
      %3132 = vmatprep.subr.mxu0 %v2515
      %3133 = vmatpush1.msra.mxu0 %v2514
      %3134 = vmatprep.subr.mxu0 %v2511
      %3135 = vmatpush1.msra.mxu0 %v2510
      %3136 = vmatprep.subr.mxu0 %v2507
      %3137 = vmatpush1.msra.mxu0 %v2506
      %3138 = vmatprep.subr.mxu0 %v2503
      %3139 = vmatpush1.msra.mxu0 %v2502
      %3140 = vmatprep.subr.mxu0 %v2499
      %3141 = vmatpush1.msra.mxu0 %v2498
      %3142 = vmatprep.subr.mxu0 %v2623
      %3143 = vmatpush2.msra.mxu0 %v2622
      %3144 = vmatprep.subr.mxu0 %v2619
      %3145 = vmatpush2.msra.mxu0 %v2618
      %3146 = vmatprep.subr.mxu0 %v2615
      %3147 = vmatpush2.msra.mxu0 %v2614
      %3148 = vmatprep.subr.mxu0 %v2611
      %3149 = vmatpush2.msra.mxu0 %v2610
      %3150 = vmatprep.subr.mxu0 %v2607
      %3151 = vmatpush2.msra.mxu0 %v2606
      %3152 = vmatprep.subr.mxu0 %v2603
      %3153 = vmatpush2.msra.mxu0 %v2602
      %3154 = vmatprep.subr.mxu0 %v2599
      %3155 = vmatpush2.msra.mxu0 %v2598
      %3156 = vmatprep.subr.mxu0 %v2595
      %3157 = vmatpush2.msra.mxu0 %v2594
      %3158 = vmatprep.subr.mxu0 %v2591
      %3159 = vmatpush2.msra.mxu0 %v2590
      %3160 = vmatprep.subr.mxu0 %v2587
      %3161 = vmatpush2.msra.mxu0 %v2586
      %3162 = vmatprep.subr.mxu0 %v2583
      %3163 = vmatpush2.msra.mxu0 %v2582
      %3164 = vmatprep.subr.mxu0 %v2579
      %3165 = vmatpush2.msra.mxu0 %v2578
      %3166 = vmatprep.subr.mxu0 %v2575
      %3167 = vmatpush2.msra.mxu0 %v2574
      %3168 = vmatprep.subr.mxu0 %v2571
      %3169 = vmatpush2.msra.mxu0 %v2570
      %3170 = vmatprep.subr.mxu0 %v2567
      %3171 = vmatpush2.msra.mxu0 %v2566
      %3172 = vmatprep.subr.mxu0 %v2563
      %3173 = vmatpush2.msra.mxu0 %v2562
      %3174 = vmatprep.mubr.f32.mxu0 %v2672
      %3175 = vmatmul.mubr.f32.gmra.mxu0 %v2669
      %v3176 = vpop.f32.mrf.mxu0
      %v3177 = vadd.f32 %v3106, %v3176
      %v3178 = vpop.f32.mrf.mxu0
      %v3179 = vadd.f32 %v3108, %v3178
      %3180 = vdwg.mxu0
      %3181 = vmatprep.subr.mxu0 0.0
      %3182 = vmatpush1.msra.mxu0 0.0
      %3183 = vmatprep.subr.mxu0 0.0
      %3184 = vmatpush1.msra.mxu0 0.0
      %3185 = vmatprep.subr.mxu0 0.0
      %3186 = vmatpush1.msra.mxu0 0.0
      %3187 = vmatprep.subr.mxu0 0.0
      %3188 = vmatpush1.msra.mxu0 0.0
      %3189 = vmatprep.subr.mxu0 0.0
      %3190 = vmatpush1.msra.mxu0 0.0
      %3191 = vmatprep.subr.mxu0 0.0
      %3192 = vmatpush1.msra.mxu0 0.0
      %3193 = vmatprep.subr.mxu0 0.0
      %3194 = vmatpush1.msra.mxu0 0.0
      %3195 = vmatprep.subr.mxu0 0.0
      %3196 = vmatpush1.msra.mxu0 0.0
      %3197 = vmatprep.subr.mxu0 0.0
      %3198 = vmatpush1.msra.mxu0 0.0
      %3199 = vmatprep.subr.mxu0 0.0
      %3200 = vmatpush1.msra.mxu0 0.0
      %3201 = vmatprep.subr.mxu0 0.0
      %3202 = vmatpush1.msra.mxu0 0.0
      %3203 = vmatprep.subr.mxu0 0.0
      %3204 = vmatpush1.msra.mxu0 0.0
      %3205 = vmatprep.subr.mxu0 %v2639
      %3206 = vmatpush1.msra.mxu0 %v2638
      %3207 = vmatprep.subr.mxu0 %v2635
      %3208 = vmatpush1.msra.mxu0 %v2634
      %3209 = vmatprep.subr.mxu0 %v2631
      %3210 = vmatpush1.msra.mxu0 %v2630
      %3211 = vmatprep.subr.mxu0 %v2627
      %3212 = vmatpush1.msra.mxu0 %v2626
      %3213 = vmatprep.subr.mxu0 0.0
      %3214 = vmatpush2.msra.mxu0 0.0
      %3215 = vmatprep.subr.mxu0 0.0
      %3216 = vmatpush2.msra.mxu0 0.0
      %3217 = vmatprep.subr.mxu0 0.0
      %3218 = vmatpush2.msra.mxu0 0.0
      %3219 = vmatprep.subr.mxu0 0.0
      %3220 = vmatpush2.msra.mxu0 0.0
      %3221 = vmatprep.subr.mxu0 0.0
      %3222 = vmatpush2.msra.mxu0 0.0
      %3223 = vmatprep.subr.mxu0 0.0
      %3224 = vmatpush2.msra.mxu0 0.0
      %3225 = vmatprep.subr.mxu0 0.0
      %3226 = vmatpush2.msra.mxu0 0.0
      %3227 = vmatprep.subr.mxu0 0.0
      %3228 = vmatpush2.msra.mxu0 0.0
      %3229 = vmatprep.subr.mxu0 0.0
      %3230 = vmatpush2.msra.mxu0 0.0
      %3231 = vmatprep.subr.mxu0 0.0
      %3232 = vmatpush2.msra.mxu0 0.0
      %3233 = vmatprep.subr.mxu0 0.0
      %3234 = vmatpush2.msra.mxu0 0.0
      %3235 = vmatprep.subr.mxu0 0.0
      %3236 = vmatpush2.msra.mxu0 0.0
      %3237 = vmatprep.subr.mxu0 0.0
      %3238 = vmatpush2.msra.mxu0 0.0
      %3239 = vmatprep.subr.mxu0 0.0
      %3240 = vmatpush2.msra.mxu0 0.0
      %3241 = vmatprep.subr.mxu0 0.0
      %3242 = vmatpush2.msra.mxu0 0.0
      %3243 = vmatprep.subr.mxu0 0.0
      %3244 = vmatpush2.msra.mxu0 0.0
      %3245 = vmatprep.mubr.f32.mxu0 0.0
      %3246 = vmatmul.mubr.f32.gmra.mxu0 %v2682
      %v3247 = vpop.f32.mrf.mxu0
      %v3248 = vadd.f32 %v3177, %v3247
      %v3249 = vpop.f32.mrf.mxu0
      %v3250 = vadd.f32 %v3179, %v3249
      %3251 = vdwg.mxu0
      %v3252 = vadd.f32 %v1937, %v2964
      %v3253 = vadd.f32 %v1939, %v2966
      %v3254 = vadd.f32 %v2221, %v3248
      %v3255 = vadd.f32 %v2223, %v3250
      %3256 = vst [vmem:[%s210] sm:$0xff] %v3252
      %3257 = vst [vmem:[%s210 + $0x8] sm:$0xff] %v3253
      %3258 = vst [vmem:[%s210 + $0x10] sm:$0xff] %v3254
      %3259 = vst [vmem:[%s210 + $0x18] sm:$0xff] %v3255
      %v3260 = vrot.slane %v3252, 4
      %v3261 = vadd.f32 %v3252, %v3260
      %v3262 = vrot.slane %v3261, 2
      %v3263 = vadd.f32 %v3261, %v3262
      %v3264 = vrot.slane %v3263, 1
      %v3265 = vadd.f32 %v3263, %v3264
      %v3266 = vrot.slane %v3253, 4
      %v3267 = vadd.f32 %v3253, %v3266
      %v3268 = vrot.slane %v3267, 2
      %v3269 = vadd.f32 %v3267, %v3268
      %v3270 = vrot.slane %v3269, 1
      %v3271 = vadd.f32 %v3269, %v3270
      %v3272 = vrot.slane %v3254, 4
      %v3273 = vadd.f32 %v3254, %v3272
      %v3274 = vrot.slane %v3273, 2
      %v3275 = vadd.f32 %v3273, %v3274
      %v3276 = vrot.slane %v3275, 1
      %v3277 = vadd.f32 %v3275, %v3276
      %v3278 = vrot.slane %v3255, 4
      %v3279 = vadd.f32 %v3255, %v3278
      %v3280 = vrot.slane %v3279, 2
      %v3281 = vadd.f32 %v3279, %v3280
      %v3282 = vrot.slane %v3281, 1
      %v3283 = vadd.f32 %v3281, %v3282
      %v3284 = vadd.f32 %v3265, 0.0
      %v3285 = vadd.f32 %v3271, 0.0
      %v3286 = vadd.f32 %v3277, 0.0
      %v3287 = vadd.f32 %v3283, 0.0
      %v3288 = vmul.f32 %v3252, %v3252
      %v3289 = vmul.f32 %v3253, %v3253
      %v3290 = vmul.f32 %v3254, %v3254
      %v3291 = vmul.f32 %v3255, %v3255
      %v3292 = vrot.slane %v3288, 4
      %v3293 = vadd.f32 %v3288, %v3292
      %v3294 = vrot.slane %v3293, 2
      %v3295 = vadd.f32 %v3293, %v3294
      %v3296 = vrot.slane %v3295, 1
      %v3297 = vadd.f32 %v3295, %v3296
      %v3298 = vrot.slane %v3289, 4
      %v3299 = vadd.f32 %v3289, %v3298
      %v3300 = vrot.slane %v3299, 2
      %v3301 = vadd.f32 %v3299, %v3300
      %v3302 = vrot.slane %v3301, 1
      %v3303 = vadd.f32 %v3301, %v3302
      %v3304 = vrot.slane %v3290, 4
      %v3305 = vadd.f32 %v3290, %v3304
      %v3306 = vrot.slane %v3305, 2
      %v3307 = vadd.f32 %v3305, %v3306
      %v3308 = vrot.slane %v3307, 1
      %v3309 = vadd.f32 %v3307, %v3308
      %v3310 = vrot.slane %v3291, 4
      %v3311 = vadd.f32 %v3291, %v3310
      %v3312 = vrot.slane %v3311, 2
      %v3313 = vadd.f32 %v3311, %v3312
      %v3314 = vrot.slane %v3313, 1
      %v3315 = vadd.f32 %v3313, %v3314
      %v3316 = vadd.f32 %v3297, 0.0
      %v3317 = vadd.f32 %v3303, 0.0
      %v3318 = vadd.f32 %v3309, 0.0
      %v3319 = vadd.f32 %v3315, 0.0
      %v3324 = vcombine.low %v3284, %v3285
      %v3325 = vcombine.low %v3286, %v3287
      %v3327 = vunpack.c.l.s4 1966171168
      %v3328 = vunpack.c.0.s8 %v3327
      %v3329 = vlaneseq
      %v3330 = vshrl.u32 %v3329, 7
      %v3331 = vsub.s32 %v3328, %v3330
      %v3332 = vrot.slane %v3324, %v3331
      %v3334 = vunpack.c.l.s4 1966171168
      %v3335 = vunpack.c.0.s8 %v3334
      %v3336 = vlaneseq
      %v3337 = vshrl.u32 %v3336, 7
      %v3338 = vsub.s32 %v3335, %v3337
      %v3339 = vrot.slane %v3325, %v3338
      %v3340 = vcombine.low %v3332, %v3339
      %v3342 = vunpack.c.l.s4 1966171168
      %v3343 = vunpack.c.0.s8 %v3342
      %v3344 = vlaneseq
      %v3345 = vshrl.u32 %v3344, 7
      %v3346 = vsub.s32 %v3343, %v3345
      %v3347 = vrot.slane %v3340, %v3346
      %v3349 = vlaneseq
      %vm3350 = vcmp.ge.s32.totalorder %v3349, 0
      %vm3351 = vcmp.lt.s32.totalorder %v3349, 512
      %vm3352 = vmand %vm3350, %vm3351
      %3353 = vst.msk [vmem:[%s214] sm:$0xf] %vm3352, %v3347
      %v3358 = vcombine.low %v3316, %v3317
      %v3359 = vcombine.low %v3318, %v3319
      %v3361 = vunpack.c.l.s4 1966171168
      %v3362 = vunpack.c.0.s8 %v3361
      %v3363 = vlaneseq
      %v3364 = vshrl.u32 %v3363, 7
      %v3365 = vsub.s32 %v3362, %v3364
      %v3366 = vrot.slane %v3358, %v3365
      %v3368 = vunpack.c.l.s4 1966171168
      %v3369 = vunpack.c.0.s8 %v3368
      %v3370 = vlaneseq
      %v3371 = vshrl.u32 %v3370, 7
      %v3372 = vsub.s32 %v3369, %v3371
      %v3373 = vrot.slane %v3359, %v3372
      %v3374 = vcombine.low %v3366, %v3373
      %v3376 = vunpack.c.l.s4 1966171168
      %v3377 = vunpack.c.0.s8 %v3376
      %v3378 = vlaneseq
      %v3379 = vshrl.u32 %v3378, 7
      %v3380 = vsub.s32 %v3377, %v3379
      %v3381 = vrot.slane %v3374, %v3380
      %3383 = vst.msk [vmem:[%s218] sm:$0xf] %vm3352, %v3381
      %p3384 = scmp.lt.s32.totalorder %s16, 1
      %s3385 = scalar_select %p3384, %s16, 1
      %s3386 = smul.addr %s3385, 4
      %s3387 = smul.addr %s3386, 8
      %s3388 = scalar_lea.vmem %s2, %s3387
      %p3389 = scmp.lt.s32.totalorder %s16, 1
      %s3390 = scalar_select %p3389, %s16, 1
      %s3391 = smul.addr %s3390, 4
      %s3392 = scalar_lea.vmem %s3, %s3391
      %p3393 = scmp.lt.s32.totalorder %s16, 1
      %s3394 = scalar_select %p3393, %s16, 1
      %s3395 = smul.addr %s3394, 4
      %s3396 = scalar_lea.vmem %s4, %s3395
      // Predicated region
      $region29: #{conv_block_forward.6} parent=27 // pred_check
        %p3397 = pneg %p81
      $region30: #{conv_block_forward.6} parent=27 // pred_check_branch
        %3399 = sbr.rel (%p3397) target = $region32
      $region31: #{conv_block_forward.6} parent=27 // pred_region
        _
      $region32: #{conv_block_forward.6} parent=27 // pred_fallthru
        _
      // Predicated region
      $region33: #{conv_block_forward.6} parent=27 // pred_check
        %p3400 = pneg %p107
      $region34: #{conv_block_forward.6} parent=27 // pred_check_branch
        %3402 = sbr.rel (%p3400) target = $region36
      $region35: #{conv_block_forward.6} parent=27 // pred_region
        _
      $region36: #{conv_block_forward.6} parent=27 // pred_fallthru
        _
      // Predicated region
      $region37: #{conv_block_forward.6} parent=27 // pred_check
        %p3403 = pneg %p133
      $region38: #{conv_block_forward.6} parent=27 // pred_check_branch
        %3405 = sbr.rel (%p3403) target = $region40
      $region39: #{conv_block_forward.6} parent=27 // pred_region
        _
      $region40: #{conv_block_forward.6} parent=27 // pred_fallthru
        _
    $region28: #{conv_block_forward.6} parent=5 // pred_fallthru
      _
    %p3406 = scmp.le.s32.totalorder 2, %s11
    // Predicated region
    $region41: #{conv_block_forward.6} parent=5 // pred_check
      %p3407 = pneg %p3406
    $region42: #{conv_block_forward.6} parent=5 // pred_check_branch
      %3409 = sbr.rel (%p3407) target = $region44
    $region43: #{conv_block_forward.6} parent=5 // pred_region
      %s3410 = ssub.s32 %s11, 2
      // Predicated region
      $region45: #{conv_block_forward.6} parent=43 // pred_check
        %p3411 = pneg %p87
      $region46: #{conv_block_forward.6} parent=43 // pred_check_branch
        %3413 = sbr.rel (%p3411) target = $region48
      $region47: #{conv_block_forward.6} parent=43 // pred_region
        %p3414 = scmp.lt.s32.totalorder %s17, 1
        %s3415 = scalar_select %p3414, %s17, 1
        %s3416 = smul.addr %s3415, 4
        %s3417 = smul.addr %s3416, 8
        %s3418 = scalar_lea.vmem %s2, %s3417
      $region48: #{conv_block_forward.6} parent=43 // pred_fallthru
        _
      // Predicated region
      $region49: #{conv_block_forward.6} parent=43 // pred_check
        %p3419 = pneg %p113
      $region50: #{conv_block_forward.6} parent=43 // pred_check_branch
        %3421 = sbr.rel (%p3419) target = $region52
      $region51: #{conv_block_forward.6} parent=43 // pred_region
        %p3422 = scmp.lt.s32.totalorder %s17, 1
        %s3423 = scalar_select %p3422, %s17, 1
        %s3424 = smul.addr %s3423, 4
        %s3425 = scalar_lea.vmem %s3, %s3424
      $region52: #{conv_block_forward.6} parent=43 // pred_fallthru
        _
      // Predicated region
      $region53: #{conv_block_forward.6} parent=43 // pred_check
        %p3426 = pneg %p139
      $region54: #{conv_block_forward.6} parent=43 // pred_check_branch
        %3428 = sbr.rel (%p3426) target = $region56
      $region55: #{conv_block_forward.6} parent=43 // pred_region
        %p3429 = scmp.lt.s32.totalorder %s17, 1
        %s3430 = scalar_select %p3429, %s17, 1
        %s3431 = smul.addr %s3430, 4
        %s3432 = scalar_lea.vmem %s4, %s3431
      $region56: #{conv_block_forward.6} parent=43 // pred_fallthru
        _
    $region44: #{conv_block_forward.6} parent=5 // pred_fallthru
      _
  $region6: #{conv_block_forward.6} parent=0 // loop_footer
    %s15 = sadd.s32 1, %s11
  $region7: #{conv_block_forward.6} parent=0 // loop_footer_branch
    %10 = sbr.rel target = $region3
  $region8: #{conv_block_forward.6} parent=0 // loop_exit
    _

</llo_original>
